<compile_context>
chip_gen: v6e
topology: v6e:2x2x1
jax: 0.10.0
libtpu: 0.0.40
codegen_flags: <defaults>
</compile_context>

<pallas_src>
import jax
import jax.numpy as jnp
from jax.experimental import pallas as pl
from jax.experimental.pallas import tpu as pltpu

EPS = 1e-5
LANE = 128

# Pyramid config mimicking the resnet50 hyperpixel structure (nbottlenecks[-3:] = [4, 6, 3]):
#   (n_layers_in_level, channels, spatial_size)
LEVELS = [
    (4, 32, 8),    # "layer2"
    (6, 64, 4),    # "layer3"
    (3, 128, 2),   # "layer4"
]
HEAD_HIDDEN = 32


def _round_up(n, m):
    return ((n + m - 1) // m) * m


# --------------------- kernel 1: fused conv chain + L2 normalization ---------------------

def _make_conv_chain_kernel(nl, C):
    def kernel(x_ref, w0_ref, wr_ref, o_ref):
        # x_ref:  (4, TN)          bf16 : 3 image rows + ones (bias) row, one 128-lane tile
        # w0_ref: (C+1, 4)         bf16 : first 1x1 conv (bias folded in col 3, ones-row kept)
        # wr_ref: (nl-1, C+1, C+1) bf16 : remaining 1x1 convs (bias in col C, row C = e_C)
        # o_ref:  (nl, C, TN)      bf16 : per-layer features, L2-normalized over channels
        x = x_ref[...]
        for k in range(nl):
            w = w0_ref[...] if k == 0 else wr_ref[k - 1]
            y = jax.lax.dot_general(w, x, (((1,), (0,)), ((), ())),
                                    preferred_element_type=jnp.float32)   # (C+1, TN) f32
            a = jnp.maximum(y, 0.0)                                       # ones-row stays 1.0
            x = a.astype(jnp.bfloat16)                                    # chain stays bf16
            f = a[:C]
            inv = jax.lax.rsqrt(jnp.sum(f * f, axis=0, keepdims=True) + EPS)   # EUP
            o_ref[k] = (f * inv).astype(jnp.bfloat16)
    return kernel


def conv_chain(x_aug, w0, wr, nl, C):
    """x_aug: (4, Npad) bf16 (Npad % 128 == 0) -> (nl, C, Npad) bf16 normalized features."""
    _, Np = x_aug.shape
    return pl.pallas_call(
        _make_conv_chain_kernel(nl, C),
        out_shape=jax.ShapeDtypeStruct((nl, C, Np), jnp.bfloat16),
        grid=(Np // LANE,),
        in_specs=[
            pl.BlockSpec((4, LANE), lambda t: (0, t)),
            pl.BlockSpec((C + 1, 4), lambda t: (0, 0)),
            pl.BlockSpec((nl - 1, C + 1, C + 1), lambda t: (0, 0, 0)),
        ],
        out_specs=pl.BlockSpec((nl, C, LANE), lambda t: (0, 0, t)),
        compiler_params=pltpu.CompilerParams(dimension_semantics=("parallel",)),
    )(x_aug, w0, wr)


# ---------------- kernel 2: fused masked correlation + mean pool (all shots) ----------------

def _make_corr_pool_kernel(B, shot, nl, Lq, Ls):
    inv_shot = 1.0 / float(shot)

    def kernel(f_ref, m_ref, o_ref):
        # f_ref: (nl, C, Npad) bf16 : L2-normalized features, image-major lane packing
        # m_ref: (B, shot, 1, Ls) f32 : continuous support masks in [0, 1]
        # o_ref: (B, nl, Lq) f32 : pooled correlation, shot-averaged
        per_batch = []
        for b in range(B):
            q = f_ref[:, :, b * Lq:(b + 1) * Lq]              # (nl, C, Lq) static lane slice
            acc = jnp.zeros((nl, Lq), jnp.float32)
            for i in range(shot):
                m = m_ref[b, i]                               # (1, Ls) f32
                # mask_feature semantics: keep columns where mask >= mean(mask[mask>0]);
                # positive mask scaling cancels under L2 normalization, so only sel matters.
                pos = (m > 0.0).astype(jnp.float32)
                cnt = jnp.sum(pos, axis=-1, keepdims=True)
                mean_val = jnp.sum(m * pos, axis=-1, keepdims=True) / jnp.maximum(cnt, 1.0)
                sel = jnp.where(jnp.logical_and(m >= mean_val, cnt > 0.0), 1.0, 0.0)
                scale = inv_shot / jnp.maximum(jnp.sum(sel, axis=-1, keepdims=True), 1.0)

                si = B + b * shot + i                         # support image column block
                s = f_ref[:, :, si * Ls:(si + 1) * Ls]        # (nl, C, Ls) static lane slice
                s = s * sel.astype(jnp.bfloat16)              # zero unselected support cols

                cors = []
                for l in range(nl):
                    c = jax.lax.dot_general(                  # s^T q on the MXU (bf16 -> f32)
                        s[l], q[l], (((0,), (0,)), ((), ())),
                        preferred_element_type=jnp.float32)   # (Ls, Lq)
                    cors.append(jnp.maximum(c, 0.0))
                corr = jnp.stack(cors, axis=0)                # (nl, Ls, Lq), VMEM/vreg only
                acc = acc + jnp.sum(corr, axis=1) * scale     # masked mean over support cols
            per_batch.append(acc)
        o_ref[...] = jnp.stack(per_batch, axis=0)             # single (B, nl, Lq) store
    return kernel


def corr_pool(feats, masks, B, shot, L):
    """feats: (nl, C, Npad) bf16, masks: (B, shot, 1, L) f32 -> pooled (B, nl, L) f32."""
    nl, C, Np = feats.shape
    return pl.pallas_call(
        _make_corr_pool_kernel(B, shot, nl, L, L),
        out_shape=jax.ShapeDtypeStruct((B, nl, L), jnp.float32),
        grid=(1,),
        in_specs=[
            pl.BlockSpec((nl, C, Np), lambda i: (0, 0, 0)),
            pl.BlockSpec((B, shot, 1, L), lambda i: (0, 0, 0, 0)),
        ],
        out_specs=pl.BlockSpec((B, nl, L), lambda i: (0, 0, 0)),
        compiler_params=pltpu.CompilerParams(dimension_semantics=("arbitrary",)),
    )(feats, masks)


# --------------------------- kernel 3: 2-layer 1x1-conv decoder head ---------------------------

def _head_kernel(f_ref, w1_ref, w2_ref, o_ref):
    # f_ref: (F+1, TN) bf16 (last row = ones), w1_ref: (H+1, F+1) bf16, w2_ref: (2, H+1) bf16
    h = jnp.maximum(
        jax.lax.dot_general(w1_ref[...], f_ref[...], (((1,), (0,)), ((), ())),
                            preferred_element_type=jnp.float32), 0.0)        # (H+1, TN)
    o_ref[...] = jax.lax.dot_general(w2_ref[...], h.astype(jnp.bfloat16),
                                     (((1,), (0,)), ((), ())),
                                     preferred_element_type=jnp.float32)      # (2, TN)


def head(flat_aug, w1, w2):
    """flat_aug: (F+1, Npad) bf16 -> 2-channel logits (2, Npad) f32, lane-dense."""
    Fa, Np = flat_aug.shape
    Ha = w1.shape[0]
    return pl.pallas_call(
        _head_kernel,
        out_shape=jax.ShapeDtypeStruct((2, Np), jnp.float32),
        grid=(Np // LANE,),
        in_specs=[
            pl.BlockSpec((Fa, LANE), lambda t: (0, t)),
            pl.BlockSpec((Ha, Fa), lambda t: (0, 0)),
            pl.BlockSpec((2, Ha), lambda t: (0, 0)),
        ],
        out_specs=pl.BlockSpec((2, LANE), lambda t: (0, t)),
        compiler_params=pltpu.CompilerParams(dimension_semantics=("parallel",)),
    )(flat_aug, w1, w2)


# --------------------------------------- JAX glue ---------------------------------------

def bilinear_ac(x, out_h, out_w):
    """Bilinear resize with align_corners=True.  x: (B, C, H, W)."""
    B, C, H, W = x.shape
    ys = jnp.zeros((out_h,), jnp.float32) if H == 1 else jnp.linspace(0.0, H - 1.0, out_h)
    xs = jnp.zeros((out_w,), jnp.float32) if W == 1 else jnp.linspace(0.0, W - 1.0, out_w)
    y0 = jnp.clip(jnp.floor(ys).astype(jnp.int32), 0, H - 1)
    x0 = jnp.clip(jnp.floor(xs).astype(jnp.int32), 0, W - 1)
    y1 = jnp.minimum(y0 + 1, H - 1)
    x1 = jnp.minimum(x0 + 1, W - 1)
    wy = (ys - y0.astype(jnp.float32))[None, None, :, None]
    wx = (xs - x0.astype(jnp.float32))[None, None, None, :]
    top = x[:, :, y0, :]
    bot = x[:, :, y1, :]
    a = top[:, :, :, x0]
    b = top[:, :, :, x1]
    c = bot[:, :, :, x0]
    d = bot[:, :, :, x1]
    return a * (1 - wy) * (1 - wx) + b * (1 - wy) * wx + c * wy * (1 - wx) + d * wy * wx


def avg_pool_to(img, S):
    B, C, H, W = img.shape
    fh, fw = H // S, W // S
    return img.reshape(B, C, S, fh, S, fw).mean(axis=(3, 5))


def extract_feats(all_imgs, backbone_params):
    """Synthetic multi-scale feature pyramid (stand-in for resnet50 hyperpixels).

    all_imgs: (n_imgs, 3, H, W) -> per level one (nl, C, Npad) bf16 slab of normalized
    features (one fused Pallas call per level; all images packed on the lane axis).
    """
    n_imgs = all_imgs.shape[0]
    feats = []
    for (nl, C, S), (w0, wr) in zip(LEVELS, backbone_params):
        L = S * S
        N = n_imgs * L
        Np = _round_up(N, LANE)
        x = avg_pool_to(all_imgs, S).reshape(n_imgs, 3, L)
        x = jnp.transpose(x, (1, 0, 2)).reshape(3, N)                    # image-major lanes
        x_aug = jnp.concatenate([x, jnp.ones((1, N), jnp.float32)], axis=0)
        if Np != N:
            x_aug = jnp.pad(x_aug, ((0, 0), (0, Np - N)))
        feats.append(conv_chain(x_aug.astype(jnp.bfloat16), w0, wr, nl, C))
    return feats


def build_level_masks(support_mask):
    """mask_feature's chained bilinear resampling of the masks -> per-level (B, shot, 1, L)."""
    B, shot = support_mask.shape[0], support_mask.shape[1]
    H, W = support_mask.shape[-2], support_mask.shape[-1]
    m = support_mask.reshape(B * shot, 1, H, W).astype(jnp.float32)
    init = LEVELS[0][2] * 2                                   # initSize = 2 * first feat spatial
    m = bilinear_ac(m, init, init)
    masks = []
    for (_, _, S) in LEVELS:
        if m.shape[-1] != S:
            m = bilinear_ac(m, S, S)
        masks.append(m.reshape(B, shot, 1, S * S))
    return masks


def init_params(key):
    backbone = []
    for (nl, C, S) in LEVELS:
        Ca = C + 1
        key, k0 = jax.random.split(key)
        w0 = jnp.zeros((Ca, 4), jnp.float32)
        w0 = w0.at[:C, :3].set(jax.random.normal(k0, (C, 3), jnp.float32) * (1.0 / (3.0 ** 0.5)))
        w0 = w0.at[C, 3].set(1.0)                              # preserve the ones (bias) row
        wr = jnp.zeros((nl - 1, Ca, Ca), jnp.float32)
        for k in range(nl - 1):
            key, kk = jax.random.split(key)
            wr = wr.at[k, :C, :C].set(
                jax.random.normal(kk, (C, C), jnp.float32) * (1.0 / (float(C) ** 0.5)))
            wr = wr.at[k, C, C].set(1.0)
        backbone.append((w0.astype(jnp.bfloat16), wr.astype(jnp.bfloat16)))

    F_tot = sum(nl for nl, _, _ in LEVELS)
    H = HEAD_HIDDEN
    key, k1, k2 = jax.random.split(key, 3)
    w1 = jnp.zeros((H + 1, F_tot + 1), jnp.float32)
    w1 = w1.at[:H, :F_tot].set(
        jax.random.normal(k1, (H, F_tot), jnp.float32) * (1.0 / (float(F_tot) ** 0.5)))
    w1 = w1.at[H, F_tot].set(1.0)
    w2 = jnp.zeros((2, H + 1), jnp.float32)
    w2 = w2.at[:, :H].set(jax.random.normal(k2, (2, H), jnp.float32) * (1.0 / (float(H) ** 0.5)))
    return {'backbone': backbone, 'head': (w1.astype(jnp.bfloat16), w2.astype(jnp.bfloat16))}


def forward(params, query_img, support_img, support_mask, gt=None):
    B = query_img.shape[0]
    shot = support_img.shape[1]
    Himg, Wimg = support_img.shape[-2], support_img.shape[-1]

    # One backbone pass over query + all support images (3 Pallas launches total).
    all_imgs = jnp.concatenate(
        [query_img, support_img.reshape(B * shot, 3, Himg, Wimg)], axis=0)
    feats = extract_feats(all_imgs, params['backbone'])

    # Per-level continuous support masks for every (b, shot).
    level_masks = build_level_masks(support_mask)

    # Fused masked correlation + mean pool, all shots accumulated in-kernel (3 launches).
    pooled = []
    for lvl, (nl, C, S) in enumerate(LEVELS):
        pooled.append(corr_pool(feats[lvl], level_masks[lvl], B, shot, S * S))

    # Upsample coarse levels to the finest query resolution, concat coarse->fine (stack_ids order).
    S0 = LEVELS[0][2]
    L0 = S0 * S0
    maps = []
    for (nl, _, S), p in zip(LEVELS, pooled):
        pm = p.reshape(B, nl, S, S)
        if S != S0:
            pm = bilinear_ac(pm, S0, S0)
        maps.append(pm)
    hyper = jnp.concatenate(list(reversed(maps)), axis=1)                 # (B, 13, S0, S0)
    F_tot = hyper.shape[1]

    # Lane-dense head input: (F+1, B*L0) with a ones row for the folded biases (1 launch).
    N = B * L0
    Np = _round_up(N, LANE)
    flat = jnp.transpose(hyper.reshape(B, F_tot, L0), (1, 0, 2)).reshape(F_tot, N)
    flat_aug = jnp.concatenate([flat, jnp.ones((1, N), jnp.float32)], axis=0)
    if Np != N:
        flat_aug = jnp.pad(flat_aug, ((0, 0), (0, Np - N)))
    logits = head(flat_aug.astype(jnp.bfloat16), *params['head'])[:, :N]  # (2, B*L0)
    logits = jnp.transpose(logits.reshape(2, B, S0, S0), (1, 0, 2, 3))    # (B, 2, S0, S0)

    # use_original_imgsize == False -> interpolate to support image size (bilinear, align_corners).
    logit_mask = bilinear_ac(logits, Himg, Wimg)

    loss = None
    if gt is not None:
        lm = logit_mask.reshape(B, 2, -1)
        g = gt.reshape(B, -1).astype(jnp.int32)
        logp = jax.nn.log_softmax(lm, axis=1)
        loss = -jnp.mean(jnp.take_along_axis(logp, g[:, None, :], axis=1))
    return logit_mask, loss

# Note: eps sits inside the rsqrt (vs added to the norm in the reference) -- numerically
# negligible for non-degenerate columns.  An all-zero support mask gives cnt=0 -> sel=0 ->
# pooled contribution 0, matching the reference's zero-support fallback.


if __name__ == "__main__":
    key = jax.random.PRNGKey(0)
    k1, k2, k3, k4, kp = jax.random.split(key, 5)

    B, shot, Himg = 2, 1, 32
    query_img = jax.random.normal(k1, (B, 3, Himg, Himg), jnp.float32)
    support_img = jax.random.normal(k2, (B, shot, 3, Himg, Himg), jnp.float32)
    support_mask = (jax.random.uniform(k3, (B, shot, Himg, Himg)) > 0.5).astype(jnp.float32)
    gt = (jax.random.uniform(k4, (B, Himg, Himg)) > 0.5).astype(jnp.int32)

    params = init_params(kp)
    fwd = jax.jit(forward)
    logit_mask, loss = fwd(params, query_img, support_img, support_mask, gt)
    jax.block_until_ready((logit_mask, loss))

    assert logit_mask.shape == (B, 2, Himg, Himg)
    assert bool(jnp.isfinite(logit_mask).all()) and bool(jnp.isfinite(loss))
    print("KERNEL_OK")
</pallas_src>

<mosaic_0001>
module attributes {stable_mosaic.version = 11 : i64} {
  func.func @kernel(%arg0: i32, %arg1: memref<4x128xbf16, #tpu.memory_space<vmem>>, %arg2: memref<33x4xbf16, #tpu.memory_space<vmem>>, %arg3: memref<3x33x33xbf16, #tpu.memory_space<vmem>>, %arg4: memref<4x32x128xbf16, #tpu.memory_space<vmem>>) attributes {dimension_semantics = [#tpu.dimension_semantics<parallel>], iteration_bounds = array<i64: 2>, scalar_prefetch = 0 : i64, scratch_operands = 0 : i64, tpu.core_type = #tpu.core_type<tc>, window_params = [{transform_indices = @transform_0, window_bounds = array<i64: 4, 128>}, {pipeline_mode = #tpu.pipeline_mode<synchronous>, transform_indices = @transform_1, window_bounds = array<i64: 33, 4>}, {pipeline_mode = #tpu.pipeline_mode<synchronous>, transform_indices = @transform_2, window_bounds = array<i64: 3, 33, 33>}, {transform_indices = @transform_3, window_bounds = array<i64: 4, 32, 128>}]} {
    %c0 = arith.constant 0 : index
    %c0_0 = arith.constant 0 : index
    %0 = vector.load %arg1[%c0, %c0_0] : memref<4x128xbf16, #tpu.memory_space<vmem>>, vector<4x128xbf16>
    %c0_1 = arith.constant 0 : index
    %c0_2 = arith.constant 0 : index
    %1 = vector.load %arg2[%c0_1, %c0_2] : memref<33x4xbf16, #tpu.memory_space<vmem>>, vector<33x4xbf16>
    %cst = arith.constant dense<0.000000e+00> : vector<33x128xf32>
    %2 = tpu.matmul %1, %0, %cst {dimension_numbers = #tpu.dot_dimension_numbers<[1], [0], [0], [1], [0, 0, 1, 1], [], []>} : vector<33x4xbf16>, vector<4x128xbf16>, vector<33x128xf32> -> vector<33x128xf32>
    %cst_3 = arith.constant 0.000000e+00 : f32
    %3 = vector.broadcast %cst_3 : f32 to vector<33x128xf32>
    %4 = arith.maximumf %2, %3 : vector<33x128xf32>
    %5 = arith.truncf %4 : vector<33x128xf32> to vector<33x128xbf16>
    %6 = vector.extract_strided_slice %4 {offsets = [0, 0], sizes = [32, 128], strides = [1, 1]} : vector<33x128xf32> to vector<32x128xf32>
    %7 = arith.mulf %6, %6 : vector<32x128xf32>
    %cst_4 = arith.constant dense<0.000000e+00> : vector<128xf32>
    %8 = vector.multi_reduction <add>, %7, %cst_4 [0] : vector<32x128xf32> to vector<128xf32>
    %9 = vector.shape_cast %8 : vector<128xf32> to vector<1x128xf32>
    %cst_5 = arith.constant 9.99999974E-6 : f32
    %10 = vector.broadcast %cst_5 : f32 to vector<1x128xf32>
    %11 = arith.addf %9, %10 : vector<1x128xf32>
    %12 = math.rsqrt %11 : vector<1x128xf32>
    %13 = vector.broadcast %12 : vector<1x128xf32> to vector<32x128xf32>
    %14 = arith.mulf %6, %13 : vector<32x128xf32>
    %15 = arith.truncf %14 : vector<32x128xf32> to vector<32x128xbf16>
    %c0_6 = arith.constant 0 : index
    %c0_7 = arith.constant 0 : index
    %c0_8 = arith.constant 0 : index
    %16 = vector.load %arg4[%c0_6, %c0_7, %c0_8] : memref<4x32x128xbf16, #tpu.memory_space<vmem>>, vector<1x32x128xbf16>
    %17 = vector.shape_cast %16 : vector<1x32x128xbf16> to vector<32x128xbf16>
    %18 = vector.shape_cast %15 : vector<32x128xbf16> to vector<1x32x128xbf16>
    tpu.vector_store %arg4[%c0_6, %c0_7, %c0_8], %18 {strides = array<i32>} : memref<4x32x128xbf16, #tpu.memory_space<vmem>>, vector<1x32x128xbf16>,
    %c0_9 = arith.constant 0 : index
    %c0_10 = arith.constant 0 : index
    %c0_11 = arith.constant 0 : index
    %19 = vector.load %arg3[%c0_9, %c0_10, %c0_11] : memref<3x33x33xbf16, #tpu.memory_space<vmem>>, vector<1x33x33xbf16>
    %20 = vector.shape_cast %19 : vector<1x33x33xbf16> to vector<33x33xbf16>
    %cst_12 = arith.constant dense<0.000000e+00> : vector<33x128xf32>
    %21 = tpu.matmul %20, %5, %cst_12 {dimension_numbers = #tpu.dot_dimension_numbers<[1], [0], [0], [1], [0, 0, 1, 1], [], []>} : vector<33x33xbf16>, vector<33x128xbf16>, vector<33x128xf32> -> vector<33x128xf32>
    %cst_13 = arith.constant 0.000000e+00 : f32
    %22 = vector.broadcast %cst_13 : f32 to vector<33x128xf32>
    %23 = arith.maximumf %21, %22 : vector<33x128xf32>
    %24 = arith.truncf %23 : vector<33x128xf32> to vector<33x128xbf16>
    %25 = vector.extract_strided_slice %23 {offsets = [0, 0], sizes = [32, 128], strides = [1, 1]} : vector<33x128xf32> to vector<32x128xf32>
    %26 = arith.mulf %25, %25 : vector<32x128xf32>
    %cst_14 = arith.constant dense<0.000000e+00> : vector<128xf32>
    %27 = vector.multi_reduction <add>, %26, %cst_14 [0] : vector<32x128xf32> to vector<128xf32>
    %28 = vector.shape_cast %27 : vector<128xf32> to vector<1x128xf32>
    %cst_15 = arith.constant 9.99999974E-6 : f32
    %29 = vector.broadcast %cst_15 : f32 to vector<1x128xf32>
    %30 = arith.addf %28, %29 : vector<1x128xf32>
    %31 = math.rsqrt %30 : vector<1x128xf32>
    %32 = vector.broadcast %31 : vector<1x128xf32> to vector<32x128xf32>
    %33 = arith.mulf %25, %32 : vector<32x128xf32>
    %34 = arith.truncf %33 : vector<32x128xf32> to vector<32x128xbf16>
    %c1 = arith.constant 1 : index
    %c0_16 = arith.constant 0 : index
    %c0_17 = arith.constant 0 : index
    %35 = vector.load %arg4[%c1, %c0_16, %c0_17] : memref<4x32x128xbf16, #tpu.memory_space<vmem>>, vector<1x32x128xbf16>
    %36 = vector.shape_cast %35 : vector<1x32x128xbf16> to vector<32x128xbf16>
    %37 = vector.shape_cast %34 : vector<32x128xbf16> to vector<1x32x128xbf16>
    tpu.vector_store %arg4[%c1, %c0_16, %c0_17], %37 {strides = array<i32>} : memref<4x32x128xbf16, #tpu.memory_space<vmem>>, vector<1x32x128xbf16>,
    %c1_18 = arith.constant 1 : index
    %c0_19 = arith.constant 0 : index
    %c0_20 = arith.constant 0 : index
    %38 = vector.load %arg3[%c1_18, %c0_19, %c0_20] : memref<3x33x33xbf16, #tpu.memory_space<vmem>>, vector<1x33x33xbf16>
    %39 = vector.shape_cast %38 : vector<1x33x33xbf16> to vector<33x33xbf16>
    %cst_21 = arith.constant dense<0.000000e+00> : vector<33x128xf32>
    %40 = tpu.matmul %39, %24, %cst_21 {dimension_numbers = #tpu.dot_dimension_numbers<[1], [0], [0], [1], [0, 0, 1, 1], [], []>} : vector<33x33xbf16>, vector<33x128xbf16>, vector<33x128xf32> -> vector<33x128xf32>
    %cst_22 = arith.constant 0.000000e+00 : f32
    %41 = vector.broadcast %cst_22 : f32 to vector<33x128xf32>
    %42 = arith.maximumf %40, %41 : vector<33x128xf32>
    %43 = arith.truncf %42 : vector<33x128xf32> to vector<33x128xbf16>
    %44 = vector.extract_strided_slice %42 {offsets = [0, 0], sizes = [32, 128], strides = [1, 1]} : vector<33x128xf32> to vector<32x128xf32>
    %45 = arith.mulf %44, %44 : vector<32x128xf32>
    %cst_23 = arith.constant dense<0.000000e+00> : vector<128xf32>
    %46 = vector.multi_reduction <add>, %45, %cst_23 [0] : vector<32x128xf32> to vector<128xf32>
    %47 = vector.shape_cast %46 : vector<128xf32> to vector<1x128xf32>
    %cst_24 = arith.constant 9.99999974E-6 : f32
    %48 = vector.broadcast %cst_24 : f32 to vector<1x128xf32>
    %49 = arith.addf %47, %48 : vector<1x128xf32>
    %50 = math.rsqrt %49 : vector<1x128xf32>
    %51 = vector.broadcast %50 : vector<1x128xf32> to vector<32x128xf32>
    %52 = arith.mulf %44, %51 : vector<32x128xf32>
    %53 = arith.truncf %52 : vector<32x128xf32> to vector<32x128xbf16>
    %c2 = arith.constant 2 : index
    %c0_25 = arith.constant 0 : index
    %c0_26 = arith.constant 0 : index
    %54 = vector.load %arg4[%c2, %c0_25, %c0_26] : memref<4x32x128xbf16, #tpu.memory_space<vmem>>, vector<1x32x128xbf16>
    %55 = vector.shape_cast %54 : vector<1x32x128xbf16> to vector<32x128xbf16>
    %56 = vector.shape_cast %53 : vector<32x128xbf16> to vector<1x32x128xbf16>
    tpu.vector_store %arg4[%c2, %c0_25, %c0_26], %56 {strides = array<i32>} : memref<4x32x128xbf16, #tpu.memory_space<vmem>>, vector<1x32x128xbf16>,
    %c2_27 = arith.constant 2 : index
    %c0_28 = arith.constant 0 : index
    %c0_29 = arith.constant 0 : index
    %57 = vector.load %arg3[%c2_27, %c0_28, %c0_29] : memref<3x33x33xbf16, #tpu.memory_space<vmem>>, vector<1x33x33xbf16>
    %58 = vector.shape_cast %57 : vector<1x33x33xbf16> to vector<33x33xbf16>
    %cst_30 = arith.constant dense<0.000000e+00> : vector<33x128xf32>
    %59 = tpu.matmul %58, %43, %cst_30 {dimension_numbers = #tpu.dot_dimension_numbers<[1], [0], [0], [1], [0, 0, 1, 1], [], []>} : vector<33x33xbf16>, vector<33x128xbf16>, vector<33x128xf32> -> vector<33x128xf32>
    %cst_31 = arith.constant 0.000000e+00 : f32
    %60 = vector.broadcast %cst_31 : f32 to vector<33x128xf32>
    %61 = arith.maximumf %59, %60 : vector<33x128xf32>
    %62 = vector.extract_strided_slice %61 {offsets = [0, 0], sizes = [32, 128], strides = [1, 1]} : vector<33x128xf32> to vector<32x128xf32>
    %63 = arith.mulf %62, %62 : vector<32x128xf32>
    %cst_32 = arith.constant dense<0.000000e+00> : vector<128xf32>
    %64 = vector.multi_reduction <add>, %63, %cst_32 [0] : vector<32x128xf32> to vector<128xf32>
    %65 = vector.shape_cast %64 : vector<128xf32> to vector<1x128xf32>
    %cst_33 = arith.constant 9.99999974E-6 : f32
    %66 = vector.broadcast %cst_33 : f32 to vector<1x128xf32>
    %67 = arith.addf %65, %66 : vector<1x128xf32>
    %68 = math.rsqrt %67 : vector<1x128xf32>
    %69 = vector.broadcast %68 : vector<1x128xf32> to vector<32x128xf32>
    %70 = arith.mulf %62, %69 : vector<32x128xf32>
    %71 = arith.truncf %70 : vector<32x128xf32> to vector<32x128xbf16>
    %c3 = arith.constant 3 : index
    %c0_34 = arith.constant 0 : index
    %c0_35 = arith.constant 0 : index
    %72 = vector.load %arg4[%c3, %c0_34, %c0_35] : memref<4x32x128xbf16, #tpu.memory_space<vmem>>, vector<1x32x128xbf16>
    %73 = vector.shape_cast %72 : vector<1x32x128xbf16> to vector<32x128xbf16>
    %74 = vector.shape_cast %71 : vector<32x128xbf16> to vector<1x32x128xbf16>
    tpu.vector_store %arg4[%c3, %c0_34, %c0_35], %74 {strides = array<i32>} : memref<4x32x128xbf16, #tpu.memory_space<vmem>>, vector<1x32x128xbf16>,
    return
  }
  func.func @transform_0(%arg0: i32) -> (i32, i32) {
    %c0_i32 = arith.constant 0 : i32
    %c0_i32_0 = arith.constant 0 : i32
    return %c0_i32, %arg0 : i32, i32
  }
  func.func @transform_1(%arg0: i32) -> (i32, i32) {
    %c0_i32 = arith.constant 0 : i32
    %c0_i32_0 = arith.constant 0 : i32
    %c0_i32_1 = arith.constant 0 : i32
    return %c0_i32, %c0_i32_0 : i32, i32
  }
  func.func @transform_2(%arg0: i32) -> (i32, i32, i32) {
    %c0_i32 = arith.constant 0 : i32
    %c0_i32_0 = arith.constant 0 : i32
    %c0_i32_1 = arith.constant 0 : i32
    %c0_i32_2 = arith.constant 0 : i32
    return %c0_i32, %c0_i32_0, %c0_i32_1 : i32, i32, i32
  }
  func.func @transform_3(%arg0: i32) -> (i32, i32, i32) {
    %c0_i32 = arith.constant 0 : i32
    %c0_i32_0 = arith.constant 0 : i32
    %c0_i32_1 = arith.constant 0 : i32
    return %c0_i32, %c0_i32_0, %arg0 : i32, i32, i32
  }
}

module attributes {stable_mosaic.version = 11 : i64} {
  func.func @kernel(%arg0: i32, %arg1: memref<4x32x256xbf16, #tpu.memory_space<vmem>>, %arg2: memref<2x1x1x64xf32, #tpu.memory_space<vmem>>, %arg3: memref<2x4x64xf32, #tpu.memory_space<vmem>>) attributes {dimension_semantics = [#tpu.dimension_semantics<arbitrary>], iteration_bounds = array<i64: 1>, scalar_prefetch = 0 : i64, scratch_operands = 0 : i64, tpu.core_type = #tpu.core_type<tc>, window_params = [{pipeline_mode = #tpu.pipeline_mode<synchronous>, transform_indices = @transform_0, window_bounds = array<i64: 4, 32, 256>}, {pipeline_mode = #tpu.pipeline_mode<synchronous>, transform_indices = @transform_1, window_bounds = array<i64: 2, 1, 1, 64>}, {pipeline_mode = #tpu.pipeline_mode<synchronous>, transform_indices = @transform_2, window_bounds = array<i64: 2, 4, 64>}]} {
    %c0 = arith.constant 0 : index
    %c0_0 = arith.constant 0 : index
    %c0_1 = arith.constant 0 : index
    %0 = vector.load %arg1[%c0, %c0_0, %c0_1] : memref<4x32x256xbf16, #tpu.memory_space<vmem>>, vector<4x32x64xbf16>
    %cst = arith.constant 0.000000e+00 : f32
    %1 = vector.broadcast %cst : f32 to vector<4x64xf32>
    %c0_2 = arith.constant 0 : index
    %c0_3 = arith.constant 0 : index
    %c0_4 = arith.constant 0 : index
    %c0_5 = arith.constant 0 : index
    %2 = vector.load %arg2[%c0_2, %c0_3, %c0_4, %c0_5] : memref<2x1x1x64xf32, #tpu.memory_space<vmem>>, vector<1x1x1x64xf32>
    %3 = vector.shape_cast %2 : vector<1x1x1x64xf32> to vector<1x64xf32>
    %cst_6 = arith.constant 0.000000e+00 : f32
    %4 = vector.broadcast %cst_6 : f32 to vector<1x64xf32>
    %5 = arith.cmpf ogt, %3, %4 : vector<1x64xf32>
    %6 = arith.extui %5 : vector<1x64xi1> to vector<1x64xi32>
    %7 = arith.sitofp %6 : vector<1x64xi32> to vector<1x64xf32>
    %cst_7 = arith.constant dense<0.000000e+00> : vector<1xf32>
    %8 = vector.multi_reduction <add>, %7, %cst_7 [1] : vector<1x64xf32> to vector<1xf32>
    %9 = vector.shape_cast %8 : vector<1xf32> to vector<1x1xf32>
    %10 = arith.mulf %3, %7 : vector<1x64xf32>
    %cst_8 = arith.constant dense<0.000000e+00> : vector<1xf32>
    %11 = vector.multi_reduction <add>, %10, %cst_8 [1] : vector<1x64xf32> to vector<1xf32>
    %12 = vector.shape_cast %11 : vector<1xf32> to vector<1x1xf32>
    %cst_9 = arith.constant 1.000000e+00 : f32
    %13 = vector.broadcast %cst_9 : f32 to vector<1x1xf32>
    %14 = arith.maximumf %9, %13 : vector<1x1xf32>
    %15 = arith.divf %12, %14 : vector<1x1xf32>
    %16 = vector.broadcast %15 : vector<1x1xf32> to vector<1x64xf32>
    %17 = arith.cmpf oge, %3, %16 : vector<1x64xf32>
    %cst_10 = arith.constant 0.000000e+00 : f32
    %18 = vector.broadcast %cst_10 : f32 to vector<1x1xf32>
    %19 = arith.cmpf ogt, %9, %18 : vector<1x1xf32>
    %20 = vector.broadcast %19 : vector<1x1xi1> to vector<1x64xi1>
    %21 = arith.andi %17, %20 : vector<1x64xi1>
    %cst_11 = arith.constant 1.000000e+00 : f32
    %cst_12 = arith.constant 0.000000e+00 : f32
    %22 = vector.broadcast %cst_11 : f32 to vector<1x64xf32>
    %23 = vector.broadcast %cst_12 : f32 to vector<1x64xf32>
    %24 = arith.select %21, %22, %23 : vector<1x64xi1>, vector<1x64xf32>
    %cst_13 = arith.constant dense<0.000000e+00> : vector<1xf32>
    %25 = vector.multi_reduction <add>, %24, %cst_13 [1] : vector<1x64xf32> to vector<1xf32>
    %26 = vector.shape_cast %25 : vector<1xf32> to vector<1x1xf32>
    %cst_14 = arith.constant 1.000000e+00 : f32
    %27 = vector.broadcast %cst_14 : f32 to vector<1x1xf32>
    %28 = arith.maximumf %26, %27 : vector<1x1xf32>
    %cst_15 = arith.constant 1.000000e+00 : f32
    %29 = vector.broadcast %cst_15 : f32 to vector<1x1xf32>
    %30 = arith.divf %29, %28 : vector<1x1xf32>
    %c0_16 = arith.constant 0 : index
    %c0_17 = arith.constant 0 : index
    %c128 = arith.constant 128 : index
    %31 = vector.load %arg1[%c0_16, %c0_17, %c128] : memref<4x32x256xbf16, #tpu.memory_space<vmem>>, vector<4x32x64xbf16>
    %32 = arith.truncf %24 : vector<1x64xf32> to vector<1x64xbf16>
    %33 = vector.shape_cast %32 : vector<1x64xbf16> to vector<1x1x64xbf16>
    %34 = vector.broadcast %33 : vector<1x1x64xbf16> to vector<4x32x64xbf16>
    %35 = arith.mulf %31, %34 : vector<4x32x64xbf16>
    %36 = vector.extract_strided_slice %35 {offsets = [0, 0, 0], sizes = [1, 32, 64], strides = [1, 1, 1]} : vector<4x32x64xbf16> to vector<1x32x64xbf16>
    %37 = vector.shape_cast %36 : vector<1x32x64xbf16> to vector<32x64xbf16>
    %38 = vector.extract_strided_slice %0 {offsets = [0, 0, 0], sizes = [1, 32, 64], strides = [1, 1, 1]} : vector<4x32x64xbf16> to vector<1x32x64xbf16>
    %39 = vector.shape_cast %38 : vector<1x32x64xbf16> to vector<32x64xbf16>
    %cst_18 = arith.constant dense<0.000000e+00> : vector<64x64xf32>
    %40 = tpu.matmul %37, %39, %cst_18 {dimension_numbers = #tpu.dot_dimension_numbers<[0], [0], [1], [1], [0, 1, 1, 1], [], []>} : vector<32x64xbf16>, vector<32x64xbf16>, vector<64x64xf32> -> vector<64x64xf32>
    %cst_19 = arith.constant 0.000000e+00 : f32
    %41 = vector.broadcast %cst_19 : f32 to vector<64x64xf32>
    %42 = arith.maximumf %40, %41 : vector<64x64xf32>
    %43 = vector.extract_strided_slice %35 {offsets = [1, 0, 0], sizes = [1, 32, 64], strides = [1, 1, 1]} : vector<4x32x64xbf16> to vector<1x32x64xbf16>
    %44 = vector.shape_cast %43 : vector<1x32x64xbf16> to vector<32x64xbf16>
    %45 = vector.extract_strided_slice %0 {offsets = [1, 0, 0], sizes = [1, 32, 64], strides = [1, 1, 1]} : vector<4x32x64xbf16> to vector<1x32x64xbf16>
    %46 = vector.shape_cast %45 : vector<1x32x64xbf16> to vector<32x64xbf16>
    %cst_20 = arith.constant dense<0.000000e+00> : vector<64x64xf32>
    %47 = tpu.matmul %44, %46, %cst_20 {dimension_numbers = #tpu.dot_dimension_numbers<[0], [0], [1], [1], [0, 1, 1, 1], [], []>} : vector<32x64xbf16>, vector<32x64xbf16>, vector<64x64xf32> -> vector<64x64xf32>
    %cst_21 = arith.constant 0.000000e+00 : f32
    %48 = vector.broadcast %cst_21 : f32 to vector<64x64xf32>
    %49 = arith.maximumf %47, %48 : vector<64x64xf32>
    %50 = vector.extract_strided_slice %35 {offsets = [2, 0, 0], sizes = [1, 32, 64], strides = [1, 1, 1]} : vector<4x32x64xbf16> to vector<1x32x64xbf16>
    %51 = vector.shape_cast %50 : vector<1x32x64xbf16> to vector<32x64xbf16>
    %52 = vector.extract_strided_slice %0 {offsets = [2, 0, 0], sizes = [1, 32, 64], strides = [1, 1, 1]} : vector<4x32x64xbf16> to vector<1x32x64xbf16>
    %53 = vector.shape_cast %52 : vector<1x32x64xbf16> to vector<32x64xbf16>
    %cst_22 = arith.constant dense<0.000000e+00> : vector<64x64xf32>
    %54 = tpu.matmul %51, %53, %cst_22 {dimension_numbers = #tpu.dot_dimension_numbers<[0], [0], [1], [1], [0, 1, 1, 1], [], []>} : vector<32x64xbf16>, vector<32x64xbf16>, vector<64x64xf32> -> vector<64x64xf32>
    %cst_23 = arith.constant 0.000000e+00 : f32
    %55 = vector.broadcast %cst_23 : f32 to vector<64x64xf32>
    %56 = arith.maximumf %54, %55 : vector<64x64xf32>
    %57 = vector.extract_strided_slice %35 {offsets = [3, 0, 0], sizes = [1, 32, 64], strides = [1, 1, 1]} : vector<4x32x64xbf16> to vector<1x32x64xbf16>
    %58 = vector.shape_cast %57 : vector<1x32x64xbf16> to vector<32x64xbf16>
    %59 = vector.extract_strided_slice %0 {offsets = [3, 0, 0], sizes = [1, 32, 64], strides = [1, 1, 1]} : vector<4x32x64xbf16> to vector<1x32x64xbf16>
    %60 = vector.shape_cast %59 : vector<1x32x64xbf16> to vector<32x64xbf16>
    %cst_24 = arith.constant dense<0.000000e+00> : vector<64x64xf32>
    %61 = tpu.matmul %58, %60, %cst_24 {dimension_numbers = #tpu.dot_dimension_numbers<[0], [0], [1], [1], [0, 1, 1, 1], [], []>} : vector<32x64xbf16>, vector<32x64xbf16>, vector<64x64xf32> -> vector<64x64xf32>
    %cst_25 = arith.constant 0.000000e+00 : f32
    %62 = vector.broadcast %cst_25 : f32 to vector<64x64xf32>
    %63 = arith.maximumf %61, %62 : vector<64x64xf32>
    %64 = vector.shape_cast %42 : vector<64x64xf32> to vector<1x64x64xf32>
    %65 = vector.shape_cast %49 : vector<64x64xf32> to vector<1x64x64xf32>
    %66 = vector.shape_cast %56 : vector<64x64xf32> to vector<1x64x64xf32>
    %67 = vector.shape_cast %63 : vector<64x64xf32> to vector<1x64x64xf32>
    %68 = tpu.concatenate %64, %65, %66, %67 in 0 : vector<1x64x64xf32>, vector<1x64x64xf32>, vector<1x64x64xf32>, vector<1x64x64xf32> -> vector<4x64x64xf32>
    %cst_26 = arith.constant dense<0.000000e+00> : vector<4x64xf32>
    %69 = vector.multi_reduction <add>, %68, %cst_26 [1] : vector<4x64x64xf32> to vector<4x64xf32>
    %70 = vector.broadcast %30 : vector<1x1xf32> to vector<4x64xf32>
    %71 = arith.mulf %69, %70 : vector<4x64xf32>
    %72 = arith.addf %1, %71 : vector<4x64xf32>
    %c0_27 = arith.constant 0 : index
    %c0_28 = arith.constant 0 : index
    %c64 = arith.constant 64 : index
    %73 = vector.load %arg1[%c0_27, %c0_28, %c64] : memref<4x32x256xbf16, #tpu.memory_space<vmem>>, vector<4x32x64xbf16>
    %cst_29 = arith.constant 0.000000e+00 : f32
    %74 = vector.broadcast %cst_29 : f32 to vector<4x64xf32>
    %c1 = arith.constant 1 : index
    %c0_30 = arith.constant 0 : index
    %c0_31 = arith.constant 0 : index
    %c0_32 = arith.constant 0 : index
    %75 = vector.load %arg2[%c1, %c0_30, %c0_31, %c0_32] : memref<2x1x1x64xf32, #tpu.memory_space<vmem>>, vector<1x1x1x64xf32>
    %76 = vector.shape_cast %75 : vector<1x1x1x64xf32> to vector<1x64xf32>
    %cst_33 = arith.constant 0.000000e+00 : f32
    %77 = vector.broadcast %cst_33 : f32 to vector<1x64xf32>
    %78 = arith.cmpf ogt, %76, %77 : vector<1x64xf32>
    %79 = arith.extui %78 : vector<1x64xi1> to vector<1x64xi32>
    %80 = arith.sitofp %79 : vector<1x64xi32> to vector<1x64xf32>
    %cst_34 = arith.constant dense<0.000000e+00> : vector<1xf32>
    %81 = vector.multi_reduction <add>, %80, %cst_34 [1] : vector<1x64xf32> to vector<1xf32>
    %82 = vector.shape_cast %81 : vector<1xf32> to vector<1x1xf32>
    %83 = arith.mulf %76, %80 : vector<1x64xf32>
    %cst_35 = arith.constant dense<0.000000e+00> : vector<1xf32>
    %84 = vector.multi_reduction <add>, %83, %cst_35 [1] : vector<1x64xf32> to vector<1xf32>
    %85 = vector.shape_cast %84 : vector<1xf32> to vector<1x1xf32>
    %cst_36 = arith.constant 1.000000e+00 : f32
    %86 = vector.broadcast %cst_36 : f32 to vector<1x1xf32>
    %87 = arith.maximumf %82, %86 : vector<1x1xf32>
    %88 = arith.divf %85, %87 : vector<1x1xf32>
    %89 = vector.broadcast %88 : vector<1x1xf32> to vector<1x64xf32>
    %90 = arith.cmpf oge, %76, %89 : vector<1x64xf32>
    %cst_37 = arith.constant 0.000000e+00 : f32
    %91 = vector.broadcast %cst_37 : f32 to vector<1x1xf32>
    %92 = arith.cmpf ogt, %82, %91 : vector<1x1xf32>
    %93 = vector.broadcast %92 : vector<1x1xi1> to vector<1x64xi1>
    %94 = arith.andi %90, %93 : vector<1x64xi1>
    %cst_38 = arith.constant 1.000000e+00 : f32
    %cst_39 = arith.constant 0.000000e+00 : f32
    %95 = vector.broadcast %cst_38 : f32 to vector<1x64xf32>
    %96 = vector.broadcast %cst_39 : f32 to vector<1x64xf32>
    %97 = arith.select %94, %95, %96 : vector<1x64xi1>, vector<1x64xf32>
    %cst_40 = arith.constant dense<0.000000e+00> : vector<1xf32>
    %98 = vector.multi_reduction <add>, %97, %cst_40 [1] : vector<1x64xf32> to vector<1xf32>
    %99 = vector.shape_cast %98 : vector<1xf32> to vector<1x1xf32>
    %cst_41 = arith.constant 1.000000e+00 : f32
    %100 = vector.broadcast %cst_41 : f32 to vector<1x1xf32>
    %101 = arith.maximumf %99, %100 : vector<1x1xf32>
    %cst_42 = arith.constant 1.000000e+00 : f32
    %102 = vector.broadcast %cst_42 : f32 to vector<1x1xf32>
    %103 = arith.divf %102, %101 : vector<1x1xf32>
    %c0_43 = arith.constant 0 : index
    %c0_44 = arith.constant 0 : index
    %c192 = arith.constant 192 : index
    %104 = vector.load %arg1[%c0_43, %c0_44, %c192] : memref<4x32x256xbf16, #tpu.memory_space<vmem>>, vector<4x32x64xbf16>
    %105 = arith.truncf %97 : vector<1x64xf32> to vector<1x64xbf16>
    %106 = vector.shape_cast %105 : vector<1x64xbf16> to vector<1x1x64xbf16>
    %107 = vector.broadcast %106 : vector<1x1x64xbf16> to vector<4x32x64xbf16>
    %108 = arith.mulf %104, %107 : vector<4x32x64xbf16>
    %109 = vector.extract_strided_slice %108 {offsets = [0, 0, 0], sizes = [1, 32, 64], strides = [1, 1, 1]} : vector<4x32x64xbf16> to vector<1x32x64xbf16>
    %110 = vector.shape_cast %109 : vector<1x32x64xbf16> to vector<32x64xbf16>
    %111 = vector.extract_strided_slice %73 {offsets = [0, 0, 0], sizes = [1, 32, 64], strides = [1, 1, 1]} : vector<4x32x64xbf16> to vector<1x32x64xbf16>
    %112 = vector.shape_cast %111 : vector<1x32x64xbf16> to vector<32x64xbf16>
    %cst_45 = arith.constant dense<0.000000e+00> : vector<64x64xf32>
    %113 = tpu.matmul %110, %112, %cst_45 {dimension_numbers = #tpu.dot_dimension_numbers<[0], [0], [1], [1], [0, 1, 1, 1], [], []>} : vector<32x64xbf16>, vector<32x64xbf16>, vector<64x64xf32> -> vector<64x64xf32>
    %cst_46 = arith.constant 0.000000e+00 : f32
    %114 = vector.broadcast %cst_46 : f32 to vector<64x64xf32>
    %115 = arith.maximumf %113, %114 : vector<64x64xf32>
    %116 = vector.extract_strided_slice %108 {offsets = [1, 0, 0], sizes = [1, 32, 64], strides = [1, 1, 1]} : vector<4x32x64xbf16> to vector<1x32x64xbf16>
    %117 = vector.shape_cast %116 : vector<1x32x64xbf16> to vector<32x64xbf16>
    %118 = vector.extract_strided_slice %73 {offsets = [1, 0, 0], sizes = [1, 32, 64], strides = [1, 1, 1]} : vector<4x32x64xbf16> to vector<1x32x64xbf16>
    %119 = vector.shape_cast %118 : vector<1x32x64xbf16> to vector<32x64xbf16>
    %cst_47 = arith.constant dense<0.000000e+00> : vector<64x64xf32>
    %120 = tpu.matmul %117, %119, %cst_47 {dimension_numbers = #tpu.dot_dimension_numbers<[0], [0], [1], [1], [0, 1, 1, 1], [], []>} : vector<32x64xbf16>, vector<32x64xbf16>, vector<64x64xf32> -> vector<64x64xf32>
    %cst_48 = arith.constant 0.000000e+00 : f32
    %121 = vector.broadcast %cst_48 : f32 to vector<64x64xf32>
    %122 = arith.maximumf %120, %121 : vector<64x64xf32>
    %123 = vector.extract_strided_slice %108 {offsets = [2, 0, 0], sizes = [1, 32, 64], strides = [1, 1, 1]} : vector<4x32x64xbf16> to vector<1x32x64xbf16>
    %124 = vector.shape_cast %123 : vector<1x32x64xbf16> to vector<32x64xbf16>
    %125 = vector.extract_strided_slice %73 {offsets = [2, 0, 0], sizes = [1, 32, 64], strides = [1, 1, 1]} : vector<4x32x64xbf16> to vector<1x32x64xbf16>
    %126 = vector.shape_cast %125 : vector<1x32x64xbf16> to vector<32x64xbf16>
    %cst_49 = arith.constant dense<0.000000e+00> : vector<64x64xf32>
    %127 = tpu.matmul %124, %126, %cst_49 {dimension_numbers = #tpu.dot_dimension_numbers<[0], [0], [1], [1], [0, 1, 1, 1], [], []>} : vector<32x64xbf16>, vector<32x64xbf16>, vector<64x64xf32> -> vector<64x64xf32>
    %cst_50 = arith.constant 0.000000e+00 : f32
    %128 = vector.broadcast %cst_50 : f32 to vector<64x64xf32>
    %129 = arith.maximumf %127, %128 : vector<64x64xf32>
    %130 = vector.extract_strided_slice %108 {offsets = [3, 0, 0], sizes = [1, 32, 64], strides = [1, 1, 1]} : vector<4x32x64xbf16> to vector<1x32x64xbf16>
    %131 = vector.shape_cast %130 : vector<1x32x64xbf16> to vector<32x64xbf16>
    %132 = vector.extract_strided_slice %73 {offsets = [3, 0, 0], sizes = [1, 32, 64], strides = [1, 1, 1]} : vector<4x32x64xbf16> to vector<1x32x64xbf16>
    %133 = vector.shape_cast %132 : vector<1x32x64xbf16> to vector<32x64xbf16>
    %cst_51 = arith.constant dense<0.000000e+00> : vector<64x64xf32>
    %134 = tpu.matmul %131, %133, %cst_51 {dimension_numbers = #tpu.dot_dimension_numbers<[0], [0], [1], [1], [0, 1, 1, 1], [], []>} : vector<32x64xbf16>, vector<32x64xbf16>, vector<64x64xf32> -> vector<64x64xf32>
    %cst_52 = arith.constant 0.000000e+00 : f32
    %135 = vector.broadcast %cst_52 : f32 to vector<64x64xf32>
    %136 = arith.maximumf %134, %135 : vector<64x64xf32>
    %137 = vector.shape_cast %115 : vector<64x64xf32> to vector<1x64x64xf32>
    %138 = vector.shape_cast %122 : vector<64x64xf32> to vector<1x64x64xf32>
    %139 = vector.shape_cast %129 : vector<64x64xf32> to vector<1x64x64xf32>
    %140 = vector.shape_cast %136 : vector<64x64xf32> to vector<1x64x64xf32>
    %141 = tpu.concatenate %137, %138, %139, %140 in 0 : vector<1x64x64xf32>, vector<1x64x64xf32>, vector<1x64x64xf32>, vector<1x64x64xf32> -> vector<4x64x64xf32>
    %cst_53 = arith.constant dense<0.000000e+00> : vector<4x64xf32>
    %142 = vector.multi_reduction <add>, %141, %cst_53 [1] : vector<4x64x64xf32> to vector<4x64xf32>
    %143 = vector.broadcast %103 : vector<1x1xf32> to vector<4x64xf32>
    %144 = arith.mulf %142, %143 : vector<4x64xf32>
    %145 = arith.addf %74, %144 : vector<4x64xf32>
    %146 = vector.shape_cast %72 : vector<4x64xf32> to vector<1x4x64xf32>
    %147 = vector.shape_cast %145 : vector<4x64xf32> to vector<1x4x64xf32>
    %148 = tpu.concatenate %146, %147 in 0 : vector<1x4x64xf32>, vector<1x4x64xf32> -> vector<2x4x64xf32>
    %c0_54 = arith.constant 0 : index
    %c0_55 = arith.constant 0 : index
    %c0_56 = arith.constant 0 : index
    %149 = vector.load %arg3[%c0_54, %c0_55, %c0_56] : memref<2x4x64xf32, #tpu.memory_space<vmem>>, vector<2x4x64xf32>
    tpu.vector_store %arg3[%c0_54, %c0_55, %c0_56], %148 {strides = array<i32>} : memref<2x4x64xf32, #tpu.memory_space<vmem>>, vector<2x4x64xf32>,
    return
  }
  func.func @transform_0(%arg0: i32) -> (i32, i32, i32) {
    %c0_i32 = arith.constant 0 : i32
    %c0_i32_0 = arith.constant 0 : i32
    %c0_i32_1 = arith.constant 0 : i32
    %c0_i32_2 = arith.constant 0 : i32
    return %c0_i32, %c0_i32_0, %c0_i32_1 : i32, i32, i32
  }
  func.func @transform_1(%arg0: i32) -> (i32, i32, i32, i32) {
    %c0_i32 = arith.constant 0 : i32
    %c0_i32_0 = arith.constant 0 : i32
    %c0_i32_1 = arith.constant 0 : i32
    %c0_i32_2 = arith.constant 0 : i32
    %c0_i32_3 = arith.constant 0 : i32
    return %c0_i32, %c0_i32_0, %c0_i32_1, %c0_i32_2 : i32, i32, i32, i32
  }
  func.func @transform_2(%arg0: i32) -> (i32, i32, i32) {
    %c0_i32 = arith.constant 0 : i32
    %c0_i32_0 = arith.constant 0 : i32
    %c0_i32_1 = arith.constant 0 : i32
    %c0_i32_2 = arith.constant 0 : i32
    return %c0_i32, %c0_i32_0, %c0_i32_1 : i32, i32, i32
  }
}

module attributes {stable_mosaic.version = 11 : i64} {
  func.func @kernel(%arg0: i32, %arg1: memref<4x128xbf16, #tpu.memory_space<vmem>>, %arg2: memref<65x4xbf16, #tpu.memory_space<vmem>>, %arg3: memref<5x65x65xbf16, #tpu.memory_space<vmem>>, %arg4: memref<6x64x128xbf16, #tpu.memory_space<vmem>>) attributes {dimension_semantics = [#tpu.dimension_semantics<parallel>], iteration_bounds = array<i64: 1>, scalar_prefetch = 0 : i64, scratch_operands = 0 : i64, tpu.core_type = #tpu.core_type<tc>, window_params = [{transform_indices = @transform_0, window_bounds = array<i64: 4, 128>}, {pipeline_mode = #tpu.pipeline_mode<synchronous>, transform_indices = @transform_1, window_bounds = array<i64: 65, 4>}, {pipeline_mode = #tpu.pipeline_mode<synchronous>, transform_indices = @transform_2, window_bounds = array<i64: 5, 65, 65>}, {transform_indices = @transform_3, window_bounds = array<i64: 6, 64, 128>}]} {
    %c0 = arith.constant 0 : index
    %c0_0 = arith.constant 0 : index
    %0 = vector.load %arg1[%c0, %c0_0] : memref<4x128xbf16, #tpu.memory_space<vmem>>, vector<4x128xbf16>
    %c0_1 = arith.constant 0 : index
    %c0_2 = arith.constant 0 : index
    %1 = vector.load %arg2[%c0_1, %c0_2] : memref<65x4xbf16, #tpu.memory_space<vmem>>, vector<65x4xbf16>
    %cst = arith.constant dense<0.000000e+00> : vector<65x128xf32>
    %2 = tpu.matmul %1, %0, %cst {dimension_numbers = #tpu.dot_dimension_numbers<[1], [0], [0], [1], [0, 0, 1, 1], [], []>} : vector<65x4xbf16>, vector<4x128xbf16>, vector<65x128xf32> -> vector<65x128xf32>
    %cst_3 = arith.constant 0.000000e+00 : f32
    %3 = vector.broadcast %cst_3 : f32 to vector<65x128xf32>
    %4 = arith.maximumf %2, %3 : vector<65x128xf32>
    %5 = arith.truncf %4 : vector<65x128xf32> to vector<65x128xbf16>
    %6 = vector.extract_strided_slice %4 {offsets = [0, 0], sizes = [64, 128], strides = [1, 1]} : vector<65x128xf32> to vector<64x128xf32>
    %7 = arith.mulf %6, %6 : vector<64x128xf32>
    %cst_4 = arith.constant dense<0.000000e+00> : vector<128xf32>
    %8 = vector.multi_reduction <add>, %7, %cst_4 [0] : vector<64x128xf32> to vector<128xf32>
    %9 = vector.shape_cast %8 : vector<128xf32> to vector<1x128xf32>
    %cst_5 = arith.constant 9.99999974E-6 : f32
    %10 = vector.broadcast %cst_5 : f32 to vector<1x128xf32>
    %11 = arith.addf %9, %10 : vector<1x128xf32>
    %12 = math.rsqrt %11 : vector<1x128xf32>
    %13 = vector.broadcast %12 : vector<1x128xf32> to vector<64x128xf32>
    %14 = arith.mulf %6, %13 : vector<64x128xf32>
    %15 = arith.truncf %14 : vector<64x128xf32> to vector<64x128xbf16>
    %c0_6 = arith.constant 0 : index
    %c0_7 = arith.constant 0 : index
    %c0_8 = arith.constant 0 : index
    %16 = vector.load %arg4[%c0_6, %c0_7, %c0_8] : memref<6x64x128xbf16, #tpu.memory_space<vmem>>, vector<1x64x128xbf16>
    %17 = vector.shape_cast %16 : vector<1x64x128xbf16> to vector<64x128xbf16>
    %18 = vector.shape_cast %15 : vector<64x128xbf16> to vector<1x64x128xbf16>
    tpu.vector_store %arg4[%c0_6, %c0_7, %c0_8], %18 {strides = array<i32>} : memref<6x64x128xbf16, #tpu.memory_space<vmem>>, vector<1x64x128xbf16>,
    %c0_9 = arith.constant 0 : index
    %c0_10 = arith.constant 0 : index
    %c0_11 = arith.constant 0 : index
    %19 = vector.load %arg3[%c0_9, %c0_10, %c0_11] : memref<5x65x65xbf16, #tpu.memory_space<vmem>>, vector<1x65x65xbf16>
    %20 = vector.shape_cast %19 : vector<1x65x65xbf16> to vector<65x65xbf16>
    %cst_12 = arith.constant dense<0.000000e+00> : vector<65x128xf32>
    %21 = tpu.matmul %20, %5, %cst_12 {dimension_numbers = #tpu.dot_dimension_numbers<[1], [0], [0], [1], [0, 0, 1, 1], [], []>} : vector<65x65xbf16>, vector<65x128xbf16>, vector<65x128xf32> -> vector<65x128xf32>
    %cst_13 = arith.constant 0.000000e+00 : f32
    %22 = vector.broadcast %cst_13 : f32 to vector<65x128xf32>
    %23 = arith.maximumf %21, %22 : vector<65x128xf32>
    %24 = arith.truncf %23 : vector<65x128xf32> to vector<65x128xbf16>
    %25 = vector.extract_strided_slice %23 {offsets = [0, 0], sizes = [64, 128], strides = [1, 1]} : vector<65x128xf32> to vector<64x128xf32>
    %26 = arith.mulf %25, %25 : vector<64x128xf32>
    %cst_14 = arith.constant dense<0.000000e+00> : vector<128xf32>
    %27 = vector.multi_reduction <add>, %26, %cst_14 [0] : vector<64x128xf32> to vector<128xf32>
    %28 = vector.shape_cast %27 : vector<128xf32> to vector<1x128xf32>
    %cst_15 = arith.constant 9.99999974E-6 : f32
    %29 = vector.broadcast %cst_15 : f32 to vector<1x128xf32>
    %30 = arith.addf %28, %29 : vector<1x128xf32>
    %31 = math.rsqrt %30 : vector<1x128xf32>
    %32 = vector.broadcast %31 : vector<1x128xf32> to vector<64x128xf32>
    %33 = arith.mulf %25, %32 : vector<64x128xf32>
    %34 = arith.truncf %33 : vector<64x128xf32> to vector<64x128xbf16>
    %c1 = arith.constant 1 : index
    %c0_16 = arith.constant 0 : index
    %c0_17 = arith.constant 0 : index
    %35 = vector.load %arg4[%c1, %c0_16, %c0_17] : memref<6x64x128xbf16, #tpu.memory_space<vmem>>, vector<1x64x128xbf16>
    %36 = vector.shape_cast %35 : vector<1x64x128xbf16> to vector<64x128xbf16>
    %37 = vector.shape_cast %34 : vector<64x128xbf16> to vector<1x64x128xbf16>
    tpu.vector_store %arg4[%c1, %c0_16, %c0_17], %37 {strides = array<i32>} : memref<6x64x128xbf16, #tpu.memory_space<vmem>>, vector<1x64x128xbf16>,
    %c1_18 = arith.constant 1 : index
    %c0_19 = arith.constant 0 : index
    %c0_20 = arith.constant 0 : index
    %38 = vector.load %arg3[%c1_18, %c0_19, %c0_20] : memref<5x65x65xbf16, #tpu.memory_space<vmem>>, vector<1x65x65xbf16>
    %39 = vector.shape_cast %38 : vector<1x65x65xbf16> to vector<65x65xbf16>
    %cst_21 = arith.constant dense<0.000000e+00> : vector<65x128xf32>
    %40 = tpu.matmul %39, %24, %cst_21 {dimension_numbers = #tpu.dot_dimension_numbers<[1], [0], [0], [1], [0, 0, 1, 1], [], []>} : vector<65x65xbf16>, vector<65x128xbf16>, vector<65x128xf32> -> vector<65x128xf32>
    %cst_22 = arith.constant 0.000000e+00 : f32
    %41 = vector.broadcast %cst_22 : f32 to vector<65x128xf32>
    %42 = arith.maximumf %40, %41 : vector<65x128xf32>
    %43 = arith.truncf %42 : vector<65x128xf32> to vector<65x128xbf16>
    %44 = vector.extract_strided_slice %42 {offsets = [0, 0], sizes = [64, 128], strides = [1, 1]} : vector<65x128xf32> to vector<64x128xf32>
    %45 = arith.mulf %44, %44 : vector<64x128xf32>
    %cst_23 = arith.constant dense<0.000000e+00> : vector<128xf32>
    %46 = vector.multi_reduction <add>, %45, %cst_23 [0] : vector<64x128xf32> to vector<128xf32>
    %47 = vector.shape_cast %46 : vector<128xf32> to vector<1x128xf32>
    %cst_24 = arith.constant 9.99999974E-6 : f32
    %48 = vector.broadcast %cst_24 : f32 to vector<1x128xf32>
    %49 = arith.addf %47, %48 : vector<1x128xf32>
    %50 = math.rsqrt %49 : vector<1x128xf32>
    %51 = vector.broadcast %50 : vector<1x128xf32> to vector<64x128xf32>
    %52 = arith.mulf %44, %51 : vector<64x128xf32>
    %53 = arith.truncf %52 : vector<64x128xf32> to vector<64x128xbf16>
    %c2 = arith.constant 2 : index
    %c0_25 = arith.constant 0 : index
    %c0_26 = arith.constant 0 : index
    %54 = vector.load %arg4[%c2, %c0_25, %c0_26] : memref<6x64x128xbf16, #tpu.memory_space<vmem>>, vector<1x64x128xbf16>
    %55 = vector.shape_cast %54 : vector<1x64x128xbf16> to vector<64x128xbf16>
    %56 = vector.shape_cast %53 : vector<64x128xbf16> to vector<1x64x128xbf16>
    tpu.vector_store %arg4[%c2, %c0_25, %c0_26], %56 {strides = array<i32>} : memref<6x64x128xbf16, #tpu.memory_space<vmem>>, vector<1x64x128xbf16>,
    %c2_27 = arith.constant 2 : index
    %c0_28 = arith.constant 0 : index
    %c0_29 = arith.constant 0 : index
    %57 = vector.load %arg3[%c2_27, %c0_28, %c0_29] : memref<5x65x65xbf16, #tpu.memory_space<vmem>>, vector<1x65x65xbf16>
    %58 = vector.shape_cast %57 : vector<1x65x65xbf16> to vector<65x65xbf16>
    %cst_30 = arith.constant dense<0.000000e+00> : vector<65x128xf32>
    %59 = tpu.matmul %58, %43, %cst_30 {dimension_numbers = #tpu.dot_dimension_numbers<[1], [0], [0], [1], [0, 0, 1, 1], [], []>} : vector<65x65xbf16>, vector<65x128xbf16>, vector<65x128xf32> -> vector<65x128xf32>
    %cst_31 = arith.constant 0.000000e+00 : f32
    %60 = vector.broadcast %cst_31 : f32 to vector<65x128xf32>
    %61 = arith.maximumf %59, %60 : vector<65x128xf32>
    %62 = arith.truncf %61 : vector<65x128xf32> to vector<65x128xbf16>
    %63 = vector.extract_strided_slice %61 {offsets = [0, 0], sizes = [64, 128], strides = [1, 1]} : vector<65x128xf32> to vector<64x128xf32>
    %64 = arith.mulf %63, %63 : vector<64x128xf32>
    %cst_32 = arith.constant dense<0.000000e+00> : vector<128xf32>
    %65 = vector.multi_reduction <add>, %64, %cst_32 [0] : vector<64x128xf32> to vector<128xf32>
    %66 = vector.shape_cast %65 : vector<128xf32> to vector<1x128xf32>
    %cst_33 = arith.constant 9.99999974E-6 : f32
    %67 = vector.broadcast %cst_33 : f32 to vector<1x128xf32>
    %68 = arith.addf %66, %67 : vector<1x128xf32>
    %69 = math.rsqrt %68 : vector<1x128xf32>
    %70 = vector.broadcast %69 : vector<1x128xf32> to vector<64x128xf32>
    %71 = arith.mulf %63, %70 : vector<64x128xf32>
    %72 = arith.truncf %71 : vector<64x128xf32> to vector<64x128xbf16>
    %c3 = arith.constant 3 : index
    %c0_34 = arith.constant 0 : index
    %c0_35 = arith.constant 0 : index
    %73 = vector.load %arg4[%c3, %c0_34, %c0_35] : memref<6x64x128xbf16, #tpu.memory_space<vmem>>, vector<1x64x128xbf16>
    %74 = vector.shape_cast %73 : vector<1x64x128xbf16> to vector<64x128xbf16>
    %75 = vector.shape_cast %72 : vector<64x128xbf16> to vector<1x64x128xbf16>
    tpu.vector_store %arg4[%c3, %c0_34, %c0_35], %75 {strides = array<i32>} : memref<6x64x128xbf16, #tpu.memory_space<vmem>>, vector<1x64x128xbf16>,
    %c3_36 = arith.constant 3 : index
    %c0_37 = arith.constant 0 : index
    %c0_38 = arith.constant 0 : index
    %76 = vector.load %arg3[%c3_36, %c0_37, %c0_38] : memref<5x65x65xbf16, #tpu.memory_space<vmem>>, vector<1x65x65xbf16>
    %77 = vector.shape_cast %76 : vector<1x65x65xbf16> to vector<65x65xbf16>
    %cst_39 = arith.constant dense<0.000000e+00> : vector<65x128xf32>
    %78 = tpu.matmul %77, %62, %cst_39 {dimension_numbers = #tpu.dot_dimension_numbers<[1], [0], [0], [1], [0, 0, 1, 1], [], []>} : vector<65x65xbf16>, vector<65x128xbf16>, vector<65x128xf32> -> vector<65x128xf32>
    %cst_40 = arith.constant 0.000000e+00 : f32
    %79 = vector.broadcast %cst_40 : f32 to vector<65x128xf32>
    %80 = arith.maximumf %78, %79 : vector<65x128xf32>
    %81 = arith.truncf %80 : vector<65x128xf32> to vector<65x128xbf16>
    %82 = vector.extract_strided_slice %80 {offsets = [0, 0], sizes = [64, 128], strides = [1, 1]} : vector<65x128xf32> to vector<64x128xf32>
    %83 = arith.mulf %82, %82 : vector<64x128xf32>
    %cst_41 = arith.constant dense<0.000000e+00> : vector<128xf32>
    %84 = vector.multi_reduction <add>, %83, %cst_41 [0] : vector<64x128xf32> to vector<128xf32>
    %85 = vector.shape_cast %84 : vector<128xf32> to vector<1x128xf32>
    %cst_42 = arith.constant 9.99999974E-6 : f32
    %86 = vector.broadcast %cst_42 : f32 to vector<1x128xf32>
    %87 = arith.addf %85, %86 : vector<1x128xf32>
    %88 = math.rsqrt %87 : vector<1x128xf32>
    %89 = vector.broadcast %88 : vector<1x128xf32> to vector<64x128xf32>
    %90 = arith.mulf %82, %89 : vector<64x128xf32>
    %91 = arith.truncf %90 : vector<64x128xf32> to vector<64x128xbf16>
    %c4 = arith.constant 4 : index
    %c0_43 = arith.constant 0 : index
    %c0_44 = arith.constant 0 : index
    %92 = vector.load %arg4[%c4, %c0_43, %c0_44] : memref<6x64x128xbf16, #tpu.memory_space<vmem>>, vector<1x64x128xbf16>
    %93 = vector.shape_cast %92 : vector<1x64x128xbf16> to vector<64x128xbf16>
    %94 = vector.shape_cast %91 : vector<64x128xbf16> to vector<1x64x128xbf16>
    tpu.vector_store %arg4[%c4, %c0_43, %c0_44], %94 {strides = array<i32>} : memref<6x64x128xbf16, #tpu.memory_space<vmem>>, vector<1x64x128xbf16>,
    %c4_45 = arith.constant 4 : index
    %c0_46 = arith.constant 0 : index
    %c0_47 = arith.constant 0 : index
    %95 = vector.load %arg3[%c4_45, %c0_46, %c0_47] : memref<5x65x65xbf16, #tpu.memory_space<vmem>>, vector<1x65x65xbf16>
    %96 = vector.shape_cast %95 : vector<1x65x65xbf16> to vector<65x65xbf16>
    %cst_48 = arith.constant dense<0.000000e+00> : vector<65x128xf32>
    %97 = tpu.matmul %96, %81, %cst_48 {dimension_numbers = #tpu.dot_dimension_numbers<[1], [0], [0], [1], [0, 0, 1, 1], [], []>} : vector<65x65xbf16>, vector<65x128xbf16>, vector<65x128xf32> -> vector<65x128xf32>
    %cst_49 = arith.constant 0.000000e+00 : f32
    %98 = vector.broadcast %cst_49 : f32 to vector<65x128xf32>
    %99 = arith.maximumf %97, %98 : vector<65x128xf32>
    %100 = vector.extract_strided_slice %99 {offsets = [0, 0], sizes = [64, 128], strides = [1, 1]} : vector<65x128xf32> to vector<64x128xf32>
    %101 = arith.mulf %100, %100 : vector<64x128xf32>
    %cst_50 = arith.constant dense<0.000000e+00> : vector<128xf32>
    %102 = vector.multi_reduction <add>, %101, %cst_50 [0] : vector<64x128xf32> to vector<128xf32>
    %103 = vector.shape_cast %102 : vector<128xf32> to vector<1x128xf32>
    %cst_51 = arith.constant 9.99999974E-6 : f32
    %104 = vector.broadcast %cst_51 : f32 to vector<1x128xf32>
    %105 = arith.addf %103, %104 : vector<1x128xf32>
    %106 = math.rsqrt %105 : vector<1x128xf32>
    %107 = vector.broadcast %106 : vector<1x128xf32> to vector<64x128xf32>
    %108 = arith.mulf %100, %107 : vector<64x128xf32>
    %109 = arith.truncf %108 : vector<64x128xf32> to vector<64x128xbf16>
    %c5 = arith.constant 5 : index
    %c0_52 = arith.constant 0 : index
    %c0_53 = arith.constant 0 : index
    %110 = vector.load %arg4[%c5, %c0_52, %c0_53] : memref<6x64x128xbf16, #tpu.memory_space<vmem>>, vector<1x64x128xbf16>
    %111 = vector.shape_cast %110 : vector<1x64x128xbf16> to vector<64x128xbf16>
    %112 = vector.shape_cast %109 : vector<64x128xbf16> to vector<1x64x128xbf16>
    tpu.vector_store %arg4[%c5, %c0_52, %c0_53], %112 {strides = array<i32>} : memref<6x64x128xbf16, #tpu.memory_space<vmem>>, vector<1x64x128xbf16>,
    return
  }
  func.func @transform_0(%arg0: i32) -> (i32, i32) {
    %c0_i32 = arith.constant 0 : i32
    %c0_i32_0 = arith.constant 0 : i32
    return %c0_i32, %arg0 : i32, i32
  }
  func.func @transform_1(%arg0: i32) -> (i32, i32) {
    %c0_i32 = arith.constant 0 : i32
    %c0_i32_0 = arith.constant 0 : i32
    %c0_i32_1 = arith.constant 0 : i32
    return %c0_i32, %c0_i32_0 : i32, i32
  }
  func.func @transform_2(%arg0: i32) -> (i32, i32, i32) {
    %c0_i32 = arith.constant 0 : i32
    %c0_i32_0 = arith.constant 0 : i32
    %c0_i32_1 = arith.constant 0 : i32
    %c0_i32_2 = arith.constant 0 : i32
    return %c0_i32, %c0_i32_0, %c0_i32_1 : i32, i32, i32
  }
  func.func @transform_3(%arg0: i32) -> (i32, i32, i32) {
    %c0_i32 = arith.constant 0 : i32
    %c0_i32_0 = arith.constant 0 : i32
    %c0_i32_1 = arith.constant 0 : i32
    return %c0_i32, %c0_i32_0, %arg0 : i32, i32, i32
  }
}

module attributes {stable_mosaic.version = 11 : i64} {
  func.func @kernel(%arg0: i32, %arg1: memref<6x64x128xbf16, #tpu.memory_space<vmem>>, %arg2: memref<2x1x1x16xf32, #tpu.memory_space<vmem>>, %arg3: memref<2x6x16xf32, #tpu.memory_space<vmem>>) attributes {dimension_semantics = [#tpu.dimension_semantics<arbitrary>], iteration_bounds = array<i64: 1>, scalar_prefetch = 0 : i64, scratch_operands = 0 : i64, tpu.core_type = #tpu.core_type<tc>, window_params = [{pipeline_mode = #tpu.pipeline_mode<synchronous>, transform_indices = @transform_0, window_bounds = array<i64: 6, 64, 128>}, {pipeline_mode = #tpu.pipeline_mode<synchronous>, transform_indices = @transform_1, window_bounds = array<i64: 2, 1, 1, 16>}, {pipeline_mode = #tpu.pipeline_mode<synchronous>, transform_indices = @transform_2, window_bounds = array<i64: 2, 6, 16>}]} {
    %c0 = arith.constant 0 : index
    %c0_0 = arith.constant 0 : index
    %c0_1 = arith.constant 0 : index
    %0 = vector.load %arg1[%c0, %c0_0, %c0_1] : memref<6x64x128xbf16, #tpu.memory_space<vmem>>, vector<6x64x16xbf16>
    %cst = arith.constant 0.000000e+00 : f32
    %1 = vector.broadcast %cst : f32 to vector<6x16xf32>
    %c0_2 = arith.constant 0 : index
    %c0_3 = arith.constant 0 : index
    %c0_4 = arith.constant 0 : index
    %c0_5 = arith.constant 0 : index
    %2 = vector.load %arg2[%c0_2, %c0_3, %c0_4, %c0_5] : memref<2x1x1x16xf32, #tpu.memory_space<vmem>>, vector<1x1x1x16xf32>
    %3 = vector.shape_cast %2 : vector<1x1x1x16xf32> to vector<1x16xf32>
    %cst_6 = arith.constant 0.000000e+00 : f32
    %4 = vector.broadcast %cst_6 : f32 to vector<1x16xf32>
    %5 = arith.cmpf ogt, %3, %4 : vector<1x16xf32>
    %6 = arith.extui %5 : vector<1x16xi1> to vector<1x16xi32>
    %7 = arith.sitofp %6 : vector<1x16xi32> to vector<1x16xf32>
    %cst_7 = arith.constant dense<0.000000e+00> : vector<1xf32>
    %8 = vector.multi_reduction <add>, %7, %cst_7 [1] : vector<1x16xf32> to vector<1xf32>
    %9 = vector.shape_cast %8 : vector<1xf32> to vector<1x1xf32>
    %10 = arith.mulf %3, %7 : vector<1x16xf32>
    %cst_8 = arith.constant dense<0.000000e+00> : vector<1xf32>
    %11 = vector.multi_reduction <add>, %10, %cst_8 [1] : vector<1x16xf32> to vector<1xf32>
    %12 = vector.shape_cast %11 : vector<1xf32> to vector<1x1xf32>
    %cst_9 = arith.constant 1.000000e+00 : f32
    %13 = vector.broadcast %cst_9 : f32 to vector<1x1xf32>
    %14 = arith.maximumf %9, %13 : vector<1x1xf32>
    %15 = arith.divf %12, %14 : vector<1x1xf32>
    %16 = vector.broadcast %15 : vector<1x1xf32> to vector<1x16xf32>
    %17 = arith.cmpf oge, %3, %16 : vector<1x16xf32>
    %cst_10 = arith.constant 0.000000e+00 : f32
    %18 = vector.broadcast %cst_10 : f32 to vector<1x1xf32>
    %19 = arith.cmpf ogt, %9, %18 : vector<1x1xf32>
    %20 = vector.broadcast %19 : vector<1x1xi1> to vector<1x16xi1>
    %21 = arith.andi %17, %20 : vector<1x16xi1>
    %cst_11 = arith.constant 1.000000e+00 : f32
    %cst_12 = arith.constant 0.000000e+00 : f32
    %22 = vector.broadcast %cst_11 : f32 to vector<1x16xf32>
    %23 = vector.broadcast %cst_12 : f32 to vector<1x16xf32>
    %24 = arith.select %21, %22, %23 : vector<1x16xi1>, vector<1x16xf32>
    %cst_13 = arith.constant dense<0.000000e+00> : vector<1xf32>
    %25 = vector.multi_reduction <add>, %24, %cst_13 [1] : vector<1x16xf32> to vector<1xf32>
    %26 = vector.shape_cast %25 : vector<1xf32> to vector<1x1xf32>
    %cst_14 = arith.constant 1.000000e+00 : f32
    %27 = vector.broadcast %cst_14 : f32 to vector<1x1xf32>
    %28 = arith.maximumf %26, %27 : vector<1x1xf32>
    %cst_15 = arith.constant 1.000000e+00 : f32
    %29 = vector.broadcast %cst_15 : f32 to vector<1x1xf32>
    %30 = arith.divf %29, %28 : vector<1x1xf32>
    %c0_16 = arith.constant 0 : index
    %c0_17 = arith.constant 0 : index
    %c32 = arith.constant 32 : index
    %31 = vector.load %arg1[%c0_16, %c0_17, %c32] : memref<6x64x128xbf16, #tpu.memory_space<vmem>>, vector<6x64x16xbf16>
    %32 = arith.truncf %24 : vector<1x16xf32> to vector<1x16xbf16>
    %33 = vector.shape_cast %32 : vector<1x16xbf16> to vector<1x1x16xbf16>
    %34 = vector.broadcast %33 : vector<1x1x16xbf16> to vector<6x64x16xbf16>
    %35 = arith.mulf %31, %34 : vector<6x64x16xbf16>
    %36 = vector.extract_strided_slice %35 {offsets = [0, 0, 0], sizes = [1, 64, 16], strides = [1, 1, 1]} : vector<6x64x16xbf16> to vector<1x64x16xbf16>
    %37 = vector.shape_cast %36 : vector<1x64x16xbf16> to vector<64x16xbf16>
    %38 = vector.extract_strided_slice %0 {offsets = [0, 0, 0], sizes = [1, 64, 16], strides = [1, 1, 1]} : vector<6x64x16xbf16> to vector<1x64x16xbf16>
    %39 = vector.shape_cast %38 : vector<1x64x16xbf16> to vector<64x16xbf16>
    %cst_18 = arith.constant dense<0.000000e+00> : vector<16x16xf32>
    %40 = tpu.matmul %37, %39, %cst_18 {dimension_numbers = #tpu.dot_dimension_numbers<[0], [0], [1], [1], [0, 1, 1, 1], [], []>} : vector<64x16xbf16>, vector<64x16xbf16>, vector<16x16xf32> -> vector<16x16xf32>
    %cst_19 = arith.constant 0.000000e+00 : f32
    %41 = vector.broadcast %cst_19 : f32 to vector<16x16xf32>
    %42 = arith.maximumf %40, %41 : vector<16x16xf32>
    %43 = vector.extract_strided_slice %35 {offsets = [1, 0, 0], sizes = [1, 64, 16], strides = [1, 1, 1]} : vector<6x64x16xbf16> to vector<1x64x16xbf16>
    %44 = vector.shape_cast %43 : vector<1x64x16xbf16> to vector<64x16xbf16>
    %45 = vector.extract_strided_slice %0 {offsets = [1, 0, 0], sizes = [1, 64, 16], strides = [1, 1, 1]} : vector<6x64x16xbf16> to vector<1x64x16xbf16>
    %46 = vector.shape_cast %45 : vector<1x64x16xbf16> to vector<64x16xbf16>
    %cst_20 = arith.constant dense<0.000000e+00> : vector<16x16xf32>
    %47 = tpu.matmul %44, %46, %cst_20 {dimension_numbers = #tpu.dot_dimension_numbers<[0], [0], [1], [1], [0, 1, 1, 1], [], []>} : vector<64x16xbf16>, vector<64x16xbf16>, vector<16x16xf32> -> vector<16x16xf32>
    %cst_21 = arith.constant 0.000000e+00 : f32
    %48 = vector.broadcast %cst_21 : f32 to vector<16x16xf32>
    %49 = arith.maximumf %47, %48 : vector<16x16xf32>
    %50 = vector.extract_strided_slice %35 {offsets = [2, 0, 0], sizes = [1, 64, 16], strides = [1, 1, 1]} : vector<6x64x16xbf16> to vector<1x64x16xbf16>
    %51 = vector.shape_cast %50 : vector<1x64x16xbf16> to vector<64x16xbf16>
    %52 = vector.extract_strided_slice %0 {offsets = [2, 0, 0], sizes = [1, 64, 16], strides = [1, 1, 1]} : vector<6x64x16xbf16> to vector<1x64x16xbf16>
    %53 = vector.shape_cast %52 : vector<1x64x16xbf16> to vector<64x16xbf16>
    %cst_22 = arith.constant dense<0.000000e+00> : vector<16x16xf32>
    %54 = tpu.matmul %51, %53, %cst_22 {dimension_numbers = #tpu.dot_dimension_numbers<[0], [0], [1], [1], [0, 1, 1, 1], [], []>} : vector<64x16xbf16>, vector<64x16xbf16>, vector<16x16xf32> -> vector<16x16xf32>
    %cst_23 = arith.constant 0.000000e+00 : f32
    %55 = vector.broadcast %cst_23 : f32 to vector<16x16xf32>
    %56 = arith.maximumf %54, %55 : vector<16x16xf32>
    %57 = vector.extract_strided_slice %35 {offsets = [3, 0, 0], sizes = [1, 64, 16], strides = [1, 1, 1]} : vector<6x64x16xbf16> to vector<1x64x16xbf16>
    %58 = vector.shape_cast %57 : vector<1x64x16xbf16> to vector<64x16xbf16>
    %59 = vector.extract_strided_slice %0 {offsets = [3, 0, 0], sizes = [1, 64, 16], strides = [1, 1, 1]} : vector<6x64x16xbf16> to vector<1x64x16xbf16>
    %60 = vector.shape_cast %59 : vector<1x64x16xbf16> to vector<64x16xbf16>
    %cst_24 = arith.constant dense<0.000000e+00> : vector<16x16xf32>
    %61 = tpu.matmul %58, %60, %cst_24 {dimension_numbers = #tpu.dot_dimension_numbers<[0], [0], [1], [1], [0, 1, 1, 1], [], []>} : vector<64x16xbf16>, vector<64x16xbf16>, vector<16x16xf32> -> vector<16x16xf32>
    %cst_25 = arith.constant 0.000000e+00 : f32
    %62 = vector.broadcast %cst_25 : f32 to vector<16x16xf32>
    %63 = arith.maximumf %61, %62 : vector<16x16xf32>
    %64 = vector.extract_strided_slice %35 {offsets = [4, 0, 0], sizes = [1, 64, 16], strides = [1, 1, 1]} : vector<6x64x16xbf16> to vector<1x64x16xbf16>
    %65 = vector.shape_cast %64 : vector<1x64x16xbf16> to vector<64x16xbf16>
    %66 = vector.extract_strided_slice %0 {offsets = [4, 0, 0], sizes = [1, 64, 16], strides = [1, 1, 1]} : vector<6x64x16xbf16> to vector<1x64x16xbf16>
    %67 = vector.shape_cast %66 : vector<1x64x16xbf16> to vector<64x16xbf16>
    %cst_26 = arith.constant dense<0.000000e+00> : vector<16x16xf32>
    %68 = tpu.matmul %65, %67, %cst_26 {dimension_numbers = #tpu.dot_dimension_numbers<[0], [0], [1], [1], [0, 1, 1, 1], [], []>} : vector<64x16xbf16>, vector<64x16xbf16>, vector<16x16xf32> -> vector<16x16xf32>
    %cst_27 = arith.constant 0.000000e+00 : f32
    %69 = vector.broadcast %cst_27 : f32 to vector<16x16xf32>
    %70 = arith.maximumf %68, %69 : vector<16x16xf32>
    %71 = vector.extract_strided_slice %35 {offsets = [5, 0, 0], sizes = [1, 64, 16], strides = [1, 1, 1]} : vector<6x64x16xbf16> to vector<1x64x16xbf16>
    %72 = vector.shape_cast %71 : vector<1x64x16xbf16> to vector<64x16xbf16>
    %73 = vector.extract_strided_slice %0 {offsets = [5, 0, 0], sizes = [1, 64, 16], strides = [1, 1, 1]} : vector<6x64x16xbf16> to vector<1x64x16xbf16>
    %74 = vector.shape_cast %73 : vector<1x64x16xbf16> to vector<64x16xbf16>
    %cst_28 = arith.constant dense<0.000000e+00> : vector<16x16xf32>
    %75 = tpu.matmul %72, %74, %cst_28 {dimension_numbers = #tpu.dot_dimension_numbers<[0], [0], [1], [1], [0, 1, 1, 1], [], []>} : vector<64x16xbf16>, vector<64x16xbf16>, vector<16x16xf32> -> vector<16x16xf32>
    %cst_29 = arith.constant 0.000000e+00 : f32
    %76 = vector.broadcast %cst_29 : f32 to vector<16x16xf32>
    %77 = arith.maximumf %75, %76 : vector<16x16xf32>
    %78 = vector.shape_cast %42 : vector<16x16xf32> to vector<1x16x16xf32>
    %79 = vector.shape_cast %49 : vector<16x16xf32> to vector<1x16x16xf32>
    %80 = vector.shape_cast %56 : vector<16x16xf32> to vector<1x16x16xf32>
    %81 = vector.shape_cast %63 : vector<16x16xf32> to vector<1x16x16xf32>
    %82 = vector.shape_cast %70 : vector<16x16xf32> to vector<1x16x16xf32>
    %83 = vector.shape_cast %77 : vector<16x16xf32> to vector<1x16x16xf32>
    %84 = tpu.concatenate %78, %79, %80, %81, %82, %83 in 0 : vector<1x16x16xf32>, vector<1x16x16xf32>, vector<1x16x16xf32>, vector<1x16x16xf32>, vector<1x16x16xf32>, vector<1x16x16xf32> -> vector<6x16x16xf32>
    %cst_30 = arith.constant dense<0.000000e+00> : vector<6x16xf32>
    %85 = vector.multi_reduction <add>, %84, %cst_30 [1] : vector<6x16x16xf32> to vector<6x16xf32>
    %86 = vector.broadcast %30 : vector<1x1xf32> to vector<6x16xf32>
    %87 = arith.mulf %85, %86 : vector<6x16xf32>
    %88 = arith.addf %1, %87 : vector<6x16xf32>
    %c0_31 = arith.constant 0 : index
    %c0_32 = arith.constant 0 : index
    %c16 = arith.constant 16 : index
    %89 = vector.load %arg1[%c0_31, %c0_32, %c16] : memref<6x64x128xbf16, #tpu.memory_space<vmem>>, vector<6x64x16xbf16>
    %cst_33 = arith.constant 0.000000e+00 : f32
    %90 = vector.broadcast %cst_33 : f32 to vector<6x16xf32>
    %c1 = arith.constant 1 : index
    %c0_34 = arith.constant 0 : index
    %c0_35 = arith.constant 0 : index
    %c0_36 = arith.constant 0 : index
    %91 = vector.load %arg2[%c1, %c0_34, %c0_35, %c0_36] : memref<2x1x1x16xf32, #tpu.memory_space<vmem>>, vector<1x1x1x16xf32>
    %92 = vector.shape_cast %91 : vector<1x1x1x16xf32> to vector<1x16xf32>
    %cst_37 = arith.constant 0.000000e+00 : f32
    %93 = vector.broadcast %cst_37 : f32 to vector<1x16xf32>
    %94 = arith.cmpf ogt, %92, %93 : vector<1x16xf32>
    %95 = arith.extui %94 : vector<1x16xi1> to vector<1x16xi32>
    %96 = arith.sitofp %95 : vector<1x16xi32> to vector<1x16xf32>
    %cst_38 = arith.constant dense<0.000000e+00> : vector<1xf32>
    %97 = vector.multi_reduction <add>, %96, %cst_38 [1] : vector<1x16xf32> to vector<1xf32>
    %98 = vector.shape_cast %97 : vector<1xf32> to vector<1x1xf32>
    %99 = arith.mulf %92, %96 : vector<1x16xf32>
    %cst_39 = arith.constant dense<0.000000e+00> : vector<1xf32>
    %100 = vector.multi_reduction <add>, %99, %cst_39 [1] : vector<1x16xf32> to vector<1xf32>
    %101 = vector.shape_cast %100 : vector<1xf32> to vector<1x1xf32>
    %cst_40 = arith.constant 1.000000e+00 : f32
    %102 = vector.broadcast %cst_40 : f32 to vector<1x1xf32>
    %103 = arith.maximumf %98, %102 : vector<1x1xf32>
    %104 = arith.divf %101, %103 : vector<1x1xf32>
    %105 = vector.broadcast %104 : vector<1x1xf32> to vector<1x16xf32>
    %106 = arith.cmpf oge, %92, %105 : vector<1x16xf32>
    %cst_41 = arith.constant 0.000000e+00 : f32
    %107 = vector.broadcast %cst_41 : f32 to vector<1x1xf32>
    %108 = arith.cmpf ogt, %98, %107 : vector<1x1xf32>
    %109 = vector.broadcast %108 : vector<1x1xi1> to vector<1x16xi1>
    %110 = arith.andi %106, %109 : vector<1x16xi1>
    %cst_42 = arith.constant 1.000000e+00 : f32
    %cst_43 = arith.constant 0.000000e+00 : f32
    %111 = vector.broadcast %cst_42 : f32 to vector<1x16xf32>
    %112 = vector.broadcast %cst_43 : f32 to vector<1x16xf32>
    %113 = arith.select %110, %111, %112 : vector<1x16xi1>, vector<1x16xf32>
    %cst_44 = arith.constant dense<0.000000e+00> : vector<1xf32>
    %114 = vector.multi_reduction <add>, %113, %cst_44 [1] : vector<1x16xf32> to vector<1xf32>
    %115 = vector.shape_cast %114 : vector<1xf32> to vector<1x1xf32>
    %cst_45 = arith.constant 1.000000e+00 : f32
    %116 = vector.broadcast %cst_45 : f32 to vector<1x1xf32>
    %117 = arith.maximumf %115, %116 : vector<1x1xf32>
    %cst_46 = arith.constant 1.000000e+00 : f32
    %118 = vector.broadcast %cst_46 : f32 to vector<1x1xf32>
    %119 = arith.divf %118, %117 : vector<1x1xf32>
    %c0_47 = arith.constant 0 : index
    %c0_48 = arith.constant 0 : index
    %c48 = arith.constant 48 : index
    %120 = vector.load %arg1[%c0_47, %c0_48, %c48] : memref<6x64x128xbf16, #tpu.memory_space<vmem>>, vector<6x64x16xbf16>
    %121 = arith.truncf %113 : vector<1x16xf32> to vector<1x16xbf16>
    %122 = vector.shape_cast %121 : vector<1x16xbf16> to vector<1x1x16xbf16>
    %123 = vector.broadcast %122 : vector<1x1x16xbf16> to vector<6x64x16xbf16>
    %124 = arith.mulf %120, %123 : vector<6x64x16xbf16>
    %125 = vector.extract_strided_slice %124 {offsets = [0, 0, 0], sizes = [1, 64, 16], strides = [1, 1, 1]} : vector<6x64x16xbf16> to vector<1x64x16xbf16>
    %126 = vector.shape_cast %125 : vector<1x64x16xbf16> to vector<64x16xbf16>
    %127 = vector.extract_strided_slice %89 {offsets = [0, 0, 0], sizes = [1, 64, 16], strides = [1, 1, 1]} : vector<6x64x16xbf16> to vector<1x64x16xbf16>
    %128 = vector.shape_cast %127 : vector<1x64x16xbf16> to vector<64x16xbf16>
    %cst_49 = arith.constant dense<0.000000e+00> : vector<16x16xf32>
    %129 = tpu.matmul %126, %128, %cst_49 {dimension_numbers = #tpu.dot_dimension_numbers<[0], [0], [1], [1], [0, 1, 1, 1], [], []>} : vector<64x16xbf16>, vector<64x16xbf16>, vector<16x16xf32> -> vector<16x16xf32>
    %cst_50 = arith.constant 0.000000e+00 : f32
    %130 = vector.broadcast %cst_50 : f32 to vector<16x16xf32>
    %131 = arith.maximumf %129, %130 : vector<16x16xf32>
    %132 = vector.extract_strided_slice %124 {offsets = [1, 0, 0], sizes = [1, 64, 16], strides = [1, 1, 1]} : vector<6x64x16xbf16> to vector<1x64x16xbf16>
    %133 = vector.shape_cast %132 : vector<1x64x16xbf16> to vector<64x16xbf16>
    %134 = vector.extract_strided_slice %89 {offsets = [1, 0, 0], sizes = [1, 64, 16], strides = [1, 1, 1]} : vector<6x64x16xbf16> to vector<1x64x16xbf16>
    %135 = vector.shape_cast %134 : vector<1x64x16xbf16> to vector<64x16xbf16>
    %cst_51 = arith.constant dense<0.000000e+00> : vector<16x16xf32>
    %136 = tpu.matmul %133, %135, %cst_51 {dimension_numbers = #tpu.dot_dimension_numbers<[0], [0], [1], [1], [0, 1, 1, 1], [], []>} : vector<64x16xbf16>, vector<64x16xbf16>, vector<16x16xf32> -> vector<16x16xf32>
    %cst_52 = arith.constant 0.000000e+00 : f32
    %137 = vector.broadcast %cst_52 : f32 to vector<16x16xf32>
    %138 = arith.maximumf %136, %137 : vector<16x16xf32>
    %139 = vector.extract_strided_slice %124 {offsets = [2, 0, 0], sizes = [1, 64, 16], strides = [1, 1, 1]} : vector<6x64x16xbf16> to vector<1x64x16xbf16>
    %140 = vector.shape_cast %139 : vector<1x64x16xbf16> to vector<64x16xbf16>
    %141 = vector.extract_strided_slice %89 {offsets = [2, 0, 0], sizes = [1, 64, 16], strides = [1, 1, 1]} : vector<6x64x16xbf16> to vector<1x64x16xbf16>
    %142 = vector.shape_cast %141 : vector<1x64x16xbf16> to vector<64x16xbf16>
    %cst_53 = arith.constant dense<0.000000e+00> : vector<16x16xf32>
    %143 = tpu.matmul %140, %142, %cst_53 {dimension_numbers = #tpu.dot_dimension_numbers<[0], [0], [1], [1], [0, 1, 1, 1], [], []>} : vector<64x16xbf16>, vector<64x16xbf16>, vector<16x16xf32> -> vector<16x16xf32>
    %cst_54 = arith.constant 0.000000e+00 : f32
    %144 = vector.broadcast %cst_54 : f32 to vector<16x16xf32>
    %145 = arith.maximumf %143, %144 : vector<16x16xf32>
    %146 = vector.extract_strided_slice %124 {offsets = [3, 0, 0], sizes = [1, 64, 16], strides = [1, 1, 1]} : vector<6x64x16xbf16> to vector<1x64x16xbf16>
    %147 = vector.shape_cast %146 : vector<1x64x16xbf16> to vector<64x16xbf16>
    %148 = vector.extract_strided_slice %89 {offsets = [3, 0, 0], sizes = [1, 64, 16], strides = [1, 1, 1]} : vector<6x64x16xbf16> to vector<1x64x16xbf16>
    %149 = vector.shape_cast %148 : vector<1x64x16xbf16> to vector<64x16xbf16>
    %cst_55 = arith.constant dense<0.000000e+00> : vector<16x16xf32>
    %150 = tpu.matmul %147, %149, %cst_55 {dimension_numbers = #tpu.dot_dimension_numbers<[0], [0], [1], [1], [0, 1, 1, 1], [], []>} : vector<64x16xbf16>, vector<64x16xbf16>, vector<16x16xf32> -> vector<16x16xf32>
    %cst_56 = arith.constant 0.000000e+00 : f32
    %151 = vector.broadcast %cst_56 : f32 to vector<16x16xf32>
    %152 = arith.maximumf %150, %151 : vector<16x16xf32>
    %153 = vector.extract_strided_slice %124 {offsets = [4, 0, 0], sizes = [1, 64, 16], strides = [1, 1, 1]} : vector<6x64x16xbf16> to vector<1x64x16xbf16>
    %154 = vector.shape_cast %153 : vector<1x64x16xbf16> to vector<64x16xbf16>
    %155 = vector.extract_strided_slice %89 {offsets = [4, 0, 0], sizes = [1, 64, 16], strides = [1, 1, 1]} : vector<6x64x16xbf16> to vector<1x64x16xbf16>
    %156 = vector.shape_cast %155 : vector<1x64x16xbf16> to vector<64x16xbf16>
    %cst_57 = arith.constant dense<0.000000e+00> : vector<16x16xf32>
    %157 = tpu.matmul %154, %156, %cst_57 {dimension_numbers = #tpu.dot_dimension_numbers<[0], [0], [1], [1], [0, 1, 1, 1], [], []>} : vector<64x16xbf16>, vector<64x16xbf16>, vector<16x16xf32> -> vector<16x16xf32>
    %cst_58 = arith.constant 0.000000e+00 : f32
    %158 = vector.broadcast %cst_58 : f32 to vector<16x16xf32>
    %159 = arith.maximumf %157, %158 : vector<16x16xf32>
    %160 = vector.extract_strided_slice %124 {offsets = [5, 0, 0], sizes = [1, 64, 16], strides = [1, 1, 1]} : vector<6x64x16xbf16> to vector<1x64x16xbf16>
    %161 = vector.shape_cast %160 : vector<1x64x16xbf16> to vector<64x16xbf16>
    %162 = vector.extract_strided_slice %89 {offsets = [5, 0, 0], sizes = [1, 64, 16], strides = [1, 1, 1]} : vector<6x64x16xbf16> to vector<1x64x16xbf16>
    %163 = vector.shape_cast %162 : vector<1x64x16xbf16> to vector<64x16xbf16>
    %cst_59 = arith.constant dense<0.000000e+00> : vector<16x16xf32>
    %164 = tpu.matmul %161, %163, %cst_59 {dimension_numbers = #tpu.dot_dimension_numbers<[0], [0], [1], [1], [0, 1, 1, 1], [], []>} : vector<64x16xbf16>, vector<64x16xbf16>, vector<16x16xf32> -> vector<16x16xf32>
    %cst_60 = arith.constant 0.000000e+00 : f32
    %165 = vector.broadcast %cst_60 : f32 to vector<16x16xf32>
    %166 = arith.maximumf %164, %165 : vector<16x16xf32>
    %167 = vector.shape_cast %131 : vector<16x16xf32> to vector<1x16x16xf32>
    %168 = vector.shape_cast %138 : vector<16x16xf32> to vector<1x16x16xf32>
    %169 = vector.shape_cast %145 : vector<16x16xf32> to vector<1x16x16xf32>
    %170 = vector.shape_cast %152 : vector<16x16xf32> to vector<1x16x16xf32>
    %171 = vector.shape_cast %159 : vector<16x16xf32> to vector<1x16x16xf32>
    %172 = vector.shape_cast %166 : vector<16x16xf32> to vector<1x16x16xf32>
    %173 = tpu.concatenate %167, %168, %169, %170, %171, %172 in 0 : vector<1x16x16xf32>, vector<1x16x16xf32>, vector<1x16x16xf32>, vector<1x16x16xf32>, vector<1x16x16xf32>, vector<1x16x16xf32> -> vector<6x16x16xf32>
    %cst_61 = arith.constant dense<0.000000e+00> : vector<6x16xf32>
    %174 = vector.multi_reduction <add>, %173, %cst_61 [1] : vector<6x16x16xf32> to vector<6x16xf32>
    %175 = vector.broadcast %119 : vector<1x1xf32> to vector<6x16xf32>
    %176 = arith.mulf %174, %175 : vector<6x16xf32>
    %177 = arith.addf %90, %176 : vector<6x16xf32>
    %178 = vector.shape_cast %88 : vector<6x16xf32> to vector<1x6x16xf32>
    %179 = vector.shape_cast %177 : vector<6x16xf32> to vector<1x6x16xf32>
    %180 = tpu.concatenate %178, %179 in 0 : vector<1x6x16xf32>, vector<1x6x16xf32> -> vector<2x6x16xf32>
    %c0_62 = arith.constant 0 : index
    %c0_63 = arith.constant 0 : index
    %c0_64 = arith.constant 0 : index
    %181 = vector.load %arg3[%c0_62, %c0_63, %c0_64] : memref<2x6x16xf32, #tpu.memory_space<vmem>>, vector<2x6x16xf32>
    tpu.vector_store %arg3[%c0_62, %c0_63, %c0_64], %180 {strides = array<i32>} : memref<2x6x16xf32, #tpu.memory_space<vmem>>, vector<2x6x16xf32>,
    return
  }
  func.func @transform_0(%arg0: i32) -> (i32, i32, i32) {
    %c0_i32 = arith.constant 0 : i32
    %c0_i32_0 = arith.constant 0 : i32
    %c0_i32_1 = arith.constant 0 : i32
    %c0_i32_2 = arith.constant 0 : i32
    return %c0_i32, %c0_i32_0, %c0_i32_1 : i32, i32, i32
  }
  func.func @transform_1(%arg0: i32) -> (i32, i32, i32, i32) {
    %c0_i32 = arith.constant 0 : i32
    %c0_i32_0 = arith.constant 0 : i32
    %c0_i32_1 = arith.constant 0 : i32
    %c0_i32_2 = arith.constant 0 : i32
    %c0_i32_3 = arith.constant 0 : i32
    return %c0_i32, %c0_i32_0, %c0_i32_1, %c0_i32_2 : i32, i32, i32, i32
  }
  func.func @transform_2(%arg0: i32) -> (i32, i32, i32) {
    %c0_i32 = arith.constant 0 : i32
    %c0_i32_0 = arith.constant 0 : i32
    %c0_i32_1 = arith.constant 0 : i32
    %c0_i32_2 = arith.constant 0 : i32
    return %c0_i32, %c0_i32_0, %c0_i32_1 : i32, i32, i32
  }
}

module attributes {stable_mosaic.version = 11 : i64} {
  func.func @kernel(%arg0: i32, %arg1: memref<4x128xbf16, #tpu.memory_space<vmem>>, %arg2: memref<129x4xbf16, #tpu.memory_space<vmem>>, %arg3: memref<2x129x129xbf16, #tpu.memory_space<vmem>>, %arg4: memref<3x128x128xbf16, #tpu.memory_space<vmem>>) attributes {dimension_semantics = [#tpu.dimension_semantics<parallel>], iteration_bounds = array<i64: 1>, scalar_prefetch = 0 : i64, scratch_operands = 0 : i64, tpu.core_type = #tpu.core_type<tc>, window_params = [{transform_indices = @transform_0, window_bounds = array<i64: 4, 128>}, {pipeline_mode = #tpu.pipeline_mode<synchronous>, transform_indices = @transform_1, window_bounds = array<i64: 129, 4>}, {pipeline_mode = #tpu.pipeline_mode<synchronous>, transform_indices = @transform_2, window_bounds = array<i64: 2, 129, 129>}, {transform_indices = @transform_3, window_bounds = array<i64: 3, 128, 128>}]} {
    %c0 = arith.constant 0 : index
    %c0_0 = arith.constant 0 : index
    %0 = vector.load %arg1[%c0, %c0_0] : memref<4x128xbf16, #tpu.memory_space<vmem>>, vector<4x128xbf16>
    %c0_1 = arith.constant 0 : index
    %c0_2 = arith.constant 0 : index
    %1 = vector.load %arg2[%c0_1, %c0_2] : memref<129x4xbf16, #tpu.memory_space<vmem>>, vector<129x4xbf16>
    %cst = arith.constant dense<0.000000e+00> : vector<129x128xf32>
    %2 = tpu.matmul %1, %0, %cst {dimension_numbers = #tpu.dot_dimension_numbers<[1], [0], [0], [1], [0, 0, 1, 1], [], []>} : vector<129x4xbf16>, vector<4x128xbf16>, vector<129x128xf32> -> vector<129x128xf32>
    %cst_3 = arith.constant 0.000000e+00 : f32
    %3 = vector.broadcast %cst_3 : f32 to vector<129x128xf32>
    %4 = arith.maximumf %2, %3 : vector<129x128xf32>
    %5 = arith.truncf %4 : vector<129x128xf32> to vector<129x128xbf16>
    %6 = vector.extract_strided_slice %4 {offsets = [0, 0], sizes = [128, 128], strides = [1, 1]} : vector<129x128xf32> to vector<128x128xf32>
    %7 = arith.mulf %6, %6 : vector<128x128xf32>
    %cst_4 = arith.constant dense<0.000000e+00> : vector<128xf32>
    %8 = vector.multi_reduction <add>, %7, %cst_4 [0] : vector<128x128xf32> to vector<128xf32>
    %9 = vector.shape_cast %8 : vector<128xf32> to vector<1x128xf32>
    %cst_5 = arith.constant 9.99999974E-6 : f32
    %10 = vector.broadcast %cst_5 : f32 to vector<1x128xf32>
    %11 = arith.addf %9, %10 : vector<1x128xf32>
    %12 = math.rsqrt %11 : vector<1x128xf32>
    %13 = vector.broadcast %12 : vector<1x128xf32> to vector<128x128xf32>
    %14 = arith.mulf %6, %13 : vector<128x128xf32>
    %15 = arith.truncf %14 : vector<128x128xf32> to vector<128x128xbf16>
    %c0_6 = arith.constant 0 : index
    %c0_7 = arith.constant 0 : index
    %c0_8 = arith.constant 0 : index
    %16 = vector.load %arg4[%c0_6, %c0_7, %c0_8] : memref<3x128x128xbf16, #tpu.memory_space<vmem>>, vector<1x128x128xbf16>
    %17 = vector.shape_cast %16 : vector<1x128x128xbf16> to vector<128x128xbf16>
    %18 = vector.shape_cast %15 : vector<128x128xbf16> to vector<1x128x128xbf16>
    tpu.vector_store %arg4[%c0_6, %c0_7, %c0_8], %18 {strides = array<i32>} : memref<3x128x128xbf16, #tpu.memory_space<vmem>>, vector<1x128x128xbf16>,
    %c0_9 = arith.constant 0 : index
    %c0_10 = arith.constant 0 : index
    %c0_11 = arith.constant 0 : index
    %19 = vector.load %arg3[%c0_9, %c0_10, %c0_11] : memref<2x129x129xbf16, #tpu.memory_space<vmem>>, vector<1x129x129xbf16>
    %20 = vector.shape_cast %19 : vector<1x129x129xbf16> to vector<129x129xbf16>
    %cst_12 = arith.constant dense<0.000000e+00> : vector<129x128xf32>
    %21 = tpu.matmul %20, %5, %cst_12 {dimension_numbers = #tpu.dot_dimension_numbers<[1], [0], [0], [1], [0, 0, 1, 1], [], []>} : vector<129x129xbf16>, vector<129x128xbf16>, vector<129x128xf32> -> vector<129x128xf32>
    %cst_13 = arith.constant 0.000000e+00 : f32
    %22 = vector.broadcast %cst_13 : f32 to vector<129x128xf32>
    %23 = arith.maximumf %21, %22 : vector<129x128xf32>
    %24 = arith.truncf %23 : vector<129x128xf32> to vector<129x128xbf16>
    %25 = vector.extract_strided_slice %23 {offsets = [0, 0], sizes = [128, 128], strides = [1, 1]} : vector<129x128xf32> to vector<128x128xf32>
    %26 = arith.mulf %25, %25 : vector<128x128xf32>
    %cst_14 = arith.constant dense<0.000000e+00> : vector<128xf32>
    %27 = vector.multi_reduction <add>, %26, %cst_14 [0] : vector<128x128xf32> to vector<128xf32>
    %28 = vector.shape_cast %27 : vector<128xf32> to vector<1x128xf32>
    %cst_15 = arith.constant 9.99999974E-6 : f32
    %29 = vector.broadcast %cst_15 : f32 to vector<1x128xf32>
    %30 = arith.addf %28, %29 : vector<1x128xf32>
    %31 = math.rsqrt %30 : vector<1x128xf32>
    %32 = vector.broadcast %31 : vector<1x128xf32> to vector<128x128xf32>
    %33 = arith.mulf %25, %32 : vector<128x128xf32>
    %34 = arith.truncf %33 : vector<128x128xf32> to vector<128x128xbf16>
    %c1 = arith.constant 1 : index
    %c0_16 = arith.constant 0 : index
    %c0_17 = arith.constant 0 : index
    %35 = vector.load %arg4[%c1, %c0_16, %c0_17] : memref<3x128x128xbf16, #tpu.memory_space<vmem>>, vector<1x128x128xbf16>
    %36 = vector.shape_cast %35 : vector<1x128x128xbf16> to vector<128x128xbf16>
    %37 = vector.shape_cast %34 : vector<128x128xbf16> to vector<1x128x128xbf16>
    tpu.vector_store %arg4[%c1, %c0_16, %c0_17], %37 {strides = array<i32>} : memref<3x128x128xbf16, #tpu.memory_space<vmem>>, vector<1x128x128xbf16>,
    %c1_18 = arith.constant 1 : index
    %c0_19 = arith.constant 0 : index
    %c0_20 = arith.constant 0 : index
    %38 = vector.load %arg3[%c1_18, %c0_19, %c0_20] : memref<2x129x129xbf16, #tpu.memory_space<vmem>>, vector<1x129x129xbf16>
    %39 = vector.shape_cast %38 : vector<1x129x129xbf16> to vector<129x129xbf16>
    %cst_21 = arith.constant dense<0.000000e+00> : vector<129x128xf32>
    %40 = tpu.matmul %39, %24, %cst_21 {dimension_numbers = #tpu.dot_dimension_numbers<[1], [0], [0], [1], [0, 0, 1, 1], [], []>} : vector<129x129xbf16>, vector<129x128xbf16>, vector<129x128xf32> -> vector<129x128xf32>
    %cst_22 = arith.constant 0.000000e+00 : f32
    %41 = vector.broadcast %cst_22 : f32 to vector<129x128xf32>
    %42 = arith.maximumf %40, %41 : vector<129x128xf32>
    %43 = vector.extract_strided_slice %42 {offsets = [0, 0], sizes = [128, 128], strides = [1, 1]} : vector<129x128xf32> to vector<128x128xf32>
    %44 = arith.mulf %43, %43 : vector<128x128xf32>
    %cst_23 = arith.constant dense<0.000000e+00> : vector<128xf32>
    %45 = vector.multi_reduction <add>, %44, %cst_23 [0] : vector<128x128xf32> to vector<128xf32>
    %46 = vector.shape_cast %45 : vector<128xf32> to vector<1x128xf32>
    %cst_24 = arith.constant 9.99999974E-6 : f32
    %47 = vector.broadcast %cst_24 : f32 to vector<1x128xf32>
    %48 = arith.addf %46, %47 : vector<1x128xf32>
    %49 = math.rsqrt %48 : vector<1x128xf32>
    %50 = vector.broadcast %49 : vector<1x128xf32> to vector<128x128xf32>
    %51 = arith.mulf %43, %50 : vector<128x128xf32>
    %52 = arith.truncf %51 : vector<128x128xf32> to vector<128x128xbf16>
    %c2 = arith.constant 2 : index
    %c0_25 = arith.constant 0 : index
    %c0_26 = arith.constant 0 : index
    %53 = vector.load %arg4[%c2, %c0_25, %c0_26] : memref<3x128x128xbf16, #tpu.memory_space<vmem>>, vector<1x128x128xbf16>
    %54 = vector.shape_cast %53 : vector<1x128x128xbf16> to vector<128x128xbf16>
    %55 = vector.shape_cast %52 : vector<128x128xbf16> to vector<1x128x128xbf16>
    tpu.vector_store %arg4[%c2, %c0_25, %c0_26], %55 {strides = array<i32>} : memref<3x128x128xbf16, #tpu.memory_space<vmem>>, vector<1x128x128xbf16>,
    return
  }
  func.func @transform_0(%arg0: i32) -> (i32, i32) {
    %c0_i32 = arith.constant 0 : i32
    %c0_i32_0 = arith.constant 0 : i32
    return %c0_i32, %arg0 : i32, i32
  }
  func.func @transform_1(%arg0: i32) -> (i32, i32) {
    %c0_i32 = arith.constant 0 : i32
    %c0_i32_0 = arith.constant 0 : i32
    %c0_i32_1 = arith.constant 0 : i32
    return %c0_i32, %c0_i32_0 : i32, i32
  }
  func.func @transform_2(%arg0: i32) -> (i32, i32, i32) {
    %c0_i32 = arith.constant 0 : i32
    %c0_i32_0 = arith.constant 0 : i32
    %c0_i32_1 = arith.constant 0 : i32
    %c0_i32_2 = arith.constant 0 : i32
    return %c0_i32, %c0_i32_0, %c0_i32_1 : i32, i32, i32
  }
  func.func @transform_3(%arg0: i32) -> (i32, i32, i32) {
    %c0_i32 = arith.constant 0 : i32
    %c0_i32_0 = arith.constant 0 : i32
    %c0_i32_1 = arith.constant 0 : i32
    return %c0_i32, %c0_i32_0, %arg0 : i32, i32, i32
  }
}

module attributes {stable_mosaic.version = 11 : i64} {
  func.func @kernel(%arg0: i32, %arg1: memref<3x128x128xbf16, #tpu.memory_space<vmem>>, %arg2: memref<2x1x1x4xf32, #tpu.memory_space<vmem>>, %arg3: memref<2x3x4xf32, #tpu.memory_space<vmem>>) attributes {dimension_semantics = [#tpu.dimension_semantics<arbitrary>], iteration_bounds = array<i64: 1>, scalar_prefetch = 0 : i64, scratch_operands = 0 : i64, tpu.core_type = #tpu.core_type<tc>, window_params = [{pipeline_mode = #tpu.pipeline_mode<synchronous>, transform_indices = @transform_0, window_bounds = array<i64: 3, 128, 128>}, {pipeline_mode = #tpu.pipeline_mode<synchronous>, transform_indices = @transform_1, window_bounds = array<i64: 2, 1, 1, 4>}, {pipeline_mode = #tpu.pipeline_mode<synchronous>, transform_indices = @transform_2, window_bounds = array<i64: 2, 3, 4>}]} {
    %c0 = arith.constant 0 : index
    %c0_0 = arith.constant 0 : index
    %c0_1 = arith.constant 0 : index
    %0 = vector.load %arg1[%c0, %c0_0, %c0_1] : memref<3x128x128xbf16, #tpu.memory_space<vmem>>, vector<3x128x4xbf16>
    %cst = arith.constant 0.000000e+00 : f32
    %1 = vector.broadcast %cst : f32 to vector<3x4xf32>
    %c0_2 = arith.constant 0 : index
    %c0_3 = arith.constant 0 : index
    %c0_4 = arith.constant 0 : index
    %c0_5 = arith.constant 0 : index
    %2 = vector.load %arg2[%c0_2, %c0_3, %c0_4, %c0_5] : memref<2x1x1x4xf32, #tpu.memory_space<vmem>>, vector<1x1x1x4xf32>
    %3 = vector.shape_cast %2 : vector<1x1x1x4xf32> to vector<1x4xf32>
    %cst_6 = arith.constant 0.000000e+00 : f32
    %4 = vector.broadcast %cst_6 : f32 to vector<1x4xf32>
    %5 = arith.cmpf ogt, %3, %4 : vector<1x4xf32>
    %6 = arith.extui %5 : vector<1x4xi1> to vector<1x4xi32>
    %7 = arith.sitofp %6 : vector<1x4xi32> to vector<1x4xf32>
    %cst_7 = arith.constant dense<0.000000e+00> : vector<1xf32>
    %8 = vector.multi_reduction <add>, %7, %cst_7 [1] : vector<1x4xf32> to vector<1xf32>
    %9 = vector.shape_cast %8 : vector<1xf32> to vector<1x1xf32>
    %10 = arith.mulf %3, %7 : vector<1x4xf32>
    %cst_8 = arith.constant dense<0.000000e+00> : vector<1xf32>
    %11 = vector.multi_reduction <add>, %10, %cst_8 [1] : vector<1x4xf32> to vector<1xf32>
    %12 = vector.shape_cast %11 : vector<1xf32> to vector<1x1xf32>
    %cst_9 = arith.constant 1.000000e+00 : f32
    %13 = vector.broadcast %cst_9 : f32 to vector<1x1xf32>
    %14 = arith.maximumf %9, %13 : vector<1x1xf32>
    %15 = arith.divf %12, %14 : vector<1x1xf32>
    %16 = vector.broadcast %15 : vector<1x1xf32> to vector<1x4xf32>
    %17 = arith.cmpf oge, %3, %16 : vector<1x4xf32>
    %cst_10 = arith.constant 0.000000e+00 : f32
    %18 = vector.broadcast %cst_10 : f32 to vector<1x1xf32>
    %19 = arith.cmpf ogt, %9, %18 : vector<1x1xf32>
    %20 = vector.broadcast %19 : vector<1x1xi1> to vector<1x4xi1>
    %21 = arith.andi %17, %20 : vector<1x4xi1>
    %cst_11 = arith.constant 1.000000e+00 : f32
    %cst_12 = arith.constant 0.000000e+00 : f32
    %22 = vector.broadcast %cst_11 : f32 to vector<1x4xf32>
    %23 = vector.broadcast %cst_12 : f32 to vector<1x4xf32>
    %24 = arith.select %21, %22, %23 : vector<1x4xi1>, vector<1x4xf32>
    %cst_13 = arith.constant dense<0.000000e+00> : vector<1xf32>
    %25 = vector.multi_reduction <add>, %24, %cst_13 [1] : vector<1x4xf32> to vector<1xf32>
    %26 = vector.shape_cast %25 : vector<1xf32> to vector<1x1xf32>
    %cst_14 = arith.constant 1.000000e+00 : f32
    %27 = vector.broadcast %cst_14 : f32 to vector<1x1xf32>
    %28 = arith.maximumf %26, %27 : vector<1x1xf32>
    %cst_15 = arith.constant 1.000000e+00 : f32
    %29 = vector.broadcast %cst_15 : f32 to vector<1x1xf32>
    %30 = arith.divf %29, %28 : vector<1x1xf32>
    %c0_16 = arith.constant 0 : index
    %c0_17 = arith.constant 0 : index
    %c8 = arith.constant 8 : index
    %31 = vector.load %arg1[%c0_16, %c0_17, %c8] : memref<3x128x128xbf16, #tpu.memory_space<vmem>>, vector<3x128x4xbf16>
    %32 = arith.truncf %24 : vector<1x4xf32> to vector<1x4xbf16>
    %33 = vector.shape_cast %32 : vector<1x4xbf16> to vector<1x1x4xbf16>
    %34 = vector.broadcast %33 : vector<1x1x4xbf16> to vector<3x128x4xbf16>
    %35 = arith.mulf %31, %34 : vector<3x128x4xbf16>
    %36 = vector.extract_strided_slice %35 {offsets = [0, 0, 0], sizes = [1, 128, 4], strides = [1, 1, 1]} : vector<3x128x4xbf16> to vector<1x128x4xbf16>
    %37 = vector.shape_cast %36 : vector<1x128x4xbf16> to vector<128x4xbf16>
    %38 = vector.extract_strided_slice %0 {offsets = [0, 0, 0], sizes = [1, 128, 4], strides = [1, 1, 1]} : vector<3x128x4xbf16> to vector<1x128x4xbf16>
    %39 = vector.shape_cast %38 : vector<1x128x4xbf16> to vector<128x4xbf16>
    %cst_18 = arith.constant dense<0.000000e+00> : vector<4x4xf32>
    %40 = tpu.matmul %37, %39, %cst_18 {dimension_numbers = #tpu.dot_dimension_numbers<[0], [0], [1], [1], [0, 1, 1, 1], [], []>} : vector<128x4xbf16>, vector<128x4xbf16>, vector<4x4xf32> -> vector<4x4xf32>
    %cst_19 = arith.constant 0.000000e+00 : f32
    %41 = vector.broadcast %cst_19 : f32 to vector<4x4xf32>
    %42 = arith.maximumf %40, %41 : vector<4x4xf32>
    %43 = vector.extract_strided_slice %35 {offsets = [1, 0, 0], sizes = [1, 128, 4], strides = [1, 1, 1]} : vector<3x128x4xbf16> to vector<1x128x4xbf16>
    %44 = vector.shape_cast %43 : vector<1x128x4xbf16> to vector<128x4xbf16>
    %45 = vector.extract_strided_slice %0 {offsets = [1, 0, 0], sizes = [1, 128, 4], strides = [1, 1, 1]} : vector<3x128x4xbf16> to vector<1x128x4xbf16>
    %46 = vector.shape_cast %45 : vector<1x128x4xbf16> to vector<128x4xbf16>
    %cst_20 = arith.constant dense<0.000000e+00> : vector<4x4xf32>
    %47 = tpu.matmul %44, %46, %cst_20 {dimension_numbers = #tpu.dot_dimension_numbers<[0], [0], [1], [1], [0, 1, 1, 1], [], []>} : vector<128x4xbf16>, vector<128x4xbf16>, vector<4x4xf32> -> vector<4x4xf32>
    %cst_21 = arith.constant 0.000000e+00 : f32
    %48 = vector.broadcast %cst_21 : f32 to vector<4x4xf32>
    %49 = arith.maximumf %47, %48 : vector<4x4xf32>
    %50 = vector.extract_strided_slice %35 {offsets = [2, 0, 0], sizes = [1, 128, 4], strides = [1, 1, 1]} : vector<3x128x4xbf16> to vector<1x128x4xbf16>
    %51 = vector.shape_cast %50 : vector<1x128x4xbf16> to vector<128x4xbf16>
    %52 = vector.extract_strided_slice %0 {offsets = [2, 0, 0], sizes = [1, 128, 4], strides = [1, 1, 1]} : vector<3x128x4xbf16> to vector<1x128x4xbf16>
    %53 = vector.shape_cast %52 : vector<1x128x4xbf16> to vector<128x4xbf16>
    %cst_22 = arith.constant dense<0.000000e+00> : vector<4x4xf32>
    %54 = tpu.matmul %51, %53, %cst_22 {dimension_numbers = #tpu.dot_dimension_numbers<[0], [0], [1], [1], [0, 1, 1, 1], [], []>} : vector<128x4xbf16>, vector<128x4xbf16>, vector<4x4xf32> -> vector<4x4xf32>
    %cst_23 = arith.constant 0.000000e+00 : f32
    %55 = vector.broadcast %cst_23 : f32 to vector<4x4xf32>
    %56 = arith.maximumf %54, %55 : vector<4x4xf32>
    %57 = vector.shape_cast %42 : vector<4x4xf32> to vector<1x4x4xf32>
    %58 = vector.shape_cast %49 : vector<4x4xf32> to vector<1x4x4xf32>
    %59 = vector.shape_cast %56 : vector<4x4xf32> to vector<1x4x4xf32>
    %60 = tpu.concatenate %57, %58, %59 in 0 : vector<1x4x4xf32>, vector<1x4x4xf32>, vector<1x4x4xf32> -> vector<3x4x4xf32>
    %cst_24 = arith.constant dense<0.000000e+00> : vector<3x4xf32>
    %61 = vector.multi_reduction <add>, %60, %cst_24 [1] : vector<3x4x4xf32> to vector<3x4xf32>
    %62 = vector.broadcast %30 : vector<1x1xf32> to vector<3x4xf32>
    %63 = arith.mulf %61, %62 : vector<3x4xf32>
    %64 = arith.addf %1, %63 : vector<3x4xf32>
    %c0_25 = arith.constant 0 : index
    %c0_26 = arith.constant 0 : index
    %c4 = arith.constant 4 : index
    %65 = vector.load %arg1[%c0_25, %c0_26, %c4] : memref<3x128x128xbf16, #tpu.memory_space<vmem>>, vector<3x128x4xbf16>
    %cst_27 = arith.constant 0.000000e+00 : f32
    %66 = vector.broadcast %cst_27 : f32 to vector<3x4xf32>
    %c1 = arith.constant 1 : index
    %c0_28 = arith.constant 0 : index
    %c0_29 = arith.constant 0 : index
    %c0_30 = arith.constant 0 : index
    %67 = vector.load %arg2[%c1, %c0_28, %c0_29, %c0_30] : memref<2x1x1x4xf32, #tpu.memory_space<vmem>>, vector<1x1x1x4xf32>
    %68 = vector.shape_cast %67 : vector<1x1x1x4xf32> to vector<1x4xf32>
    %cst_31 = arith.constant 0.000000e+00 : f32
    %69 = vector.broadcast %cst_31 : f32 to vector<1x4xf32>
    %70 = arith.cmpf ogt, %68, %69 : vector<1x4xf32>
    %71 = arith.extui %70 : vector<1x4xi1> to vector<1x4xi32>
    %72 = arith.sitofp %71 : vector<1x4xi32> to vector<1x4xf32>
    %cst_32 = arith.constant dense<0.000000e+00> : vector<1xf32>
    %73 = vector.multi_reduction <add>, %72, %cst_32 [1] : vector<1x4xf32> to vector<1xf32>
    %74 = vector.shape_cast %73 : vector<1xf32> to vector<1x1xf32>
    %75 = arith.mulf %68, %72 : vector<1x4xf32>
    %cst_33 = arith.constant dense<0.000000e+00> : vector<1xf32>
    %76 = vector.multi_reduction <add>, %75, %cst_33 [1] : vector<1x4xf32> to vector<1xf32>
    %77 = vector.shape_cast %76 : vector<1xf32> to vector<1x1xf32>
    %cst_34 = arith.constant 1.000000e+00 : f32
    %78 = vector.broadcast %cst_34 : f32 to vector<1x1xf32>
    %79 = arith.maximumf %74, %78 : vector<1x1xf32>
    %80 = arith.divf %77, %79 : vector<1x1xf32>
    %81 = vector.broadcast %80 : vector<1x1xf32> to vector<1x4xf32>
    %82 = arith.cmpf oge, %68, %81 : vector<1x4xf32>
    %cst_35 = arith.constant 0.000000e+00 : f32
    %83 = vector.broadcast %cst_35 : f32 to vector<1x1xf32>
    %84 = arith.cmpf ogt, %74, %83 : vector<1x1xf32>
    %85 = vector.broadcast %84 : vector<1x1xi1> to vector<1x4xi1>
    %86 = arith.andi %82, %85 : vector<1x4xi1>
    %cst_36 = arith.constant 1.000000e+00 : f32
    %cst_37 = arith.constant 0.000000e+00 : f32
    %87 = vector.broadcast %cst_36 : f32 to vector<1x4xf32>
    %88 = vector.broadcast %cst_37 : f32 to vector<1x4xf32>
    %89 = arith.select %86, %87, %88 : vector<1x4xi1>, vector<1x4xf32>
    %cst_38 = arith.constant dense<0.000000e+00> : vector<1xf32>
    %90 = vector.multi_reduction <add>, %89, %cst_38 [1] : vector<1x4xf32> to vector<1xf32>
    %91 = vector.shape_cast %90 : vector<1xf32> to vector<1x1xf32>
    %cst_39 = arith.constant 1.000000e+00 : f32
    %92 = vector.broadcast %cst_39 : f32 to vector<1x1xf32>
    %93 = arith.maximumf %91, %92 : vector<1x1xf32>
    %cst_40 = arith.constant 1.000000e+00 : f32
    %94 = vector.broadcast %cst_40 : f32 to vector<1x1xf32>
    %95 = arith.divf %94, %93 : vector<1x1xf32>
    %c0_41 = arith.constant 0 : index
    %c0_42 = arith.constant 0 : index
    %c12 = arith.constant 12 : index
    %96 = vector.load %arg1[%c0_41, %c0_42, %c12] : memref<3x128x128xbf16, #tpu.memory_space<vmem>>, vector<3x128x4xbf16>
    %97 = arith.truncf %89 : vector<1x4xf32> to vector<1x4xbf16>
    %98 = vector.shape_cast %97 : vector<1x4xbf16> to vector<1x1x4xbf16>
    %99 = vector.broadcast %98 : vector<1x1x4xbf16> to vector<3x128x4xbf16>
    %100 = arith.mulf %96, %99 : vector<3x128x4xbf16>
    %101 = vector.extract_strided_slice %100 {offsets = [0, 0, 0], sizes = [1, 128, 4], strides = [1, 1, 1]} : vector<3x128x4xbf16> to vector<1x128x4xbf16>
    %102 = vector.shape_cast %101 : vector<1x128x4xbf16> to vector<128x4xbf16>
    %103 = vector.extract_strided_slice %65 {offsets = [0, 0, 0], sizes = [1, 128, 4], strides = [1, 1, 1]} : vector<3x128x4xbf16> to vector<1x128x4xbf16>
    %104 = vector.shape_cast %103 : vector<1x128x4xbf16> to vector<128x4xbf16>
    %cst_43 = arith.constant dense<0.000000e+00> : vector<4x4xf32>
    %105 = tpu.matmul %102, %104, %cst_43 {dimension_numbers = #tpu.dot_dimension_numbers<[0], [0], [1], [1], [0, 1, 1, 1], [], []>} : vector<128x4xbf16>, vector<128x4xbf16>, vector<4x4xf32> -> vector<4x4xf32>
    %cst_44 = arith.constant 0.000000e+00 : f32
    %106 = vector.broadcast %cst_44 : f32 to vector<4x4xf32>
    %107 = arith.maximumf %105, %106 : vector<4x4xf32>
    %108 = vector.extract_strided_slice %100 {offsets = [1, 0, 0], sizes = [1, 128, 4], strides = [1, 1, 1]} : vector<3x128x4xbf16> to vector<1x128x4xbf16>
    %109 = vector.shape_cast %108 : vector<1x128x4xbf16> to vector<128x4xbf16>
    %110 = vector.extract_strided_slice %65 {offsets = [1, 0, 0], sizes = [1, 128, 4], strides = [1, 1, 1]} : vector<3x128x4xbf16> to vector<1x128x4xbf16>
    %111 = vector.shape_cast %110 : vector<1x128x4xbf16> to vector<128x4xbf16>
    %cst_45 = arith.constant dense<0.000000e+00> : vector<4x4xf32>
    %112 = tpu.matmul %109, %111, %cst_45 {dimension_numbers = #tpu.dot_dimension_numbers<[0], [0], [1], [1], [0, 1, 1, 1], [], []>} : vector<128x4xbf16>, vector<128x4xbf16>, vector<4x4xf32> -> vector<4x4xf32>
    %cst_46 = arith.constant 0.000000e+00 : f32
    %113 = vector.broadcast %cst_46 : f32 to vector<4x4xf32>
    %114 = arith.maximumf %112, %113 : vector<4x4xf32>
    %115 = vector.extract_strided_slice %100 {offsets = [2, 0, 0], sizes = [1, 128, 4], strides = [1, 1, 1]} : vector<3x128x4xbf16> to vector<1x128x4xbf16>
    %116 = vector.shape_cast %115 : vector<1x128x4xbf16> to vector<128x4xbf16>
    %117 = vector.extract_strided_slice %65 {offsets = [2, 0, 0], sizes = [1, 128, 4], strides = [1, 1, 1]} : vector<3x128x4xbf16> to vector<1x128x4xbf16>
    %118 = vector.shape_cast %117 : vector<1x128x4xbf16> to vector<128x4xbf16>
    %cst_47 = arith.constant dense<0.000000e+00> : vector<4x4xf32>
    %119 = tpu.matmul %116, %118, %cst_47 {dimension_numbers = #tpu.dot_dimension_numbers<[0], [0], [1], [1], [0, 1, 1, 1], [], []>} : vector<128x4xbf16>, vector<128x4xbf16>, vector<4x4xf32> -> vector<4x4xf32>
    %cst_48 = arith.constant 0.000000e+00 : f32
    %120 = vector.broadcast %cst_48 : f32 to vector<4x4xf32>
    %121 = arith.maximumf %119, %120 : vector<4x4xf32>
    %122 = vector.shape_cast %107 : vector<4x4xf32> to vector<1x4x4xf32>
    %123 = vector.shape_cast %114 : vector<4x4xf32> to vector<1x4x4xf32>
    %124 = vector.shape_cast %121 : vector<4x4xf32> to vector<1x4x4xf32>
    %125 = tpu.concatenate %122, %123, %124 in 0 : vector<1x4x4xf32>, vector<1x4x4xf32>, vector<1x4x4xf32> -> vector<3x4x4xf32>
    %cst_49 = arith.constant dense<0.000000e+00> : vector<3x4xf32>
    %126 = vector.multi_reduction <add>, %125, %cst_49 [1] : vector<3x4x4xf32> to vector<3x4xf32>
    %127 = vector.broadcast %95 : vector<1x1xf32> to vector<3x4xf32>
    %128 = arith.mulf %126, %127 : vector<3x4xf32>
    %129 = arith.addf %66, %128 : vector<3x4xf32>
    %130 = vector.shape_cast %64 : vector<3x4xf32> to vector<1x3x4xf32>
    %131 = vector.shape_cast %129 : vector<3x4xf32> to vector<1x3x4xf32>
    %132 = tpu.concatenate %130, %131 in 0 : vector<1x3x4xf32>, vector<1x3x4xf32> -> vector<2x3x4xf32>
    %c0_50 = arith.constant 0 : index
    %c0_51 = arith.constant 0 : index
    %c0_52 = arith.constant 0 : index
    %133 = vector.load %arg3[%c0_50, %c0_51, %c0_52] : memref<2x3x4xf32, #tpu.memory_space<vmem>>, vector<2x3x4xf32>
    tpu.vector_store %arg3[%c0_50, %c0_51, %c0_52], %132 {strides = array<i32>} : memref<2x3x4xf32, #tpu.memory_space<vmem>>, vector<2x3x4xf32>,
    return
  }
  func.func @transform_0(%arg0: i32) -> (i32, i32, i32) {
    %c0_i32 = arith.constant 0 : i32
    %c0_i32_0 = arith.constant 0 : i32
    %c0_i32_1 = arith.constant 0 : i32
    %c0_i32_2 = arith.constant 0 : i32
    return %c0_i32, %c0_i32_0, %c0_i32_1 : i32, i32, i32
  }
  func.func @transform_1(%arg0: i32) -> (i32, i32, i32, i32) {
    %c0_i32 = arith.constant 0 : i32
    %c0_i32_0 = arith.constant 0 : i32
    %c0_i32_1 = arith.constant 0 : i32
    %c0_i32_2 = arith.constant 0 : i32
    %c0_i32_3 = arith.constant 0 : i32
    return %c0_i32, %c0_i32_0, %c0_i32_1, %c0_i32_2 : i32, i32, i32, i32
  }
  func.func @transform_2(%arg0: i32) -> (i32, i32, i32) {
    %c0_i32 = arith.constant 0 : i32
    %c0_i32_0 = arith.constant 0 : i32
    %c0_i32_1 = arith.constant 0 : i32
    %c0_i32_2 = arith.constant 0 : i32
    return %c0_i32, %c0_i32_0, %c0_i32_1 : i32, i32, i32
  }
}

module attributes {stable_mosaic.version = 11 : i64} {
  func.func @_head_kernel(%arg0: i32, %arg1: memref<14x128xbf16, #tpu.memory_space<vmem>>, %arg2: memref<33x14xbf16, #tpu.memory_space<vmem>>, %arg3: memref<2x33xbf16, #tpu.memory_space<vmem>>, %arg4: memref<2x128xf32, #tpu.memory_space<vmem>>) attributes {dimension_semantics = [#tpu.dimension_semantics<parallel>], iteration_bounds = array<i64: 1>, scalar_prefetch = 0 : i64, scratch_operands = 0 : i64, tpu.core_type = #tpu.core_type<tc>, window_params = [{transform_indices = @transform_0, window_bounds = array<i64: 14, 128>}, {pipeline_mode = #tpu.pipeline_mode<synchronous>, transform_indices = @transform_1, window_bounds = array<i64: 33, 14>}, {pipeline_mode = #tpu.pipeline_mode<synchronous>, transform_indices = @transform_2, window_bounds = array<i64: 2, 33>}, {transform_indices = @transform_3, window_bounds = array<i64: 2, 128>}]} {
    %c0 = arith.constant 0 : index
    %c0_0 = arith.constant 0 : index
    %0 = vector.load %arg2[%c0, %c0_0] : memref<33x14xbf16, #tpu.memory_space<vmem>>, vector<33x14xbf16>
    %c0_1 = arith.constant 0 : index
    %c0_2 = arith.constant 0 : index
    %1 = vector.load %arg1[%c0_1, %c0_2] : memref<14x128xbf16, #tpu.memory_space<vmem>>, vector<14x128xbf16>
    %cst = arith.constant dense<0.000000e+00> : vector<33x128xf32>
    %2 = tpu.matmul %0, %1, %cst {dimension_numbers = #tpu.dot_dimension_numbers<[1], [0], [0], [1], [0, 0, 1, 1], [], []>} : vector<33x14xbf16>, vector<14x128xbf16>, vector<33x128xf32> -> vector<33x128xf32>
    %cst_3 = arith.constant 0.000000e+00 : f32
    %3 = vector.broadcast %cst_3 : f32 to vector<33x128xf32>
    %4 = arith.maximumf %2, %3 : vector<33x128xf32>
    %c0_4 = arith.constant 0 : index
    %c0_5 = arith.constant 0 : index
    %5 = vector.load %arg3[%c0_4, %c0_5] : memref<2x33xbf16, #tpu.memory_space<vmem>>, vector<2x33xbf16>
    %6 = arith.truncf %4 : vector<33x128xf32> to vector<33x128xbf16>
    %cst_6 = arith.constant dense<0.000000e+00> : vector<2x128xf32>
    %7 = tpu.matmul %5, %6, %cst_6 {dimension_numbers = #tpu.dot_dimension_numbers<[1], [0], [0], [1], [0, 0, 1, 1], [], []>} : vector<2x33xbf16>, vector<33x128xbf16>, vector<2x128xf32> -> vector<2x128xf32>
    %c0_7 = arith.constant 0 : index
    %c0_8 = arith.constant 0 : index
    %8 = vector.load %arg4[%c0_7, %c0_8] : memref<2x128xf32, #tpu.memory_space<vmem>>, vector<2x128xf32>
    tpu.vector_store %arg4[%c0_7, %c0_8], %7 {strides = array<i32>} : memref<2x128xf32, #tpu.memory_space<vmem>>, vector<2x128xf32>,
    return
  }
  func.func @transform_0(%arg0: i32) -> (i32, i32) {
    %c0_i32 = arith.constant 0 : i32
    %c0_i32_0 = arith.constant 0 : i32
    return %c0_i32, %arg0 : i32, i32
  }
  func.func @transform_1(%arg0: i32) -> (i32, i32) {
    %c0_i32 = arith.constant 0 : i32
    %c0_i32_0 = arith.constant 0 : i32
    %c0_i32_1 = arith.constant 0 : i32
    return %c0_i32, %c0_i32_0 : i32, i32
  }
  func.func @transform_2(%arg0: i32) -> (i32, i32) {
    %c0_i32 = arith.constant 0 : i32
    %c0_i32_0 = arith.constant 0 : i32
    %c0_i32_1 = arith.constant 0 : i32
    return %c0_i32, %c0_i32_0 : i32, i32
  }
  func.func @transform_3(%arg0: i32) -> (i32, i32) {
    %c0_i32 = arith.constant 0 : i32
    %c0_i32_0 = arith.constant 0 : i32
    return %c0_i32, %arg0 : i32, i32
  }
}

</mosaic_0001>

<llo_original>
// kernel: forward.7
$region0: #{forward.7}
  #allocation0 [shape = 'u32[]', space=smem, size = 0x4, offset = 0x4, fixed_abs, tag = 'smem constant byte address 0x4 - core index']
  #allocation1 [shape = 'u32[144,128]{1,0:T(1,128)}', space=vmem, size = 0x12000, scoped, tag = 'internal scratch']
  %s0 = inlined_call_operand.vmem [shape: bf16[4,256], index: 0, kind: input, shape index: {}]
  %s1 = inlined_call_operand.vmem [shape: bf16[33,4], index: 1, kind: input, shape index: {}]
  %s2 = inlined_call_operand.vmem [shape: bf16[3,33,33], index: 2, kind: input, shape index: {}]
  %s3 = inlined_call_operand.vmem [shape: bf16[4,32,256], index: 3, kind: output, shape index: {}]
  %s4 = sld [smem:[#allocation0]]
  $region82: #{forward.7} parent=0
    _
  %s6 = ssub.s32 1, %s4
  %s7 = scalar_select 0, %s6, %s4
  $region1: #{forward.7} parent=0
    #allocation2 [shape = 'u8[65536]{0}', space=vmem, size = 0x10000, scoped, tag = 'output window, operand 0']
    loop: start=0, step=1, limit=4
    $region2: #{forward.7} parent=1 // loop_pre_header
      _
    $region3: #{forward.7} parent=1 // loop_header
      %s9 = sphi 0, %s13
      %p10 = scmp.ge.s32.totalorder %s9, 4
      %s19 = sphi 0, %s21
      %s22 = sphi 0, %s19
      %s23 = sphi 0, %s22
      %s39 = sphi 0, %s23
      %s43 = sphi 0, %s43
      %s45 = sphi 0, %s43
      %s46 = sphi 0, %s45
      %s60 = sphi 0, %s46
      %s64 = sphi 0, %s64
      %s66 = sphi 0, %s64
      %s67 = sphi 0, %s66
      %s81 = sphi 0, %s67
      %s87 = sphi 0, %s89
      %s90 = sphi 0, %s87
      %s91 = sphi 0, %s90
      %s107 = sphi 0, %s91
    $region4: #{forward.7} parent=1 // loop_header_branch
      %12 = sbr.rel (%p10) target = $region8
    $region5: #{forward.7} parent=1 // loop_body
      %s14 = ssub.s32 %s9, 1
      %s15 = ssub.s32 %s9, 2
      %s16 = sadd.s32 %s9, 1
      %s17 = ssub.s32 %s9, %s16
      %p18 = scmp.eq.s32.totalorder %s17, 0
      %s20 = sadd.s32 %s19, 1
      %s21 = scalar_select %p18, %s19, %s20
      %p24 = pneg %p18
      %p25 = scmp.eq.s32.totalorder %s9, 1
      %p26 = por %p24, %p25
      %p27 = scmp.ne.s32.totalorder %s19, %s22
      %p28 = scmp.eq.s32.totalorder %s9, 0
      %p29 = por %p27, %p28
      %p30 = scmp.ne.s32.totalorder %s19, %s22
      %p31 = scmp.eq.s32.totalorder %s14, 1
      %p32 = por %p30, %p31
      %p33 = scmp.ne.s32.totalorder %s22, %s23
      %p34 = scmp.eq.s32.totalorder %s14, 0
      %p35 = por %p33, %p34
      %p36 = scmp.ne.s32.totalorder %s22, %s23
      %p37 = scmp.eq.s32.totalorder %s15, 1
      %p38 = por %p36, %p37
      %p40 = scmp.ne.s32.totalorder %s23, %s39
      %p41 = scmp.eq.s32.totalorder %s15, 0
      %p42 = por %p40, %p41
      %s44 = sadd.s32 %s43, 1
      %p47 = scmp.eq.s32.totalorder %s9, 1
      %p48 = scmp.ne.s32.totalorder %s43, %s45
      %p49 = scmp.eq.s32.totalorder %s9, 0
      %p50 = por %p48, %p49
      %p51 = scmp.ne.s32.totalorder %s43, %s45
      %p52 = scmp.eq.s32.totalorder %s14, 1
      %p53 = por %p51, %p52
      %p54 = scmp.ne.s32.totalorder %s45, %s46
      %p55 = scmp.eq.s32.totalorder %s14, 0
      %p56 = por %p54, %p55
      %p57 = scmp.ne.s32.totalorder %s45, %s46
      %p58 = scmp.eq.s32.totalorder %s15, 1
      %p59 = por %p57, %p58
      %p61 = scmp.ne.s32.totalorder %s46, %s60
      %p62 = scmp.eq.s32.totalorder %s15, 0
      %p63 = por %p61, %p62
      %s65 = sadd.s32 %s64, 1
      %p68 = scmp.eq.s32.totalorder %s9, 1
      %p69 = scmp.ne.s32.totalorder %s64, %s66
      %p70 = scmp.eq.s32.totalorder %s9, 0
      %p71 = por %p69, %p70
      %p72 = scmp.ne.s32.totalorder %s64, %s66
      %p73 = scmp.eq.s32.totalorder %s14, 1
      %p74 = por %p72, %p73
      %p75 = scmp.ne.s32.totalorder %s66, %s67
      %p76 = scmp.eq.s32.totalorder %s14, 0
      %p77 = por %p75, %p76
      %p78 = scmp.ne.s32.totalorder %s66, %s67
      %p79 = scmp.eq.s32.totalorder %s15, 1
      %p80 = por %p78, %p79
      %p82 = scmp.ne.s32.totalorder %s67, %s81
      %p83 = scmp.eq.s32.totalorder %s15, 0
      %p84 = por %p82, %p83
      %s85 = ssub.s32 %s9, %s16
      %p86 = scmp.eq.s32.totalorder %s85, 0
      %s88 = sadd.s32 %s87, 1
      %s89 = scalar_select %p86, %s87, %s88
      %p92 = pneg %p86
      %p93 = scmp.eq.s32.totalorder %s9, 1
      %p94 = por %p92, %p93
      %p95 = scmp.ne.s32.totalorder %s87, %s90
      %p96 = scmp.eq.s32.totalorder %s9, 0
      %p97 = por %p95, %p96
      %p98 = scmp.ne.s32.totalorder %s87, %s90
      %p99 = scmp.eq.s32.totalorder %s14, 1
      %p100 = por %p98, %p99
      %p101 = scmp.ne.s32.totalorder %s90, %s91
      %p102 = scmp.eq.s32.totalorder %s14, 0
      %p103 = por %p101, %p102
      %p104 = scmp.ne.s32.totalorder %s90, %s91
      %p105 = scmp.eq.s32.totalorder %s15, 1
      %p106 = por %p104, %p105
      %p108 = scmp.ne.s32.totalorder %s91, %s107
      %p109 = scmp.eq.s32.totalorder %s15, 0
      %p110 = por %p108, %p109
      %p111 = scmp.le.s32.totalorder 1, %s9
      %p112 = scmp.lt.s32.totalorder %s9, 3
      %p113 = pnand %p111, %p112
      %p114 = pneg %p113
      // Predicated region
      $region9: #{forward.7} parent=5 // pred_check
        _
      $region10: #{forward.7} parent=5 // pred_check_branch
        %116 = sbr.rel (%p113) target = $region12
      $region11: #{forward.7} parent=5 // pred_region
        %s117 = ssub.s32 %s9, 1
        // Predicated region
        $region13: #{forward.7} parent=11 // pred_check
          %p118 = pneg %p56
        $region14: #{forward.7} parent=11 // pred_check_branch
          %120 = sbr.rel (%p118) target = $region16
        $region15: #{forward.7} parent=11 // pred_region
          _
        $region16: #{forward.7} parent=11 // pred_fallthru
          _
        // Predicated region
        $region17: #{forward.7} parent=11 // pred_check
          %p121 = pneg %p77
        $region18: #{forward.7} parent=11 // pred_check_branch
          %123 = sbr.rel (%p121) target = $region20
        $region19: #{forward.7} parent=11 // pred_region
          _
        $region20: #{forward.7} parent=11 // pred_fallthru
          _
      $region12: #{forward.7} parent=5 // pred_fallthru
        _
      %p124 = scmp.lt.s32.totalorder %s9, 2
      // Predicated region
      $region21: #{forward.7} parent=5 // pred_check
        %p125 = pneg %p124
      $region22: #{forward.7} parent=5 // pred_check_branch
        %127 = sbr.rel (%p125) target = $region24
      $region23: #{forward.7} parent=5 // pred_region
        // Predicated region
        $region25: #{forward.7} parent=23 // pred_check
          %p128 = pneg %p29
        $region26: #{forward.7} parent=23 // pred_check_branch
          %130 = sbr.rel (%p128) target = $region28
        $region27: #{forward.7} parent=23 // pred_region
          %p131 = scmp.lt.s32.totalorder %s9, 1
          %s132 = scalar_select %p131, %s9, 1
          %s133 = smul.addr %s132, 2
          %s134 = scalar_lea.vmem %s0, %s133
        $region28: #{forward.7} parent=23 // pred_fallthru
          _
      $region24: #{forward.7} parent=5 // pred_fallthru
        _
      %p135 = scmp.le.s32.totalorder 1, %s9
      %p136 = scmp.lt.s32.totalorder %s9, 3
      %p137 = pnand %p135, %p136
      %p138 = pneg %p137
      // Predicated region
      $region29: #{forward.7} parent=5 // pred_check
        _
      $region30: #{forward.7} parent=5 // pred_check_branch
        %140 = sbr.rel (%p137) target = $region32
      $region31: #{forward.7} parent=5 // pred_region
        %s141 = ssub.s32 %s9, 1
        %p142 = scmp.lt.s32.totalorder %s14, 1
        %s143 = scalar_select %p142, %s14, 1
        %s144 = smul.addr %s143, 2
        %s145 = scalar_lea.vmem %s0, %s144
        %p146 = pneg %p35
        %p147 = pneg %p32
        %p148 = pneg %p56
        %p149 = pneg %p53
        %p150 = pneg %p77
        %p151 = pneg %p74
        %p152 = pneg %p103
        %p153 = pneg %p100
        %s154 = sand.u32 %s90, 1
        %s155 = sand.u32 %s90, 1
        %s156 = smul.addr %s155, 64
        %s157 = scalar_lea.vmem [#allocation2], %s156
        %p158 = scmp.lt.s32.totalorder %s14, 1
        %s159 = scalar_select %p158, %s14, 1
        %s160 = smul.addr %s159, 2
        %s161 = scalar_lea.vmem %s0, %s160
        %v163 = vld [vmem:[%s161] sm:$0x3]
        %v164 = vld [vmem:[%s1] sm:$0xf]
        %v165 = vld [vmem:[%s1 + $0x4] sm:$0xf]
        %v166 = vld [vmem:[%s1 + $0x8] sm:$0xf]
        %v167 = vld [vmem:[%s1 + $0xc] sm:$0xf]
        %v168 = vld [vmem:[%s1 + $0x10] sm:$0x1]
        %v174 = vunpack.c.l.b16 %v164
        %v175 = vunpack.c.l.b16 %v165
        %v176 = vunpack.c.l.b16 %v166
        %v177 = vunpack.c.l.b16 %v167
        %v178 = vunpack.c.l.b16 %v168
        %v179 = vpack.c.b16 %v175, %v174
        %v180 = vpack.c.b16 %v177, %v176
        %v181 = vpack.c.b16 %v178, %v178
        %vm182 = vcmask 31744
        %v184 = vsel %vm182, %v179, 0
        %v187 = vsel %vm182, %v180, 0
        %v190 = vsel %vm182, %v181, 0
        %vm192 = vcmask 1041408
        %v194 = vsel %vm192, %v163, 0
        %196 = vmatprep.subr.bf16.mxu0 0
        %197 = vmatpush1.bf16.msra.mxu0 0
        %198 = vmatprep.subr.bf16.mxu0 0
        %199 = vmatpush1.bf16.msra.mxu0 0
        %200 = vmatprep.subr.bf16.mxu0 0
        %201 = vmatpush1.bf16.msra.mxu0 0
        %202 = vmatprep.subr.bf16.mxu0 0
        %203 = vmatpush1.bf16.msra.mxu0 0
        %204 = vmatprep.subr.bf16.mxu0 0
        %205 = vmatpush1.bf16.msra.mxu0 0
        %206 = vmatprep.subr.bf16.mxu0 0
        %207 = vmatpush1.bf16.msra.mxu0 0
        %208 = vmatprep.subr.bf16.mxu0 0
        %209 = vmatpush1.bf16.msra.mxu0 0
        %210 = vmatprep.subr.bf16.mxu0 0
        %211 = vmatpush1.bf16.msra.mxu0 %v194
        %212 = vmatprep.subr.bf16.mxu0 0
        %213 = vmatpush2.bf16.msra.mxu0 0
        %214 = vmatprep.subr.bf16.mxu0 0
        %215 = vmatpush2.bf16.msra.mxu0 0
        %216 = vmatprep.subr.bf16.mxu0 0
        %217 = vmatpush2.bf16.msra.mxu0 0
        %218 = vmatprep.subr.bf16.mxu0 0
        %219 = vmatpush2.bf16.msra.mxu0 0
        %220 = vmatprep.subr.bf16.mxu0 0
        %221 = vmatpush2.bf16.msra.mxu0 0
        %222 = vmatprep.subr.bf16.mxu0 0
        %223 = vmatpush2.bf16.msra.mxu0 0
        %224 = vmatprep.subr.bf16.mxu0 0
        %225 = vmatpush2.bf16.msra.mxu0 0
        %226 = vmatprep.subr.bf16.mxu0 0
        %227 = vmatpush2.bf16.msra.mxu0 0
        %228 = vmatprep.mubr.bf16.mxu0 0
        %229 = vmatmul.mubr.bf16.gmra.mxu0 %v184
        %v230 = vpop.f32.mrf.mxu0
        %v231 = vadd.f32 0.0, %v230
        %v232 = vpop.f32.mrf.mxu0
        %v233 = vpop.f32.mrf.mxu0
        %v234 = vadd.f32 0.0, %v233
        %v235 = vpop.f32.mrf.mxu0
        %236 = vmatprep.mubr.bf16.mxu0 0
        %237 = vmatmul.mubr.bf16.gmra.mxu0 %v187
        %v238 = vpop.f32.mrf.mxu0
        %v239 = vadd.f32 0.0, %v238
        %v240 = vpop.f32.mrf.mxu0
        %v241 = vpop.f32.mrf.mxu0
        %v242 = vadd.f32 0.0, %v241
        %v243 = vpop.f32.mrf.mxu0
        %244 = vmatprep.mubr.bf16.mxu0 0
        %245 = vmatmul.mubr.bf16.gmra.mxu0 %v190
        %v246 = vpop.f32.mrf.mxu0
        %v247 = vadd.f32 0.0, %v246
        %v248 = vpop.f32.mrf.mxu0
        %v249 = vpop.f32.mrf.mxu0
        %v250 = vpop.f32.mrf.mxu0
        %251 = vdwg.mxu0
        %v252 = vmax.f32 %v231, 0.0
        %v253 = vmax.f32 %v234, 0.0
        %v254 = vmax.f32 %v239, 0.0
        %v255 = vmax.f32 %v242, 0.0
        %v256 = vmax.f32 %v247, 0.0
        %v257 = vpack.c.bf16 %v253, %v252
        %v258 = vpack.c.bf16 %v255, %v254
        %v259 = vpack.c.bf16 %v256, %v256
        %v260 = vmul.f32 %v252, %v252
        %v261 = vmul.f32 %v253, %v253
        %v262 = vmul.f32 %v254, %v254
        %v263 = vmul.f32 %v255, %v255
        %v264 = vadd.f32 %v260, %v261
        %v265 = vadd.f32 %v264, %v262
        %v266 = vadd.f32 %v265, %v263
        %v267 = vrot.slane %v266, 4
        %v268 = vadd.f32 %v266, %v267
        %v269 = vrot.slane %v268, 2
        %v270 = vadd.f32 %v268, %v269
        %v271 = vrot.slane %v270, 1
        %v272 = vadd.f32 %v270, %v271
        %v273 = vadd.f32 %v272, 1e-05
        %v274 = vrsqrt.pop %v273
        %v275 = vmul.f32 %v252, %v274
        %v276 = vmul.f32 %v253, %v274
        %v277 = vmul.f32 %v254, %v274
        %v278 = vmul.f32 %v255, %v274
        %v279 = vpack.c.bf16 %v276, %v275
        %v280 = vpack.c.bf16 %v278, %v277
        %v283 = vunpack.c.l.b16 %v279
        %v284 = vunpack.c.h.b16 %v279
        %v285 = vunpack.c.l.b16 %v280
        %v286 = vunpack.c.h.b16 %v280
        %v287 = vpack.c.b16 %v283, %v283
        %v288 = vpack.c.b16 %v284, %v284
        %v289 = vpack.c.b16 %v285, %v285
        %v290 = vpack.c.b16 %v286, %v286
        %295 = vst [vmem:[%s157] sm:$0xf] %v287
        %296 = vst [vmem:[%s157 + $0x4] sm:$0xf] %v288
        %297 = vst [vmem:[%s157 + $0x8] sm:$0xf] %v289
        %298 = vst [vmem:[%s157 + $0xc] sm:$0xf] %v290
        %v299 = vld [vmem:[%s2] sm:$0xf]
        %v300 = vld [vmem:[%s2 + $0x4] sm:$0xf]
        %v301 = vld [vmem:[%s2 + $0x8] sm:$0xf]
        %v302 = vld [vmem:[%s2 + $0xc] sm:$0xf]
        %v303 = vld [vmem:[%s2 + $0x10] sm:$0x1]
        %v309 = vunpack.c.l.b16 %v299
        %v310 = vunpack.c.l.b16 %v300
        %v311 = vunpack.c.l.b16 %v301
        %v312 = vunpack.c.l.b16 %v302
        %v313 = vunpack.c.l.b16 %v303
        %v314 = vpack.c.b16 %v310, %v309
        %v315 = vpack.c.b16 %v312, %v311
        %v316 = vpack.c.b16 %v313, %v313
        %vm317 = vcmask 269312
        %v319 = vsel %vm317, %v314, 0
        %v322 = vsel %vm317, %v315, 0
        %v325 = vsel %vm317, %v316, 0
        %vm327 = vcmask 1040384
        %v328 = vsel 0, 4294967295, 65535
        %v329 = vsel %vm327, %v328, 0
        %v331 = vand.u32 %v259, %v329
        %333 = vmatprep.subr.bf16.mxu0 0
        %334 = vmatpush1.bf16.msra.mxu0 0
        %335 = vmatprep.subr.bf16.mxu0 0
        %336 = vmatpush1.bf16.msra.mxu0 0
        %337 = vmatprep.subr.bf16.mxu0 0
        %338 = vmatpush1.bf16.msra.mxu0 0
        %339 = vmatprep.subr.bf16.mxu0 0
        %340 = vmatpush1.bf16.msra.mxu0 0
        %341 = vmatprep.subr.bf16.mxu0 0
        %342 = vmatpush1.bf16.msra.mxu0 0
        %343 = vmatprep.subr.bf16.mxu0 0
        %344 = vmatpush1.bf16.msra.mxu0 %v331
        %345 = vmatprep.subr.bf16.mxu0 0
        %346 = vmatpush1.bf16.msra.mxu0 %v258
        %347 = vmatprep.subr.bf16.mxu0 0
        %348 = vmatpush1.bf16.msra.mxu0 %v257
        %349 = vmatprep.subr.bf16.mxu0 0
        %350 = vmatpush2.bf16.msra.mxu0 0
        %351 = vmatprep.subr.bf16.mxu0 0
        %352 = vmatpush2.bf16.msra.mxu0 0
        %353 = vmatprep.subr.bf16.mxu0 0
        %354 = vmatpush2.bf16.msra.mxu0 0
        %355 = vmatprep.subr.bf16.mxu0 0
        %356 = vmatpush2.bf16.msra.mxu0 0
        %357 = vmatprep.subr.bf16.mxu0 0
        %358 = vmatpush2.bf16.msra.mxu0 0
        %359 = vmatprep.subr.bf16.mxu0 0
        %360 = vmatpush2.bf16.msra.mxu0 0
        %361 = vmatprep.subr.bf16.mxu0 0
        %362 = vmatpush2.bf16.msra.mxu0 0
        %363 = vmatprep.subr.bf16.mxu0 0
        %364 = vmatpush2.bf16.msra.mxu0 0
        %365 = vmatprep.mubr.bf16.mxu0 0
        %366 = vmatmul.mubr.bf16.gmra.mxu0 %v319
        %v367 = vpop.f32.mrf.mxu0
        %v368 = vadd.f32 0.0, %v367
        %v369 = vpop.f32.mrf.mxu0
        %v370 = vpop.f32.mrf.mxu0
        %v371 = vadd.f32 0.0, %v370
        %v372 = vpop.f32.mrf.mxu0
        %373 = vmatprep.mubr.bf16.mxu0 0
        %374 = vmatmul.mubr.bf16.gmra.mxu0 %v322
        %v375 = vpop.f32.mrf.mxu0
        %v376 = vadd.f32 0.0, %v375
        %v377 = vpop.f32.mrf.mxu0
        %v378 = vpop.f32.mrf.mxu0
        %v379 = vadd.f32 0.0, %v378
        %v380 = vpop.f32.mrf.mxu0
        %381 = vmatprep.mubr.bf16.mxu0 0
        %382 = vmatmul.mubr.bf16.gmra.mxu0 %v325
        %v383 = vpop.f32.mrf.mxu0
        %v384 = vadd.f32 0.0, %v383
        %v385 = vpop.f32.mrf.mxu0
        %v386 = vpop.f32.mrf.mxu0
        %v387 = vpop.f32.mrf.mxu0
        %388 = vdwg.mxu0
        %v389 = vmax.f32 %v368, 0.0
        %v390 = vmax.f32 %v371, 0.0
        %v391 = vmax.f32 %v376, 0.0
        %v392 = vmax.f32 %v379, 0.0
        %v393 = vmax.f32 %v384, 0.0
        %v394 = vpack.c.bf16 %v390, %v389
        %v395 = vpack.c.bf16 %v392, %v391
        %v396 = vpack.c.bf16 %v393, %v393
        %v397 = vmul.f32 %v389, %v389
        %v398 = vmul.f32 %v390, %v390
        %v399 = vmul.f32 %v391, %v391
        %v400 = vmul.f32 %v392, %v392
        %v401 = vadd.f32 %v397, %v398
        %v402 = vadd.f32 %v401, %v399
        %v403 = vadd.f32 %v402, %v400
        %v404 = vrot.slane %v403, 4
        %v405 = vadd.f32 %v403, %v404
        %v406 = vrot.slane %v405, 2
        %v407 = vadd.f32 %v405, %v406
        %v408 = vrot.slane %v407, 1
        %v409 = vadd.f32 %v407, %v408
        %v410 = vadd.f32 %v409, 1e-05
        %v411 = vrsqrt.pop %v410
        %v412 = vmul.f32 %v389, %v411
        %v413 = vmul.f32 %v390, %v411
        %v414 = vmul.f32 %v391, %v411
        %v415 = vmul.f32 %v392, %v411
        %v416 = vpack.c.bf16 %v413, %v412
        %v417 = vpack.c.bf16 %v415, %v414
        %v420 = vunpack.c.l.b16 %v416
        %v421 = vunpack.c.h.b16 %v416
        %v422 = vunpack.c.l.b16 %v417
        %v423 = vunpack.c.h.b16 %v417
        %v424 = vpack.c.b16 %v420, %v420
        %v425 = vpack.c.b16 %v421, %v421
        %v426 = vpack.c.b16 %v422, %v422
        %v427 = vpack.c.b16 %v423, %v423
        %s432 = scalar_lea.vmem %s157, 16 [#allocation2]
        %433 = vst [vmem:[%s432] sm:$0xf] %v424
        %434 = vst [vmem:[%s432 + $0x4] sm:$0xf] %v425
        %435 = vst [vmem:[%s432 + $0x8] sm:$0xf] %v426
        %436 = vst [vmem:[%s432 + $0xc] sm:$0xf] %v427
        %s437 = scalar_lea.vmem %s2, 20
        %v438 = vld [vmem:[%s437] sm:$0xf]
        %v439 = vld [vmem:[%s437 + $0x4] sm:$0xf]
        %v440 = vld [vmem:[%s437 + $0x8] sm:$0xf]
        %v441 = vld [vmem:[%s437 + $0xc] sm:$0xf]
        %v442 = vld [vmem:[%s437 + $0x10] sm:$0x1]
        %v448 = vunpack.c.l.b16 %v438
        %v449 = vunpack.c.l.b16 %v439
        %v450 = vunpack.c.l.b16 %v440
        %v451 = vunpack.c.l.b16 %v441
        %v452 = vunpack.c.l.b16 %v442
        %v453 = vpack.c.b16 %v449, %v448
        %v454 = vpack.c.b16 %v451, %v450
        %v455 = vpack.c.b16 %v452, %v452
        %v457 = vsel %vm317, %v453, 0
        %v460 = vsel %vm317, %v454, 0
        %v463 = vsel %vm317, %v455, 0
        %v466 = vand.u32 %v396, %v329
        %468 = vmatprep.subr.bf16.mxu0 0
        %469 = vmatpush1.bf16.msra.mxu0 0
        %470 = vmatprep.subr.bf16.mxu0 0
        %471 = vmatpush1.bf16.msra.mxu0 0
        %472 = vmatprep.subr.bf16.mxu0 0
        %473 = vmatpush1.bf16.msra.mxu0 0
        %474 = vmatprep.subr.bf16.mxu0 0
        %475 = vmatpush1.bf16.msra.mxu0 0
        %476 = vmatprep.subr.bf16.mxu0 0
        %477 = vmatpush1.bf16.msra.mxu0 0
        %478 = vmatprep.subr.bf16.mxu0 0
        %479 = vmatpush1.bf16.msra.mxu0 %v466
        %480 = vmatprep.subr.bf16.mxu0 0
        %481 = vmatpush1.bf16.msra.mxu0 %v395
        %482 = vmatprep.subr.bf16.mxu0 0
        %483 = vmatpush1.bf16.msra.mxu0 %v394
        %484 = vmatprep.subr.bf16.mxu0 0
        %485 = vmatpush2.bf16.msra.mxu0 0
        %486 = vmatprep.subr.bf16.mxu0 0
        %487 = vmatpush2.bf16.msra.mxu0 0
        %488 = vmatprep.subr.bf16.mxu0 0
        %489 = vmatpush2.bf16.msra.mxu0 0
        %490 = vmatprep.subr.bf16.mxu0 0
        %491 = vmatpush2.bf16.msra.mxu0 0
        %492 = vmatprep.subr.bf16.mxu0 0
        %493 = vmatpush2.bf16.msra.mxu0 0
        %494 = vmatprep.subr.bf16.mxu0 0
        %495 = vmatpush2.bf16.msra.mxu0 0
        %496 = vmatprep.subr.bf16.mxu0 0
        %497 = vmatpush2.bf16.msra.mxu0 0
        %498 = vmatprep.subr.bf16.mxu0 0
        %499 = vmatpush2.bf16.msra.mxu0 0
        %500 = vmatprep.mubr.bf16.mxu0 0
        %501 = vmatmul.mubr.bf16.gmra.mxu0 %v457
        %v502 = vpop.f32.mrf.mxu0
        %v503 = vadd.f32 0.0, %v502
        %v504 = vpop.f32.mrf.mxu0
        %v505 = vpop.f32.mrf.mxu0
        %v506 = vadd.f32 0.0, %v505
        %v507 = vpop.f32.mrf.mxu0
        %508 = vmatprep.mubr.bf16.mxu0 0
        %509 = vmatmul.mubr.bf16.gmra.mxu0 %v460
        %v510 = vpop.f32.mrf.mxu0
        %v511 = vadd.f32 0.0, %v510
        %v512 = vpop.f32.mrf.mxu0
        %v513 = vpop.f32.mrf.mxu0
        %v514 = vadd.f32 0.0, %v513
        %v515 = vpop.f32.mrf.mxu0
        %516 = vmatprep.mubr.bf16.mxu0 0
        %517 = vmatmul.mubr.bf16.gmra.mxu0 %v463
        %v518 = vpop.f32.mrf.mxu0
        %v519 = vadd.f32 0.0, %v518
        %v520 = vpop.f32.mrf.mxu0
        %v521 = vpop.f32.mrf.mxu0
        %v522 = vpop.f32.mrf.mxu0
        %523 = vdwg.mxu0
        %v524 = vmax.f32 %v503, 0.0
        %v525 = vmax.f32 %v506, 0.0
        %v526 = vmax.f32 %v511, 0.0
        %v527 = vmax.f32 %v514, 0.0
        %v528 = vmax.f32 %v519, 0.0
        %v529 = vpack.c.bf16 %v525, %v524
        %v530 = vpack.c.bf16 %v527, %v526
        %v531 = vpack.c.bf16 %v528, %v528
        %v532 = vmul.f32 %v524, %v524
        %v533 = vmul.f32 %v525, %v525
        %v534 = vmul.f32 %v526, %v526
        %v535 = vmul.f32 %v527, %v527
        %v536 = vadd.f32 %v532, %v533
        %v537 = vadd.f32 %v536, %v534
        %v538 = vadd.f32 %v537, %v535
        %v539 = vrot.slane %v538, 4
        %v540 = vadd.f32 %v538, %v539
        %v541 = vrot.slane %v540, 2
        %v542 = vadd.f32 %v540, %v541
        %v543 = vrot.slane %v542, 1
        %v544 = vadd.f32 %v542, %v543
        %v545 = vadd.f32 %v544, 1e-05
        %v546 = vrsqrt.pop %v545
        %v547 = vmul.f32 %v524, %v546
        %v548 = vmul.f32 %v525, %v546
        %v549 = vmul.f32 %v526, %v546
        %v550 = vmul.f32 %v527, %v546
        %v551 = vpack.c.bf16 %v548, %v547
        %v552 = vpack.c.bf16 %v550, %v549
        %v555 = vunpack.c.l.b16 %v551
        %v556 = vunpack.c.h.b16 %v551
        %v557 = vunpack.c.l.b16 %v552
        %v558 = vunpack.c.h.b16 %v552
        %v559 = vpack.c.b16 %v555, %v555
        %v560 = vpack.c.b16 %v556, %v556
        %v561 = vpack.c.b16 %v557, %v557
        %v562 = vpack.c.b16 %v558, %v558
        %s567 = scalar_lea.vmem %s157, 32 [#allocation2]
        %568 = vst [vmem:[%s567] sm:$0xf] %v559
        %569 = vst [vmem:[%s567 + $0x4] sm:$0xf] %v560
        %570 = vst [vmem:[%s567 + $0x8] sm:$0xf] %v561
        %571 = vst [vmem:[%s567 + $0xc] sm:$0xf] %v562
        %s572 = scalar_lea.vmem %s2, 40
        %v573 = vld [vmem:[%s572] sm:$0xf]
        %v574 = vld [vmem:[%s572 + $0x4] sm:$0xf]
        %v575 = vld [vmem:[%s572 + $0x8] sm:$0xf]
        %v576 = vld [vmem:[%s572 + $0xc] sm:$0xf]
        %v577 = vld [vmem:[%s572 + $0x10] sm:$0x1]
        %v583 = vunpack.c.l.b16 %v573
        %v584 = vunpack.c.l.b16 %v574
        %v585 = vunpack.c.l.b16 %v575
        %v586 = vunpack.c.l.b16 %v576
        %v587 = vunpack.c.l.b16 %v577
        %v588 = vpack.c.b16 %v584, %v583
        %v589 = vpack.c.b16 %v586, %v585
        %v590 = vpack.c.b16 %v587, %v587
        %v592 = vsel %vm317, %v588, 0
        %v595 = vsel %vm317, %v589, 0
        %v598 = vsel %vm317, %v590, 0
        %v601 = vand.u32 %v531, %v329
        %603 = vmatprep.subr.bf16.mxu0 0
        %604 = vmatpush1.bf16.msra.mxu0 0
        %605 = vmatprep.subr.bf16.mxu0 0
        %606 = vmatpush1.bf16.msra.mxu0 0
        %607 = vmatprep.subr.bf16.mxu0 0
        %608 = vmatpush1.bf16.msra.mxu0 0
        %609 = vmatprep.subr.bf16.mxu0 0
        %610 = vmatpush1.bf16.msra.mxu0 0
        %611 = vmatprep.subr.bf16.mxu0 0
        %612 = vmatpush1.bf16.msra.mxu0 0
        %613 = vmatprep.subr.bf16.mxu0 0
        %614 = vmatpush1.bf16.msra.mxu0 %v601
        %615 = vmatprep.subr.bf16.mxu0 0
        %616 = vmatpush1.bf16.msra.mxu0 %v530
        %617 = vmatprep.subr.bf16.mxu0 0
        %618 = vmatpush1.bf16.msra.mxu0 %v529
        %619 = vmatprep.subr.bf16.mxu0 0
        %620 = vmatpush2.bf16.msra.mxu0 0
        %621 = vmatprep.subr.bf16.mxu0 0
        %622 = vmatpush2.bf16.msra.mxu0 0
        %623 = vmatprep.subr.bf16.mxu0 0
        %624 = vmatpush2.bf16.msra.mxu0 0
        %625 = vmatprep.subr.bf16.mxu0 0
        %626 = vmatpush2.bf16.msra.mxu0 0
        %627 = vmatprep.subr.bf16.mxu0 0
        %628 = vmatpush2.bf16.msra.mxu0 0
        %629 = vmatprep.subr.bf16.mxu0 0
        %630 = vmatpush2.bf16.msra.mxu0 0
        %631 = vmatprep.subr.bf16.mxu0 0
        %632 = vmatpush2.bf16.msra.mxu0 0
        %633 = vmatprep.subr.bf16.mxu0 0
        %634 = vmatpush2.bf16.msra.mxu0 0
        %635 = vmatprep.mubr.bf16.mxu0 0
        %636 = vmatmul.mubr.bf16.gmra.mxu0 %v592
        %v637 = vpop.f32.mrf.mxu0
        %v638 = vadd.f32 0.0, %v637
        %v639 = vpop.f32.mrf.mxu0
        %v640 = vpop.f32.mrf.mxu0
        %v641 = vadd.f32 0.0, %v640
        %v642 = vpop.f32.mrf.mxu0
        %643 = vmatprep.mubr.bf16.mxu0 0
        %644 = vmatmul.mubr.bf16.gmra.mxu0 %v595
        %v645 = vpop.f32.mrf.mxu0
        %v646 = vadd.f32 0.0, %v645
        %v647 = vpop.f32.mrf.mxu0
        %v648 = vpop.f32.mrf.mxu0
        %v649 = vadd.f32 0.0, %v648
        %v650 = vpop.f32.mrf.mxu0
        %651 = vmatprep.mubr.bf16.mxu0 0
        %652 = vmatmul.mubr.bf16.gmra.mxu0 %v598
        %v653 = vpop.f32.mrf.mxu0
        %v654 = vpop.f32.mrf.mxu0
        %v655 = vpop.f32.mrf.mxu0
        %v656 = vpop.f32.mrf.mxu0
        %657 = vdwg.mxu0
        %v658 = vmax.f32 %v638, 0.0
        %v659 = vmax.f32 %v641, 0.0
        %v660 = vmax.f32 %v646, 0.0
        %v661 = vmax.f32 %v649, 0.0
        %v662 = vmul.f32 %v658, %v658
        %v663 = vmul.f32 %v659, %v659
        %v664 = vmul.f32 %v660, %v660
        %v665 = vmul.f32 %v661, %v661
        %v666 = vadd.f32 %v662, %v663
        %v667 = vadd.f32 %v666, %v664
        %v668 = vadd.f32 %v667, %v665
        %v669 = vrot.slane %v668, 4
        %v670 = vadd.f32 %v668, %v669
        %v671 = vrot.slane %v670, 2
        %v672 = vadd.f32 %v670, %v671
        %v673 = vrot.slane %v672, 1
        %v674 = vadd.f32 %v672, %v673
        %v675 = vadd.f32 %v674, 1e-05
        %v676 = vrsqrt.pop %v675
        %v677 = vmul.f32 %v658, %v676
        %v678 = vmul.f32 %v659, %v676
        %v679 = vmul.f32 %v660, %v676
        %v680 = vmul.f32 %v661, %v676
        %v681 = vpack.c.bf16 %v678, %v677
        %v682 = vpack.c.bf16 %v680, %v679
        %v685 = vunpack.c.l.b16 %v681
        %v686 = vunpack.c.h.b16 %v681
        %v687 = vunpack.c.l.b16 %v682
        %v688 = vunpack.c.h.b16 %v682
        %v689 = vpack.c.b16 %v685, %v685
        %v690 = vpack.c.b16 %v686, %v686
        %v691 = vpack.c.b16 %v687, %v687
        %v692 = vpack.c.b16 %v688, %v688
        %s697 = scalar_lea.vmem %s157, 48 [#allocation2]
        %698 = vst [vmem:[%s697] sm:$0xf] %v689
        %699 = vst [vmem:[%s697 + $0x4] sm:$0xf] %v690
        %700 = vst [vmem:[%s697 + $0x8] sm:$0xf] %v691
        %701 = vst [vmem:[%s697 + $0xc] sm:$0xf] %v692
        %s702 = sand.u32 %s90, 1
        %s703 = sand.u32 %s90, 1
        %s704 = smul.addr %s703, 64
        %s705 = scalar_lea.vmem [#allocation2], %s704
        // Predicated region
        $region33: #{forward.7} parent=31 // pred_check
          %p706 = pneg %p100
        $region34: #{forward.7} parent=31 // pred_check_branch
          %708 = sbr.rel (%p706) target = $region36
        $region35: #{forward.7} parent=31 // pred_region
          %s709 = smul.addr %s14, 4
          %s710 = scalar_lea.vmem %s3, %s709
          // Predicated region
          $region37: #{forward.7} parent=35 // pred_check
            _
          $region38: #{forward.7} parent=35 // pred_check_branch
            %712 = sbr.rel (0) target = $region40
          $region39: #{forward.7} parent=35 // pred_region
            // Predicated region
            $region41: #{forward.7} parent=39 // pred_check
              _
            $region42: #{forward.7} parent=39 // pred_check_branch
              %714 = sbr.rel target = $region44
            $region43: #{forward.7} parent=39 // pred_region
              // Predicated region
              $region56: #{forward.7} parent=43 // pred_check
                _
              $region57: #{forward.7} parent=43 // pred_check_branch
                %760 = sbr.rel (0) target = $region59
              $region58: #{forward.7} parent=43 // pred_region
                loop: start=0, step=1, limit=1
                $region60: #{forward.7} parent=58 // loop_pre_header
                  _
                $region61: #{forward.7} parent=58 // loop_header
                  %s762 = sphi 0, %s766
                  %p763 = scmp.ge.s32.totalorder %s762, 1
                  %s767 = sphi %s705, %s705
                  %s768 = sphi %s710, %s710
                $region62: #{forward.7} parent=58 // loop_header_branch
                  %765 = sbr.rel (%p763) target = $region66
                $region63: #{forward.7} parent=58 // loop_body
                  _
                $region64: #{forward.7} parent=58 // loop_footer
                  %s766 = sadd.s32 1, %s762
                $region65: #{forward.7} parent=58 // loop_footer_branch
                  %761 = sbr.rel target = $region61
                $region66: #{forward.7} parent=58 // loop_exit
                  _
                %s770 = ssub.s32 16, 1
                loop: start=0, step=1, limit=1
                $region67: #{forward.7} parent=58 // loop_pre_header
                  _
                $region68: #{forward.7} parent=58 // loop_header
                  %s772 = sphi 0, %s776
                  %p773 = scmp.ge.s32.totalorder %s772, 1
                  %s777 = sphi %s705, %s705
                  %s778 = sphi %s710, %s710
                $region69: #{forward.7} parent=58 // loop_header_branch
                  %775 = sbr.rel (%p773) target = $region73
                $region70: #{forward.7} parent=58 // loop_body
                  %v779 = vld [vmem:[%s777] sm:%s770]
                  %780 = vst [vmem:[%s778] sm:%s770] %v779
                  %v781 = vld [vmem:[%s777 + $0x4] sm:%s770]
                  %782 = vst [vmem:[%s778 + $0x8] sm:%s770] %v781
                  %v783 = vld [vmem:[%s777 + $0x8] sm:%s770]
                  %784 = vst [vmem:[%s778 + $0x10] sm:%s770] %v783
                  %v785 = vld [vmem:[%s777 + $0xc] sm:%s770]
                  %786 = vst [vmem:[%s778 + $0x18] sm:%s770] %v785
                  %v787 = vld [vmem:[%s777 + $0x10] sm:%s770]
                  %788 = vst [vmem:[%s778 + $0x20] sm:%s770] %v787
                  %v789 = vld [vmem:[%s777 + $0x14] sm:%s770]
                  %790 = vst [vmem:[%s778 + $0x28] sm:%s770] %v789
                  %v791 = vld [vmem:[%s777 + $0x18] sm:%s770]
                  %792 = vst [vmem:[%s778 + $0x30] sm:%s770] %v791
                  %v793 = vld [vmem:[%s777 + $0x1c] sm:%s770]
                  %794 = vst [vmem:[%s778 + $0x38] sm:%s770] %v793
                  %v795 = vld [vmem:[%s777 + $0x20] sm:%s770]
                  %796 = vst [vmem:[%s778 + $0x40] sm:%s770] %v795
                  %v797 = vld [vmem:[%s777 + $0x24] sm:%s770]
                  %798 = vst [vmem:[%s778 + $0x48] sm:%s770] %v797
                  %v799 = vld [vmem:[%s777 + $0x28] sm:%s770]
                  %800 = vst [vmem:[%s778 + $0x50] sm:%s770] %v799
                  %v801 = vld [vmem:[%s777 + $0x2c] sm:%s770]
                  %802 = vst [vmem:[%s778 + $0x58] sm:%s770] %v801
                  %v803 = vld [vmem:[%s777 + $0x30] sm:%s770]
                  %804 = vst [vmem:[%s778 + $0x60] sm:%s770] %v803
                  %v805 = vld [vmem:[%s777 + $0x34] sm:%s770]
                  %806 = vst [vmem:[%s778 + $0x68] sm:%s770] %v805
                  %v807 = vld [vmem:[%s777 + $0x38] sm:%s770]
                  %808 = vst [vmem:[%s778 + $0x70] sm:%s770] %v807
                  %v809 = vld [vmem:[%s777 + $0x3c] sm:%s770]
                  %810 = vst [vmem:[%s778 + $0x78] sm:%s770] %v809
                $region71: #{forward.7} parent=58 // loop_footer
                  %s776 = sadd.s32 1, %s772
                $region72: #{forward.7} parent=58 // loop_footer_branch
                  %771 = sbr.rel target = $region68
                $region73: #{forward.7} parent=58 // loop_exit
                  _
              $region59: #{forward.7} parent=43 // pred_fallthru
                _
            $region44: #{forward.7} parent=39 // pred_fallthru
              _
            // Predicated region
            $region45: #{forward.7} parent=39 // pred_check
              _
            $region46: #{forward.7} parent=39 // pred_check_branch
              %716 = sbr.rel (0) target = $region48
            $region47: #{forward.7} parent=39 // pred_region
              %s718 = ssub.s32 16, 1
              loop: start=0, step=1, limit=1
              $region49: #{forward.7} parent=47 // loop_pre_header
                _
              $region50: #{forward.7} parent=47 // loop_header
                %s720 = sphi 0, %s724
                %p721 = scmp.ge.s32.totalorder %s720, 1
                %s725 = sphi %s705, %s705
                %s726 = sphi %s710, %s710
              $region51: #{forward.7} parent=47 // loop_header_branch
                %723 = sbr.rel (%p721) target = $region55
              $region52: #{forward.7} parent=47 // loop_body
                %v727 = vld [vmem:[%s725] sm:%s718]
                %728 = vst [vmem:[%s726] sm:%s718] %v727
                %v729 = vld [vmem:[%s725 + $0x4] sm:%s718]
                %730 = vst [vmem:[%s726 + $0x8] sm:%s718] %v729
                %v731 = vld [vmem:[%s725 + $0x8] sm:%s718]
                %732 = vst [vmem:[%s726 + $0x10] sm:%s718] %v731
                %v733 = vld [vmem:[%s725 + $0xc] sm:%s718]
                %734 = vst [vmem:[%s726 + $0x18] sm:%s718] %v733
                %v735 = vld [vmem:[%s725 + $0x10] sm:%s718]
                %736 = vst [vmem:[%s726 + $0x20] sm:%s718] %v735
                %v737 = vld [vmem:[%s725 + $0x14] sm:%s718]
                %738 = vst [vmem:[%s726 + $0x28] sm:%s718] %v737
                %v739 = vld [vmem:[%s725 + $0x18] sm:%s718]
                %740 = vst [vmem:[%s726 + $0x30] sm:%s718] %v739
                %v741 = vld [vmem:[%s725 + $0x1c] sm:%s718]
                %742 = vst [vmem:[%s726 + $0x38] sm:%s718] %v741
                %v743 = vld [vmem:[%s725 + $0x20] sm:%s718]
                %744 = vst [vmem:[%s726 + $0x40] sm:%s718] %v743
                %v745 = vld [vmem:[%s725 + $0x24] sm:%s718]
                %746 = vst [vmem:[%s726 + $0x48] sm:%s718] %v745
                %v747 = vld [vmem:[%s725 + $0x28] sm:%s718]
                %748 = vst [vmem:[%s726 + $0x50] sm:%s718] %v747
                %v749 = vld [vmem:[%s725 + $0x2c] sm:%s718]
                %750 = vst [vmem:[%s726 + $0x58] sm:%s718] %v749
                %v751 = vld [vmem:[%s725 + $0x30] sm:%s718]
                %752 = vst [vmem:[%s726 + $0x60] sm:%s718] %v751
                %v753 = vld [vmem:[%s725 + $0x34] sm:%s718]
                %754 = vst [vmem:[%s726 + $0x68] sm:%s718] %v753
                %v755 = vld [vmem:[%s725 + $0x38] sm:%s718]
                %756 = vst [vmem:[%s726 + $0x70] sm:%s718] %v755
                %v757 = vld [vmem:[%s725 + $0x3c] sm:%s718]
                %758 = vst [vmem:[%s726 + $0x78] sm:%s718] %v757
              $region53: #{forward.7} parent=47 // loop_footer
                %s724 = sadd.s32 1, %s720
              $region54: #{forward.7} parent=47 // loop_footer_branch
                %719 = sbr.rel target = $region50
              $region55: #{forward.7} parent=47 // loop_exit
                _
            $region48: #{forward.7} parent=39 // pred_fallthru
              _
          $region40: #{forward.7} parent=35 // pred_fallthru
            _
          %811 = vnop
        $region36: #{forward.7} parent=31 // pred_fallthru
          _
      $region32: #{forward.7} parent=5 // pred_fallthru
        _
      %p812 = scmp.le.s32.totalorder 2, %s9
      // Predicated region
      $region74: #{forward.7} parent=5 // pred_check
        %p813 = pneg %p812
      $region75: #{forward.7} parent=5 // pred_check_branch
        %815 = sbr.rel (%p813) target = $region77
      $region76: #{forward.7} parent=5 // pred_region
        %s816 = ssub.s32 %s9, 2
        // Predicated region
        $region78: #{forward.7} parent=76 // pred_check
          %p817 = pneg %p106
        $region79: #{forward.7} parent=76 // pred_check_branch
          %819 = sbr.rel (%p817) target = $region81
        $region80: #{forward.7} parent=76 // pred_region
          %s820 = sand.u32 %s91, 1
          %s821 = sand.u32 %s91, 1
          %s822 = smul.addr %s821, 64
          %s823 = scalar_lea.vmem [#allocation2], %s822
        $region81: #{forward.7} parent=76 // pred_fallthru
          _
      $region77: #{forward.7} parent=5 // pred_fallthru
        _
    $region6: #{forward.7} parent=1 // loop_footer
      %s13 = sadd.s32 1, %s9
    $region7: #{forward.7} parent=1 // loop_footer_branch
      %8 = sbr.rel target = $region3
    $region8: #{forward.7} parent=1 // loop_exit
      _

// kernel: forward.10
$region0: #{forward.10}
  #allocation0 [shape = 'u32[]', space=smem, size = 0x4, offset = 0x4, fixed_abs, tag = 'smem constant byte address 0x4 - core index']
  #allocation1 [shape = 'u32[144,128]{1,0:T(1,128)}', space=vmem, size = 0x12000, scoped, tag = 'internal scratch']
  %s0 = inlined_call_operand.vmem [shape: bf16[4,32,256], index: 0, kind: input, shape index: {}]
  %s1 = inlined_call_operand.vmem [shape: f32[2,1,1,64], index: 1, kind: input, shape index: {}]
  %s2 = inlined_call_operand.vmem [shape: f32[2,4,64], index: 2, kind: output, shape index: {}]
  %s3 = sld [smem:[#allocation0]]
  $region18: #{forward.10} parent=0
    _
  %s5 = ssub.s32 1, %s3
  %s6 = scalar_select 0, %s5, %s3
  // Predicated region
  $region2: #{forward.10} parent=0 // pred_check
    _
  $region3: #{forward.10} parent=0 // pred_check_branch
    %8 = sbr.rel (0) target = $region5
  $region4: #{forward.10} parent=0 // pred_region
    _
  $region5: #{forward.10} parent=0 // pred_fallthru
    _
  // Predicated region
  $region6: #{forward.10} parent=0 // pred_check
    _
  $region7: #{forward.10} parent=0 // pred_check_branch
    %10 = sbr.rel (0) target = $region9
  $region8: #{forward.10} parent=0 // pred_region
    _
  $region9: #{forward.10} parent=0 // pred_fallthru
    _
  %v12 = vld [vmem:[%s0] sm:$0xf]
  %v13 = vld [vmem:[%s0 + $0x8] sm:$0xf]
  %v14 = vld [vmem:[%s0 + $0x10] sm:$0xf]
  %v15 = vld [vmem:[%s0 + $0x18] sm:$0xf]
  %v16 = vld [vmem:[%s0 + $0x20] sm:$0xf]
  %v17 = vld [vmem:[%s0 + $0x28] sm:$0xf]
  %v18 = vld [vmem:[%s0 + $0x30] sm:$0xf]
  %v19 = vld [vmem:[%s0 + $0x38] sm:$0xf]
  %v20 = vld [vmem:[%s0 + $0x40] sm:$0xf]
  %v21 = vld [vmem:[%s0 + $0x48] sm:$0xf]
  %v22 = vld [vmem:[%s0 + $0x50] sm:$0xf]
  %v23 = vld [vmem:[%s0 + $0x58] sm:$0xf]
  %v24 = vld [vmem:[%s0 + $0x60] sm:$0xf]
  %v25 = vld [vmem:[%s0 + $0x68] sm:$0xf]
  %v26 = vld [vmem:[%s0 + $0x70] sm:$0xf]
  %v27 = vld [vmem:[%s0 + $0x78] sm:$0xf]
  %v28 = vld [vmem:[%s1] sm:$0x1]
  %vm29 = vcmp.gt.f32.partialorder %v28, 0.0
  %v30 = vsel %vm29, 1, 0
  %v31 = vcvt.s32.f32 %v30
  %vm32 = vcmask 516096
  %v33 = vsel %vm32, %v31, 0.0
  %34 = vadd.xlane.f32.xlu0 %v33
  %v35 = vpop.xlane.xlu0 %34
  %v36 = vmul.f32 %v28, %v31
  %v37 = vsel %vm32, %v36, 0.0
  %38 = vadd.xlane.f32.xlu0 %v37
  %v39 = vpop.xlane.xlu0 %38
  %v40 = vmax.f32 %v35, 1.0
  %v41 = vrcp.pop %v40
  %v42 = vmul.f32 %v39, %v41
  %vm43 = vcmp.ge.f32.partialorder %v28, %v42
  %vm44 = vcmp.gt.f32.partialorder %v35, 0.0
  %v45 = vsel %vm44, 1, 0
  %vm46 = vcmp.eq.s32.totalorder %v45, 1
  %vm47 = vmand %vm43, %vm46
  %v48 = vsel %vm47, 1.0, 0.0
  %v49 = vsel %vm32, %v48, 0.0
  %50 = vadd.xlane.f32.xlu0 %v49
  %v51 = vpop.xlane.xlu0 %50
  %v52 = vmax.f32 %v51, 1.0
  %v53 = vrcp.pop %v52
  %v54 = vmul.f32 1.0, %v53
  %v55 = vld [vmem:[%s0 + $0x4] sm:$0xf]
  %v56 = vld [vmem:[%s0 + $0xc] sm:$0xf]
  %v57 = vld [vmem:[%s0 + $0x14] sm:$0xf]
  %v58 = vld [vmem:[%s0 + $0x1c] sm:$0xf]
  %v59 = vld [vmem:[%s0 + $0x24] sm:$0xf]
  %v60 = vld [vmem:[%s0 + $0x2c] sm:$0xf]
  %v61 = vld [vmem:[%s0 + $0x34] sm:$0xf]
  %v62 = vld [vmem:[%s0 + $0x3c] sm:$0xf]
  %v63 = vld [vmem:[%s0 + $0x44] sm:$0xf]
  %v64 = vld [vmem:[%s0 + $0x4c] sm:$0xf]
  %v65 = vld [vmem:[%s0 + $0x54] sm:$0xf]
  %v66 = vld [vmem:[%s0 + $0x5c] sm:$0xf]
  %v67 = vld [vmem:[%s0 + $0x64] sm:$0xf]
  %v68 = vld [vmem:[%s0 + $0x6c] sm:$0xf]
  %v69 = vld [vmem:[%s0 + $0x74] sm:$0xf]
  %v70 = vld [vmem:[%s0 + $0x7c] sm:$0xf]
  %v71 = vpack.c.bf16 %v48, %v48
  %v73 = vpack.i.b16 %v71, %v71
  %v75 = vlaneseq
  %v76 = vshrl.u32 %v75, 7
  %v77 = vsub.s32 0, %v76
  %v78 = vrot.slane %v73, %v77
  %v80 = vunpack.c.l.b16 %v78
  %v81 = vpack.c.b16 %v80, %v80
  %v83 = vmul.bf16 %v55, %v81
  %v84 = vmul.bf16 %v56, %v81
  %v85 = vmul.bf16 %v57, %v81
  %v86 = vmul.bf16 %v58, %v81
  %v87 = vmul.bf16 %v59, %v81
  %v88 = vmul.bf16 %v60, %v81
  %v89 = vmul.bf16 %v61, %v81
  %v90 = vmul.bf16 %v62, %v81
  %v91 = vmul.bf16 %v63, %v81
  %v92 = vmul.bf16 %v64, %v81
  %v93 = vmul.bf16 %v65, %v81
  %v94 = vmul.bf16 %v66, %v81
  %v95 = vmul.bf16 %v67, %v81
  %v96 = vmul.bf16 %v68, %v81
  %v97 = vmul.bf16 %v69, %v81
  %v98 = vmul.bf16 %v70, %v81
  %v103 = vunpack.c.l.b16 %v83
  %v104 = vunpack.c.l.b16 %v84
  %v105 = vunpack.c.l.b16 %v85
  %v106 = vunpack.c.l.b16 %v86
  %v107 = vpack.c.b16 %v104, %v103
  %v108 = vpack.c.b16 %v106, %v105
  %111 = vxpose.xlu0.c.b16.start [1/8] %v107, 128
  %112 = vxpose.xlu0.c.b16.cont [2/8] %v108, 128
  %113 = vxpose.xlu0.c.b16.cont [3/8] 0, 128
  %114 = vxpose.xlu0.c.b16.cont [4/8] 0, 128
  %115 = vxpose.xlu0.c.b16.cont [5/8] 0, 128
  %116 = vxpose.xlu0.c.b16.cont [6/8] 0, 128
  %117 = vxpose.xlu0.c.b16.cont [7/8] 0, 128
  %118 = vxpose.xlu0.c.b16.end [8/8] 0, 128
  %v119 = vpop.trf.xlu0
  %v120 = vpop.trf.xlu0
  %v121 = vpop.trf.xlu0
  %v122 = vpop.trf.xlu0
  %v123 = vpop.trf.xlu0
  %v124 = vpop.trf.xlu0
  %v125 = vpop.trf.xlu0
  %v126 = vpop.trf.xlu0
  %v131 = vunpack.c.l.b16 %v12
  %v132 = vunpack.c.l.b16 %v13
  %v133 = vunpack.c.l.b16 %v14
  %v134 = vunpack.c.l.b16 %v15
  %v135 = vpack.c.b16 %v132, %v131
  %v136 = vpack.c.b16 %v134, %v133
  %vm139 = vcmask 261120
  %v141 = vsel %vm139, %v119, 0
  %v144 = vsel %vm139, %v120, 0
  %v147 = vsel %vm139, %v121, 0
  %v150 = vsel %vm139, %v122, 0
  %152 = vmatprep.subr.bf16.mxu0 0
  %153 = vmatpush1.bf16.msra.mxu0 0
  %154 = vmatprep.subr.bf16.mxu0 0
  %155 = vmatpush1.bf16.msra.mxu0 0
  %156 = vmatprep.subr.bf16.mxu0 0
  %157 = vmatpush1.bf16.msra.mxu0 0
  %158 = vmatprep.subr.bf16.mxu0 0
  %159 = vmatpush1.bf16.msra.mxu0 0
  %160 = vmatprep.subr.bf16.mxu0 0
  %161 = vmatpush1.bf16.msra.mxu0 0
  %162 = vmatprep.subr.bf16.mxu0 0
  %163 = vmatpush1.bf16.msra.mxu0 0
  %164 = vmatprep.subr.bf16.mxu0 0
  %165 = vmatpush1.bf16.msra.mxu0 %v136
  %166 = vmatprep.subr.bf16.mxu0 0
  %167 = vmatpush1.bf16.msra.mxu0 %v135
  %168 = vmatprep.subr.bf16.mxu0 0
  %169 = vmatpush2.bf16.msra.mxu0 0
  %170 = vmatprep.subr.bf16.mxu0 0
  %171 = vmatpush2.bf16.msra.mxu0 0
  %172 = vmatprep.subr.bf16.mxu0 0
  %173 = vmatpush2.bf16.msra.mxu0 0
  %174 = vmatprep.subr.bf16.mxu0 0
  %175 = vmatpush2.bf16.msra.mxu0 0
  %176 = vmatprep.subr.bf16.mxu0 0
  %177 = vmatpush2.bf16.msra.mxu0 0
  %178 = vmatprep.subr.bf16.mxu0 0
  %179 = vmatpush2.bf16.msra.mxu0 0
  %180 = vmatprep.subr.bf16.mxu0 0
  %181 = vmatpush2.bf16.msra.mxu0 0
  %182 = vmatprep.subr.bf16.mxu0 0
  %183 = vmatpush2.bf16.msra.mxu0 0
  %184 = vmatprep.mubr.bf16.mxu0 0
  %185 = vmatmul.mubr.bf16.gmra.mxu0 %v141
  %v186 = vpop.f32.mrf.mxu0
  %v187 = vadd.f32 0.0, %v186
  %v188 = vpop.f32.mrf.mxu0
  %v189 = vpop.f32.mrf.mxu0
  %v190 = vadd.f32 0.0, %v189
  %v191 = vpop.f32.mrf.mxu0
  %192 = vmatprep.mubr.bf16.mxu0 0
  %193 = vmatmul.mubr.bf16.gmra.mxu0 %v144
  %v194 = vpop.f32.mrf.mxu0
  %v195 = vadd.f32 0.0, %v194
  %v196 = vpop.f32.mrf.mxu0
  %v197 = vpop.f32.mrf.mxu0
  %v198 = vadd.f32 0.0, %v197
  %v199 = vpop.f32.mrf.mxu0
  %200 = vmatprep.mubr.bf16.mxu0 0
  %201 = vmatmul.mubr.bf16.gmra.mxu0 %v147
  %v202 = vpop.f32.mrf.mxu0
  %v203 = vadd.f32 0.0, %v202
  %v204 = vpop.f32.mrf.mxu0
  %v205 = vpop.f32.mrf.mxu0
  %v206 = vadd.f32 0.0, %v205
  %v207 = vpop.f32.mrf.mxu0
  %208 = vmatprep.mubr.bf16.mxu0 0
  %209 = vmatmul.mubr.bf16.gmra.mxu0 %v150
  %v210 = vpop.f32.mrf.mxu0
  %v211 = vadd.f32 0.0, %v210
  %v212 = vpop.f32.mrf.mxu0
  %v213 = vpop.f32.mrf.mxu0
  %v214 = vadd.f32 0.0, %v213
  %v215 = vpop.f32.mrf.mxu0
  %216 = vdwg.mxu0
  %v217 = vmax.f32 %v187, 0.0
  %v218 = vmax.f32 %v190, 0.0
  %v219 = vmax.f32 %v195, 0.0
  %v220 = vmax.f32 %v198, 0.0
  %v221 = vmax.f32 %v203, 0.0
  %v222 = vmax.f32 %v206, 0.0
  %v223 = vmax.f32 %v211, 0.0
  %v224 = vmax.f32 %v214, 0.0
  %v229 = vunpack.c.l.b16 %v87
  %v230 = vunpack.c.l.b16 %v88
  %v231 = vunpack.c.l.b16 %v89
  %v232 = vunpack.c.l.b16 %v90
  %v233 = vpack.c.b16 %v230, %v229
  %v234 = vpack.c.b16 %v232, %v231
  %237 = vxpose.xlu0.c.b16.start [1/8] %v233, 128
  %238 = vxpose.xlu0.c.b16.cont [2/8] %v234, 128
  %239 = vxpose.xlu0.c.b16.cont [3/8] 0, 128
  %240 = vxpose.xlu0.c.b16.cont [4/8] 0, 128
  %241 = vxpose.xlu0.c.b16.cont [5/8] 0, 128
  %242 = vxpose.xlu0.c.b16.cont [6/8] 0, 128
  %243 = vxpose.xlu0.c.b16.cont [7/8] 0, 128
  %244 = vxpose.xlu0.c.b16.end [8/8] 0, 128
  %v245 = vpop.trf.xlu0
  %v246 = vpop.trf.xlu0
  %v247 = vpop.trf.xlu0
  %v248 = vpop.trf.xlu0
  %v249 = vpop.trf.xlu0
  %v250 = vpop.trf.xlu0
  %v251 = vpop.trf.xlu0
  %v252 = vpop.trf.xlu0
  %v257 = vunpack.c.l.b16 %v16
  %v258 = vunpack.c.l.b16 %v17
  %v259 = vunpack.c.l.b16 %v18
  %v260 = vunpack.c.l.b16 %v19
  %v261 = vpack.c.b16 %v258, %v257
  %v262 = vpack.c.b16 %v260, %v259
  %v266 = vsel %vm139, %v245, 0
  %v269 = vsel %vm139, %v246, 0
  %v272 = vsel %vm139, %v247, 0
  %v275 = vsel %vm139, %v248, 0
  %277 = vmatprep.subr.bf16.mxu0 0
  %278 = vmatpush1.bf16.msra.mxu0 0
  %279 = vmatprep.subr.bf16.mxu0 0
  %280 = vmatpush1.bf16.msra.mxu0 0
  %281 = vmatprep.subr.bf16.mxu0 0
  %282 = vmatpush1.bf16.msra.mxu0 0
  %283 = vmatprep.subr.bf16.mxu0 0
  %284 = vmatpush1.bf16.msra.mxu0 0
  %285 = vmatprep.subr.bf16.mxu0 0
  %286 = vmatpush1.bf16.msra.mxu0 0
  %287 = vmatprep.subr.bf16.mxu0 0
  %288 = vmatpush1.bf16.msra.mxu0 0
  %289 = vmatprep.subr.bf16.mxu0 0
  %290 = vmatpush1.bf16.msra.mxu0 %v262
  %291 = vmatprep.subr.bf16.mxu0 0
  %292 = vmatpush1.bf16.msra.mxu0 %v261
  %293 = vmatprep.subr.bf16.mxu0 0
  %294 = vmatpush2.bf16.msra.mxu0 0
  %295 = vmatprep.subr.bf16.mxu0 0
  %296 = vmatpush2.bf16.msra.mxu0 0
  %297 = vmatprep.subr.bf16.mxu0 0
  %298 = vmatpush2.bf16.msra.mxu0 0
  %299 = vmatprep.subr.bf16.mxu0 0
  %300 = vmatpush2.bf16.msra.mxu0 0
  %301 = vmatprep.subr.bf16.mxu0 0
  %302 = vmatpush2.bf16.msra.mxu0 0
  %303 = vmatprep.subr.bf16.mxu0 0
  %304 = vmatpush2.bf16.msra.mxu0 0
  %305 = vmatprep.subr.bf16.mxu0 0
  %306 = vmatpush2.bf16.msra.mxu0 0
  %307 = vmatprep.subr.bf16.mxu0 0
  %308 = vmatpush2.bf16.msra.mxu0 0
  %309 = vmatprep.mubr.bf16.mxu0 0
  %310 = vmatmul.mubr.bf16.gmra.mxu0 %v266
  %v311 = vpop.f32.mrf.mxu0
  %v312 = vadd.f32 0.0, %v311
  %v313 = vpop.f32.mrf.mxu0
  %v314 = vpop.f32.mrf.mxu0
  %v315 = vadd.f32 0.0, %v314
  %v316 = vpop.f32.mrf.mxu0
  %317 = vmatprep.mubr.bf16.mxu0 0
  %318 = vmatmul.mubr.bf16.gmra.mxu0 %v269
  %v319 = vpop.f32.mrf.mxu0
  %v320 = vadd.f32 0.0, %v319
  %v321 = vpop.f32.mrf.mxu0
  %v322 = vpop.f32.mrf.mxu0
  %v323 = vadd.f32 0.0, %v322
  %v324 = vpop.f32.mrf.mxu0
  %325 = vmatprep.mubr.bf16.mxu0 0
  %326 = vmatmul.mubr.bf16.gmra.mxu0 %v272
  %v327 = vpop.f32.mrf.mxu0
  %v328 = vadd.f32 0.0, %v327
  %v329 = vpop.f32.mrf.mxu0
  %v330 = vpop.f32.mrf.mxu0
  %v331 = vadd.f32 0.0, %v330
  %v332 = vpop.f32.mrf.mxu0
  %333 = vmatprep.mubr.bf16.mxu0 0
  %334 = vmatmul.mubr.bf16.gmra.mxu0 %v275
  %v335 = vpop.f32.mrf.mxu0
  %v336 = vadd.f32 0.0, %v335
  %v337 = vpop.f32.mrf.mxu0
  %v338 = vpop.f32.mrf.mxu0
  %v339 = vadd.f32 0.0, %v338
  %v340 = vpop.f32.mrf.mxu0
  %341 = vdwg.mxu0
  %v342 = vmax.f32 %v312, 0.0
  %v343 = vmax.f32 %v315, 0.0
  %v344 = vmax.f32 %v320, 0.0
  %v345 = vmax.f32 %v323, 0.0
  %v346 = vmax.f32 %v328, 0.0
  %v347 = vmax.f32 %v331, 0.0
  %v348 = vmax.f32 %v336, 0.0
  %v349 = vmax.f32 %v339, 0.0
  %v354 = vunpack.c.l.b16 %v91
  %v355 = vunpack.c.l.b16 %v92
  %v356 = vunpack.c.l.b16 %v93
  %v357 = vunpack.c.l.b16 %v94
  %v358 = vpack.c.b16 %v355, %v354
  %v359 = vpack.c.b16 %v357, %v356
  %362 = vxpose.xlu0.c.b16.start [1/8] %v358, 128
  %363 = vxpose.xlu0.c.b16.cont [2/8] %v359, 128
  %364 = vxpose.xlu0.c.b16.cont [3/8] 0, 128
  %365 = vxpose.xlu0.c.b16.cont [4/8] 0, 128
  %366 = vxpose.xlu0.c.b16.cont [5/8] 0, 128
  %367 = vxpose.xlu0.c.b16.cont [6/8] 0, 128
  %368 = vxpose.xlu0.c.b16.cont [7/8] 0, 128
  %369 = vxpose.xlu0.c.b16.end [8/8] 0, 128
  %v370 = vpop.trf.xlu0
  %v371 = vpop.trf.xlu0
  %v372 = vpop.trf.xlu0
  %v373 = vpop.trf.xlu0
  %v374 = vpop.trf.xlu0
  %v375 = vpop.trf.xlu0
  %v376 = vpop.trf.xlu0
  %v377 = vpop.trf.xlu0
  %v382 = vunpack.c.l.b16 %v20
  %v383 = vunpack.c.l.b16 %v21
  %v384 = vunpack.c.l.b16 %v22
  %v385 = vunpack.c.l.b16 %v23
  %v386 = vpack.c.b16 %v383, %v382
  %v387 = vpack.c.b16 %v385, %v384
  %v391 = vsel %vm139, %v370, 0
  %v394 = vsel %vm139, %v371, 0
  %v397 = vsel %vm139, %v372, 0
  %v400 = vsel %vm139, %v373, 0
  %402 = vmatprep.subr.bf16.mxu0 0
  %403 = vmatpush1.bf16.msra.mxu0 0
  %404 = vmatprep.subr.bf16.mxu0 0
  %405 = vmatpush1.bf16.msra.mxu0 0
  %406 = vmatprep.subr.bf16.mxu0 0
  %407 = vmatpush1.bf16.msra.mxu0 0
  %408 = vmatprep.subr.bf16.mxu0 0
  %409 = vmatpush1.bf16.msra.mxu0 0
  %410 = vmatprep.subr.bf16.mxu0 0
  %411 = vmatpush1.bf16.msra.mxu0 0
  %412 = vmatprep.subr.bf16.mxu0 0
  %413 = vmatpush1.bf16.msra.mxu0 0
  %414 = vmatprep.subr.bf16.mxu0 0
  %415 = vmatpush1.bf16.msra.mxu0 %v387
  %416 = vmatprep.subr.bf16.mxu0 0
  %417 = vmatpush1.bf16.msra.mxu0 %v386
  %418 = vmatprep.subr.bf16.mxu0 0
  %419 = vmatpush2.bf16.msra.mxu0 0
  %420 = vmatprep.subr.bf16.mxu0 0
  %421 = vmatpush2.bf16.msra.mxu0 0
  %422 = vmatprep.subr.bf16.mxu0 0
  %423 = vmatpush2.bf16.msra.mxu0 0
  %424 = vmatprep.subr.bf16.mxu0 0
  %425 = vmatpush2.bf16.msra.mxu0 0
  %426 = vmatprep.subr.bf16.mxu0 0
  %427 = vmatpush2.bf16.msra.mxu0 0
  %428 = vmatprep.subr.bf16.mxu0 0
  %429 = vmatpush2.bf16.msra.mxu0 0
  %430 = vmatprep.subr.bf16.mxu0 0
  %431 = vmatpush2.bf16.msra.mxu0 0
  %432 = vmatprep.subr.bf16.mxu0 0
  %433 = vmatpush2.bf16.msra.mxu0 0
  %434 = vmatprep.mubr.bf16.mxu0 0
  %435 = vmatmul.mubr.bf16.gmra.mxu0 %v391
  %v436 = vpop.f32.mrf.mxu0
  %v437 = vadd.f32 0.0, %v436
  %v438 = vpop.f32.mrf.mxu0
  %v439 = vpop.f32.mrf.mxu0
  %v440 = vadd.f32 0.0, %v439
  %v441 = vpop.f32.mrf.mxu0
  %442 = vmatprep.mubr.bf16.mxu0 0
  %443 = vmatmul.mubr.bf16.gmra.mxu0 %v394
  %v444 = vpop.f32.mrf.mxu0
  %v445 = vadd.f32 0.0, %v444
  %v446 = vpop.f32.mrf.mxu0
  %v447 = vpop.f32.mrf.mxu0
  %v448 = vadd.f32 0.0, %v447
  %v449 = vpop.f32.mrf.mxu0
  %450 = vmatprep.mubr.bf16.mxu0 0
  %451 = vmatmul.mubr.bf16.gmra.mxu0 %v397
  %v452 = vpop.f32.mrf.mxu0
  %v453 = vadd.f32 0.0, %v452
  %v454 = vpop.f32.mrf.mxu0
  %v455 = vpop.f32.mrf.mxu0
  %v456 = vadd.f32 0.0, %v455
  %v457 = vpop.f32.mrf.mxu0
  %458 = vmatprep.mubr.bf16.mxu0 0
  %459 = vmatmul.mubr.bf16.gmra.mxu0 %v400
  %v460 = vpop.f32.mrf.mxu0
  %v461 = vadd.f32 0.0, %v460
  %v462 = vpop.f32.mrf.mxu0
  %v463 = vpop.f32.mrf.mxu0
  %v464 = vadd.f32 0.0, %v463
  %v465 = vpop.f32.mrf.mxu0
  %466 = vdwg.mxu0
  %v467 = vmax.f32 %v437, 0.0
  %v468 = vmax.f32 %v440, 0.0
  %v469 = vmax.f32 %v445, 0.0
  %v470 = vmax.f32 %v448, 0.0
  %v471 = vmax.f32 %v453, 0.0
  %v472 = vmax.f32 %v456, 0.0
  %v473 = vmax.f32 %v461, 0.0
  %v474 = vmax.f32 %v464, 0.0
  %v479 = vunpack.c.l.b16 %v95
  %v480 = vunpack.c.l.b16 %v96
  %v481 = vunpack.c.l.b16 %v97
  %v482 = vunpack.c.l.b16 %v98
  %v483 = vpack.c.b16 %v480, %v479
  %v484 = vpack.c.b16 %v482, %v481
  %487 = vxpose.xlu0.c.b16.start [1/8] %v483, 128
  %488 = vxpose.xlu0.c.b16.cont [2/8] %v484, 128
  %489 = vxpose.xlu0.c.b16.cont [3/8] 0, 128
  %490 = vxpose.xlu0.c.b16.cont [4/8] 0, 128
  %491 = vxpose.xlu0.c.b16.cont [5/8] 0, 128
  %492 = vxpose.xlu0.c.b16.cont [6/8] 0, 128
  %493 = vxpose.xlu0.c.b16.cont [7/8] 0, 128
  %494 = vxpose.xlu0.c.b16.end [8/8] 0, 128
  %v495 = vpop.trf.xlu0
  %v496 = vpop.trf.xlu0
  %v497 = vpop.trf.xlu0
  %v498 = vpop.trf.xlu0
  %v499 = vpop.trf.xlu0
  %v500 = vpop.trf.xlu0
  %v501 = vpop.trf.xlu0
  %v502 = vpop.trf.xlu0
  %v507 = vunpack.c.l.b16 %v24
  %v508 = vunpack.c.l.b16 %v25
  %v509 = vunpack.c.l.b16 %v26
  %v510 = vunpack.c.l.b16 %v27
  %v511 = vpack.c.b16 %v508, %v507
  %v512 = vpack.c.b16 %v510, %v509
  %v516 = vsel %vm139, %v495, 0
  %v519 = vsel %vm139, %v496, 0
  %v522 = vsel %vm139, %v497, 0
  %v525 = vsel %vm139, %v498, 0
  %527 = vmatprep.subr.bf16.mxu0 0
  %528 = vmatpush1.bf16.msra.mxu0 0
  %529 = vmatprep.subr.bf16.mxu0 0
  %530 = vmatpush1.bf16.msra.mxu0 0
  %531 = vmatprep.subr.bf16.mxu0 0
  %532 = vmatpush1.bf16.msra.mxu0 0
  %533 = vmatprep.subr.bf16.mxu0 0
  %534 = vmatpush1.bf16.msra.mxu0 0
  %535 = vmatprep.subr.bf16.mxu0 0
  %536 = vmatpush1.bf16.msra.mxu0 0
  %537 = vmatprep.subr.bf16.mxu0 0
  %538 = vmatpush1.bf16.msra.mxu0 0
  %539 = vmatprep.subr.bf16.mxu0 0
  %540 = vmatpush1.bf16.msra.mxu0 %v512
  %541 = vmatprep.subr.bf16.mxu0 0
  %542 = vmatpush1.bf16.msra.mxu0 %v511
  %543 = vmatprep.subr.bf16.mxu0 0
  %544 = vmatpush2.bf16.msra.mxu0 0
  %545 = vmatprep.subr.bf16.mxu0 0
  %546 = vmatpush2.bf16.msra.mxu0 0
  %547 = vmatprep.subr.bf16.mxu0 0
  %548 = vmatpush2.bf16.msra.mxu0 0
  %549 = vmatprep.subr.bf16.mxu0 0
  %550 = vmatpush2.bf16.msra.mxu0 0
  %551 = vmatprep.subr.bf16.mxu0 0
  %552 = vmatpush2.bf16.msra.mxu0 0
  %553 = vmatprep.subr.bf16.mxu0 0
  %554 = vmatpush2.bf16.msra.mxu0 0
  %555 = vmatprep.subr.bf16.mxu0 0
  %556 = vmatpush2.bf16.msra.mxu0 0
  %557 = vmatprep.subr.bf16.mxu0 0
  %558 = vmatpush2.bf16.msra.mxu0 0
  %559 = vmatprep.mubr.bf16.mxu0 0
  %560 = vmatmul.mubr.bf16.gmra.mxu0 %v516
  %v561 = vpop.f32.mrf.mxu0
  %v562 = vadd.f32 0.0, %v561
  %v563 = vpop.f32.mrf.mxu0
  %v564 = vpop.f32.mrf.mxu0
  %v565 = vadd.f32 0.0, %v564
  %v566 = vpop.f32.mrf.mxu0
  %567 = vmatprep.mubr.bf16.mxu0 0
  %568 = vmatmul.mubr.bf16.gmra.mxu0 %v519
  %v569 = vpop.f32.mrf.mxu0
  %v570 = vadd.f32 0.0, %v569
  %v571 = vpop.f32.mrf.mxu0
  %v572 = vpop.f32.mrf.mxu0
  %v573 = vadd.f32 0.0, %v572
  %v574 = vpop.f32.mrf.mxu0
  %575 = vmatprep.mubr.bf16.mxu0 0
  %576 = vmatmul.mubr.bf16.gmra.mxu0 %v522
  %v577 = vpop.f32.mrf.mxu0
  %v578 = vadd.f32 0.0, %v577
  %v579 = vpop.f32.mrf.mxu0
  %v580 = vpop.f32.mrf.mxu0
  %v581 = vadd.f32 0.0, %v580
  %v582 = vpop.f32.mrf.mxu0
  %583 = vmatprep.mubr.bf16.mxu0 0
  %584 = vmatmul.mubr.bf16.gmra.mxu0 %v525
  %v585 = vpop.f32.mrf.mxu0
  %v586 = vadd.f32 0.0, %v585
  %v587 = vpop.f32.mrf.mxu0
  %v588 = vpop.f32.mrf.mxu0
  %v589 = vadd.f32 0.0, %v588
  %v590 = vpop.f32.mrf.mxu0
  %591 = vdwg.mxu0
  %v592 = vmax.f32 %v562, 0.0
  %v593 = vmax.f32 %v565, 0.0
  %v594 = vmax.f32 %v570, 0.0
  %v595 = vmax.f32 %v573, 0.0
  %v596 = vmax.f32 %v578, 0.0
  %v597 = vmax.f32 %v581, 0.0
  %v598 = vmax.f32 %v586, 0.0
  %v599 = vmax.f32 %v589, 0.0
  %vm600 = vcmask 523264
  %v601 = vsel %vm600, %v217, 0.0
  %v602 = vsel %vm600, %v218, 0.0
  %v603 = vadd.f32 %v601, %v602
  %v604 = vsel %vm600, %v219, 0.0
  %v605 = vadd.f32 %v603, %v604
  %v606 = vsel %vm600, %v220, 0.0
  %v607 = vadd.f32 %v605, %v606
  %v608 = vsel %vm600, %v221, 0.0
  %v609 = vadd.f32 %v607, %v608
  %v610 = vsel %vm600, %v222, 0.0
  %v611 = vadd.f32 %v609, %v610
  %v612 = vsel %vm600, %v223, 0.0
  %v613 = vadd.f32 %v611, %v612
  %v614 = vsel %vm600, %v224, 0.0
  %v615 = vadd.f32 %v613, %v614
  %v616 = vrot.slane %v615, 4
  %v617 = vadd.f32 %v615, %v616
  %v618 = vrot.slane %v617, 2
  %v619 = vadd.f32 %v617, %v618
  %v620 = vrot.slane %v619, 1
  %v621 = vadd.f32 %v619, %v620
  %v622 = vsel %vm600, %v342, 0.0
  %v623 = vsel %vm600, %v343, 0.0
  %v624 = vadd.f32 %v622, %v623
  %v625 = vsel %vm600, %v344, 0.0
  %v626 = vadd.f32 %v624, %v625
  %v627 = vsel %vm600, %v345, 0.0
  %v628 = vadd.f32 %v626, %v627
  %v629 = vsel %vm600, %v346, 0.0
  %v630 = vadd.f32 %v628, %v629
  %v631 = vsel %vm600, %v347, 0.0
  %v632 = vadd.f32 %v630, %v631
  %v633 = vsel %vm600, %v348, 0.0
  %v634 = vadd.f32 %v632, %v633
  %v635 = vsel %vm600, %v349, 0.0
  %v636 = vadd.f32 %v634, %v635
  %v637 = vrot.slane %v636, 4
  %v638 = vadd.f32 %v636, %v637
  %v639 = vrot.slane %v638, 2
  %v640 = vadd.f32 %v638, %v639
  %v641 = vrot.slane %v640, 1
  %v642 = vadd.f32 %v640, %v641
  %v643 = vsel %vm600, %v467, 0.0
  %v644 = vsel %vm600, %v468, 0.0
  %v645 = vadd.f32 %v643, %v644
  %v646 = vsel %vm600, %v469, 0.0
  %v647 = vadd.f32 %v645, %v646
  %v648 = vsel %vm600, %v470, 0.0
  %v649 = vadd.f32 %v647, %v648
  %v650 = vsel %vm600, %v471, 0.0
  %v651 = vadd.f32 %v649, %v650
  %v652 = vsel %vm600, %v472, 0.0
  %v653 = vadd.f32 %v651, %v652
  %v654 = vsel %vm600, %v473, 0.0
  %v655 = vadd.f32 %v653, %v654
  %v656 = vsel %vm600, %v474, 0.0
  %v657 = vadd.f32 %v655, %v656
  %v658 = vrot.slane %v657, 4
  %v659 = vadd.f32 %v657, %v658
  %v660 = vrot.slane %v659, 2
  %v661 = vadd.f32 %v659, %v660
  %v662 = vrot.slane %v661, 1
  %v663 = vadd.f32 %v661, %v662
  %v664 = vsel %vm600, %v592, 0.0
  %v665 = vsel %vm600, %v593, 0.0
  %v666 = vadd.f32 %v664, %v665
  %v667 = vsel %vm600, %v594, 0.0
  %v668 = vadd.f32 %v666, %v667
  %v669 = vsel %vm600, %v595, 0.0
  %v670 = vadd.f32 %v668, %v669
  %v671 = vsel %vm600, %v596, 0.0
  %v672 = vadd.f32 %v670, %v671
  %v673 = vsel %vm600, %v597, 0.0
  %v674 = vadd.f32 %v672, %v673
  %v675 = vsel %vm600, %v598, 0.0
  %v676 = vadd.f32 %v674, %v675
  %v677 = vsel %vm600, %v599, 0.0
  %v678 = vadd.f32 %v676, %v677
  %v679 = vrot.slane %v678, 4
  %v680 = vadd.f32 %v678, %v679
  %v681 = vrot.slane %v680, 2
  %v682 = vadd.f32 %v680, %v681
  %v683 = vrot.slane %v682, 1
  %v684 = vadd.f32 %v682, %v683
  %v685 = vlaneseq
  %v686 = vshrl.u32 %v685, 7
  %v687 = vsub.s32 0, %v686
  %v688 = vrot.slane %v54, %v687
  %v689 = vmul.f32 %v621, %v688
  %v690 = vmul.f32 %v642, %v688
  %v691 = vmul.f32 %v663, %v688
  %v692 = vmul.f32 %v684, %v688
  %v693 = vadd.f32 %v689, 0.0
  %v694 = vadd.f32 %v690, 0.0
  %v695 = vadd.f32 %v691, 0.0
  %v696 = vadd.f32 %v692, 0.0
  %s697 = scalar_lea.vmem %s1, 1
  %v698 = vld [vmem:[%s697] sm:$0x1]
  %vm699 = vcmp.gt.f32.partialorder %v698, 0.0
  %v700 = vsel %vm699, 1, 0
  %v701 = vcvt.s32.f32 %v700
  %v702 = vsel %vm32, %v701, 0.0
  %703 = vadd.xlane.f32.xlu0 %v702
  %v704 = vpop.xlane.xlu0 %703
  %v705 = vmul.f32 %v698, %v701
  %v706 = vsel %vm32, %v705, 0.0
  %707 = vadd.xlane.f32.xlu0 %v706
  %v708 = vpop.xlane.xlu0 %707
  %v709 = vmax.f32 %v704, 1.0
  %v710 = vrcp.pop %v709
  %v711 = vmul.f32 %v708, %v710
  %vm712 = vcmp.ge.f32.partialorder %v698, %v711
  %vm713 = vcmp.gt.f32.partialorder %v704, 0.0
  %v714 = vsel %vm713, 1, 0
  %vm715 = vcmp.eq.s32.totalorder %v714, 1
  %vm716 = vmand %vm712, %vm715
  %v717 = vsel %vm716, 1.0, 0.0
  %v718 = vsel %vm32, %v717, 0.0
  %719 = vadd.xlane.f32.xlu0 %v718
  %v720 = vpop.xlane.xlu0 %719
  %v721 = vmax.f32 %v720, 1.0
  %v722 = vrcp.pop %v721
  %v723 = vmul.f32 1.0, %v722
  %v724 = vpack.c.bf16 %v717, %v717
  %v726 = vpack.i.b16 %v724, %v724
  %v728 = vlaneseq
  %v729 = vshrl.u32 %v728, 7
  %v730 = vsub.s32 0, %v729
  %v731 = vrot.slane %v726, %v730
  %v733 = vunpack.c.l.b16 %v731
  %v734 = vpack.c.b16 %v733, %v733
  %735 = vrot.lane.b32.xlu0 %v734, 64
  %v736 = vpop.permute.xlu0 %735
  %v738 = vmul.bf16 %v55, %v736
  %v739 = vmul.bf16 %v56, %v736
  %v740 = vmul.bf16 %v57, %v736
  %v741 = vmul.bf16 %v58, %v736
  %v742 = vmul.bf16 %v59, %v736
  %v743 = vmul.bf16 %v60, %v736
  %v744 = vmul.bf16 %v61, %v736
  %v745 = vmul.bf16 %v62, %v736
  %v746 = vmul.bf16 %v63, %v736
  %v747 = vmul.bf16 %v64, %v736
  %v748 = vmul.bf16 %v65, %v736
  %v749 = vmul.bf16 %v66, %v736
  %v750 = vmul.bf16 %v67, %v736
  %v751 = vmul.bf16 %v68, %v736
  %v752 = vmul.bf16 %v69, %v736
  %v753 = vmul.bf16 %v70, %v736
  %v758 = vunpack.c.l.b16 %v738
  %v759 = vunpack.c.l.b16 %v739
  %v760 = vunpack.c.l.b16 %v740
  %v761 = vunpack.c.l.b16 %v741
  %v762 = vpack.c.b16 %v759, %v758
  %v763 = vpack.c.b16 %v761, %v760
  %764 = vrot.lane.b32.xlu0 %v762, 64
  %v765 = vpop.permute.xlu0 %764
  %766 = vrot.lane.b32.xlu0 %v763, 64
  %v767 = vpop.permute.xlu0 %766
  %770 = vxpose.xlu0.c.b16.start [1/8] %v765, 128
  %771 = vxpose.xlu0.c.b16.cont [2/8] %v767, 128
  %772 = vxpose.xlu0.c.b16.cont [3/8] 0, 128
  %773 = vxpose.xlu0.c.b16.cont [4/8] 0, 128
  %774 = vxpose.xlu0.c.b16.cont [5/8] 0, 128
  %775 = vxpose.xlu0.c.b16.cont [6/8] 0, 128
  %776 = vxpose.xlu0.c.b16.cont [7/8] 0, 128
  %777 = vxpose.xlu0.c.b16.end [8/8] 0, 128
  %v778 = vpop.trf.xlu0
  %v779 = vpop.trf.xlu0
  %v780 = vpop.trf.xlu0
  %v781 = vpop.trf.xlu0
  %v782 = vpop.trf.xlu0
  %v783 = vpop.trf.xlu0
  %v784 = vpop.trf.xlu0
  %v785 = vpop.trf.xlu0
  %786 = vrot.lane.b32.xlu0 %v135, 64
  %v787 = vpop.permute.xlu0 %786
  %788 = vrot.lane.b32.xlu0 %v136, 64
  %v789 = vpop.permute.xlu0 %788
  %v793 = vsel %vm139, %v778, 0
  %v796 = vsel %vm139, %v779, 0
  %v799 = vsel %vm139, %v780, 0
  %v802 = vsel %vm139, %v781, 0
  %804 = vmatprep.subr.bf16.mxu0 0
  %805 = vmatpush1.bf16.msra.mxu0 0
  %806 = vmatprep.subr.bf16.mxu0 0
  %807 = vmatpush1.bf16.msra.mxu0 0
  %808 = vmatprep.subr.bf16.mxu0 0
  %809 = vmatpush1.bf16.msra.mxu0 0
  %810 = vmatprep.subr.bf16.mxu0 0
  %811 = vmatpush1.bf16.msra.mxu0 0
  %812 = vmatprep.subr.bf16.mxu0 0
  %813 = vmatpush1.bf16.msra.mxu0 0
  %814 = vmatprep.subr.bf16.mxu0 0
  %815 = vmatpush1.bf16.msra.mxu0 0
  %816 = vmatprep.subr.bf16.mxu0 0
  %817 = vmatpush1.bf16.msra.mxu0 %v789
  %818 = vmatprep.subr.bf16.mxu0 0
  %819 = vmatpush1.bf16.msra.mxu0 %v787
  %820 = vmatprep.subr.bf16.mxu0 0
  %821 = vmatpush2.bf16.msra.mxu0 0
  %822 = vmatprep.subr.bf16.mxu0 0
  %823 = vmatpush2.bf16.msra.mxu0 0
  %824 = vmatprep.subr.bf16.mxu0 0
  %825 = vmatpush2.bf16.msra.mxu0 0
  %826 = vmatprep.subr.bf16.mxu0 0
  %827 = vmatpush2.bf16.msra.mxu0 0
  %828 = vmatprep.subr.bf16.mxu0 0
  %829 = vmatpush2.bf16.msra.mxu0 0
  %830 = vmatprep.subr.bf16.mxu0 0
  %831 = vmatpush2.bf16.msra.mxu0 0
  %832 = vmatprep.subr.bf16.mxu0 0
  %833 = vmatpush2.bf16.msra.mxu0 0
  %834 = vmatprep.subr.bf16.mxu0 0
  %835 = vmatpush2.bf16.msra.mxu0 0
  %836 = vmatprep.mubr.bf16.mxu0 0
  %837 = vmatmul.mubr.bf16.gmra.mxu0 %v793
  %v838 = vpop.f32.mrf.mxu0
  %v839 = vadd.f32 0.0, %v838
  %v840 = vpop.f32.mrf.mxu0
  %v841 = vpop.f32.mrf.mxu0
  %v842 = vadd.f32 0.0, %v841
  %v843 = vpop.f32.mrf.mxu0
  %844 = vmatprep.mubr.bf16.mxu0 0
  %845 = vmatmul.mubr.bf16.gmra.mxu0 %v796
  %v846 = vpop.f32.mrf.mxu0
  %v847 = vadd.f32 0.0, %v846
  %v848 = vpop.f32.mrf.mxu0
  %v849 = vpop.f32.mrf.mxu0
  %v850 = vadd.f32 0.0, %v849
  %v851 = vpop.f32.mrf.mxu0
  %852 = vmatprep.mubr.bf16.mxu0 0
  %853 = vmatmul.mubr.bf16.gmra.mxu0 %v799
  %v854 = vpop.f32.mrf.mxu0
  %v855 = vadd.f32 0.0, %v854
  %v856 = vpop.f32.mrf.mxu0
  %v857 = vpop.f32.mrf.mxu0
  %v858 = vadd.f32 0.0, %v857
  %v859 = vpop.f32.mrf.mxu0
  %860 = vmatprep.mubr.bf16.mxu0 0
  %861 = vmatmul.mubr.bf16.gmra.mxu0 %v802
  %v862 = vpop.f32.mrf.mxu0
  %v863 = vadd.f32 0.0, %v862
  %v864 = vpop.f32.mrf.mxu0
  %v865 = vpop.f32.mrf.mxu0
  %v866 = vadd.f32 0.0, %v865
  %v867 = vpop.f32.mrf.mxu0
  %868 = vdwg.mxu0
  %v869 = vmax.f32 %v839, 0.0
  %v870 = vmax.f32 %v842, 0.0
  %v871 = vmax.f32 %v847, 0.0
  %v872 = vmax.f32 %v850, 0.0
  %v873 = vmax.f32 %v855, 0.0
  %v874 = vmax.f32 %v858, 0.0
  %v875 = vmax.f32 %v863, 0.0
  %v876 = vmax.f32 %v866, 0.0
  %v881 = vunpack.c.l.b16 %v742
  %v882 = vunpack.c.l.b16 %v743
  %v883 = vunpack.c.l.b16 %v744
  %v884 = vunpack.c.l.b16 %v745
  %v885 = vpack.c.b16 %v882, %v881
  %v886 = vpack.c.b16 %v884, %v883
  %887 = vrot.lane.b32.xlu0 %v885, 64
  %v888 = vpop.permute.xlu0 %887
  %889 = vrot.lane.b32.xlu0 %v886, 64
  %v890 = vpop.permute.xlu0 %889
  %893 = vxpose.xlu0.c.b16.start [1/8] %v888, 128
  %894 = vxpose.xlu0.c.b16.cont [2/8] %v890, 128
  %895 = vxpose.xlu0.c.b16.cont [3/8] 0, 128
  %896 = vxpose.xlu0.c.b16.cont [4/8] 0, 128
  %897 = vxpose.xlu0.c.b16.cont [5/8] 0, 128
  %898 = vxpose.xlu0.c.b16.cont [6/8] 0, 128
  %899 = vxpose.xlu0.c.b16.cont [7/8] 0, 128
  %900 = vxpose.xlu0.c.b16.end [8/8] 0, 128
  %v901 = vpop.trf.xlu0
  %v902 = vpop.trf.xlu0
  %v903 = vpop.trf.xlu0
  %v904 = vpop.trf.xlu0
  %v905 = vpop.trf.xlu0
  %v906 = vpop.trf.xlu0
  %v907 = vpop.trf.xlu0
  %v908 = vpop.trf.xlu0
  %909 = vrot.lane.b32.xlu0 %v261, 64
  %v910 = vpop.permute.xlu0 %909
  %911 = vrot.lane.b32.xlu0 %v262, 64
  %v912 = vpop.permute.xlu0 %911
  %v916 = vsel %vm139, %v901, 0
  %v919 = vsel %vm139, %v902, 0
  %v922 = vsel %vm139, %v903, 0
  %v925 = vsel %vm139, %v904, 0
  %927 = vmatprep.subr.bf16.mxu0 0
  %928 = vmatpush1.bf16.msra.mxu0 0
  %929 = vmatprep.subr.bf16.mxu0 0
  %930 = vmatpush1.bf16.msra.mxu0 0
  %931 = vmatprep.subr.bf16.mxu0 0
  %932 = vmatpush1.bf16.msra.mxu0 0
  %933 = vmatprep.subr.bf16.mxu0 0
  %934 = vmatpush1.bf16.msra.mxu0 0
  %935 = vmatprep.subr.bf16.mxu0 0
  %936 = vmatpush1.bf16.msra.mxu0 0
  %937 = vmatprep.subr.bf16.mxu0 0
  %938 = vmatpush1.bf16.msra.mxu0 0
  %939 = vmatprep.subr.bf16.mxu0 0
  %940 = vmatpush1.bf16.msra.mxu0 %v912
  %941 = vmatprep.subr.bf16.mxu0 0
  %942 = vmatpush1.bf16.msra.mxu0 %v910
  %943 = vmatprep.subr.bf16.mxu0 0
  %944 = vmatpush2.bf16.msra.mxu0 0
  %945 = vmatprep.subr.bf16.mxu0 0
  %946 = vmatpush2.bf16.msra.mxu0 0
  %947 = vmatprep.subr.bf16.mxu0 0
  %948 = vmatpush2.bf16.msra.mxu0 0
  %949 = vmatprep.subr.bf16.mxu0 0
  %950 = vmatpush2.bf16.msra.mxu0 0
  %951 = vmatprep.subr.bf16.mxu0 0
  %952 = vmatpush2.bf16.msra.mxu0 0
  %953 = vmatprep.subr.bf16.mxu0 0
  %954 = vmatpush2.bf16.msra.mxu0 0
  %955 = vmatprep.subr.bf16.mxu0 0
  %956 = vmatpush2.bf16.msra.mxu0 0
  %957 = vmatprep.subr.bf16.mxu0 0
  %958 = vmatpush2.bf16.msra.mxu0 0
  %959 = vmatprep.mubr.bf16.mxu0 0
  %960 = vmatmul.mubr.bf16.gmra.mxu0 %v916
  %v961 = vpop.f32.mrf.mxu0
  %v962 = vadd.f32 0.0, %v961
  %v963 = vpop.f32.mrf.mxu0
  %v964 = vpop.f32.mrf.mxu0
  %v965 = vadd.f32 0.0, %v964
  %v966 = vpop.f32.mrf.mxu0
  %967 = vmatprep.mubr.bf16.mxu0 0
  %968 = vmatmul.mubr.bf16.gmra.mxu0 %v919
  %v969 = vpop.f32.mrf.mxu0
  %v970 = vadd.f32 0.0, %v969
  %v971 = vpop.f32.mrf.mxu0
  %v972 = vpop.f32.mrf.mxu0
  %v973 = vadd.f32 0.0, %v972
  %v974 = vpop.f32.mrf.mxu0
  %975 = vmatprep.mubr.bf16.mxu0 0
  %976 = vmatmul.mubr.bf16.gmra.mxu0 %v922
  %v977 = vpop.f32.mrf.mxu0
  %v978 = vadd.f32 0.0, %v977
  %v979 = vpop.f32.mrf.mxu0
  %v980 = vpop.f32.mrf.mxu0
  %v981 = vadd.f32 0.0, %v980
  %v982 = vpop.f32.mrf.mxu0
  %983 = vmatprep.mubr.bf16.mxu0 0
  %984 = vmatmul.mubr.bf16.gmra.mxu0 %v925
  %v985 = vpop.f32.mrf.mxu0
  %v986 = vadd.f32 0.0, %v985
  %v987 = vpop.f32.mrf.mxu0
  %v988 = vpop.f32.mrf.mxu0
  %v989 = vadd.f32 0.0, %v988
  %v990 = vpop.f32.mrf.mxu0
  %991 = vdwg.mxu0
  %v992 = vmax.f32 %v962, 0.0
  %v993 = vmax.f32 %v965, 0.0
  %v994 = vmax.f32 %v970, 0.0
  %v995 = vmax.f32 %v973, 0.0
  %v996 = vmax.f32 %v978, 0.0
  %v997 = vmax.f32 %v981, 0.0
  %v998 = vmax.f32 %v986, 0.0
  %v999 = vmax.f32 %v989, 0.0
  %v1004 = vunpack.c.l.b16 %v746
  %v1005 = vunpack.c.l.b16 %v747
  %v1006 = vunpack.c.l.b16 %v748
  %v1007 = vunpack.c.l.b16 %v749
  %v1008 = vpack.c.b16 %v1005, %v1004
  %v1009 = vpack.c.b16 %v1007, %v1006
  %1010 = vrot.lane.b32.xlu0 %v1008, 64
  %v1011 = vpop.permute.xlu0 %1010
  %1012 = vrot.lane.b32.xlu0 %v1009, 64
  %v1013 = vpop.permute.xlu0 %1012
  %1016 = vxpose.xlu0.c.b16.start [1/8] %v1011, 128
  %1017 = vxpose.xlu0.c.b16.cont [2/8] %v1013, 128
  %1018 = vxpose.xlu0.c.b16.cont [3/8] 0, 128
  %1019 = vxpose.xlu0.c.b16.cont [4/8] 0, 128
  %1020 = vxpose.xlu0.c.b16.cont [5/8] 0, 128
  %1021 = vxpose.xlu0.c.b16.cont [6/8] 0, 128
  %1022 = vxpose.xlu0.c.b16.cont [7/8] 0, 128
  %1023 = vxpose.xlu0.c.b16.end [8/8] 0, 128
  %v1024 = vpop.trf.xlu0
  %v1025 = vpop.trf.xlu0
  %v1026 = vpop.trf.xlu0
  %v1027 = vpop.trf.xlu0
  %v1028 = vpop.trf.xlu0
  %v1029 = vpop.trf.xlu0
  %v1030 = vpop.trf.xlu0
  %v1031 = vpop.trf.xlu0
  %1032 = vrot.lane.b32.xlu0 %v386, 64
  %v1033 = vpop.permute.xlu0 %1032
  %1034 = vrot.lane.b32.xlu0 %v387, 64
  %v1035 = vpop.permute.xlu0 %1034
  %v1039 = vsel %vm139, %v1024, 0
  %v1042 = vsel %vm139, %v1025, 0
  %v1045 = vsel %vm139, %v1026, 0
  %v1048 = vsel %vm139, %v1027, 0
  %1050 = vmatprep.subr.bf16.mxu0 0
  %1051 = vmatpush1.bf16.msra.mxu0 0
  %1052 = vmatprep.subr.bf16.mxu0 0
  %1053 = vmatpush1.bf16.msra.mxu0 0
  %1054 = vmatprep.subr.bf16.mxu0 0
  %1055 = vmatpush1.bf16.msra.mxu0 0
  %1056 = vmatprep.subr.bf16.mxu0 0
  %1057 = vmatpush1.bf16.msra.mxu0 0
  %1058 = vmatprep.subr.bf16.mxu0 0
  %1059 = vmatpush1.bf16.msra.mxu0 0
  %1060 = vmatprep.subr.bf16.mxu0 0
  %1061 = vmatpush1.bf16.msra.mxu0 0
  %1062 = vmatprep.subr.bf16.mxu0 0
  %1063 = vmatpush1.bf16.msra.mxu0 %v1035
  %1064 = vmatprep.subr.bf16.mxu0 0
  %1065 = vmatpush1.bf16.msra.mxu0 %v1033
  %1066 = vmatprep.subr.bf16.mxu0 0
  %1067 = vmatpush2.bf16.msra.mxu0 0
  %1068 = vmatprep.subr.bf16.mxu0 0
  %1069 = vmatpush2.bf16.msra.mxu0 0
  %1070 = vmatprep.subr.bf16.mxu0 0
  %1071 = vmatpush2.bf16.msra.mxu0 0
  %1072 = vmatprep.subr.bf16.mxu0 0
  %1073 = vmatpush2.bf16.msra.mxu0 0
  %1074 = vmatprep.subr.bf16.mxu0 0
  %1075 = vmatpush2.bf16.msra.mxu0 0
  %1076 = vmatprep.subr.bf16.mxu0 0
  %1077 = vmatpush2.bf16.msra.mxu0 0
  %1078 = vmatprep.subr.bf16.mxu0 0
  %1079 = vmatpush2.bf16.msra.mxu0 0
  %1080 = vmatprep.subr.bf16.mxu0 0
  %1081 = vmatpush2.bf16.msra.mxu0 0
  %1082 = vmatprep.mubr.bf16.mxu0 0
  %1083 = vmatmul.mubr.bf16.gmra.mxu0 %v1039
  %v1084 = vpop.f32.mrf.mxu0
  %v1085 = vadd.f32 0.0, %v1084
  %v1086 = vpop.f32.mrf.mxu0
  %v1087 = vpop.f32.mrf.mxu0
  %v1088 = vadd.f32 0.0, %v1087
  %v1089 = vpop.f32.mrf.mxu0
  %1090 = vmatprep.mubr.bf16.mxu0 0
  %1091 = vmatmul.mubr.bf16.gmra.mxu0 %v1042
  %v1092 = vpop.f32.mrf.mxu0
  %v1093 = vadd.f32 0.0, %v1092
  %v1094 = vpop.f32.mrf.mxu0
  %v1095 = vpop.f32.mrf.mxu0
  %v1096 = vadd.f32 0.0, %v1095
  %v1097 = vpop.f32.mrf.mxu0
  %1098 = vmatprep.mubr.bf16.mxu0 0
  %1099 = vmatmul.mubr.bf16.gmra.mxu0 %v1045
  %v1100 = vpop.f32.mrf.mxu0
  %v1101 = vadd.f32 0.0, %v1100
  %v1102 = vpop.f32.mrf.mxu0
  %v1103 = vpop.f32.mrf.mxu0
  %v1104 = vadd.f32 0.0, %v1103
  %v1105 = vpop.f32.mrf.mxu0
  %1106 = vmatprep.mubr.bf16.mxu0 0
  %1107 = vmatmul.mubr.bf16.gmra.mxu0 %v1048
  %v1108 = vpop.f32.mrf.mxu0
  %v1109 = vadd.f32 0.0, %v1108
  %v1110 = vpop.f32.mrf.mxu0
  %v1111 = vpop.f32.mrf.mxu0
  %v1112 = vadd.f32 0.0, %v1111
  %v1113 = vpop.f32.mrf.mxu0
  %1114 = vdwg.mxu0
  %v1115 = vmax.f32 %v1085, 0.0
  %v1116 = vmax.f32 %v1088, 0.0
  %v1117 = vmax.f32 %v1093, 0.0
  %v1118 = vmax.f32 %v1096, 0.0
  %v1119 = vmax.f32 %v1101, 0.0
  %v1120 = vmax.f32 %v1104, 0.0
  %v1121 = vmax.f32 %v1109, 0.0
  %v1122 = vmax.f32 %v1112, 0.0
  %v1127 = vunpack.c.l.b16 %v750
  %v1128 = vunpack.c.l.b16 %v751
  %v1129 = vunpack.c.l.b16 %v752
  %v1130 = vunpack.c.l.b16 %v753
  %v1131 = vpack.c.b16 %v1128, %v1127
  %v1132 = vpack.c.b16 %v1130, %v1129
  %1133 = vrot.lane.b32.xlu0 %v1131, 64
  %v1134 = vpop.permute.xlu0 %1133
  %1135 = vrot.lane.b32.xlu0 %v1132, 64
  %v1136 = vpop.permute.xlu0 %1135
  %1139 = vxpose.xlu0.c.b16.start [1/8] %v1134, 128
  %1140 = vxpose.xlu0.c.b16.cont [2/8] %v1136, 128
  %1141 = vxpose.xlu0.c.b16.cont [3/8] 0, 128
  %1142 = vxpose.xlu0.c.b16.cont [4/8] 0, 128
  %1143 = vxpose.xlu0.c.b16.cont [5/8] 0, 128
  %1144 = vxpose.xlu0.c.b16.cont [6/8] 0, 128
  %1145 = vxpose.xlu0.c.b16.cont [7/8] 0, 128
  %1146 = vxpose.xlu0.c.b16.end [8/8] 0, 128
  %v1147 = vpop.trf.xlu0
  %v1148 = vpop.trf.xlu0
  %v1149 = vpop.trf.xlu0
  %v1150 = vpop.trf.xlu0
  %v1151 = vpop.trf.xlu0
  %v1152 = vpop.trf.xlu0
  %v1153 = vpop.trf.xlu0
  %v1154 = vpop.trf.xlu0
  %1155 = vrot.lane.b32.xlu0 %v511, 64
  %v1156 = vpop.permute.xlu0 %1155
  %1157 = vrot.lane.b32.xlu0 %v512, 64
  %v1158 = vpop.permute.xlu0 %1157
  %v1162 = vsel %vm139, %v1147, 0
  %v1165 = vsel %vm139, %v1148, 0
  %v1168 = vsel %vm139, %v1149, 0
  %v1171 = vsel %vm139, %v1150, 0
  %1173 = vmatprep.subr.bf16.mxu0 0
  %1174 = vmatpush1.bf16.msra.mxu0 0
  %1175 = vmatprep.subr.bf16.mxu0 0
  %1176 = vmatpush1.bf16.msra.mxu0 0
  %1177 = vmatprep.subr.bf16.mxu0 0
  %1178 = vmatpush1.bf16.msra.mxu0 0
  %1179 = vmatprep.subr.bf16.mxu0 0
  %1180 = vmatpush1.bf16.msra.mxu0 0
  %1181 = vmatprep.subr.bf16.mxu0 0
  %1182 = vmatpush1.bf16.msra.mxu0 0
  %1183 = vmatprep.subr.bf16.mxu0 0
  %1184 = vmatpush1.bf16.msra.mxu0 0
  %1185 = vmatprep.subr.bf16.mxu0 0
  %1186 = vmatpush1.bf16.msra.mxu0 %v1158
  %1187 = vmatprep.subr.bf16.mxu0 0
  %1188 = vmatpush1.bf16.msra.mxu0 %v1156
  %1189 = vmatprep.subr.bf16.mxu0 0
  %1190 = vmatpush2.bf16.msra.mxu0 0
  %1191 = vmatprep.subr.bf16.mxu0 0
  %1192 = vmatpush2.bf16.msra.mxu0 0
  %1193 = vmatprep.subr.bf16.mxu0 0
  %1194 = vmatpush2.bf16.msra.mxu0 0
  %1195 = vmatprep.subr.bf16.mxu0 0
  %1196 = vmatpush2.bf16.msra.mxu0 0
  %1197 = vmatprep.subr.bf16.mxu0 0
  %1198 = vmatpush2.bf16.msra.mxu0 0
  %1199 = vmatprep.subr.bf16.mxu0 0
  %1200 = vmatpush2.bf16.msra.mxu0 0
  %1201 = vmatprep.subr.bf16.mxu0 0
  %1202 = vmatpush2.bf16.msra.mxu0 0
  %1203 = vmatprep.subr.bf16.mxu0 0
  %1204 = vmatpush2.bf16.msra.mxu0 0
  %1205 = vmatprep.mubr.bf16.mxu0 0
  %1206 = vmatmul.mubr.bf16.gmra.mxu0 %v1162
  %v1207 = vpop.f32.mrf.mxu0
  %v1208 = vadd.f32 0.0, %v1207
  %v1209 = vpop.f32.mrf.mxu0
  %v1210 = vpop.f32.mrf.mxu0
  %v1211 = vadd.f32 0.0, %v1210
  %v1212 = vpop.f32.mrf.mxu0
  %1213 = vmatprep.mubr.bf16.mxu0 0
  %1214 = vmatmul.mubr.bf16.gmra.mxu0 %v1165
  %v1215 = vpop.f32.mrf.mxu0
  %v1216 = vadd.f32 0.0, %v1215
  %v1217 = vpop.f32.mrf.mxu0
  %v1218 = vpop.f32.mrf.mxu0
  %v1219 = vadd.f32 0.0, %v1218
  %v1220 = vpop.f32.mrf.mxu0
  %1221 = vmatprep.mubr.bf16.mxu0 0
  %1222 = vmatmul.mubr.bf16.gmra.mxu0 %v1168
  %v1223 = vpop.f32.mrf.mxu0
  %v1224 = vadd.f32 0.0, %v1223
  %v1225 = vpop.f32.mrf.mxu0
  %v1226 = vpop.f32.mrf.mxu0
  %v1227 = vadd.f32 0.0, %v1226
  %v1228 = vpop.f32.mrf.mxu0
  %1229 = vmatprep.mubr.bf16.mxu0 0
  %1230 = vmatmul.mubr.bf16.gmra.mxu0 %v1171
  %v1231 = vpop.f32.mrf.mxu0
  %v1232 = vadd.f32 0.0, %v1231
  %v1233 = vpop.f32.mrf.mxu0
  %v1234 = vpop.f32.mrf.mxu0
  %v1235 = vadd.f32 0.0, %v1234
  %v1236 = vpop.f32.mrf.mxu0
  %1237 = vdwg.mxu0
  %v1238 = vmax.f32 %v1208, 0.0
  %v1239 = vmax.f32 %v1211, 0.0
  %v1240 = vmax.f32 %v1216, 0.0
  %v1241 = vmax.f32 %v1219, 0.0
  %v1242 = vmax.f32 %v1224, 0.0
  %v1243 = vmax.f32 %v1227, 0.0
  %v1244 = vmax.f32 %v1232, 0.0
  %v1245 = vmax.f32 %v1235, 0.0
  %v1246 = vsel %vm600, %v869, 0.0
  %v1247 = vsel %vm600, %v870, 0.0
  %v1248 = vadd.f32 %v1246, %v1247
  %v1249 = vsel %vm600, %v871, 0.0
  %v1250 = vadd.f32 %v1248, %v1249
  %v1251 = vsel %vm600, %v872, 0.0
  %v1252 = vadd.f32 %v1250, %v1251
  %v1253 = vsel %vm600, %v873, 0.0
  %v1254 = vadd.f32 %v1252, %v1253
  %v1255 = vsel %vm600, %v874, 0.0
  %v1256 = vadd.f32 %v1254, %v1255
  %v1257 = vsel %vm600, %v875, 0.0
  %v1258 = vadd.f32 %v1256, %v1257
  %v1259 = vsel %vm600, %v876, 0.0
  %v1260 = vadd.f32 %v1258, %v1259
  %v1261 = vrot.slane %v1260, 4
  %v1262 = vadd.f32 %v1260, %v1261
  %v1263 = vrot.slane %v1262, 2
  %v1264 = vadd.f32 %v1262, %v1263
  %v1265 = vrot.slane %v1264, 1
  %v1266 = vadd.f32 %v1264, %v1265
  %v1267 = vsel %vm600, %v992, 0.0
  %v1268 = vsel %vm600, %v993, 0.0
  %v1269 = vadd.f32 %v1267, %v1268
  %v1270 = vsel %vm600, %v994, 0.0
  %v1271 = vadd.f32 %v1269, %v1270
  %v1272 = vsel %vm600, %v995, 0.0
  %v1273 = vadd.f32 %v1271, %v1272
  %v1274 = vsel %vm600, %v996, 0.0
  %v1275 = vadd.f32 %v1273, %v1274
  %v1276 = vsel %vm600, %v997, 0.0
  %v1277 = vadd.f32 %v1275, %v1276
  %v1278 = vsel %vm600, %v998, 0.0
  %v1279 = vadd.f32 %v1277, %v1278
  %v1280 = vsel %vm600, %v999, 0.0
  %v1281 = vadd.f32 %v1279, %v1280
  %v1282 = vrot.slane %v1281, 4
  %v1283 = vadd.f32 %v1281, %v1282
  %v1284 = vrot.slane %v1283, 2
  %v1285 = vadd.f32 %v1283, %v1284
  %v1286 = vrot.slane %v1285, 1
  %v1287 = vadd.f32 %v1285, %v1286
  %v1288 = vsel %vm600, %v1115, 0.0
  %v1289 = vsel %vm600, %v1116, 0.0
  %v1290 = vadd.f32 %v1288, %v1289
  %v1291 = vsel %vm600, %v1117, 0.0
  %v1292 = vadd.f32 %v1290, %v1291
  %v1293 = vsel %vm600, %v1118, 0.0
  %v1294 = vadd.f32 %v1292, %v1293
  %v1295 = vsel %vm600, %v1119, 0.0
  %v1296 = vadd.f32 %v1294, %v1295
  %v1297 = vsel %vm600, %v1120, 0.0
  %v1298 = vadd.f32 %v1296, %v1297
  %v1299 = vsel %vm600, %v1121, 0.0
  %v1300 = vadd.f32 %v1298, %v1299
  %v1301 = vsel %vm600, %v1122, 0.0
  %v1302 = vadd.f32 %v1300, %v1301
  %v1303 = vrot.slane %v1302, 4
  %v1304 = vadd.f32 %v1302, %v1303
  %v1305 = vrot.slane %v1304, 2
  %v1306 = vadd.f32 %v1304, %v1305
  %v1307 = vrot.slane %v1306, 1
  %v1308 = vadd.f32 %v1306, %v1307
  %v1309 = vsel %vm600, %v1238, 0.0
  %v1310 = vsel %vm600, %v1239, 0.0
  %v1311 = vadd.f32 %v1309, %v1310
  %v1312 = vsel %vm600, %v1240, 0.0
  %v1313 = vadd.f32 %v1311, %v1312
  %v1314 = vsel %vm600, %v1241, 0.0
  %v1315 = vadd.f32 %v1313, %v1314
  %v1316 = vsel %vm600, %v1242, 0.0
  %v1317 = vadd.f32 %v1315, %v1316
  %v1318 = vsel %vm600, %v1243, 0.0
  %v1319 = vadd.f32 %v1317, %v1318
  %v1320 = vsel %vm600, %v1244, 0.0
  %v1321 = vadd.f32 %v1319, %v1320
  %v1322 = vsel %vm600, %v1245, 0.0
  %v1323 = vadd.f32 %v1321, %v1322
  %v1324 = vrot.slane %v1323, 4
  %v1325 = vadd.f32 %v1323, %v1324
  %v1326 = vrot.slane %v1325, 2
  %v1327 = vadd.f32 %v1325, %v1326
  %v1328 = vrot.slane %v1327, 1
  %v1329 = vadd.f32 %v1327, %v1328
  %v1330 = vlaneseq
  %v1331 = vshrl.u32 %v1330, 7
  %v1332 = vsub.s32 0, %v1331
  %v1333 = vrot.slane %v723, %v1332
  %v1334 = vmul.f32 %v1266, %v1333
  %v1335 = vmul.f32 %v1287, %v1333
  %v1336 = vmul.f32 %v1308, %v1333
  %v1337 = vmul.f32 %v1329, %v1333
  %v1338 = vadd.f32 %v1334, 0.0
  %v1339 = vadd.f32 %v1335, 0.0
  %v1340 = vadd.f32 %v1336, 0.0
  %v1341 = vadd.f32 %v1337, 0.0
  %v1350 = vrot.slane %v694, 7
  %vm1351 = vcmask 1041409
  %v1352 = vsel %vm1351, %v1350, %v693
  %v1353 = vrot.slane %v695, 6
  %vm1354 = vcmask 1042434
  %v1355 = vsel %vm1354, %v1353, %v1352
  %v1356 = vrot.slane %v696, 5
  %vm1357 = vcmask 1043459
  %v1358 = vsel %vm1357, %v1356, %v1355
  %v1359 = vrot.slane %v1339, 7
  %v1360 = vsel %vm1351, %v1359, %v1338
  %v1361 = vrot.slane %v1340, 6
  %v1362 = vsel %vm1354, %v1361, %v1360
  %v1363 = vrot.slane %v1341, 5
  %v1364 = vsel %vm1357, %v1363, %v1362
  %vm1367 = vcmask 519168
  %1368 = vst.msk [vmem:[%s2] sm:$0xf] %vm1367, %v1358
  %1369 = vst.msk [vmem:[%s2 + $0x4] sm:$0xf] %vm1367, %v1364
  // Predicated region
  $region10: #{forward.10} parent=0 // pred_check
    _
  $region11: #{forward.10} parent=0 // pred_check_branch
    %1371 = sbr.rel (0) target = $region13
  $region12: #{forward.10} parent=0 // pred_region
    _
  $region13: #{forward.10} parent=0 // pred_fallthru
    _
  // Predicated region
  $region14: #{forward.10} parent=0 // pred_check
    _
  $region15: #{forward.10} parent=0 // pred_check_branch
    %1373 = sbr.rel (0) target = $region17
  $region16: #{forward.10} parent=0 // pred_region
    _
  $region17: #{forward.10} parent=0 // pred_fallthru
    _

// kernel: forward.8
$region0: #{forward.8}
  #allocation0 [shape = 'u32[]', space=smem, size = 0x4, offset = 0x4, fixed_abs, tag = 'smem constant byte address 0x4 - core index']
  #allocation1 [shape = 'u32[144,128]{1,0:T(1,128)}', space=vmem, size = 0x12000, scoped, tag = 'internal scratch']
  %s0 = inlined_call_operand.vmem [shape: bf16[4,128], index: 0, kind: input, shape index: {}]
  %s1 = inlined_call_operand.vmem [shape: bf16[65,4], index: 1, kind: input, shape index: {}]
  %s2 = inlined_call_operand.vmem [shape: bf16[5,65,65], index: 2, kind: input, shape index: {}]
  %s3 = inlined_call_operand.vmem [shape: bf16[6,64,128], index: 3, kind: output, shape index: {}]
  %s4 = sld [smem:[#allocation0]]
  $region22: #{forward.8} parent=0
    _
  %s6 = ssub.s32 1, %s4
  %s7 = scalar_select 0, %s6, %s4
  // Predicated region
  $region2: #{forward.8} parent=0 // pred_check
    _
  $region3: #{forward.8} parent=0 // pred_check_branch
    %9 = sbr.rel (0) target = $region5
  $region4: #{forward.8} parent=0 // pred_region
    _
  $region5: #{forward.8} parent=0 // pred_fallthru
    _
  // Predicated region
  $region6: #{forward.8} parent=0 // pred_check
    _
  $region7: #{forward.8} parent=0 // pred_check_branch
    %11 = sbr.rel (0) target = $region9
  $region8: #{forward.8} parent=0 // pred_region
    _
  $region9: #{forward.8} parent=0 // pred_fallthru
    _
  // Predicated region
  $region10: #{forward.8} parent=0 // pred_check
    _
  $region11: #{forward.8} parent=0 // pred_check_branch
    %13 = sbr.rel (0) target = $region13
  $region12: #{forward.8} parent=0 // pred_region
    _
  $region13: #{forward.8} parent=0 // pred_fallthru
    _
  %v15 = vld [vmem:[%s0] sm:$0x3]
  %v16 = vld [vmem:[%s1] sm:$0xf]
  %v17 = vld [vmem:[%s1 + $0x4] sm:$0xf]
  %v18 = vld [vmem:[%s1 + $0x8] sm:$0xf]
  %v19 = vld [vmem:[%s1 + $0xc] sm:$0xf]
  %v20 = vld [vmem:[%s1 + $0x10] sm:$0xf]
  %v21 = vld [vmem:[%s1 + $0x14] sm:$0xf]
  %v22 = vld [vmem:[%s1 + $0x18] sm:$0xf]
  %v23 = vld [vmem:[%s1 + $0x1c] sm:$0xf]
  %v24 = vld [vmem:[%s1 + $0x20] sm:$0x1]
  %v34 = vunpack.c.l.b16 %v16
  %v35 = vunpack.c.l.b16 %v17
  %v36 = vunpack.c.l.b16 %v18
  %v37 = vunpack.c.l.b16 %v19
  %v38 = vunpack.c.l.b16 %v20
  %v39 = vunpack.c.l.b16 %v21
  %v40 = vunpack.c.l.b16 %v22
  %v41 = vunpack.c.l.b16 %v23
  %v42 = vunpack.c.l.b16 %v24
  %v43 = vpack.c.b16 %v35, %v34
  %v44 = vpack.c.b16 %v37, %v36
  %v45 = vpack.c.b16 %v39, %v38
  %v46 = vpack.c.b16 %v41, %v40
  %v47 = vpack.c.b16 %v42, %v42
  %vm48 = vcmask 31744
  %v50 = vsel %vm48, %v43, 0
  %v53 = vsel %vm48, %v44, 0
  %v56 = vsel %vm48, %v45, 0
  %v59 = vsel %vm48, %v46, 0
  %v62 = vsel %vm48, %v47, 0
  %vm64 = vcmask 1041408
  %v66 = vsel %vm64, %v15, 0
  %68 = vmatprep.subr.bf16.mxu0 0
  %69 = vmatpush1.bf16.msra.mxu0 0
  %70 = vmatprep.subr.bf16.mxu0 0
  %71 = vmatpush1.bf16.msra.mxu0 0
  %72 = vmatprep.subr.bf16.mxu0 0
  %73 = vmatpush1.bf16.msra.mxu0 0
  %74 = vmatprep.subr.bf16.mxu0 0
  %75 = vmatpush1.bf16.msra.mxu0 0
  %76 = vmatprep.subr.bf16.mxu0 0
  %77 = vmatpush1.bf16.msra.mxu0 0
  %78 = vmatprep.subr.bf16.mxu0 0
  %79 = vmatpush1.bf16.msra.mxu0 0
  %80 = vmatprep.subr.bf16.mxu0 0
  %81 = vmatpush1.bf16.msra.mxu0 0
  %82 = vmatprep.subr.bf16.mxu0 0
  %83 = vmatpush1.bf16.msra.mxu0 %v66
  %84 = vmatprep.subr.bf16.mxu0 0
  %85 = vmatpush2.bf16.msra.mxu0 0
  %86 = vmatprep.subr.bf16.mxu0 0
  %87 = vmatpush2.bf16.msra.mxu0 0
  %88 = vmatprep.subr.bf16.mxu0 0
  %89 = vmatpush2.bf16.msra.mxu0 0
  %90 = vmatprep.subr.bf16.mxu0 0
  %91 = vmatpush2.bf16.msra.mxu0 0
  %92 = vmatprep.subr.bf16.mxu0 0
  %93 = vmatpush2.bf16.msra.mxu0 0
  %94 = vmatprep.subr.bf16.mxu0 0
  %95 = vmatpush2.bf16.msra.mxu0 0
  %96 = vmatprep.subr.bf16.mxu0 0
  %97 = vmatpush2.bf16.msra.mxu0 0
  %98 = vmatprep.subr.bf16.mxu0 0
  %99 = vmatpush2.bf16.msra.mxu0 0
  %100 = vmatprep.mubr.bf16.mxu0 0
  %101 = vmatmul.mubr.bf16.gmra.mxu0 %v50
  %v102 = vpop.f32.mrf.mxu0
  %v103 = vadd.f32 0.0, %v102
  %v104 = vpop.f32.mrf.mxu0
  %v105 = vpop.f32.mrf.mxu0
  %v106 = vadd.f32 0.0, %v105
  %v107 = vpop.f32.mrf.mxu0
  %108 = vmatprep.mubr.bf16.mxu0 0
  %109 = vmatmul.mubr.bf16.gmra.mxu0 %v53
  %v110 = vpop.f32.mrf.mxu0
  %v111 = vadd.f32 0.0, %v110
  %v112 = vpop.f32.mrf.mxu0
  %v113 = vpop.f32.mrf.mxu0
  %v114 = vadd.f32 0.0, %v113
  %v115 = vpop.f32.mrf.mxu0
  %116 = vmatprep.mubr.bf16.mxu0 0
  %117 = vmatmul.mubr.bf16.gmra.mxu0 %v56
  %v118 = vpop.f32.mrf.mxu0
  %v119 = vadd.f32 0.0, %v118
  %v120 = vpop.f32.mrf.mxu0
  %v121 = vpop.f32.mrf.mxu0
  %v122 = vadd.f32 0.0, %v121
  %v123 = vpop.f32.mrf.mxu0
  %124 = vmatprep.mubr.bf16.mxu0 0
  %125 = vmatmul.mubr.bf16.gmra.mxu0 %v59
  %v126 = vpop.f32.mrf.mxu0
  %v127 = vadd.f32 0.0, %v126
  %v128 = vpop.f32.mrf.mxu0
  %v129 = vpop.f32.mrf.mxu0
  %v130 = vadd.f32 0.0, %v129
  %v131 = vpop.f32.mrf.mxu0
  %132 = vmatprep.mubr.bf16.mxu0 0
  %133 = vmatmul.mubr.bf16.gmra.mxu0 %v62
  %v134 = vpop.f32.mrf.mxu0
  %v135 = vadd.f32 0.0, %v134
  %v136 = vpop.f32.mrf.mxu0
  %v137 = vpop.f32.mrf.mxu0
  %v138 = vpop.f32.mrf.mxu0
  %139 = vdwg.mxu0
  %v140 = vmax.f32 %v103, 0.0
  %v141 = vmax.f32 %v106, 0.0
  %v142 = vmax.f32 %v111, 0.0
  %v143 = vmax.f32 %v114, 0.0
  %v144 = vmax.f32 %v119, 0.0
  %v145 = vmax.f32 %v122, 0.0
  %v146 = vmax.f32 %v127, 0.0
  %v147 = vmax.f32 %v130, 0.0
  %v148 = vmax.f32 %v135, 0.0
  %v149 = vpack.c.bf16 %v141, %v140
  %v150 = vpack.c.bf16 %v143, %v142
  %v151 = vpack.c.bf16 %v145, %v144
  %v152 = vpack.c.bf16 %v147, %v146
  %v153 = vpack.c.bf16 %v148, %v148
  %v154 = vmul.f32 %v140, %v140
  %v155 = vmul.f32 %v141, %v141
  %v156 = vmul.f32 %v142, %v142
  %v157 = vmul.f32 %v143, %v143
  %v158 = vmul.f32 %v144, %v144
  %v159 = vmul.f32 %v145, %v145
  %v160 = vmul.f32 %v146, %v146
  %v161 = vmul.f32 %v147, %v147
  %v162 = vadd.f32 %v154, %v155
  %v163 = vadd.f32 %v162, %v156
  %v164 = vadd.f32 %v163, %v157
  %v165 = vadd.f32 %v164, %v158
  %v166 = vadd.f32 %v165, %v159
  %v167 = vadd.f32 %v166, %v160
  %v168 = vadd.f32 %v167, %v161
  %v169 = vrot.slane %v168, 4
  %v170 = vadd.f32 %v168, %v169
  %v171 = vrot.slane %v170, 2
  %v172 = vadd.f32 %v170, %v171
  %v173 = vrot.slane %v172, 1
  %v174 = vadd.f32 %v172, %v173
  %v175 = vadd.f32 %v174, 1e-05
  %v176 = vrsqrt.pop %v175
  %v177 = vmul.f32 %v140, %v176
  %v178 = vmul.f32 %v141, %v176
  %v179 = vmul.f32 %v142, %v176
  %v180 = vmul.f32 %v143, %v176
  %v181 = vmul.f32 %v144, %v176
  %v182 = vmul.f32 %v145, %v176
  %v183 = vmul.f32 %v146, %v176
  %v184 = vmul.f32 %v147, %v176
  %v185 = vpack.c.bf16 %v178, %v177
  %v186 = vpack.c.bf16 %v180, %v179
  %v187 = vpack.c.bf16 %v182, %v181
  %v188 = vpack.c.bf16 %v184, %v183
  %v193 = vunpack.c.l.b16 %v185
  %v194 = vunpack.c.h.b16 %v185
  %v195 = vunpack.c.l.b16 %v186
  %v196 = vunpack.c.h.b16 %v186
  %v197 = vunpack.c.l.b16 %v187
  %v198 = vunpack.c.h.b16 %v187
  %v199 = vunpack.c.l.b16 %v188
  %v200 = vunpack.c.h.b16 %v188
  %v201 = vpack.c.b16 %v193, %v193
  %v202 = vpack.c.b16 %v194, %v194
  %v203 = vpack.c.b16 %v195, %v195
  %v204 = vpack.c.b16 %v196, %v196
  %v205 = vpack.c.b16 %v197, %v197
  %v206 = vpack.c.b16 %v198, %v198
  %v207 = vpack.c.b16 %v199, %v199
  %v208 = vpack.c.b16 %v200, %v200
  %217 = vst [vmem:[%s3] sm:$0xf] %v201
  %218 = vst [vmem:[%s3 + $0x4] sm:$0xf] %v202
  %219 = vst [vmem:[%s3 + $0x8] sm:$0xf] %v203
  %220 = vst [vmem:[%s3 + $0xc] sm:$0xf] %v204
  %221 = vst [vmem:[%s3 + $0x10] sm:$0xf] %v205
  %222 = vst [vmem:[%s3 + $0x14] sm:$0xf] %v206
  %223 = vst [vmem:[%s3 + $0x18] sm:$0xf] %v207
  %224 = vst [vmem:[%s3 + $0x1c] sm:$0xf] %v208
  %v225 = vld [vmem:[%s2] sm:$0xf]
  %v226 = vld [vmem:[%s2 + $0x4] sm:$0xf]
  %v227 = vld [vmem:[%s2 + $0x8] sm:$0xf]
  %v228 = vld [vmem:[%s2 + $0xc] sm:$0xf]
  %v229 = vld [vmem:[%s2 + $0x10] sm:$0xf]
  %v230 = vld [vmem:[%s2 + $0x14] sm:$0xf]
  %v231 = vld [vmem:[%s2 + $0x18] sm:$0xf]
  %v232 = vld [vmem:[%s2 + $0x1c] sm:$0xf]
  %v233 = vld [vmem:[%s2 + $0x20] sm:$0x1]
  %v243 = vunpack.c.l.b16 %v225
  %v244 = vunpack.c.l.b16 %v226
  %v245 = vunpack.c.l.b16 %v227
  %v246 = vunpack.c.l.b16 %v228
  %v247 = vunpack.c.l.b16 %v229
  %v248 = vunpack.c.l.b16 %v230
  %v249 = vunpack.c.l.b16 %v231
  %v250 = vunpack.c.l.b16 %v232
  %v251 = vunpack.c.l.b16 %v233
  %v252 = vpack.c.b16 %v244, %v243
  %v253 = vpack.c.b16 %v246, %v245
  %v254 = vpack.c.b16 %v248, %v247
  %v255 = vpack.c.b16 %v250, %v249
  %v256 = vpack.c.b16 %v251, %v251
  %vm257 = vcmask 531456
  %v259 = vsel %vm257, %v252, 0
  %v262 = vsel %vm257, %v253, 0
  %v265 = vsel %vm257, %v254, 0
  %v268 = vsel %vm257, %v255, 0
  %v271 = vsel %vm257, %v256, 0
  %vm273 = vcmask 1040384
  %v274 = vsel 0, 4294967295, 65535
  %v275 = vsel %vm273, %v274, 0
  %v277 = vand.u32 %v153, %v275
  %279 = vmatprep.subr.bf16.mxu0 0
  %280 = vmatpush1.bf16.msra.mxu0 0
  %281 = vmatprep.subr.bf16.mxu0 0
  %282 = vmatpush1.bf16.msra.mxu0 0
  %283 = vmatprep.subr.bf16.mxu0 0
  %284 = vmatpush1.bf16.msra.mxu0 0
  %285 = vmatprep.subr.bf16.mxu0 0
  %286 = vmatpush1.bf16.msra.mxu0 %v277
  %287 = vmatprep.subr.bf16.mxu0 0
  %288 = vmatpush1.bf16.msra.mxu0 %v152
  %289 = vmatprep.subr.bf16.mxu0 0
  %290 = vmatpush1.bf16.msra.mxu0 %v151
  %291 = vmatprep.subr.bf16.mxu0 0
  %292 = vmatpush1.bf16.msra.mxu0 %v150
  %293 = vmatprep.subr.bf16.mxu0 0
  %294 = vmatpush1.bf16.msra.mxu0 %v149
  %295 = vmatprep.subr.bf16.mxu0 0
  %296 = vmatpush2.bf16.msra.mxu0 0
  %297 = vmatprep.subr.bf16.mxu0 0
  %298 = vmatpush2.bf16.msra.mxu0 0
  %299 = vmatprep.subr.bf16.mxu0 0
  %300 = vmatpush2.bf16.msra.mxu0 0
  %301 = vmatprep.subr.bf16.mxu0 0
  %302 = vmatpush2.bf16.msra.mxu0 0
  %303 = vmatprep.subr.bf16.mxu0 0
  %304 = vmatpush2.bf16.msra.mxu0 0
  %305 = vmatprep.subr.bf16.mxu0 0
  %306 = vmatpush2.bf16.msra.mxu0 0
  %307 = vmatprep.subr.bf16.mxu0 0
  %308 = vmatpush2.bf16.msra.mxu0 0
  %309 = vmatprep.subr.bf16.mxu0 0
  %310 = vmatpush2.bf16.msra.mxu0 0
  %311 = vmatprep.mubr.bf16.mxu0 0
  %312 = vmatmul.mubr.bf16.gmra.mxu0 %v259
  %v313 = vpop.f32.mrf.mxu0
  %v314 = vadd.f32 0.0, %v313
  %v315 = vpop.f32.mrf.mxu0
  %v316 = vpop.f32.mrf.mxu0
  %v317 = vadd.f32 0.0, %v316
  %v318 = vpop.f32.mrf.mxu0
  %319 = vmatprep.mubr.bf16.mxu0 0
  %320 = vmatmul.mubr.bf16.gmra.mxu0 %v262
  %v321 = vpop.f32.mrf.mxu0
  %v322 = vadd.f32 0.0, %v321
  %v323 = vpop.f32.mrf.mxu0
  %v324 = vpop.f32.mrf.mxu0
  %v325 = vadd.f32 0.0, %v324
  %v326 = vpop.f32.mrf.mxu0
  %327 = vmatprep.mubr.bf16.mxu0 0
  %328 = vmatmul.mubr.bf16.gmra.mxu0 %v265
  %v329 = vpop.f32.mrf.mxu0
  %v330 = vadd.f32 0.0, %v329
  %v331 = vpop.f32.mrf.mxu0
  %v332 = vpop.f32.mrf.mxu0
  %v333 = vadd.f32 0.0, %v332
  %v334 = vpop.f32.mrf.mxu0
  %335 = vmatprep.mubr.bf16.mxu0 0
  %336 = vmatmul.mubr.bf16.gmra.mxu0 %v268
  %v337 = vpop.f32.mrf.mxu0
  %v338 = vadd.f32 0.0, %v337
  %v339 = vpop.f32.mrf.mxu0
  %v340 = vpop.f32.mrf.mxu0
  %v341 = vadd.f32 0.0, %v340
  %v342 = vpop.f32.mrf.mxu0
  %343 = vmatprep.mubr.bf16.mxu0 0
  %344 = vmatmul.mubr.bf16.gmra.mxu0 %v271
  %v345 = vpop.f32.mrf.mxu0
  %v346 = vadd.f32 0.0, %v345
  %v347 = vpop.f32.mrf.mxu0
  %v348 = vpop.f32.mrf.mxu0
  %v349 = vpop.f32.mrf.mxu0
  %350 = vdwg.mxu0
  %v351 = vmax.f32 %v314, 0.0
  %v352 = vmax.f32 %v317, 0.0
  %v353 = vmax.f32 %v322, 0.0
  %v354 = vmax.f32 %v325, 0.0
  %v355 = vmax.f32 %v330, 0.0
  %v356 = vmax.f32 %v333, 0.0
  %v357 = vmax.f32 %v338, 0.0
  %v358 = vmax.f32 %v341, 0.0
  %v359 = vmax.f32 %v346, 0.0
  %v360 = vpack.c.bf16 %v352, %v351
  %v361 = vpack.c.bf16 %v354, %v353
  %v362 = vpack.c.bf16 %v356, %v355
  %v363 = vpack.c.bf16 %v358, %v357
  %v364 = vpack.c.bf16 %v359, %v359
  %v365 = vmul.f32 %v351, %v351
  %v366 = vmul.f32 %v352, %v352
  %v367 = vmul.f32 %v353, %v353
  %v368 = vmul.f32 %v354, %v354
  %v369 = vmul.f32 %v355, %v355
  %v370 = vmul.f32 %v356, %v356
  %v371 = vmul.f32 %v357, %v357
  %v372 = vmul.f32 %v358, %v358
  %v373 = vadd.f32 %v365, %v366
  %v374 = vadd.f32 %v373, %v367
  %v375 = vadd.f32 %v374, %v368
  %v376 = vadd.f32 %v375, %v369
  %v377 = vadd.f32 %v376, %v370
  %v378 = vadd.f32 %v377, %v371
  %v379 = vadd.f32 %v378, %v372
  %v380 = vrot.slane %v379, 4
  %v381 = vadd.f32 %v379, %v380
  %v382 = vrot.slane %v381, 2
  %v383 = vadd.f32 %v381, %v382
  %v384 = vrot.slane %v383, 1
  %v385 = vadd.f32 %v383, %v384
  %v386 = vadd.f32 %v385, 1e-05
  %v387 = vrsqrt.pop %v386
  %v388 = vmul.f32 %v351, %v387
  %v389 = vmul.f32 %v352, %v387
  %v390 = vmul.f32 %v353, %v387
  %v391 = vmul.f32 %v354, %v387
  %v392 = vmul.f32 %v355, %v387
  %v393 = vmul.f32 %v356, %v387
  %v394 = vmul.f32 %v357, %v387
  %v395 = vmul.f32 %v358, %v387
  %v396 = vpack.c.bf16 %v389, %v388
  %v397 = vpack.c.bf16 %v391, %v390
  %v398 = vpack.c.bf16 %v393, %v392
  %v399 = vpack.c.bf16 %v395, %v394
  %v404 = vunpack.c.l.b16 %v396
  %v405 = vunpack.c.h.b16 %v396
  %v406 = vunpack.c.l.b16 %v397
  %v407 = vunpack.c.h.b16 %v397
  %v408 = vunpack.c.l.b16 %v398
  %v409 = vunpack.c.h.b16 %v398
  %v410 = vunpack.c.l.b16 %v399
  %v411 = vunpack.c.h.b16 %v399
  %v412 = vpack.c.b16 %v404, %v404
  %v413 = vpack.c.b16 %v405, %v405
  %v414 = vpack.c.b16 %v406, %v406
  %v415 = vpack.c.b16 %v407, %v407
  %v416 = vpack.c.b16 %v408, %v408
  %v417 = vpack.c.b16 %v409, %v409
  %v418 = vpack.c.b16 %v410, %v410
  %v419 = vpack.c.b16 %v411, %v411
  %s428 = scalar_lea.vmem %s3, 32
  %429 = vst [vmem:[%s428] sm:$0xf] %v412
  %430 = vst [vmem:[%s428 + $0x4] sm:$0xf] %v413
  %431 = vst [vmem:[%s428 + $0x8] sm:$0xf] %v414
  %432 = vst [vmem:[%s428 + $0xc] sm:$0xf] %v415
  %433 = vst [vmem:[%s428 + $0x10] sm:$0xf] %v416
  %434 = vst [vmem:[%s428 + $0x14] sm:$0xf] %v417
  %435 = vst [vmem:[%s428 + $0x18] sm:$0xf] %v418
  %436 = vst [vmem:[%s428 + $0x1c] sm:$0xf] %v419
  %s437 = scalar_lea.vmem %s2, 36
  %v438 = vld [vmem:[%s437] sm:$0xf]
  %v439 = vld [vmem:[%s437 + $0x4] sm:$0xf]
  %v440 = vld [vmem:[%s437 + $0x8] sm:$0xf]
  %v441 = vld [vmem:[%s437 + $0xc] sm:$0xf]
  %v442 = vld [vmem:[%s437 + $0x10] sm:$0xf]
  %v443 = vld [vmem:[%s437 + $0x14] sm:$0xf]
  %v444 = vld [vmem:[%s437 + $0x18] sm:$0xf]
  %v445 = vld [vmem:[%s437 + $0x1c] sm:$0xf]
  %v446 = vld [vmem:[%s437 + $0x20] sm:$0x1]
  %v456 = vunpack.c.l.b16 %v438
  %v457 = vunpack.c.l.b16 %v439
  %v458 = vunpack.c.l.b16 %v440
  %v459 = vunpack.c.l.b16 %v441
  %v460 = vunpack.c.l.b16 %v442
  %v461 = vunpack.c.l.b16 %v443
  %v462 = vunpack.c.l.b16 %v444
  %v463 = vunpack.c.l.b16 %v445
  %v464 = vunpack.c.l.b16 %v446
  %v465 = vpack.c.b16 %v457, %v456
  %v466 = vpack.c.b16 %v459, %v458
  %v467 = vpack.c.b16 %v461, %v460
  %v468 = vpack.c.b16 %v463, %v462
  %v469 = vpack.c.b16 %v464, %v464
  %v471 = vsel %vm257, %v465, 0
  %v474 = vsel %vm257, %v466, 0
  %v477 = vsel %vm257, %v467, 0
  %v480 = vsel %vm257, %v468, 0
  %v483 = vsel %vm257, %v469, 0
  %v486 = vand.u32 %v364, %v275
  %488 = vmatprep.subr.bf16.mxu0 0
  %489 = vmatpush1.bf16.msra.mxu0 0
  %490 = vmatprep.subr.bf16.mxu0 0
  %491 = vmatpush1.bf16.msra.mxu0 0
  %492 = vmatprep.subr.bf16.mxu0 0
  %493 = vmatpush1.bf16.msra.mxu0 0
  %494 = vmatprep.subr.bf16.mxu0 0
  %495 = vmatpush1.bf16.msra.mxu0 %v486
  %496 = vmatprep.subr.bf16.mxu0 0
  %497 = vmatpush1.bf16.msra.mxu0 %v363
  %498 = vmatprep.subr.bf16.mxu0 0
  %499 = vmatpush1.bf16.msra.mxu0 %v362
  %500 = vmatprep.subr.bf16.mxu0 0
  %501 = vmatpush1.bf16.msra.mxu0 %v361
  %502 = vmatprep.subr.bf16.mxu0 0
  %503 = vmatpush1.bf16.msra.mxu0 %v360
  %504 = vmatprep.subr.bf16.mxu0 0
  %505 = vmatpush2.bf16.msra.mxu0 0
  %506 = vmatprep.subr.bf16.mxu0 0
  %507 = vmatpush2.bf16.msra.mxu0 0
  %508 = vmatprep.subr.bf16.mxu0 0
  %509 = vmatpush2.bf16.msra.mxu0 0
  %510 = vmatprep.subr.bf16.mxu0 0
  %511 = vmatpush2.bf16.msra.mxu0 0
  %512 = vmatprep.subr.bf16.mxu0 0
  %513 = vmatpush2.bf16.msra.mxu0 0
  %514 = vmatprep.subr.bf16.mxu0 0
  %515 = vmatpush2.bf16.msra.mxu0 0
  %516 = vmatprep.subr.bf16.mxu0 0
  %517 = vmatpush2.bf16.msra.mxu0 0
  %518 = vmatprep.subr.bf16.mxu0 0
  %519 = vmatpush2.bf16.msra.mxu0 0
  %520 = vmatprep.mubr.bf16.mxu0 0
  %521 = vmatmul.mubr.bf16.gmra.mxu0 %v471
  %v522 = vpop.f32.mrf.mxu0
  %v523 = vadd.f32 0.0, %v522
  %v524 = vpop.f32.mrf.mxu0
  %v525 = vpop.f32.mrf.mxu0
  %v526 = vadd.f32 0.0, %v525
  %v527 = vpop.f32.mrf.mxu0
  %528 = vmatprep.mubr.bf16.mxu0 0
  %529 = vmatmul.mubr.bf16.gmra.mxu0 %v474
  %v530 = vpop.f32.mrf.mxu0
  %v531 = vadd.f32 0.0, %v530
  %v532 = vpop.f32.mrf.mxu0
  %v533 = vpop.f32.mrf.mxu0
  %v534 = vadd.f32 0.0, %v533
  %v535 = vpop.f32.mrf.mxu0
  %536 = vmatprep.mubr.bf16.mxu0 0
  %537 = vmatmul.mubr.bf16.gmra.mxu0 %v477
  %v538 = vpop.f32.mrf.mxu0
  %v539 = vadd.f32 0.0, %v538
  %v540 = vpop.f32.mrf.mxu0
  %v541 = vpop.f32.mrf.mxu0
  %v542 = vadd.f32 0.0, %v541
  %v543 = vpop.f32.mrf.mxu0
  %544 = vmatprep.mubr.bf16.mxu0 0
  %545 = vmatmul.mubr.bf16.gmra.mxu0 %v480
  %v546 = vpop.f32.mrf.mxu0
  %v547 = vadd.f32 0.0, %v546
  %v548 = vpop.f32.mrf.mxu0
  %v549 = vpop.f32.mrf.mxu0
  %v550 = vadd.f32 0.0, %v549
  %v551 = vpop.f32.mrf.mxu0
  %552 = vmatprep.mubr.bf16.mxu0 0
  %553 = vmatmul.mubr.bf16.gmra.mxu0 %v483
  %v554 = vpop.f32.mrf.mxu0
  %v555 = vadd.f32 0.0, %v554
  %v556 = vpop.f32.mrf.mxu0
  %v557 = vpop.f32.mrf.mxu0
  %v558 = vpop.f32.mrf.mxu0
  %559 = vdwg.mxu0
  %v560 = vmax.f32 %v523, 0.0
  %v561 = vmax.f32 %v526, 0.0
  %v562 = vmax.f32 %v531, 0.0
  %v563 = vmax.f32 %v534, 0.0
  %v564 = vmax.f32 %v539, 0.0
  %v565 = vmax.f32 %v542, 0.0
  %v566 = vmax.f32 %v547, 0.0
  %v567 = vmax.f32 %v550, 0.0
  %v568 = vmax.f32 %v555, 0.0
  %v569 = vpack.c.bf16 %v561, %v560
  %v570 = vpack.c.bf16 %v563, %v562
  %v571 = vpack.c.bf16 %v565, %v564
  %v572 = vpack.c.bf16 %v567, %v566
  %v573 = vpack.c.bf16 %v568, %v568
  %v574 = vmul.f32 %v560, %v560
  %v575 = vmul.f32 %v561, %v561
  %v576 = vmul.f32 %v562, %v562
  %v577 = vmul.f32 %v563, %v563
  %v578 = vmul.f32 %v564, %v564
  %v579 = vmul.f32 %v565, %v565
  %v580 = vmul.f32 %v566, %v566
  %v581 = vmul.f32 %v567, %v567
  %v582 = vadd.f32 %v574, %v575
  %v583 = vadd.f32 %v582, %v576
  %v584 = vadd.f32 %v583, %v577
  %v585 = vadd.f32 %v584, %v578
  %v586 = vadd.f32 %v585, %v579
  %v587 = vadd.f32 %v586, %v580
  %v588 = vadd.f32 %v587, %v581
  %v589 = vrot.slane %v588, 4
  %v590 = vadd.f32 %v588, %v589
  %v591 = vrot.slane %v590, 2
  %v592 = vadd.f32 %v590, %v591
  %v593 = vrot.slane %v592, 1
  %v594 = vadd.f32 %v592, %v593
  %v595 = vadd.f32 %v594, 1e-05
  %v596 = vrsqrt.pop %v595
  %v597 = vmul.f32 %v560, %v596
  %v598 = vmul.f32 %v561, %v596
  %v599 = vmul.f32 %v562, %v596
  %v600 = vmul.f32 %v563, %v596
  %v601 = vmul.f32 %v564, %v596
  %v602 = vmul.f32 %v565, %v596
  %v603 = vmul.f32 %v566, %v596
  %v604 = vmul.f32 %v567, %v596
  %v605 = vpack.c.bf16 %v598, %v597
  %v606 = vpack.c.bf16 %v600, %v599
  %v607 = vpack.c.bf16 %v602, %v601
  %v608 = vpack.c.bf16 %v604, %v603
  %v613 = vunpack.c.l.b16 %v605
  %v614 = vunpack.c.h.b16 %v605
  %v615 = vunpack.c.l.b16 %v606
  %v616 = vunpack.c.h.b16 %v606
  %v617 = vunpack.c.l.b16 %v607
  %v618 = vunpack.c.h.b16 %v607
  %v619 = vunpack.c.l.b16 %v608
  %v620 = vunpack.c.h.b16 %v608
  %v621 = vpack.c.b16 %v613, %v613
  %v622 = vpack.c.b16 %v614, %v614
  %v623 = vpack.c.b16 %v615, %v615
  %v624 = vpack.c.b16 %v616, %v616
  %v625 = vpack.c.b16 %v617, %v617
  %v626 = vpack.c.b16 %v618, %v618
  %v627 = vpack.c.b16 %v619, %v619
  %v628 = vpack.c.b16 %v620, %v620
  %s637 = scalar_lea.vmem %s3, 64
  %638 = vst [vmem:[%s637] sm:$0xf] %v621
  %639 = vst [vmem:[%s637 + $0x4] sm:$0xf] %v622
  %640 = vst [vmem:[%s637 + $0x8] sm:$0xf] %v623
  %641 = vst [vmem:[%s637 + $0xc] sm:$0xf] %v624
  %642 = vst [vmem:[%s637 + $0x10] sm:$0xf] %v625
  %643 = vst [vmem:[%s637 + $0x14] sm:$0xf] %v626
  %644 = vst [vmem:[%s637 + $0x18] sm:$0xf] %v627
  %645 = vst [vmem:[%s637 + $0x1c] sm:$0xf] %v628
  %s646 = scalar_lea.vmem %s2, 72
  %v647 = vld [vmem:[%s646] sm:$0xf]
  %v648 = vld [vmem:[%s646 + $0x4] sm:$0xf]
  %v649 = vld [vmem:[%s646 + $0x8] sm:$0xf]
  %v650 = vld [vmem:[%s646 + $0xc] sm:$0xf]
  %v651 = vld [vmem:[%s646 + $0x10] sm:$0xf]
  %v652 = vld [vmem:[%s646 + $0x14] sm:$0xf]
  %v653 = vld [vmem:[%s646 + $0x18] sm:$0xf]
  %v654 = vld [vmem:[%s646 + $0x1c] sm:$0xf]
  %v655 = vld [vmem:[%s646 + $0x20] sm:$0x1]
  %v665 = vunpack.c.l.b16 %v647
  %v666 = vunpack.c.l.b16 %v648
  %v667 = vunpack.c.l.b16 %v649
  %v668 = vunpack.c.l.b16 %v650
  %v669 = vunpack.c.l.b16 %v651
  %v670 = vunpack.c.l.b16 %v652
  %v671 = vunpack.c.l.b16 %v653
  %v672 = vunpack.c.l.b16 %v654
  %v673 = vunpack.c.l.b16 %v655
  %v674 = vpack.c.b16 %v666, %v665
  %v675 = vpack.c.b16 %v668, %v667
  %v676 = vpack.c.b16 %v670, %v669
  %v677 = vpack.c.b16 %v672, %v671
  %v678 = vpack.c.b16 %v673, %v673
  %v680 = vsel %vm257, %v674, 0
  %v683 = vsel %vm257, %v675, 0
  %v686 = vsel %vm257, %v676, 0
  %v689 = vsel %vm257, %v677, 0
  %v692 = vsel %vm257, %v678, 0
  %v695 = vand.u32 %v573, %v275
  %697 = vmatprep.subr.bf16.mxu0 0
  %698 = vmatpush1.bf16.msra.mxu0 0
  %699 = vmatprep.subr.bf16.mxu0 0
  %700 = vmatpush1.bf16.msra.mxu0 0
  %701 = vmatprep.subr.bf16.mxu0 0
  %702 = vmatpush1.bf16.msra.mxu0 0
  %703 = vmatprep.subr.bf16.mxu0 0
  %704 = vmatpush1.bf16.msra.mxu0 %v695
  %705 = vmatprep.subr.bf16.mxu0 0
  %706 = vmatpush1.bf16.msra.mxu0 %v572
  %707 = vmatprep.subr.bf16.mxu0 0
  %708 = vmatpush1.bf16.msra.mxu0 %v571
  %709 = vmatprep.subr.bf16.mxu0 0
  %710 = vmatpush1.bf16.msra.mxu0 %v570
  %711 = vmatprep.subr.bf16.mxu0 0
  %712 = vmatpush1.bf16.msra.mxu0 %v569
  %713 = vmatprep.subr.bf16.mxu0 0
  %714 = vmatpush2.bf16.msra.mxu0 0
  %715 = vmatprep.subr.bf16.mxu0 0
  %716 = vmatpush2.bf16.msra.mxu0 0
  %717 = vmatprep.subr.bf16.mxu0 0
  %718 = vmatpush2.bf16.msra.mxu0 0
  %719 = vmatprep.subr.bf16.mxu0 0
  %720 = vmatpush2.bf16.msra.mxu0 0
  %721 = vmatprep.subr.bf16.mxu0 0
  %722 = vmatpush2.bf16.msra.mxu0 0
  %723 = vmatprep.subr.bf16.mxu0 0
  %724 = vmatpush2.bf16.msra.mxu0 0
  %725 = vmatprep.subr.bf16.mxu0 0
  %726 = vmatpush2.bf16.msra.mxu0 0
  %727 = vmatprep.subr.bf16.mxu0 0
  %728 = vmatpush2.bf16.msra.mxu0 0
  %729 = vmatprep.mubr.bf16.mxu0 0
  %730 = vmatmul.mubr.bf16.gmra.mxu0 %v680
  %v731 = vpop.f32.mrf.mxu0
  %v732 = vadd.f32 0.0, %v731
  %v733 = vpop.f32.mrf.mxu0
  %v734 = vpop.f32.mrf.mxu0
  %v735 = vadd.f32 0.0, %v734
  %v736 = vpop.f32.mrf.mxu0
  %737 = vmatprep.mubr.bf16.mxu0 0
  %738 = vmatmul.mubr.bf16.gmra.mxu0 %v683
  %v739 = vpop.f32.mrf.mxu0
  %v740 = vadd.f32 0.0, %v739
  %v741 = vpop.f32.mrf.mxu0
  %v742 = vpop.f32.mrf.mxu0
  %v743 = vadd.f32 0.0, %v742
  %v744 = vpop.f32.mrf.mxu0
  %745 = vmatprep.mubr.bf16.mxu0 0
  %746 = vmatmul.mubr.bf16.gmra.mxu0 %v686
  %v747 = vpop.f32.mrf.mxu0
  %v748 = vadd.f32 0.0, %v747
  %v749 = vpop.f32.mrf.mxu0
  %v750 = vpop.f32.mrf.mxu0
  %v751 = vadd.f32 0.0, %v750
  %v752 = vpop.f32.mrf.mxu0
  %753 = vmatprep.mubr.bf16.mxu0 0
  %754 = vmatmul.mubr.bf16.gmra.mxu0 %v689
  %v755 = vpop.f32.mrf.mxu0
  %v756 = vadd.f32 0.0, %v755
  %v757 = vpop.f32.mrf.mxu0
  %v758 = vpop.f32.mrf.mxu0
  %v759 = vadd.f32 0.0, %v758
  %v760 = vpop.f32.mrf.mxu0
  %761 = vmatprep.mubr.bf16.mxu0 0
  %762 = vmatmul.mubr.bf16.gmra.mxu0 %v692
  %v763 = vpop.f32.mrf.mxu0
  %v764 = vadd.f32 0.0, %v763
  %v765 = vpop.f32.mrf.mxu0
  %v766 = vpop.f32.mrf.mxu0
  %v767 = vpop.f32.mrf.mxu0
  %768 = vdwg.mxu0
  %v769 = vmax.f32 %v732, 0.0
  %v770 = vmax.f32 %v735, 0.0
  %v771 = vmax.f32 %v740, 0.0
  %v772 = vmax.f32 %v743, 0.0
  %v773 = vmax.f32 %v748, 0.0
  %v774 = vmax.f32 %v751, 0.0
  %v775 = vmax.f32 %v756, 0.0
  %v776 = vmax.f32 %v759, 0.0
  %v777 = vmax.f32 %v764, 0.0
  %v778 = vpack.c.bf16 %v770, %v769
  %v779 = vpack.c.bf16 %v772, %v771
  %v780 = vpack.c.bf16 %v774, %v773
  %v781 = vpack.c.bf16 %v776, %v775
  %v782 = vpack.c.bf16 %v777, %v777
  %v783 = vmul.f32 %v769, %v769
  %v784 = vmul.f32 %v770, %v770
  %v785 = vmul.f32 %v771, %v771
  %v786 = vmul.f32 %v772, %v772
  %v787 = vmul.f32 %v773, %v773
  %v788 = vmul.f32 %v774, %v774
  %v789 = vmul.f32 %v775, %v775
  %v790 = vmul.f32 %v776, %v776
  %v791 = vadd.f32 %v783, %v784
  %v792 = vadd.f32 %v791, %v785
  %v793 = vadd.f32 %v792, %v786
  %v794 = vadd.f32 %v793, %v787
  %v795 = vadd.f32 %v794, %v788
  %v796 = vadd.f32 %v795, %v789
  %v797 = vadd.f32 %v796, %v790
  %v798 = vrot.slane %v797, 4
  %v799 = vadd.f32 %v797, %v798
  %v800 = vrot.slane %v799, 2
  %v801 = vadd.f32 %v799, %v800
  %v802 = vrot.slane %v801, 1
  %v803 = vadd.f32 %v801, %v802
  %v804 = vadd.f32 %v803, 1e-05
  %v805 = vrsqrt.pop %v804
  %v806 = vmul.f32 %v769, %v805
  %v807 = vmul.f32 %v770, %v805
  %v808 = vmul.f32 %v771, %v805
  %v809 = vmul.f32 %v772, %v805
  %v810 = vmul.f32 %v773, %v805
  %v811 = vmul.f32 %v774, %v805
  %v812 = vmul.f32 %v775, %v805
  %v813 = vmul.f32 %v776, %v805
  %v814 = vpack.c.bf16 %v807, %v806
  %v815 = vpack.c.bf16 %v809, %v808
  %v816 = vpack.c.bf16 %v811, %v810
  %v817 = vpack.c.bf16 %v813, %v812
  %v822 = vunpack.c.l.b16 %v814
  %v823 = vunpack.c.h.b16 %v814
  %v824 = vunpack.c.l.b16 %v815
  %v825 = vunpack.c.h.b16 %v815
  %v826 = vunpack.c.l.b16 %v816
  %v827 = vunpack.c.h.b16 %v816
  %v828 = vunpack.c.l.b16 %v817
  %v829 = vunpack.c.h.b16 %v817
  %v830 = vpack.c.b16 %v822, %v822
  %v831 = vpack.c.b16 %v823, %v823
  %v832 = vpack.c.b16 %v824, %v824
  %v833 = vpack.c.b16 %v825, %v825
  %v834 = vpack.c.b16 %v826, %v826
  %v835 = vpack.c.b16 %v827, %v827
  %v836 = vpack.c.b16 %v828, %v828
  %v837 = vpack.c.b16 %v829, %v829
  %s846 = scalar_lea.vmem %s3, 96
  %847 = vst [vmem:[%s846] sm:$0xf] %v830
  %848 = vst [vmem:[%s846 + $0x4] sm:$0xf] %v831
  %849 = vst [vmem:[%s846 + $0x8] sm:$0xf] %v832
  %850 = vst [vmem:[%s846 + $0xc] sm:$0xf] %v833
  %851 = vst [vmem:[%s846 + $0x10] sm:$0xf] %v834
  %852 = vst [vmem:[%s846 + $0x14] sm:$0xf] %v835
  %853 = vst [vmem:[%s846 + $0x18] sm:$0xf] %v836
  %854 = vst [vmem:[%s846 + $0x1c] sm:$0xf] %v837
  %s855 = scalar_lea.vmem %s2, 108
  %v856 = vld [vmem:[%s855] sm:$0xf]
  %v857 = vld [vmem:[%s855 + $0x4] sm:$0xf]
  %v858 = vld [vmem:[%s855 + $0x8] sm:$0xf]
  %v859 = vld [vmem:[%s855 + $0xc] sm:$0xf]
  %v860 = vld [vmem:[%s855 + $0x10] sm:$0xf]
  %v861 = vld [vmem:[%s855 + $0x14] sm:$0xf]
  %v862 = vld [vmem:[%s855 + $0x18] sm:$0xf]
  %v863 = vld [vmem:[%s855 + $0x1c] sm:$0xf]
  %v864 = vld [vmem:[%s855 + $0x20] sm:$0x1]
  %v874 = vunpack.c.l.b16 %v856
  %v875 = vunpack.c.l.b16 %v857
  %v876 = vunpack.c.l.b16 %v858
  %v877 = vunpack.c.l.b16 %v859
  %v878 = vunpack.c.l.b16 %v860
  %v879 = vunpack.c.l.b16 %v861
  %v880 = vunpack.c.l.b16 %v862
  %v881 = vunpack.c.l.b16 %v863
  %v882 = vunpack.c.l.b16 %v864
  %v883 = vpack.c.b16 %v875, %v874
  %v884 = vpack.c.b16 %v877, %v876
  %v885 = vpack.c.b16 %v879, %v878
  %v886 = vpack.c.b16 %v881, %v880
  %v887 = vpack.c.b16 %v882, %v882
  %v889 = vsel %vm257, %v883, 0
  %v892 = vsel %vm257, %v884, 0
  %v895 = vsel %vm257, %v885, 0
  %v898 = vsel %vm257, %v886, 0
  %v901 = vsel %vm257, %v887, 0
  %v904 = vand.u32 %v782, %v275
  %906 = vmatprep.subr.bf16.mxu0 0
  %907 = vmatpush1.bf16.msra.mxu0 0
  %908 = vmatprep.subr.bf16.mxu0 0
  %909 = vmatpush1.bf16.msra.mxu0 0
  %910 = vmatprep.subr.bf16.mxu0 0
  %911 = vmatpush1.bf16.msra.mxu0 0
  %912 = vmatprep.subr.bf16.mxu0 0
  %913 = vmatpush1.bf16.msra.mxu0 %v904
  %914 = vmatprep.subr.bf16.mxu0 0
  %915 = vmatpush1.bf16.msra.mxu0 %v781
  %916 = vmatprep.subr.bf16.mxu0 0
  %917 = vmatpush1.bf16.msra.mxu0 %v780
  %918 = vmatprep.subr.bf16.mxu0 0
  %919 = vmatpush1.bf16.msra.mxu0 %v779
  %920 = vmatprep.subr.bf16.mxu0 0
  %921 = vmatpush1.bf16.msra.mxu0 %v778
  %922 = vmatprep.subr.bf16.mxu0 0
  %923 = vmatpush2.bf16.msra.mxu0 0
  %924 = vmatprep.subr.bf16.mxu0 0
  %925 = vmatpush2.bf16.msra.mxu0 0
  %926 = vmatprep.subr.bf16.mxu0 0
  %927 = vmatpush2.bf16.msra.mxu0 0
  %928 = vmatprep.subr.bf16.mxu0 0
  %929 = vmatpush2.bf16.msra.mxu0 0
  %930 = vmatprep.subr.bf16.mxu0 0
  %931 = vmatpush2.bf16.msra.mxu0 0
  %932 = vmatprep.subr.bf16.mxu0 0
  %933 = vmatpush2.bf16.msra.mxu0 0
  %934 = vmatprep.subr.bf16.mxu0 0
  %935 = vmatpush2.bf16.msra.mxu0 0
  %936 = vmatprep.subr.bf16.mxu0 0
  %937 = vmatpush2.bf16.msra.mxu0 0
  %938 = vmatprep.mubr.bf16.mxu0 0
  %939 = vmatmul.mubr.bf16.gmra.mxu0 %v889
  %v940 = vpop.f32.mrf.mxu0
  %v941 = vadd.f32 0.0, %v940
  %v942 = vpop.f32.mrf.mxu0
  %v943 = vpop.f32.mrf.mxu0
  %v944 = vadd.f32 0.0, %v943
  %v945 = vpop.f32.mrf.mxu0
  %946 = vmatprep.mubr.bf16.mxu0 0
  %947 = vmatmul.mubr.bf16.gmra.mxu0 %v892
  %v948 = vpop.f32.mrf.mxu0
  %v949 = vadd.f32 0.0, %v948
  %v950 = vpop.f32.mrf.mxu0
  %v951 = vpop.f32.mrf.mxu0
  %v952 = vadd.f32 0.0, %v951
  %v953 = vpop.f32.mrf.mxu0
  %954 = vmatprep.mubr.bf16.mxu0 0
  %955 = vmatmul.mubr.bf16.gmra.mxu0 %v895
  %v956 = vpop.f32.mrf.mxu0
  %v957 = vadd.f32 0.0, %v956
  %v958 = vpop.f32.mrf.mxu0
  %v959 = vpop.f32.mrf.mxu0
  %v960 = vadd.f32 0.0, %v959
  %v961 = vpop.f32.mrf.mxu0
  %962 = vmatprep.mubr.bf16.mxu0 0
  %963 = vmatmul.mubr.bf16.gmra.mxu0 %v898
  %v964 = vpop.f32.mrf.mxu0
  %v965 = vadd.f32 0.0, %v964
  %v966 = vpop.f32.mrf.mxu0
  %v967 = vpop.f32.mrf.mxu0
  %v968 = vadd.f32 0.0, %v967
  %v969 = vpop.f32.mrf.mxu0
  %970 = vmatprep.mubr.bf16.mxu0 0
  %971 = vmatmul.mubr.bf16.gmra.mxu0 %v901
  %v972 = vpop.f32.mrf.mxu0
  %v973 = vadd.f32 0.0, %v972
  %v974 = vpop.f32.mrf.mxu0
  %v975 = vpop.f32.mrf.mxu0
  %v976 = vpop.f32.mrf.mxu0
  %977 = vdwg.mxu0
  %v978 = vmax.f32 %v941, 0.0
  %v979 = vmax.f32 %v944, 0.0
  %v980 = vmax.f32 %v949, 0.0
  %v981 = vmax.f32 %v952, 0.0
  %v982 = vmax.f32 %v957, 0.0
  %v983 = vmax.f32 %v960, 0.0
  %v984 = vmax.f32 %v965, 0.0
  %v985 = vmax.f32 %v968, 0.0
  %v986 = vmax.f32 %v973, 0.0
  %v987 = vpack.c.bf16 %v979, %v978
  %v988 = vpack.c.bf16 %v981, %v980
  %v989 = vpack.c.bf16 %v983, %v982
  %v990 = vpack.c.bf16 %v985, %v984
  %v991 = vpack.c.bf16 %v986, %v986
  %v992 = vmul.f32 %v978, %v978
  %v993 = vmul.f32 %v979, %v979
  %v994 = vmul.f32 %v980, %v980
  %v995 = vmul.f32 %v981, %v981
  %v996 = vmul.f32 %v982, %v982
  %v997 = vmul.f32 %v983, %v983
  %v998 = vmul.f32 %v984, %v984
  %v999 = vmul.f32 %v985, %v985
  %v1000 = vadd.f32 %v992, %v993
  %v1001 = vadd.f32 %v1000, %v994
  %v1002 = vadd.f32 %v1001, %v995
  %v1003 = vadd.f32 %v1002, %v996
  %v1004 = vadd.f32 %v1003, %v997
  %v1005 = vadd.f32 %v1004, %v998
  %v1006 = vadd.f32 %v1005, %v999
  %v1007 = vrot.slane %v1006, 4
  %v1008 = vadd.f32 %v1006, %v1007
  %v1009 = vrot.slane %v1008, 2
  %v1010 = vadd.f32 %v1008, %v1009
  %v1011 = vrot.slane %v1010, 1
  %v1012 = vadd.f32 %v1010, %v1011
  %v1013 = vadd.f32 %v1012, 1e-05
  %v1014 = vrsqrt.pop %v1013
  %v1015 = vmul.f32 %v978, %v1014
  %v1016 = vmul.f32 %v979, %v1014
  %v1017 = vmul.f32 %v980, %v1014
  %v1018 = vmul.f32 %v981, %v1014
  %v1019 = vmul.f32 %v982, %v1014
  %v1020 = vmul.f32 %v983, %v1014
  %v1021 = vmul.f32 %v984, %v1014
  %v1022 = vmul.f32 %v985, %v1014
  %v1023 = vpack.c.bf16 %v1016, %v1015
  %v1024 = vpack.c.bf16 %v1018, %v1017
  %v1025 = vpack.c.bf16 %v1020, %v1019
  %v1026 = vpack.c.bf16 %v1022, %v1021
  %v1031 = vunpack.c.l.b16 %v1023
  %v1032 = vunpack.c.h.b16 %v1023
  %v1033 = vunpack.c.l.b16 %v1024
  %v1034 = vunpack.c.h.b16 %v1024
  %v1035 = vunpack.c.l.b16 %v1025
  %v1036 = vunpack.c.h.b16 %v1025
  %v1037 = vunpack.c.l.b16 %v1026
  %v1038 = vunpack.c.h.b16 %v1026
  %v1039 = vpack.c.b16 %v1031, %v1031
  %v1040 = vpack.c.b16 %v1032, %v1032
  %v1041 = vpack.c.b16 %v1033, %v1033
  %v1042 = vpack.c.b16 %v1034, %v1034
  %v1043 = vpack.c.b16 %v1035, %v1035
  %v1044 = vpack.c.b16 %v1036, %v1036
  %v1045 = vpack.c.b16 %v1037, %v1037
  %v1046 = vpack.c.b16 %v1038, %v1038
  %s1055 = scalar_lea.vmem %s3, 128
  %1056 = vst [vmem:[%s1055] sm:$0xf] %v1039
  %1057 = vst [vmem:[%s1055 + $0x4] sm:$0xf] %v1040
  %1058 = vst [vmem:[%s1055 + $0x8] sm:$0xf] %v1041
  %1059 = vst [vmem:[%s1055 + $0xc] sm:$0xf] %v1042
  %1060 = vst [vmem:[%s1055 + $0x10] sm:$0xf] %v1043
  %1061 = vst [vmem:[%s1055 + $0x14] sm:$0xf] %v1044
  %1062 = vst [vmem:[%s1055 + $0x18] sm:$0xf] %v1045
  %1063 = vst [vmem:[%s1055 + $0x1c] sm:$0xf] %v1046
  %s1064 = scalar_lea.vmem %s2, 144
  %v1065 = vld [vmem:[%s1064] sm:$0xf]
  %v1066 = vld [vmem:[%s1064 + $0x4] sm:$0xf]
  %v1067 = vld [vmem:[%s1064 + $0x8] sm:$0xf]
  %v1068 = vld [vmem:[%s1064 + $0xc] sm:$0xf]
  %v1069 = vld [vmem:[%s1064 + $0x10] sm:$0xf]
  %v1070 = vld [vmem:[%s1064 + $0x14] sm:$0xf]
  %v1071 = vld [vmem:[%s1064 + $0x18] sm:$0xf]
  %v1072 = vld [vmem:[%s1064 + $0x1c] sm:$0xf]
  %v1073 = vld [vmem:[%s1064 + $0x20] sm:$0x1]
  %v1083 = vunpack.c.l.b16 %v1065
  %v1084 = vunpack.c.l.b16 %v1066
  %v1085 = vunpack.c.l.b16 %v1067
  %v1086 = vunpack.c.l.b16 %v1068
  %v1087 = vunpack.c.l.b16 %v1069
  %v1088 = vunpack.c.l.b16 %v1070
  %v1089 = vunpack.c.l.b16 %v1071
  %v1090 = vunpack.c.l.b16 %v1072
  %v1091 = vunpack.c.l.b16 %v1073
  %v1092 = vpack.c.b16 %v1084, %v1083
  %v1093 = vpack.c.b16 %v1086, %v1085
  %v1094 = vpack.c.b16 %v1088, %v1087
  %v1095 = vpack.c.b16 %v1090, %v1089
  %v1096 = vpack.c.b16 %v1091, %v1091
  %v1098 = vsel %vm257, %v1092, 0
  %v1101 = vsel %vm257, %v1093, 0
  %v1104 = vsel %vm257, %v1094, 0
  %v1107 = vsel %vm257, %v1095, 0
  %v1110 = vsel %vm257, %v1096, 0
  %v1113 = vand.u32 %v991, %v275
  %1115 = vmatprep.subr.bf16.mxu0 0
  %1116 = vmatpush1.bf16.msra.mxu0 0
  %1117 = vmatprep.subr.bf16.mxu0 0
  %1118 = vmatpush1.bf16.msra.mxu0 0
  %1119 = vmatprep.subr.bf16.mxu0 0
  %1120 = vmatpush1.bf16.msra.mxu0 0
  %1121 = vmatprep.subr.bf16.mxu0 0
  %1122 = vmatpush1.bf16.msra.mxu0 %v1113
  %1123 = vmatprep.subr.bf16.mxu0 0
  %1124 = vmatpush1.bf16.msra.mxu0 %v990
  %1125 = vmatprep.subr.bf16.mxu0 0
  %1126 = vmatpush1.bf16.msra.mxu0 %v989
  %1127 = vmatprep.subr.bf16.mxu0 0
  %1128 = vmatpush1.bf16.msra.mxu0 %v988
  %1129 = vmatprep.subr.bf16.mxu0 0
  %1130 = vmatpush1.bf16.msra.mxu0 %v987
  %1131 = vmatprep.subr.bf16.mxu0 0
  %1132 = vmatpush2.bf16.msra.mxu0 0
  %1133 = vmatprep.subr.bf16.mxu0 0
  %1134 = vmatpush2.bf16.msra.mxu0 0
  %1135 = vmatprep.subr.bf16.mxu0 0
  %1136 = vmatpush2.bf16.msra.mxu0 0
  %1137 = vmatprep.subr.bf16.mxu0 0
  %1138 = vmatpush2.bf16.msra.mxu0 0
  %1139 = vmatprep.subr.bf16.mxu0 0
  %1140 = vmatpush2.bf16.msra.mxu0 0
  %1141 = vmatprep.subr.bf16.mxu0 0
  %1142 = vmatpush2.bf16.msra.mxu0 0
  %1143 = vmatprep.subr.bf16.mxu0 0
  %1144 = vmatpush2.bf16.msra.mxu0 0
  %1145 = vmatprep.subr.bf16.mxu0 0
  %1146 = vmatpush2.bf16.msra.mxu0 0
  %1147 = vmatprep.mubr.bf16.mxu0 0
  %1148 = vmatmul.mubr.bf16.gmra.mxu0 %v1098
  %v1149 = vpop.f32.mrf.mxu0
  %v1150 = vadd.f32 0.0, %v1149
  %v1151 = vpop.f32.mrf.mxu0
  %v1152 = vpop.f32.mrf.mxu0
  %v1153 = vadd.f32 0.0, %v1152
  %v1154 = vpop.f32.mrf.mxu0
  %1155 = vmatprep.mubr.bf16.mxu0 0
  %1156 = vmatmul.mubr.bf16.gmra.mxu0 %v1101
  %v1157 = vpop.f32.mrf.mxu0
  %v1158 = vadd.f32 0.0, %v1157
  %v1159 = vpop.f32.mrf.mxu0
  %v1160 = vpop.f32.mrf.mxu0
  %v1161 = vadd.f32 0.0, %v1160
  %v1162 = vpop.f32.mrf.mxu0
  %1163 = vmatprep.mubr.bf16.mxu0 0
  %1164 = vmatmul.mubr.bf16.gmra.mxu0 %v1104
  %v1165 = vpop.f32.mrf.mxu0
  %v1166 = vadd.f32 0.0, %v1165
  %v1167 = vpop.f32.mrf.mxu0
  %v1168 = vpop.f32.mrf.mxu0
  %v1169 = vadd.f32 0.0, %v1168
  %v1170 = vpop.f32.mrf.mxu0
  %1171 = vmatprep.mubr.bf16.mxu0 0
  %1172 = vmatmul.mubr.bf16.gmra.mxu0 %v1107
  %v1173 = vpop.f32.mrf.mxu0
  %v1174 = vadd.f32 0.0, %v1173
  %v1175 = vpop.f32.mrf.mxu0
  %v1176 = vpop.f32.mrf.mxu0
  %v1177 = vadd.f32 0.0, %v1176
  %v1178 = vpop.f32.mrf.mxu0
  %1179 = vmatprep.mubr.bf16.mxu0 0
  %1180 = vmatmul.mubr.bf16.gmra.mxu0 %v1110
  %v1181 = vpop.f32.mrf.mxu0
  %v1182 = vpop.f32.mrf.mxu0
  %v1183 = vpop.f32.mrf.mxu0
  %v1184 = vpop.f32.mrf.mxu0
  %1185 = vdwg.mxu0
  %v1186 = vmax.f32 %v1150, 0.0
  %v1187 = vmax.f32 %v1153, 0.0
  %v1188 = vmax.f32 %v1158, 0.0
  %v1189 = vmax.f32 %v1161, 0.0
  %v1190 = vmax.f32 %v1166, 0.0
  %v1191 = vmax.f32 %v1169, 0.0
  %v1192 = vmax.f32 %v1174, 0.0
  %v1193 = vmax.f32 %v1177, 0.0
  %v1194 = vmul.f32 %v1186, %v1186
  %v1195 = vmul.f32 %v1187, %v1187
  %v1196 = vmul.f32 %v1188, %v1188
  %v1197 = vmul.f32 %v1189, %v1189
  %v1198 = vmul.f32 %v1190, %v1190
  %v1199 = vmul.f32 %v1191, %v1191
  %v1200 = vmul.f32 %v1192, %v1192
  %v1201 = vmul.f32 %v1193, %v1193
  %v1202 = vadd.f32 %v1194, %v1195
  %v1203 = vadd.f32 %v1202, %v1196
  %v1204 = vadd.f32 %v1203, %v1197
  %v1205 = vadd.f32 %v1204, %v1198
  %v1206 = vadd.f32 %v1205, %v1199
  %v1207 = vadd.f32 %v1206, %v1200
  %v1208 = vadd.f32 %v1207, %v1201
  %v1209 = vrot.slane %v1208, 4
  %v1210 = vadd.f32 %v1208, %v1209
  %v1211 = vrot.slane %v1210, 2
  %v1212 = vadd.f32 %v1210, %v1211
  %v1213 = vrot.slane %v1212, 1
  %v1214 = vadd.f32 %v1212, %v1213
  %v1215 = vadd.f32 %v1214, 1e-05
  %v1216 = vrsqrt.pop %v1215
  %v1217 = vmul.f32 %v1186, %v1216
  %v1218 = vmul.f32 %v1187, %v1216
  %v1219 = vmul.f32 %v1188, %v1216
  %v1220 = vmul.f32 %v1189, %v1216
  %v1221 = vmul.f32 %v1190, %v1216
  %v1222 = vmul.f32 %v1191, %v1216
  %v1223 = vmul.f32 %v1192, %v1216
  %v1224 = vmul.f32 %v1193, %v1216
  %v1225 = vpack.c.bf16 %v1218, %v1217
  %v1226 = vpack.c.bf16 %v1220, %v1219
  %v1227 = vpack.c.bf16 %v1222, %v1221
  %v1228 = vpack.c.bf16 %v1224, %v1223
  %v1233 = vunpack.c.l.b16 %v1225
  %v1234 = vunpack.c.h.b16 %v1225
  %v1235 = vunpack.c.l.b16 %v1226
  %v1236 = vunpack.c.h.b16 %v1226
  %v1237 = vunpack.c.l.b16 %v1227
  %v1238 = vunpack.c.h.b16 %v1227
  %v1239 = vunpack.c.l.b16 %v1228
  %v1240 = vunpack.c.h.b16 %v1228
  %v1241 = vpack.c.b16 %v1233, %v1233
  %v1242 = vpack.c.b16 %v1234, %v1234
  %v1243 = vpack.c.b16 %v1235, %v1235
  %v1244 = vpack.c.b16 %v1236, %v1236
  %v1245 = vpack.c.b16 %v1237, %v1237
  %v1246 = vpack.c.b16 %v1238, %v1238
  %v1247 = vpack.c.b16 %v1239, %v1239
  %v1248 = vpack.c.b16 %v1240, %v1240
  %s1257 = scalar_lea.vmem %s3, 160
  %1258 = vst [vmem:[%s1257] sm:$0xf] %v1241
  %1259 = vst [vmem:[%s1257 + $0x4] sm:$0xf] %v1242
  %1260 = vst [vmem:[%s1257 + $0x8] sm:$0xf] %v1243
  %1261 = vst [vmem:[%s1257 + $0xc] sm:$0xf] %v1244
  %1262 = vst [vmem:[%s1257 + $0x10] sm:$0xf] %v1245
  %1263 = vst [vmem:[%s1257 + $0x14] sm:$0xf] %v1246
  %1264 = vst [vmem:[%s1257 + $0x18] sm:$0xf] %v1247
  %1265 = vst [vmem:[%s1257 + $0x1c] sm:$0xf] %v1248
  // Predicated region
  $region14: #{forward.8} parent=0 // pred_check
    _
  $region15: #{forward.8} parent=0 // pred_check_branch
    %1267 = sbr.rel (0) target = $region17
  $region16: #{forward.8} parent=0 // pred_region
    _
  $region17: #{forward.8} parent=0 // pred_fallthru
    _
  // Predicated region
  $region18: #{forward.8} parent=0 // pred_check
    _
  $region19: #{forward.8} parent=0 // pred_check_branch
    %1269 = sbr.rel (0) target = $region21
  $region20: #{forward.8} parent=0 // pred_region
    _
  $region21: #{forward.8} parent=0 // pred_fallthru
    _

// kernel: forward.11
$region0: #{forward.11}
  #allocation0 [shape = 'u32[]', space=smem, size = 0x4, offset = 0x4, fixed_abs, tag = 'smem constant byte address 0x4 - core index']
  #allocation1 [shape = 'u32[144,128]{1,0:T(1,128)}', space=vmem, size = 0x12000, scoped, tag = 'internal scratch']
  %s0 = inlined_call_operand.vmem [shape: bf16[6,64,128], index: 0, kind: input, shape index: {}]
  %s1 = inlined_call_operand.vmem [shape: f32[2,1,1,16], index: 1, kind: input, shape index: {}]
  %s2 = inlined_call_operand.vmem [shape: f32[2,6,16], index: 2, kind: output, shape index: {}]
  %s3 = sld [smem:[#allocation0]]
  $region18: #{forward.11} parent=0
    _
  %s5 = ssub.s32 1, %s3
  %s6 = scalar_select 0, %s5, %s3
  // Predicated region
  $region2: #{forward.11} parent=0 // pred_check
    _
  $region3: #{forward.11} parent=0 // pred_check_branch
    %8 = sbr.rel (0) target = $region5
  $region4: #{forward.11} parent=0 // pred_region
    _
  $region5: #{forward.11} parent=0 // pred_fallthru
    _
  // Predicated region
  $region6: #{forward.11} parent=0 // pred_check
    _
  $region7: #{forward.11} parent=0 // pred_check_branch
    %10 = sbr.rel (0) target = $region9
  $region8: #{forward.11} parent=0 // pred_region
    _
  $region9: #{forward.11} parent=0 // pred_fallthru
    _
  %v12 = vld [vmem:[%s0] sm:$0xf]
  %v13 = vld [vmem:[%s0 + $0x4] sm:$0xf]
  %v14 = vld [vmem:[%s0 + $0x8] sm:$0xf]
  %v15 = vld [vmem:[%s0 + $0xc] sm:$0xf]
  %v16 = vld [vmem:[%s0 + $0x10] sm:$0xf]
  %v17 = vld [vmem:[%s0 + $0x14] sm:$0xf]
  %v18 = vld [vmem:[%s0 + $0x18] sm:$0xf]
  %v19 = vld [vmem:[%s0 + $0x1c] sm:$0xf]
  %v20 = vld [vmem:[%s0 + $0x20] sm:$0xf]
  %v21 = vld [vmem:[%s0 + $0x24] sm:$0xf]
  %v22 = vld [vmem:[%s0 + $0x28] sm:$0xf]
  %v23 = vld [vmem:[%s0 + $0x2c] sm:$0xf]
  %v24 = vld [vmem:[%s0 + $0x30] sm:$0xf]
  %v25 = vld [vmem:[%s0 + $0x34] sm:$0xf]
  %v26 = vld [vmem:[%s0 + $0x38] sm:$0xf]
  %v27 = vld [vmem:[%s0 + $0x3c] sm:$0xf]
  %v28 = vld [vmem:[%s0 + $0x40] sm:$0xf]
  %v29 = vld [vmem:[%s0 + $0x44] sm:$0xf]
  %v30 = vld [vmem:[%s0 + $0x48] sm:$0xf]
  %v31 = vld [vmem:[%s0 + $0x4c] sm:$0xf]
  %v32 = vld [vmem:[%s0 + $0x50] sm:$0xf]
  %v33 = vld [vmem:[%s0 + $0x54] sm:$0xf]
  %v34 = vld [vmem:[%s0 + $0x58] sm:$0xf]
  %v35 = vld [vmem:[%s0 + $0x5c] sm:$0xf]
  %v36 = vld [vmem:[%s0 + $0x60] sm:$0xf]
  %v37 = vld [vmem:[%s0 + $0x64] sm:$0xf]
  %v38 = vld [vmem:[%s0 + $0x68] sm:$0xf]
  %v39 = vld [vmem:[%s0 + $0x6c] sm:$0xf]
  %v40 = vld [vmem:[%s0 + $0x70] sm:$0xf]
  %v41 = vld [vmem:[%s0 + $0x74] sm:$0xf]
  %v42 = vld [vmem:[%s0 + $0x78] sm:$0xf]
  %v43 = vld [vmem:[%s0 + $0x7c] sm:$0xf]
  %v44 = vld [vmem:[%s0 + $0x80] sm:$0xf]
  %v45 = vld [vmem:[%s0 + $0x84] sm:$0xf]
  %v46 = vld [vmem:[%s0 + $0x88] sm:$0xf]
  %v47 = vld [vmem:[%s0 + $0x8c] sm:$0xf]
  %v48 = vld [vmem:[%s0 + $0x90] sm:$0xf]
  %v49 = vld [vmem:[%s0 + $0x94] sm:$0xf]
  %v50 = vld [vmem:[%s0 + $0x98] sm:$0xf]
  %v51 = vld [vmem:[%s0 + $0x9c] sm:$0xf]
  %v52 = vld [vmem:[%s0 + $0xa0] sm:$0xf]
  %v53 = vld [vmem:[%s0 + $0xa4] sm:$0xf]
  %v54 = vld [vmem:[%s0 + $0xa8] sm:$0xf]
  %v55 = vld [vmem:[%s0 + $0xac] sm:$0xf]
  %v56 = vld [vmem:[%s0 + $0xb0] sm:$0xf]
  %v57 = vld [vmem:[%s0 + $0xb4] sm:$0xf]
  %v58 = vld [vmem:[%s0 + $0xb8] sm:$0xf]
  %v59 = vld [vmem:[%s0 + $0xbc] sm:$0xf]
  %v60 = vld [vmem:[%s1] sm:$0x1]
  %vm61 = vcmp.gt.f32.partialorder %v60, 0.0
  %v62 = vsel %vm61, 1, 0
  %v63 = vcvt.s32.f32 %v62
  %vm64 = vcmask 122880
  %v65 = vsel %vm64, %v63, 0.0
  %66 = vadd.xlane.f32.xlu0 %v65
  %v67 = vpop.xlane.xlu0 %66
  %v68 = vmul.f32 %v60, %v63
  %v69 = vsel %vm64, %v68, 0.0
  %70 = vadd.xlane.f32.xlu0 %v69
  %v71 = vpop.xlane.xlu0 %70
  %v72 = vmax.f32 %v67, 1.0
  %v73 = vrcp.pop %v72
  %v74 = vmul.f32 %v71, %v73
  %vm75 = vcmp.ge.f32.partialorder %v60, %v74
  %vm76 = vcmp.gt.f32.partialorder %v67, 0.0
  %v77 = vsel %vm76, 1, 0
  %vm78 = vcmp.eq.s32.totalorder %v77, 1
  %vm79 = vmand %vm75, %vm78
  %v80 = vsel %vm79, 1.0, 0.0
  %v81 = vsel %vm64, %v80, 0.0
  %82 = vadd.xlane.f32.xlu0 %v81
  %v83 = vpop.xlane.xlu0 %82
  %v84 = vmax.f32 %v83, 1.0
  %v85 = vrcp.pop %v84
  %v86 = vmul.f32 1.0, %v85
  %v87 = vpack.c.bf16 %v80, %v80
  %v89 = vpack.i.b16 %v87, %v87
  %v91 = vlaneseq
  %v92 = vshrl.u32 %v91, 7
  %v93 = vsub.s32 0, %v92
  %v94 = vrot.slane %v89, %v93
  %v96 = vunpack.c.l.b16 %v94
  %v97 = vpack.c.b16 %v96, %v96
  %98 = vrot.lane.b32.xlu0 %v97, 32
  %v99 = vpop.permute.xlu0 %98
  %v101 = vmul.bf16 %v12, %v99
  %v102 = vmul.bf16 %v13, %v99
  %v103 = vmul.bf16 %v14, %v99
  %v104 = vmul.bf16 %v15, %v99
  %v105 = vmul.bf16 %v16, %v99
  %v106 = vmul.bf16 %v17, %v99
  %v107 = vmul.bf16 %v18, %v99
  %v108 = vmul.bf16 %v19, %v99
  %v109 = vmul.bf16 %v20, %v99
  %v110 = vmul.bf16 %v21, %v99
  %v111 = vmul.bf16 %v22, %v99
  %v112 = vmul.bf16 %v23, %v99
  %v113 = vmul.bf16 %v24, %v99
  %v114 = vmul.bf16 %v25, %v99
  %v115 = vmul.bf16 %v26, %v99
  %v116 = vmul.bf16 %v27, %v99
  %v117 = vmul.bf16 %v28, %v99
  %v118 = vmul.bf16 %v29, %v99
  %v119 = vmul.bf16 %v30, %v99
  %v120 = vmul.bf16 %v31, %v99
  %v121 = vmul.bf16 %v32, %v99
  %v122 = vmul.bf16 %v33, %v99
  %v123 = vmul.bf16 %v34, %v99
  %v124 = vmul.bf16 %v35, %v99
  %v125 = vmul.bf16 %v36, %v99
  %v126 = vmul.bf16 %v37, %v99
  %v127 = vmul.bf16 %v38, %v99
  %v128 = vmul.bf16 %v39, %v99
  %v129 = vmul.bf16 %v40, %v99
  %v130 = vmul.bf16 %v41, %v99
  %v131 = vmul.bf16 %v42, %v99
  %v132 = vmul.bf16 %v43, %v99
  %v133 = vmul.bf16 %v44, %v99
  %v134 = vmul.bf16 %v45, %v99
  %v135 = vmul.bf16 %v46, %v99
  %v136 = vmul.bf16 %v47, %v99
  %v137 = vmul.bf16 %v48, %v99
  %v138 = vmul.bf16 %v49, %v99
  %v139 = vmul.bf16 %v50, %v99
  %v140 = vmul.bf16 %v51, %v99
  %v141 = vmul.bf16 %v52, %v99
  %v142 = vmul.bf16 %v53, %v99
  %v143 = vmul.bf16 %v54, %v99
  %v144 = vmul.bf16 %v55, %v99
  %v145 = vmul.bf16 %v56, %v99
  %v146 = vmul.bf16 %v57, %v99
  %v147 = vmul.bf16 %v58, %v99
  %v148 = vmul.bf16 %v59, %v99
  %v157 = vunpack.c.l.b16 %v101
  %v158 = vunpack.c.l.b16 %v102
  %v159 = vunpack.c.l.b16 %v103
  %v160 = vunpack.c.l.b16 %v104
  %v161 = vunpack.c.l.b16 %v105
  %v162 = vunpack.c.l.b16 %v106
  %v163 = vunpack.c.l.b16 %v107
  %v164 = vunpack.c.l.b16 %v108
  %v165 = vpack.c.b16 %v158, %v157
  %v166 = vpack.c.b16 %v160, %v159
  %v167 = vpack.c.b16 %v162, %v161
  %v168 = vpack.c.b16 %v164, %v163
  %169 = vrot.lane.b32.xlu0 %v165, 96
  %v170 = vpop.permute.xlu0 %169
  %171 = vrot.lane.b32.xlu0 %v166, 96
  %v172 = vpop.permute.xlu0 %171
  %173 = vrot.lane.b32.xlu0 %v167, 96
  %v174 = vpop.permute.xlu0 %173
  %175 = vrot.lane.b32.xlu0 %v168, 96
  %v176 = vpop.permute.xlu0 %175
  %181 = vxpose.xlu0.c.b16.start [1/8] %v170, 128
  %182 = vxpose.xlu0.c.b16.cont [2/8] %v172, 128
  %183 = vxpose.xlu0.c.b16.cont [3/8] %v174, 128
  %184 = vxpose.xlu0.c.b16.cont [4/8] %v176, 128
  %185 = vxpose.xlu0.c.b16.cont [5/8] 0, 128
  %186 = vxpose.xlu0.c.b16.cont [6/8] 0, 128
  %187 = vxpose.xlu0.c.b16.cont [7/8] 0, 128
  %188 = vxpose.xlu0.c.b16.end [8/8] 0, 128
  %v189 = vpop.trf.xlu0
  %v190 = vpop.trf.xlu0
  %v191 = vpop.trf.xlu0
  %v192 = vpop.trf.xlu0
  %v193 = vpop.trf.xlu0
  %v194 = vpop.trf.xlu0
  %v195 = vpop.trf.xlu0
  %v196 = vpop.trf.xlu0
  %v205 = vunpack.c.l.b16 %v12
  %v206 = vunpack.c.l.b16 %v13
  %v207 = vunpack.c.l.b16 %v14
  %v208 = vunpack.c.l.b16 %v15
  %v209 = vunpack.c.l.b16 %v16
  %v210 = vunpack.c.l.b16 %v17
  %v211 = vunpack.c.l.b16 %v18
  %v212 = vunpack.c.l.b16 %v19
  %v213 = vpack.c.b16 %v206, %v205
  %v214 = vpack.c.b16 %v208, %v207
  %v215 = vpack.c.b16 %v210, %v209
  %v216 = vpack.c.b16 %v212, %v211
  %vm221 = vcmask 523264
  %v223 = vsel %vm221, %v189, 0
  %225 = vmatprep.subr.bf16.mxu0 0
  %226 = vmatpush1.bf16.msra.mxu0 0
  %227 = vmatprep.subr.bf16.mxu0 0
  %228 = vmatpush1.bf16.msra.mxu0 0
  %229 = vmatprep.subr.bf16.mxu0 0
  %230 = vmatpush1.bf16.msra.mxu0 0
  %231 = vmatprep.subr.bf16.mxu0 0
  %232 = vmatpush1.bf16.msra.mxu0 0
  %233 = vmatprep.subr.bf16.mxu0 0
  %234 = vmatpush1.bf16.msra.mxu0 %v216
  %235 = vmatprep.subr.bf16.mxu0 0
  %236 = vmatpush1.bf16.msra.mxu0 %v215
  %237 = vmatprep.subr.bf16.mxu0 0
  %238 = vmatpush1.bf16.msra.mxu0 %v214
  %239 = vmatprep.subr.bf16.mxu0 0
  %240 = vmatpush1.bf16.msra.mxu0 %v213
  %241 = vmatprep.subr.bf16.mxu0 0
  %242 = vmatpush2.bf16.msra.mxu0 0
  %243 = vmatprep.subr.bf16.mxu0 0
  %244 = vmatpush2.bf16.msra.mxu0 0
  %245 = vmatprep.subr.bf16.mxu0 0
  %246 = vmatpush2.bf16.msra.mxu0 0
  %247 = vmatprep.subr.bf16.mxu0 0
  %248 = vmatpush2.bf16.msra.mxu0 0
  %249 = vmatprep.subr.bf16.mxu0 0
  %250 = vmatpush2.bf16.msra.mxu0 0
  %251 = vmatprep.subr.bf16.mxu0 0
  %252 = vmatpush2.bf16.msra.mxu0 0
  %253 = vmatprep.subr.bf16.mxu0 0
  %254 = vmatpush2.bf16.msra.mxu0 0
  %255 = vmatprep.subr.bf16.mxu0 0
  %256 = vmatpush2.bf16.msra.mxu0 0
  %257 = vmatprep.mubr.bf16.mxu0 0
  %258 = vmatmul.mubr.bf16.gmra.mxu0 %v223
  %v259 = vpop.f32.mrf.mxu0
  %v260 = vadd.f32 0.0, %v259
  %v261 = vpop.f32.mrf.mxu0
  %v262 = vpop.f32.mrf.mxu0
  %v263 = vadd.f32 0.0, %v262
  %v264 = vpop.f32.mrf.mxu0
  %265 = vdwg.mxu0
  %v266 = vmax.f32 %v260, 0.0
  %v267 = vmax.f32 %v263, 0.0
  %v276 = vunpack.c.l.b16 %v109
  %v277 = vunpack.c.l.b16 %v110
  %v278 = vunpack.c.l.b16 %v111
  %v279 = vunpack.c.l.b16 %v112
  %v280 = vunpack.c.l.b16 %v113
  %v281 = vunpack.c.l.b16 %v114
  %v282 = vunpack.c.l.b16 %v115
  %v283 = vunpack.c.l.b16 %v116
  %v284 = vpack.c.b16 %v277, %v276
  %v285 = vpack.c.b16 %v279, %v278
  %v286 = vpack.c.b16 %v281, %v280
  %v287 = vpack.c.b16 %v283, %v282
  %288 = vrot.lane.b32.xlu0 %v284, 96
  %v289 = vpop.permute.xlu0 %288
  %290 = vrot.lane.b32.xlu0 %v285, 96
  %v291 = vpop.permute.xlu0 %290
  %292 = vrot.lane.b32.xlu0 %v286, 96
  %v293 = vpop.permute.xlu0 %292
  %294 = vrot.lane.b32.xlu0 %v287, 96
  %v295 = vpop.permute.xlu0 %294
  %300 = vxpose.xlu0.c.b16.start [1/8] %v289, 128
  %301 = vxpose.xlu0.c.b16.cont [2/8] %v291, 128
  %302 = vxpose.xlu0.c.b16.cont [3/8] %v293, 128
  %303 = vxpose.xlu0.c.b16.cont [4/8] %v295, 128
  %304 = vxpose.xlu0.c.b16.cont [5/8] 0, 128
  %305 = vxpose.xlu0.c.b16.cont [6/8] 0, 128
  %306 = vxpose.xlu0.c.b16.cont [7/8] 0, 128
  %307 = vxpose.xlu0.c.b16.end [8/8] 0, 128
  %v308 = vpop.trf.xlu0
  %v309 = vpop.trf.xlu0
  %v310 = vpop.trf.xlu0
  %v311 = vpop.trf.xlu0
  %v312 = vpop.trf.xlu0
  %v313 = vpop.trf.xlu0
  %v314 = vpop.trf.xlu0
  %v315 = vpop.trf.xlu0
  %v324 = vunpack.c.l.b16 %v20
  %v325 = vunpack.c.l.b16 %v21
  %v326 = vunpack.c.l.b16 %v22
  %v327 = vunpack.c.l.b16 %v23
  %v328 = vunpack.c.l.b16 %v24
  %v329 = vunpack.c.l.b16 %v25
  %v330 = vunpack.c.l.b16 %v26
  %v331 = vunpack.c.l.b16 %v27
  %v332 = vpack.c.b16 %v325, %v324
  %v333 = vpack.c.b16 %v327, %v326
  %v334 = vpack.c.b16 %v329, %v328
  %v335 = vpack.c.b16 %v331, %v330
  %v341 = vsel %vm221, %v308, 0
  %343 = vmatprep.subr.bf16.mxu0 0
  %344 = vmatpush1.bf16.msra.mxu0 0
  %345 = vmatprep.subr.bf16.mxu0 0
  %346 = vmatpush1.bf16.msra.mxu0 0
  %347 = vmatprep.subr.bf16.mxu0 0
  %348 = vmatpush1.bf16.msra.mxu0 0
  %349 = vmatprep.subr.bf16.mxu0 0
  %350 = vmatpush1.bf16.msra.mxu0 0
  %351 = vmatprep.subr.bf16.mxu0 0
  %352 = vmatpush1.bf16.msra.mxu0 %v335
  %353 = vmatprep.subr.bf16.mxu0 0
  %354 = vmatpush1.bf16.msra.mxu0 %v334
  %355 = vmatprep.subr.bf16.mxu0 0
  %356 = vmatpush1.bf16.msra.mxu0 %v333
  %357 = vmatprep.subr.bf16.mxu0 0
  %358 = vmatpush1.bf16.msra.mxu0 %v332
  %359 = vmatprep.subr.bf16.mxu0 0
  %360 = vmatpush2.bf16.msra.mxu0 0
  %361 = vmatprep.subr.bf16.mxu0 0
  %362 = vmatpush2.bf16.msra.mxu0 0
  %363 = vmatprep.subr.bf16.mxu0 0
  %364 = vmatpush2.bf16.msra.mxu0 0
  %365 = vmatprep.subr.bf16.mxu0 0
  %366 = vmatpush2.bf16.msra.mxu0 0
  %367 = vmatprep.subr.bf16.mxu0 0
  %368 = vmatpush2.bf16.msra.mxu0 0
  %369 = vmatprep.subr.bf16.mxu0 0
  %370 = vmatpush2.bf16.msra.mxu0 0
  %371 = vmatprep.subr.bf16.mxu0 0
  %372 = vmatpush2.bf16.msra.mxu0 0
  %373 = vmatprep.subr.bf16.mxu0 0
  %374 = vmatpush2.bf16.msra.mxu0 0
  %375 = vmatprep.mubr.bf16.mxu0 0
  %376 = vmatmul.mubr.bf16.gmra.mxu0 %v341
  %v377 = vpop.f32.mrf.mxu0
  %v378 = vadd.f32 0.0, %v377
  %v379 = vpop.f32.mrf.mxu0
  %v380 = vpop.f32.mrf.mxu0
  %v381 = vadd.f32 0.0, %v380
  %v382 = vpop.f32.mrf.mxu0
  %383 = vdwg.mxu0
  %v384 = vmax.f32 %v378, 0.0
  %v385 = vmax.f32 %v381, 0.0
  %v394 = vunpack.c.l.b16 %v117
  %v395 = vunpack.c.l.b16 %v118
  %v396 = vunpack.c.l.b16 %v119
  %v397 = vunpack.c.l.b16 %v120
  %v398 = vunpack.c.l.b16 %v121
  %v399 = vunpack.c.l.b16 %v122
  %v400 = vunpack.c.l.b16 %v123
  %v401 = vunpack.c.l.b16 %v124
  %v402 = vpack.c.b16 %v395, %v394
  %v403 = vpack.c.b16 %v397, %v396
  %v404 = vpack.c.b16 %v399, %v398
  %v405 = vpack.c.b16 %v401, %v400
  %406 = vrot.lane.b32.xlu0 %v402, 96
  %v407 = vpop.permute.xlu0 %406
  %408 = vrot.lane.b32.xlu0 %v403, 96
  %v409 = vpop.permute.xlu0 %408
  %410 = vrot.lane.b32.xlu0 %v404, 96
  %v411 = vpop.permute.xlu0 %410
  %412 = vrot.lane.b32.xlu0 %v405, 96
  %v413 = vpop.permute.xlu0 %412
  %418 = vxpose.xlu0.c.b16.start [1/8] %v407, 128
  %419 = vxpose.xlu0.c.b16.cont [2/8] %v409, 128
  %420 = vxpose.xlu0.c.b16.cont [3/8] %v411, 128
  %421 = vxpose.xlu0.c.b16.cont [4/8] %v413, 128
  %422 = vxpose.xlu0.c.b16.cont [5/8] 0, 128
  %423 = vxpose.xlu0.c.b16.cont [6/8] 0, 128
  %424 = vxpose.xlu0.c.b16.cont [7/8] 0, 128
  %425 = vxpose.xlu0.c.b16.end [8/8] 0, 128
  %v426 = vpop.trf.xlu0
  %v427 = vpop.trf.xlu0
  %v428 = vpop.trf.xlu0
  %v429 = vpop.trf.xlu0
  %v430 = vpop.trf.xlu0
  %v431 = vpop.trf.xlu0
  %v432 = vpop.trf.xlu0
  %v433 = vpop.trf.xlu0
  %v442 = vunpack.c.l.b16 %v28
  %v443 = vunpack.c.l.b16 %v29
  %v444 = vunpack.c.l.b16 %v30
  %v445 = vunpack.c.l.b16 %v31
  %v446 = vunpack.c.l.b16 %v32
  %v447 = vunpack.c.l.b16 %v33
  %v448 = vunpack.c.l.b16 %v34
  %v449 = vunpack.c.l.b16 %v35
  %v450 = vpack.c.b16 %v443, %v442
  %v451 = vpack.c.b16 %v445, %v444
  %v452 = vpack.c.b16 %v447, %v446
  %v453 = vpack.c.b16 %v449, %v448
  %v459 = vsel %vm221, %v426, 0
  %461 = vmatprep.subr.bf16.mxu0 0
  %462 = vmatpush1.bf16.msra.mxu0 0
  %463 = vmatprep.subr.bf16.mxu0 0
  %464 = vmatpush1.bf16.msra.mxu0 0
  %465 = vmatprep.subr.bf16.mxu0 0
  %466 = vmatpush1.bf16.msra.mxu0 0
  %467 = vmatprep.subr.bf16.mxu0 0
  %468 = vmatpush1.bf16.msra.mxu0 0
  %469 = vmatprep.subr.bf16.mxu0 0
  %470 = vmatpush1.bf16.msra.mxu0 %v453
  %471 = vmatprep.subr.bf16.mxu0 0
  %472 = vmatpush1.bf16.msra.mxu0 %v452
  %473 = vmatprep.subr.bf16.mxu0 0
  %474 = vmatpush1.bf16.msra.mxu0 %v451
  %475 = vmatprep.subr.bf16.mxu0 0
  %476 = vmatpush1.bf16.msra.mxu0 %v450
  %477 = vmatprep.subr.bf16.mxu0 0
  %478 = vmatpush2.bf16.msra.mxu0 0
  %479 = vmatprep.subr.bf16.mxu0 0
  %480 = vmatpush2.bf16.msra.mxu0 0
  %481 = vmatprep.subr.bf16.mxu0 0
  %482 = vmatpush2.bf16.msra.mxu0 0
  %483 = vmatprep.subr.bf16.mxu0 0
  %484 = vmatpush2.bf16.msra.mxu0 0
  %485 = vmatprep.subr.bf16.mxu0 0
  %486 = vmatpush2.bf16.msra.mxu0 0
  %487 = vmatprep.subr.bf16.mxu0 0
  %488 = vmatpush2.bf16.msra.mxu0 0
  %489 = vmatprep.subr.bf16.mxu0 0
  %490 = vmatpush2.bf16.msra.mxu0 0
  %491 = vmatprep.subr.bf16.mxu0 0
  %492 = vmatpush2.bf16.msra.mxu0 0
  %493 = vmatprep.mubr.bf16.mxu0 0
  %494 = vmatmul.mubr.bf16.gmra.mxu0 %v459
  %v495 = vpop.f32.mrf.mxu0
  %v496 = vadd.f32 0.0, %v495
  %v497 = vpop.f32.mrf.mxu0
  %v498 = vpop.f32.mrf.mxu0
  %v499 = vadd.f32 0.0, %v498
  %v500 = vpop.f32.mrf.mxu0
  %501 = vdwg.mxu0
  %v502 = vmax.f32 %v496, 0.0
  %v503 = vmax.f32 %v499, 0.0
  %v512 = vunpack.c.l.b16 %v125
  %v513 = vunpack.c.l.b16 %v126
  %v514 = vunpack.c.l.b16 %v127
  %v515 = vunpack.c.l.b16 %v128
  %v516 = vunpack.c.l.b16 %v129
  %v517 = vunpack.c.l.b16 %v130
  %v518 = vunpack.c.l.b16 %v131
  %v519 = vunpack.c.l.b16 %v132
  %v520 = vpack.c.b16 %v513, %v512
  %v521 = vpack.c.b16 %v515, %v514
  %v522 = vpack.c.b16 %v517, %v516
  %v523 = vpack.c.b16 %v519, %v518
  %524 = vrot.lane.b32.xlu0 %v520, 96
  %v525 = vpop.permute.xlu0 %524
  %526 = vrot.lane.b32.xlu0 %v521, 96
  %v527 = vpop.permute.xlu0 %526
  %528 = vrot.lane.b32.xlu0 %v522, 96
  %v529 = vpop.permute.xlu0 %528
  %530 = vrot.lane.b32.xlu0 %v523, 96
  %v531 = vpop.permute.xlu0 %530
  %536 = vxpose.xlu0.c.b16.start [1/8] %v525, 128
  %537 = vxpose.xlu0.c.b16.cont [2/8] %v527, 128
  %538 = vxpose.xlu0.c.b16.cont [3/8] %v529, 128
  %539 = vxpose.xlu0.c.b16.cont [4/8] %v531, 128
  %540 = vxpose.xlu0.c.b16.cont [5/8] 0, 128
  %541 = vxpose.xlu0.c.b16.cont [6/8] 0, 128
  %542 = vxpose.xlu0.c.b16.cont [7/8] 0, 128
  %543 = vxpose.xlu0.c.b16.end [8/8] 0, 128
  %v544 = vpop.trf.xlu0
  %v545 = vpop.trf.xlu0
  %v546 = vpop.trf.xlu0
  %v547 = vpop.trf.xlu0
  %v548 = vpop.trf.xlu0
  %v549 = vpop.trf.xlu0
  %v550 = vpop.trf.xlu0
  %v551 = vpop.trf.xlu0
  %v560 = vunpack.c.l.b16 %v36
  %v561 = vunpack.c.l.b16 %v37
  %v562 = vunpack.c.l.b16 %v38
  %v563 = vunpack.c.l.b16 %v39
  %v564 = vunpack.c.l.b16 %v40
  %v565 = vunpack.c.l.b16 %v41
  %v566 = vunpack.c.l.b16 %v42
  %v567 = vunpack.c.l.b16 %v43
  %v568 = vpack.c.b16 %v561, %v560
  %v569 = vpack.c.b16 %v563, %v562
  %v570 = vpack.c.b16 %v565, %v564
  %v571 = vpack.c.b16 %v567, %v566
  %v577 = vsel %vm221, %v544, 0
  %579 = vmatprep.subr.bf16.mxu0 0
  %580 = vmatpush1.bf16.msra.mxu0 0
  %581 = vmatprep.subr.bf16.mxu0 0
  %582 = vmatpush1.bf16.msra.mxu0 0
  %583 = vmatprep.subr.bf16.mxu0 0
  %584 = vmatpush1.bf16.msra.mxu0 0
  %585 = vmatprep.subr.bf16.mxu0 0
  %586 = vmatpush1.bf16.msra.mxu0 0
  %587 = vmatprep.subr.bf16.mxu0 0
  %588 = vmatpush1.bf16.msra.mxu0 %v571
  %589 = vmatprep.subr.bf16.mxu0 0
  %590 = vmatpush1.bf16.msra.mxu0 %v570
  %591 = vmatprep.subr.bf16.mxu0 0
  %592 = vmatpush1.bf16.msra.mxu0 %v569
  %593 = vmatprep.subr.bf16.mxu0 0
  %594 = vmatpush1.bf16.msra.mxu0 %v568
  %595 = vmatprep.subr.bf16.mxu0 0
  %596 = vmatpush2.bf16.msra.mxu0 0
  %597 = vmatprep.subr.bf16.mxu0 0
  %598 = vmatpush2.bf16.msra.mxu0 0
  %599 = vmatprep.subr.bf16.mxu0 0
  %600 = vmatpush2.bf16.msra.mxu0 0
  %601 = vmatprep.subr.bf16.mxu0 0
  %602 = vmatpush2.bf16.msra.mxu0 0
  %603 = vmatprep.subr.bf16.mxu0 0
  %604 = vmatpush2.bf16.msra.mxu0 0
  %605 = vmatprep.subr.bf16.mxu0 0
  %606 = vmatpush2.bf16.msra.mxu0 0
  %607 = vmatprep.subr.bf16.mxu0 0
  %608 = vmatpush2.bf16.msra.mxu0 0
  %609 = vmatprep.subr.bf16.mxu0 0
  %610 = vmatpush2.bf16.msra.mxu0 0
  %611 = vmatprep.mubr.bf16.mxu0 0
  %612 = vmatmul.mubr.bf16.gmra.mxu0 %v577
  %v613 = vpop.f32.mrf.mxu0
  %v614 = vadd.f32 0.0, %v613
  %v615 = vpop.f32.mrf.mxu0
  %v616 = vpop.f32.mrf.mxu0
  %v617 = vadd.f32 0.0, %v616
  %v618 = vpop.f32.mrf.mxu0
  %619 = vdwg.mxu0
  %v620 = vmax.f32 %v614, 0.0
  %v621 = vmax.f32 %v617, 0.0
  %v630 = vunpack.c.l.b16 %v133
  %v631 = vunpack.c.l.b16 %v134
  %v632 = vunpack.c.l.b16 %v135
  %v633 = vunpack.c.l.b16 %v136
  %v634 = vunpack.c.l.b16 %v137
  %v635 = vunpack.c.l.b16 %v138
  %v636 = vunpack.c.l.b16 %v139
  %v637 = vunpack.c.l.b16 %v140
  %v638 = vpack.c.b16 %v631, %v630
  %v639 = vpack.c.b16 %v633, %v632
  %v640 = vpack.c.b16 %v635, %v634
  %v641 = vpack.c.b16 %v637, %v636
  %642 = vrot.lane.b32.xlu0 %v638, 96
  %v643 = vpop.permute.xlu0 %642
  %644 = vrot.lane.b32.xlu0 %v639, 96
  %v645 = vpop.permute.xlu0 %644
  %646 = vrot.lane.b32.xlu0 %v640, 96
  %v647 = vpop.permute.xlu0 %646
  %648 = vrot.lane.b32.xlu0 %v641, 96
  %v649 = vpop.permute.xlu0 %648
  %654 = vxpose.xlu0.c.b16.start [1/8] %v643, 128
  %655 = vxpose.xlu0.c.b16.cont [2/8] %v645, 128
  %656 = vxpose.xlu0.c.b16.cont [3/8] %v647, 128
  %657 = vxpose.xlu0.c.b16.cont [4/8] %v649, 128
  %658 = vxpose.xlu0.c.b16.cont [5/8] 0, 128
  %659 = vxpose.xlu0.c.b16.cont [6/8] 0, 128
  %660 = vxpose.xlu0.c.b16.cont [7/8] 0, 128
  %661 = vxpose.xlu0.c.b16.end [8/8] 0, 128
  %v662 = vpop.trf.xlu0
  %v663 = vpop.trf.xlu0
  %v664 = vpop.trf.xlu0
  %v665 = vpop.trf.xlu0
  %v666 = vpop.trf.xlu0
  %v667 = vpop.trf.xlu0
  %v668 = vpop.trf.xlu0
  %v669 = vpop.trf.xlu0
  %v678 = vunpack.c.l.b16 %v44
  %v679 = vunpack.c.l.b16 %v45
  %v680 = vunpack.c.l.b16 %v46
  %v681 = vunpack.c.l.b16 %v47
  %v682 = vunpack.c.l.b16 %v48
  %v683 = vunpack.c.l.b16 %v49
  %v684 = vunpack.c.l.b16 %v50
  %v685 = vunpack.c.l.b16 %v51
  %v686 = vpack.c.b16 %v679, %v678
  %v687 = vpack.c.b16 %v681, %v680
  %v688 = vpack.c.b16 %v683, %v682
  %v689 = vpack.c.b16 %v685, %v684
  %v695 = vsel %vm221, %v662, 0
  %697 = vmatprep.subr.bf16.mxu0 0
  %698 = vmatpush1.bf16.msra.mxu0 0
  %699 = vmatprep.subr.bf16.mxu0 0
  %700 = vmatpush1.bf16.msra.mxu0 0
  %701 = vmatprep.subr.bf16.mxu0 0
  %702 = vmatpush1.bf16.msra.mxu0 0
  %703 = vmatprep.subr.bf16.mxu0 0
  %704 = vmatpush1.bf16.msra.mxu0 0
  %705 = vmatprep.subr.bf16.mxu0 0
  %706 = vmatpush1.bf16.msra.mxu0 %v689
  %707 = vmatprep.subr.bf16.mxu0 0
  %708 = vmatpush1.bf16.msra.mxu0 %v688
  %709 = vmatprep.subr.bf16.mxu0 0
  %710 = vmatpush1.bf16.msra.mxu0 %v687
  %711 = vmatprep.subr.bf16.mxu0 0
  %712 = vmatpush1.bf16.msra.mxu0 %v686
  %713 = vmatprep.subr.bf16.mxu0 0
  %714 = vmatpush2.bf16.msra.mxu0 0
  %715 = vmatprep.subr.bf16.mxu0 0
  %716 = vmatpush2.bf16.msra.mxu0 0
  %717 = vmatprep.subr.bf16.mxu0 0
  %718 = vmatpush2.bf16.msra.mxu0 0
  %719 = vmatprep.subr.bf16.mxu0 0
  %720 = vmatpush2.bf16.msra.mxu0 0
  %721 = vmatprep.subr.bf16.mxu0 0
  %722 = vmatpush2.bf16.msra.mxu0 0
  %723 = vmatprep.subr.bf16.mxu0 0
  %724 = vmatpush2.bf16.msra.mxu0 0
  %725 = vmatprep.subr.bf16.mxu0 0
  %726 = vmatpush2.bf16.msra.mxu0 0
  %727 = vmatprep.subr.bf16.mxu0 0
  %728 = vmatpush2.bf16.msra.mxu0 0
  %729 = vmatprep.mubr.bf16.mxu0 0
  %730 = vmatmul.mubr.bf16.gmra.mxu0 %v695
  %v731 = vpop.f32.mrf.mxu0
  %v732 = vadd.f32 0.0, %v731
  %v733 = vpop.f32.mrf.mxu0
  %v734 = vpop.f32.mrf.mxu0
  %v735 = vadd.f32 0.0, %v734
  %v736 = vpop.f32.mrf.mxu0
  %737 = vdwg.mxu0
  %v738 = vmax.f32 %v732, 0.0
  %v739 = vmax.f32 %v735, 0.0
  %v748 = vunpack.c.l.b16 %v141
  %v749 = vunpack.c.l.b16 %v142
  %v750 = vunpack.c.l.b16 %v143
  %v751 = vunpack.c.l.b16 %v144
  %v752 = vunpack.c.l.b16 %v145
  %v753 = vunpack.c.l.b16 %v146
  %v754 = vunpack.c.l.b16 %v147
  %v755 = vunpack.c.l.b16 %v148
  %v756 = vpack.c.b16 %v749, %v748
  %v757 = vpack.c.b16 %v751, %v750
  %v758 = vpack.c.b16 %v753, %v752
  %v759 = vpack.c.b16 %v755, %v754
  %760 = vrot.lane.b32.xlu0 %v756, 96
  %v761 = vpop.permute.xlu0 %760
  %762 = vrot.lane.b32.xlu0 %v757, 96
  %v763 = vpop.permute.xlu0 %762
  %764 = vrot.lane.b32.xlu0 %v758, 96
  %v765 = vpop.permute.xlu0 %764
  %766 = vrot.lane.b32.xlu0 %v759, 96
  %v767 = vpop.permute.xlu0 %766
  %772 = vxpose.xlu0.c.b16.start [1/8] %v761, 128
  %773 = vxpose.xlu0.c.b16.cont [2/8] %v763, 128
  %774 = vxpose.xlu0.c.b16.cont [3/8] %v765, 128
  %775 = vxpose.xlu0.c.b16.cont [4/8] %v767, 128
  %776 = vxpose.xlu0.c.b16.cont [5/8] 0, 128
  %777 = vxpose.xlu0.c.b16.cont [6/8] 0, 128
  %778 = vxpose.xlu0.c.b16.cont [7/8] 0, 128
  %779 = vxpose.xlu0.c.b16.end [8/8] 0, 128
  %v780 = vpop.trf.xlu0
  %v781 = vpop.trf.xlu0
  %v782 = vpop.trf.xlu0
  %v783 = vpop.trf.xlu0
  %v784 = vpop.trf.xlu0
  %v785 = vpop.trf.xlu0
  %v786 = vpop.trf.xlu0
  %v787 = vpop.trf.xlu0
  %v796 = vunpack.c.l.b16 %v52
  %v797 = vunpack.c.l.b16 %v53
  %v798 = vunpack.c.l.b16 %v54
  %v799 = vunpack.c.l.b16 %v55
  %v800 = vunpack.c.l.b16 %v56
  %v801 = vunpack.c.l.b16 %v57
  %v802 = vunpack.c.l.b16 %v58
  %v803 = vunpack.c.l.b16 %v59
  %v804 = vpack.c.b16 %v797, %v796
  %v805 = vpack.c.b16 %v799, %v798
  %v806 = vpack.c.b16 %v801, %v800
  %v807 = vpack.c.b16 %v803, %v802
  %v813 = vsel %vm221, %v780, 0
  %815 = vmatprep.subr.bf16.mxu0 0
  %816 = vmatpush1.bf16.msra.mxu0 0
  %817 = vmatprep.subr.bf16.mxu0 0
  %818 = vmatpush1.bf16.msra.mxu0 0
  %819 = vmatprep.subr.bf16.mxu0 0
  %820 = vmatpush1.bf16.msra.mxu0 0
  %821 = vmatprep.subr.bf16.mxu0 0
  %822 = vmatpush1.bf16.msra.mxu0 0
  %823 = vmatprep.subr.bf16.mxu0 0
  %824 = vmatpush1.bf16.msra.mxu0 %v807
  %825 = vmatprep.subr.bf16.mxu0 0
  %826 = vmatpush1.bf16.msra.mxu0 %v806
  %827 = vmatprep.subr.bf16.mxu0 0
  %828 = vmatpush1.bf16.msra.mxu0 %v805
  %829 = vmatprep.subr.bf16.mxu0 0
  %830 = vmatpush1.bf16.msra.mxu0 %v804
  %831 = vmatprep.subr.bf16.mxu0 0
  %832 = vmatpush2.bf16.msra.mxu0 0
  %833 = vmatprep.subr.bf16.mxu0 0
  %834 = vmatpush2.bf16.msra.mxu0 0
  %835 = vmatprep.subr.bf16.mxu0 0
  %836 = vmatpush2.bf16.msra.mxu0 0
  %837 = vmatprep.subr.bf16.mxu0 0
  %838 = vmatpush2.bf16.msra.mxu0 0
  %839 = vmatprep.subr.bf16.mxu0 0
  %840 = vmatpush2.bf16.msra.mxu0 0
  %841 = vmatprep.subr.bf16.mxu0 0
  %842 = vmatpush2.bf16.msra.mxu0 0
  %843 = vmatprep.subr.bf16.mxu0 0
  %844 = vmatpush2.bf16.msra.mxu0 0
  %845 = vmatprep.subr.bf16.mxu0 0
  %846 = vmatpush2.bf16.msra.mxu0 0
  %847 = vmatprep.mubr.bf16.mxu0 0
  %848 = vmatmul.mubr.bf16.gmra.mxu0 %v813
  %v849 = vpop.f32.mrf.mxu0
  %v850 = vadd.f32 0.0, %v849
  %v851 = vpop.f32.mrf.mxu0
  %v852 = vpop.f32.mrf.mxu0
  %v853 = vadd.f32 0.0, %v852
  %v854 = vpop.f32.mrf.mxu0
  %855 = vdwg.mxu0
  %v856 = vmax.f32 %v850, 0.0
  %v857 = vmax.f32 %v853, 0.0
  %vm858 = vcmask 130048
  %v859 = vsel %vm858, %v266, 0.0
  %v860 = vsel %vm858, %v267, 0.0
  %v861 = vadd.f32 %v859, %v860
  %v862 = vrot.slane %v861, 4
  %v863 = vadd.f32 %v861, %v862
  %v864 = vrot.slane %v863, 2
  %v865 = vadd.f32 %v863, %v864
  %v866 = vrot.slane %v865, 1
  %v867 = vadd.f32 %v865, %v866
  %v868 = vsel %vm858, %v384, 0.0
  %v869 = vsel %vm858, %v385, 0.0
  %v870 = vadd.f32 %v868, %v869
  %v871 = vrot.slane %v870, 4
  %v872 = vadd.f32 %v870, %v871
  %v873 = vrot.slane %v872, 2
  %v874 = vadd.f32 %v872, %v873
  %v875 = vrot.slane %v874, 1
  %v876 = vadd.f32 %v874, %v875
  %v877 = vsel %vm858, %v502, 0.0
  %v878 = vsel %vm858, %v503, 0.0
  %v879 = vadd.f32 %v877, %v878
  %v880 = vrot.slane %v879, 4
  %v881 = vadd.f32 %v879, %v880
  %v882 = vrot.slane %v881, 2
  %v883 = vadd.f32 %v881, %v882
  %v884 = vrot.slane %v883, 1
  %v885 = vadd.f32 %v883, %v884
  %v886 = vsel %vm858, %v620, 0.0
  %v887 = vsel %vm858, %v621, 0.0
  %v888 = vadd.f32 %v886, %v887
  %v889 = vrot.slane %v888, 4
  %v890 = vadd.f32 %v888, %v889
  %v891 = vrot.slane %v890, 2
  %v892 = vadd.f32 %v890, %v891
  %v893 = vrot.slane %v892, 1
  %v894 = vadd.f32 %v892, %v893
  %v895 = vsel %vm858, %v738, 0.0
  %v896 = vsel %vm858, %v739, 0.0
  %v897 = vadd.f32 %v895, %v896
  %v898 = vrot.slane %v897, 4
  %v899 = vadd.f32 %v897, %v898
  %v900 = vrot.slane %v899, 2
  %v901 = vadd.f32 %v899, %v900
  %v902 = vrot.slane %v901, 1
  %v903 = vadd.f32 %v901, %v902
  %v904 = vsel %vm858, %v856, 0.0
  %v905 = vsel %vm858, %v857, 0.0
  %v906 = vadd.f32 %v904, %v905
  %v907 = vrot.slane %v906, 4
  %v908 = vadd.f32 %v906, %v907
  %v909 = vrot.slane %v908, 2
  %v910 = vadd.f32 %v908, %v909
  %v911 = vrot.slane %v910, 1
  %v912 = vadd.f32 %v910, %v911
  %v913 = vlaneseq
  %v914 = vshrl.u32 %v913, 7
  %v915 = vsub.s32 0, %v914
  %v916 = vrot.slane %v86, %v915
  %v917 = vmul.f32 %v867, %v916
  %v918 = vmul.f32 %v876, %v916
  %v919 = vmul.f32 %v885, %v916
  %v920 = vmul.f32 %v894, %v916
  %v921 = vmul.f32 %v903, %v916
  %v922 = vmul.f32 %v912, %v916
  %v923 = vadd.f32 %v917, 0.0
  %v924 = vadd.f32 %v918, 0.0
  %v925 = vadd.f32 %v919, 0.0
  %v926 = vadd.f32 %v920, 0.0
  %v927 = vadd.f32 %v921, 0.0
  %v928 = vadd.f32 %v922, 0.0
  %s929 = scalar_lea.vmem %s1, 1
  %v930 = vld [vmem:[%s929] sm:$0x1]
  %vm931 = vcmp.gt.f32.partialorder %v930, 0.0
  %v932 = vsel %vm931, 1, 0
  %v933 = vcvt.s32.f32 %v932
  %v934 = vsel %vm64, %v933, 0.0
  %935 = vadd.xlane.f32.xlu0 %v934
  %v936 = vpop.xlane.xlu0 %935
  %v937 = vmul.f32 %v930, %v933
  %v938 = vsel %vm64, %v937, 0.0
  %939 = vadd.xlane.f32.xlu0 %v938
  %v940 = vpop.xlane.xlu0 %939
  %v941 = vmax.f32 %v936, 1.0
  %v942 = vrcp.pop %v941
  %v943 = vmul.f32 %v940, %v942
  %vm944 = vcmp.ge.f32.partialorder %v930, %v943
  %vm945 = vcmp.gt.f32.partialorder %v936, 0.0
  %v946 = vsel %vm945, 1, 0
  %vm947 = vcmp.eq.s32.totalorder %v946, 1
  %vm948 = vmand %vm944, %vm947
  %v949 = vsel %vm948, 1.0, 0.0
  %v950 = vsel %vm64, %v949, 0.0
  %951 = vadd.xlane.f32.xlu0 %v950
  %v952 = vpop.xlane.xlu0 %951
  %v953 = vmax.f32 %v952, 1.0
  %v954 = vrcp.pop %v953
  %v955 = vmul.f32 1.0, %v954
  %v956 = vpack.c.bf16 %v949, %v949
  %v958 = vpack.i.b16 %v956, %v956
  %v960 = vlaneseq
  %v961 = vshrl.u32 %v960, 7
  %v962 = vsub.s32 0, %v961
  %v963 = vrot.slane %v958, %v962
  %v965 = vunpack.c.l.b16 %v963
  %v966 = vpack.c.b16 %v965, %v965
  %967 = vrot.lane.b32.xlu0 %v966, 48
  %v968 = vpop.permute.xlu0 %967
  %v970 = vmul.bf16 %v12, %v968
  %v971 = vmul.bf16 %v13, %v968
  %v972 = vmul.bf16 %v14, %v968
  %v973 = vmul.bf16 %v15, %v968
  %v974 = vmul.bf16 %v16, %v968
  %v975 = vmul.bf16 %v17, %v968
  %v976 = vmul.bf16 %v18, %v968
  %v977 = vmul.bf16 %v19, %v968
  %v978 = vmul.bf16 %v20, %v968
  %v979 = vmul.bf16 %v21, %v968
  %v980 = vmul.bf16 %v22, %v968
  %v981 = vmul.bf16 %v23, %v968
  %v982 = vmul.bf16 %v24, %v968
  %v983 = vmul.bf16 %v25, %v968
  %v984 = vmul.bf16 %v26, %v968
  %v985 = vmul.bf16 %v27, %v968
  %v986 = vmul.bf16 %v28, %v968
  %v987 = vmul.bf16 %v29, %v968
  %v988 = vmul.bf16 %v30, %v968
  %v989 = vmul.bf16 %v31, %v968
  %v990 = vmul.bf16 %v32, %v968
  %v991 = vmul.bf16 %v33, %v968
  %v992 = vmul.bf16 %v34, %v968
  %v993 = vmul.bf16 %v35, %v968
  %v994 = vmul.bf16 %v36, %v968
  %v995 = vmul.bf16 %v37, %v968
  %v996 = vmul.bf16 %v38, %v968
  %v997 = vmul.bf16 %v39, %v968
  %v998 = vmul.bf16 %v40, %v968
  %v999 = vmul.bf16 %v41, %v968
  %v1000 = vmul.bf16 %v42, %v968
  %v1001 = vmul.bf16 %v43, %v968
  %v1002 = vmul.bf16 %v44, %v968
  %v1003 = vmul.bf16 %v45, %v968
  %v1004 = vmul.bf16 %v46, %v968
  %v1005 = vmul.bf16 %v47, %v968
  %v1006 = vmul.bf16 %v48, %v968
  %v1007 = vmul.bf16 %v49, %v968
  %v1008 = vmul.bf16 %v50, %v968
  %v1009 = vmul.bf16 %v51, %v968
  %v1010 = vmul.bf16 %v52, %v968
  %v1011 = vmul.bf16 %v53, %v968
  %v1012 = vmul.bf16 %v54, %v968
  %v1013 = vmul.bf16 %v55, %v968
  %v1014 = vmul.bf16 %v56, %v968
  %v1015 = vmul.bf16 %v57, %v968
  %v1016 = vmul.bf16 %v58, %v968
  %v1017 = vmul.bf16 %v59, %v968
  %v1026 = vunpack.c.l.b16 %v970
  %v1027 = vunpack.c.l.b16 %v971
  %v1028 = vunpack.c.l.b16 %v972
  %v1029 = vunpack.c.l.b16 %v973
  %v1030 = vunpack.c.l.b16 %v974
  %v1031 = vunpack.c.l.b16 %v975
  %v1032 = vunpack.c.l.b16 %v976
  %v1033 = vunpack.c.l.b16 %v977
  %v1034 = vpack.c.b16 %v1027, %v1026
  %v1035 = vpack.c.b16 %v1029, %v1028
  %v1036 = vpack.c.b16 %v1031, %v1030
  %v1037 = vpack.c.b16 %v1033, %v1032
  %1038 = vrot.lane.b32.xlu0 %v1034, 80
  %v1039 = vpop.permute.xlu0 %1038
  %1040 = vrot.lane.b32.xlu0 %v1035, 80
  %v1041 = vpop.permute.xlu0 %1040
  %1042 = vrot.lane.b32.xlu0 %v1036, 80
  %v1043 = vpop.permute.xlu0 %1042
  %1044 = vrot.lane.b32.xlu0 %v1037, 80
  %v1045 = vpop.permute.xlu0 %1044
  %1050 = vxpose.xlu0.c.b16.start [1/8] %v1039, 128
  %1051 = vxpose.xlu0.c.b16.cont [2/8] %v1041, 128
  %1052 = vxpose.xlu0.c.b16.cont [3/8] %v1043, 128
  %1053 = vxpose.xlu0.c.b16.cont [4/8] %v1045, 128
  %1054 = vxpose.xlu0.c.b16.cont [5/8] 0, 128
  %1055 = vxpose.xlu0.c.b16.cont [6/8] 0, 128
  %1056 = vxpose.xlu0.c.b16.cont [7/8] 0, 128
  %1057 = vxpose.xlu0.c.b16.end [8/8] 0, 128
  %v1058 = vpop.trf.xlu0
  %v1059 = vpop.trf.xlu0
  %v1060 = vpop.trf.xlu0
  %v1061 = vpop.trf.xlu0
  %v1062 = vpop.trf.xlu0
  %v1063 = vpop.trf.xlu0
  %v1064 = vpop.trf.xlu0
  %v1065 = vpop.trf.xlu0
  %1066 = vrot.lane.b32.xlu0 %v213, 112
  %v1067 = vpop.permute.xlu0 %1066
  %1068 = vrot.lane.b32.xlu0 %v214, 112
  %v1069 = vpop.permute.xlu0 %1068
  %1070 = vrot.lane.b32.xlu0 %v215, 112
  %v1071 = vpop.permute.xlu0 %1070
  %1072 = vrot.lane.b32.xlu0 %v216, 112
  %v1073 = vpop.permute.xlu0 %1072
  %v1079 = vsel %vm221, %v1058, 0
  %1081 = vmatprep.subr.bf16.mxu0 0
  %1082 = vmatpush1.bf16.msra.mxu0 0
  %1083 = vmatprep.subr.bf16.mxu0 0
  %1084 = vmatpush1.bf16.msra.mxu0 0
  %1085 = vmatprep.subr.bf16.mxu0 0
  %1086 = vmatpush1.bf16.msra.mxu0 0
  %1087 = vmatprep.subr.bf16.mxu0 0
  %1088 = vmatpush1.bf16.msra.mxu0 0
  %1089 = vmatprep.subr.bf16.mxu0 0
  %1090 = vmatpush1.bf16.msra.mxu0 %v1073
  %1091 = vmatprep.subr.bf16.mxu0 0
  %1092 = vmatpush1.bf16.msra.mxu0 %v1071
  %1093 = vmatprep.subr.bf16.mxu0 0
  %1094 = vmatpush1.bf16.msra.mxu0 %v1069
  %1095 = vmatprep.subr.bf16.mxu0 0
  %1096 = vmatpush1.bf16.msra.mxu0 %v1067
  %1097 = vmatprep.subr.bf16.mxu0 0
  %1098 = vmatpush2.bf16.msra.mxu0 0
  %1099 = vmatprep.subr.bf16.mxu0 0
  %1100 = vmatpush2.bf16.msra.mxu0 0
  %1101 = vmatprep.subr.bf16.mxu0 0
  %1102 = vmatpush2.bf16.msra.mxu0 0
  %1103 = vmatprep.subr.bf16.mxu0 0
  %1104 = vmatpush2.bf16.msra.mxu0 0
  %1105 = vmatprep.subr.bf16.mxu0 0
  %1106 = vmatpush2.bf16.msra.mxu0 0
  %1107 = vmatprep.subr.bf16.mxu0 0
  %1108 = vmatpush2.bf16.msra.mxu0 0
  %1109 = vmatprep.subr.bf16.mxu0 0
  %1110 = vmatpush2.bf16.msra.mxu0 0
  %1111 = vmatprep.subr.bf16.mxu0 0
  %1112 = vmatpush2.bf16.msra.mxu0 0
  %1113 = vmatprep.mubr.bf16.mxu0 0
  %1114 = vmatmul.mubr.bf16.gmra.mxu0 %v1079
  %v1115 = vpop.f32.mrf.mxu0
  %v1116 = vadd.f32 0.0, %v1115
  %v1117 = vpop.f32.mrf.mxu0
  %v1118 = vpop.f32.mrf.mxu0
  %v1119 = vadd.f32 0.0, %v1118
  %v1120 = vpop.f32.mrf.mxu0
  %1121 = vdwg.mxu0
  %v1122 = vmax.f32 %v1116, 0.0
  %v1123 = vmax.f32 %v1119, 0.0
  %v1132 = vunpack.c.l.b16 %v978
  %v1133 = vunpack.c.l.b16 %v979
  %v1134 = vunpack.c.l.b16 %v980
  %v1135 = vunpack.c.l.b16 %v981
  %v1136 = vunpack.c.l.b16 %v982
  %v1137 = vunpack.c.l.b16 %v983
  %v1138 = vunpack.c.l.b16 %v984
  %v1139 = vunpack.c.l.b16 %v985
  %v1140 = vpack.c.b16 %v1133, %v1132
  %v1141 = vpack.c.b16 %v1135, %v1134
  %v1142 = vpack.c.b16 %v1137, %v1136
  %v1143 = vpack.c.b16 %v1139, %v1138
  %1144 = vrot.lane.b32.xlu0 %v1140, 80
  %v1145 = vpop.permute.xlu0 %1144
  %1146 = vrot.lane.b32.xlu0 %v1141, 80
  %v1147 = vpop.permute.xlu0 %1146
  %1148 = vrot.lane.b32.xlu0 %v1142, 80
  %v1149 = vpop.permute.xlu0 %1148
  %1150 = vrot.lane.b32.xlu0 %v1143, 80
  %v1151 = vpop.permute.xlu0 %1150
  %1156 = vxpose.xlu0.c.b16.start [1/8] %v1145, 128
  %1157 = vxpose.xlu0.c.b16.cont [2/8] %v1147, 128
  %1158 = vxpose.xlu0.c.b16.cont [3/8] %v1149, 128
  %1159 = vxpose.xlu0.c.b16.cont [4/8] %v1151, 128
  %1160 = vxpose.xlu0.c.b16.cont [5/8] 0, 128
  %1161 = vxpose.xlu0.c.b16.cont [6/8] 0, 128
  %1162 = vxpose.xlu0.c.b16.cont [7/8] 0, 128
  %1163 = vxpose.xlu0.c.b16.end [8/8] 0, 128
  %v1164 = vpop.trf.xlu0
  %v1165 = vpop.trf.xlu0
  %v1166 = vpop.trf.xlu0
  %v1167 = vpop.trf.xlu0
  %v1168 = vpop.trf.xlu0
  %v1169 = vpop.trf.xlu0
  %v1170 = vpop.trf.xlu0
  %v1171 = vpop.trf.xlu0
  %1172 = vrot.lane.b32.xlu0 %v332, 112
  %v1173 = vpop.permute.xlu0 %1172
  %1174 = vrot.lane.b32.xlu0 %v333, 112
  %v1175 = vpop.permute.xlu0 %1174
  %1176 = vrot.lane.b32.xlu0 %v334, 112
  %v1177 = vpop.permute.xlu0 %1176
  %1178 = vrot.lane.b32.xlu0 %v335, 112
  %v1179 = vpop.permute.xlu0 %1178
  %v1185 = vsel %vm221, %v1164, 0
  %1187 = vmatprep.subr.bf16.mxu0 0
  %1188 = vmatpush1.bf16.msra.mxu0 0
  %1189 = vmatprep.subr.bf16.mxu0 0
  %1190 = vmatpush1.bf16.msra.mxu0 0
  %1191 = vmatprep.subr.bf16.mxu0 0
  %1192 = vmatpush1.bf16.msra.mxu0 0
  %1193 = vmatprep.subr.bf16.mxu0 0
  %1194 = vmatpush1.bf16.msra.mxu0 0
  %1195 = vmatprep.subr.bf16.mxu0 0
  %1196 = vmatpush1.bf16.msra.mxu0 %v1179
  %1197 = vmatprep.subr.bf16.mxu0 0
  %1198 = vmatpush1.bf16.msra.mxu0 %v1177
  %1199 = vmatprep.subr.bf16.mxu0 0
  %1200 = vmatpush1.bf16.msra.mxu0 %v1175
  %1201 = vmatprep.subr.bf16.mxu0 0
  %1202 = vmatpush1.bf16.msra.mxu0 %v1173
  %1203 = vmatprep.subr.bf16.mxu0 0
  %1204 = vmatpush2.bf16.msra.mxu0 0
  %1205 = vmatprep.subr.bf16.mxu0 0
  %1206 = vmatpush2.bf16.msra.mxu0 0
  %1207 = vmatprep.subr.bf16.mxu0 0
  %1208 = vmatpush2.bf16.msra.mxu0 0
  %1209 = vmatprep.subr.bf16.mxu0 0
  %1210 = vmatpush2.bf16.msra.mxu0 0
  %1211 = vmatprep.subr.bf16.mxu0 0
  %1212 = vmatpush2.bf16.msra.mxu0 0
  %1213 = vmatprep.subr.bf16.mxu0 0
  %1214 = vmatpush2.bf16.msra.mxu0 0
  %1215 = vmatprep.subr.bf16.mxu0 0
  %1216 = vmatpush2.bf16.msra.mxu0 0
  %1217 = vmatprep.subr.bf16.mxu0 0
  %1218 = vmatpush2.bf16.msra.mxu0 0
  %1219 = vmatprep.mubr.bf16.mxu0 0
  %1220 = vmatmul.mubr.bf16.gmra.mxu0 %v1185
  %v1221 = vpop.f32.mrf.mxu0
  %v1222 = vadd.f32 0.0, %v1221
  %v1223 = vpop.f32.mrf.mxu0
  %v1224 = vpop.f32.mrf.mxu0
  %v1225 = vadd.f32 0.0, %v1224
  %v1226 = vpop.f32.mrf.mxu0
  %1227 = vdwg.mxu0
  %v1228 = vmax.f32 %v1222, 0.0
  %v1229 = vmax.f32 %v1225, 0.0
  %v1238 = vunpack.c.l.b16 %v986
  %v1239 = vunpack.c.l.b16 %v987
  %v1240 = vunpack.c.l.b16 %v988
  %v1241 = vunpack.c.l.b16 %v989
  %v1242 = vunpack.c.l.b16 %v990
  %v1243 = vunpack.c.l.b16 %v991
  %v1244 = vunpack.c.l.b16 %v992
  %v1245 = vunpack.c.l.b16 %v993
  %v1246 = vpack.c.b16 %v1239, %v1238
  %v1247 = vpack.c.b16 %v1241, %v1240
  %v1248 = vpack.c.b16 %v1243, %v1242
  %v1249 = vpack.c.b16 %v1245, %v1244
  %1250 = vrot.lane.b32.xlu0 %v1246, 80
  %v1251 = vpop.permute.xlu0 %1250
  %1252 = vrot.lane.b32.xlu0 %v1247, 80
  %v1253 = vpop.permute.xlu0 %1252
  %1254 = vrot.lane.b32.xlu0 %v1248, 80
  %v1255 = vpop.permute.xlu0 %1254
  %1256 = vrot.lane.b32.xlu0 %v1249, 80
  %v1257 = vpop.permute.xlu0 %1256
  %1262 = vxpose.xlu0.c.b16.start [1/8] %v1251, 128
  %1263 = vxpose.xlu0.c.b16.cont [2/8] %v1253, 128
  %1264 = vxpose.xlu0.c.b16.cont [3/8] %v1255, 128
  %1265 = vxpose.xlu0.c.b16.cont [4/8] %v1257, 128
  %1266 = vxpose.xlu0.c.b16.cont [5/8] 0, 128
  %1267 = vxpose.xlu0.c.b16.cont [6/8] 0, 128
  %1268 = vxpose.xlu0.c.b16.cont [7/8] 0, 128
  %1269 = vxpose.xlu0.c.b16.end [8/8] 0, 128
  %v1270 = vpop.trf.xlu0
  %v1271 = vpop.trf.xlu0
  %v1272 = vpop.trf.xlu0
  %v1273 = vpop.trf.xlu0
  %v1274 = vpop.trf.xlu0
  %v1275 = vpop.trf.xlu0
  %v1276 = vpop.trf.xlu0
  %v1277 = vpop.trf.xlu0
  %1278 = vrot.lane.b32.xlu0 %v450, 112
  %v1279 = vpop.permute.xlu0 %1278
  %1280 = vrot.lane.b32.xlu0 %v451, 112
  %v1281 = vpop.permute.xlu0 %1280
  %1282 = vrot.lane.b32.xlu0 %v452, 112
  %v1283 = vpop.permute.xlu0 %1282
  %1284 = vrot.lane.b32.xlu0 %v453, 112
  %v1285 = vpop.permute.xlu0 %1284
  %v1291 = vsel %vm221, %v1270, 0
  %1293 = vmatprep.subr.bf16.mxu0 0
  %1294 = vmatpush1.bf16.msra.mxu0 0
  %1295 = vmatprep.subr.bf16.mxu0 0
  %1296 = vmatpush1.bf16.msra.mxu0 0
  %1297 = vmatprep.subr.bf16.mxu0 0
  %1298 = vmatpush1.bf16.msra.mxu0 0
  %1299 = vmatprep.subr.bf16.mxu0 0
  %1300 = vmatpush1.bf16.msra.mxu0 0
  %1301 = vmatprep.subr.bf16.mxu0 0
  %1302 = vmatpush1.bf16.msra.mxu0 %v1285
  %1303 = vmatprep.subr.bf16.mxu0 0
  %1304 = vmatpush1.bf16.msra.mxu0 %v1283
  %1305 = vmatprep.subr.bf16.mxu0 0
  %1306 = vmatpush1.bf16.msra.mxu0 %v1281
  %1307 = vmatprep.subr.bf16.mxu0 0
  %1308 = vmatpush1.bf16.msra.mxu0 %v1279
  %1309 = vmatprep.subr.bf16.mxu0 0
  %1310 = vmatpush2.bf16.msra.mxu0 0
  %1311 = vmatprep.subr.bf16.mxu0 0
  %1312 = vmatpush2.bf16.msra.mxu0 0
  %1313 = vmatprep.subr.bf16.mxu0 0
  %1314 = vmatpush2.bf16.msra.mxu0 0
  %1315 = vmatprep.subr.bf16.mxu0 0
  %1316 = vmatpush2.bf16.msra.mxu0 0
  %1317 = vmatprep.subr.bf16.mxu0 0
  %1318 = vmatpush2.bf16.msra.mxu0 0
  %1319 = vmatprep.subr.bf16.mxu0 0
  %1320 = vmatpush2.bf16.msra.mxu0 0
  %1321 = vmatprep.subr.bf16.mxu0 0
  %1322 = vmatpush2.bf16.msra.mxu0 0
  %1323 = vmatprep.subr.bf16.mxu0 0
  %1324 = vmatpush2.bf16.msra.mxu0 0
  %1325 = vmatprep.mubr.bf16.mxu0 0
  %1326 = vmatmul.mubr.bf16.gmra.mxu0 %v1291
  %v1327 = vpop.f32.mrf.mxu0
  %v1328 = vadd.f32 0.0, %v1327
  %v1329 = vpop.f32.mrf.mxu0
  %v1330 = vpop.f32.mrf.mxu0
  %v1331 = vadd.f32 0.0, %v1330
  %v1332 = vpop.f32.mrf.mxu0
  %1333 = vdwg.mxu0
  %v1334 = vmax.f32 %v1328, 0.0
  %v1335 = vmax.f32 %v1331, 0.0
  %v1344 = vunpack.c.l.b16 %v994
  %v1345 = vunpack.c.l.b16 %v995
  %v1346 = vunpack.c.l.b16 %v996
  %v1347 = vunpack.c.l.b16 %v997
  %v1348 = vunpack.c.l.b16 %v998
  %v1349 = vunpack.c.l.b16 %v999
  %v1350 = vunpack.c.l.b16 %v1000
  %v1351 = vunpack.c.l.b16 %v1001
  %v1352 = vpack.c.b16 %v1345, %v1344
  %v1353 = vpack.c.b16 %v1347, %v1346
  %v1354 = vpack.c.b16 %v1349, %v1348
  %v1355 = vpack.c.b16 %v1351, %v1350
  %1356 = vrot.lane.b32.xlu0 %v1352, 80
  %v1357 = vpop.permute.xlu0 %1356
  %1358 = vrot.lane.b32.xlu0 %v1353, 80
  %v1359 = vpop.permute.xlu0 %1358
  %1360 = vrot.lane.b32.xlu0 %v1354, 80
  %v1361 = vpop.permute.xlu0 %1360
  %1362 = vrot.lane.b32.xlu0 %v1355, 80
  %v1363 = vpop.permute.xlu0 %1362
  %1368 = vxpose.xlu0.c.b16.start [1/8] %v1357, 128
  %1369 = vxpose.xlu0.c.b16.cont [2/8] %v1359, 128
  %1370 = vxpose.xlu0.c.b16.cont [3/8] %v1361, 128
  %1371 = vxpose.xlu0.c.b16.cont [4/8] %v1363, 128
  %1372 = vxpose.xlu0.c.b16.cont [5/8] 0, 128
  %1373 = vxpose.xlu0.c.b16.cont [6/8] 0, 128
  %1374 = vxpose.xlu0.c.b16.cont [7/8] 0, 128
  %1375 = vxpose.xlu0.c.b16.end [8/8] 0, 128
  %v1376 = vpop.trf.xlu0
  %v1377 = vpop.trf.xlu0
  %v1378 = vpop.trf.xlu0
  %v1379 = vpop.trf.xlu0
  %v1380 = vpop.trf.xlu0
  %v1381 = vpop.trf.xlu0
  %v1382 = vpop.trf.xlu0
  %v1383 = vpop.trf.xlu0
  %1384 = vrot.lane.b32.xlu0 %v568, 112
  %v1385 = vpop.permute.xlu0 %1384
  %1386 = vrot.lane.b32.xlu0 %v569, 112
  %v1387 = vpop.permute.xlu0 %1386
  %1388 = vrot.lane.b32.xlu0 %v570, 112
  %v1389 = vpop.permute.xlu0 %1388
  %1390 = vrot.lane.b32.xlu0 %v571, 112
  %v1391 = vpop.permute.xlu0 %1390
  %v1397 = vsel %vm221, %v1376, 0
  %1399 = vmatprep.subr.bf16.mxu0 0
  %1400 = vmatpush1.bf16.msra.mxu0 0
  %1401 = vmatprep.subr.bf16.mxu0 0
  %1402 = vmatpush1.bf16.msra.mxu0 0
  %1403 = vmatprep.subr.bf16.mxu0 0
  %1404 = vmatpush1.bf16.msra.mxu0 0
  %1405 = vmatprep.subr.bf16.mxu0 0
  %1406 = vmatpush1.bf16.msra.mxu0 0
  %1407 = vmatprep.subr.bf16.mxu0 0
  %1408 = vmatpush1.bf16.msra.mxu0 %v1391
  %1409 = vmatprep.subr.bf16.mxu0 0
  %1410 = vmatpush1.bf16.msra.mxu0 %v1389
  %1411 = vmatprep.subr.bf16.mxu0 0
  %1412 = vmatpush1.bf16.msra.mxu0 %v1387
  %1413 = vmatprep.subr.bf16.mxu0 0
  %1414 = vmatpush1.bf16.msra.mxu0 %v1385
  %1415 = vmatprep.subr.bf16.mxu0 0
  %1416 = vmatpush2.bf16.msra.mxu0 0
  %1417 = vmatprep.subr.bf16.mxu0 0
  %1418 = vmatpush2.bf16.msra.mxu0 0
  %1419 = vmatprep.subr.bf16.mxu0 0
  %1420 = vmatpush2.bf16.msra.mxu0 0
  %1421 = vmatprep.subr.bf16.mxu0 0
  %1422 = vmatpush2.bf16.msra.mxu0 0
  %1423 = vmatprep.subr.bf16.mxu0 0
  %1424 = vmatpush2.bf16.msra.mxu0 0
  %1425 = vmatprep.subr.bf16.mxu0 0
  %1426 = vmatpush2.bf16.msra.mxu0 0
  %1427 = vmatprep.subr.bf16.mxu0 0
  %1428 = vmatpush2.bf16.msra.mxu0 0
  %1429 = vmatprep.subr.bf16.mxu0 0
  %1430 = vmatpush2.bf16.msra.mxu0 0
  %1431 = vmatprep.mubr.bf16.mxu0 0
  %1432 = vmatmul.mubr.bf16.gmra.mxu0 %v1397
  %v1433 = vpop.f32.mrf.mxu0
  %v1434 = vadd.f32 0.0, %v1433
  %v1435 = vpop.f32.mrf.mxu0
  %v1436 = vpop.f32.mrf.mxu0
  %v1437 = vadd.f32 0.0, %v1436
  %v1438 = vpop.f32.mrf.mxu0
  %1439 = vdwg.mxu0
  %v1440 = vmax.f32 %v1434, 0.0
  %v1441 = vmax.f32 %v1437, 0.0
  %v1450 = vunpack.c.l.b16 %v1002
  %v1451 = vunpack.c.l.b16 %v1003
  %v1452 = vunpack.c.l.b16 %v1004
  %v1453 = vunpack.c.l.b16 %v1005
  %v1454 = vunpack.c.l.b16 %v1006
  %v1455 = vunpack.c.l.b16 %v1007
  %v1456 = vunpack.c.l.b16 %v1008
  %v1457 = vunpack.c.l.b16 %v1009
  %v1458 = vpack.c.b16 %v1451, %v1450
  %v1459 = vpack.c.b16 %v1453, %v1452
  %v1460 = vpack.c.b16 %v1455, %v1454
  %v1461 = vpack.c.b16 %v1457, %v1456
  %1462 = vrot.lane.b32.xlu0 %v1458, 80
  %v1463 = vpop.permute.xlu0 %1462
  %1464 = vrot.lane.b32.xlu0 %v1459, 80
  %v1465 = vpop.permute.xlu0 %1464
  %1466 = vrot.lane.b32.xlu0 %v1460, 80
  %v1467 = vpop.permute.xlu0 %1466
  %1468 = vrot.lane.b32.xlu0 %v1461, 80
  %v1469 = vpop.permute.xlu0 %1468
  %1474 = vxpose.xlu0.c.b16.start [1/8] %v1463, 128
  %1475 = vxpose.xlu0.c.b16.cont [2/8] %v1465, 128
  %1476 = vxpose.xlu0.c.b16.cont [3/8] %v1467, 128
  %1477 = vxpose.xlu0.c.b16.cont [4/8] %v1469, 128
  %1478 = vxpose.xlu0.c.b16.cont [5/8] 0, 128
  %1479 = vxpose.xlu0.c.b16.cont [6/8] 0, 128
  %1480 = vxpose.xlu0.c.b16.cont [7/8] 0, 128
  %1481 = vxpose.xlu0.c.b16.end [8/8] 0, 128
  %v1482 = vpop.trf.xlu0
  %v1483 = vpop.trf.xlu0
  %v1484 = vpop.trf.xlu0
  %v1485 = vpop.trf.xlu0
  %v1486 = vpop.trf.xlu0
  %v1487 = vpop.trf.xlu0
  %v1488 = vpop.trf.xlu0
  %v1489 = vpop.trf.xlu0
  %1490 = vrot.lane.b32.xlu0 %v686, 112
  %v1491 = vpop.permute.xlu0 %1490
  %1492 = vrot.lane.b32.xlu0 %v687, 112
  %v1493 = vpop.permute.xlu0 %1492
  %1494 = vrot.lane.b32.xlu0 %v688, 112
  %v1495 = vpop.permute.xlu0 %1494
  %1496 = vrot.lane.b32.xlu0 %v689, 112
  %v1497 = vpop.permute.xlu0 %1496
  %v1503 = vsel %vm221, %v1482, 0
  %1505 = vmatprep.subr.bf16.mxu0 0
  %1506 = vmatpush1.bf16.msra.mxu0 0
  %1507 = vmatprep.subr.bf16.mxu0 0
  %1508 = vmatpush1.bf16.msra.mxu0 0
  %1509 = vmatprep.subr.bf16.mxu0 0
  %1510 = vmatpush1.bf16.msra.mxu0 0
  %1511 = vmatprep.subr.bf16.mxu0 0
  %1512 = vmatpush1.bf16.msra.mxu0 0
  %1513 = vmatprep.subr.bf16.mxu0 0
  %1514 = vmatpush1.bf16.msra.mxu0 %v1497
  %1515 = vmatprep.subr.bf16.mxu0 0
  %1516 = vmatpush1.bf16.msra.mxu0 %v1495
  %1517 = vmatprep.subr.bf16.mxu0 0
  %1518 = vmatpush1.bf16.msra.mxu0 %v1493
  %1519 = vmatprep.subr.bf16.mxu0 0
  %1520 = vmatpush1.bf16.msra.mxu0 %v1491
  %1521 = vmatprep.subr.bf16.mxu0 0
  %1522 = vmatpush2.bf16.msra.mxu0 0
  %1523 = vmatprep.subr.bf16.mxu0 0
  %1524 = vmatpush2.bf16.msra.mxu0 0
  %1525 = vmatprep.subr.bf16.mxu0 0
  %1526 = vmatpush2.bf16.msra.mxu0 0
  %1527 = vmatprep.subr.bf16.mxu0 0
  %1528 = vmatpush2.bf16.msra.mxu0 0
  %1529 = vmatprep.subr.bf16.mxu0 0
  %1530 = vmatpush2.bf16.msra.mxu0 0
  %1531 = vmatprep.subr.bf16.mxu0 0
  %1532 = vmatpush2.bf16.msra.mxu0 0
  %1533 = vmatprep.subr.bf16.mxu0 0
  %1534 = vmatpush2.bf16.msra.mxu0 0
  %1535 = vmatprep.subr.bf16.mxu0 0
  %1536 = vmatpush2.bf16.msra.mxu0 0
  %1537 = vmatprep.mubr.bf16.mxu0 0
  %1538 = vmatmul.mubr.bf16.gmra.mxu0 %v1503
  %v1539 = vpop.f32.mrf.mxu0
  %v1540 = vadd.f32 0.0, %v1539
  %v1541 = vpop.f32.mrf.mxu0
  %v1542 = vpop.f32.mrf.mxu0
  %v1543 = vadd.f32 0.0, %v1542
  %v1544 = vpop.f32.mrf.mxu0
  %1545 = vdwg.mxu0
  %v1546 = vmax.f32 %v1540, 0.0
  %v1547 = vmax.f32 %v1543, 0.0
  %v1556 = vunpack.c.l.b16 %v1010
  %v1557 = vunpack.c.l.b16 %v1011
  %v1558 = vunpack.c.l.b16 %v1012
  %v1559 = vunpack.c.l.b16 %v1013
  %v1560 = vunpack.c.l.b16 %v1014
  %v1561 = vunpack.c.l.b16 %v1015
  %v1562 = vunpack.c.l.b16 %v1016
  %v1563 = vunpack.c.l.b16 %v1017
  %v1564 = vpack.c.b16 %v1557, %v1556
  %v1565 = vpack.c.b16 %v1559, %v1558
  %v1566 = vpack.c.b16 %v1561, %v1560
  %v1567 = vpack.c.b16 %v1563, %v1562
  %1568 = vrot.lane.b32.xlu0 %v1564, 80
  %v1569 = vpop.permute.xlu0 %1568
  %1570 = vrot.lane.b32.xlu0 %v1565, 80
  %v1571 = vpop.permute.xlu0 %1570
  %1572 = vrot.lane.b32.xlu0 %v1566, 80
  %v1573 = vpop.permute.xlu0 %1572
  %1574 = vrot.lane.b32.xlu0 %v1567, 80
  %v1575 = vpop.permute.xlu0 %1574
  %1580 = vxpose.xlu0.c.b16.start [1/8] %v1569, 128
  %1581 = vxpose.xlu0.c.b16.cont [2/8] %v1571, 128
  %1582 = vxpose.xlu0.c.b16.cont [3/8] %v1573, 128
  %1583 = vxpose.xlu0.c.b16.cont [4/8] %v1575, 128
  %1584 = vxpose.xlu0.c.b16.cont [5/8] 0, 128
  %1585 = vxpose.xlu0.c.b16.cont [6/8] 0, 128
  %1586 = vxpose.xlu0.c.b16.cont [7/8] 0, 128
  %1587 = vxpose.xlu0.c.b16.end [8/8] 0, 128
  %v1588 = vpop.trf.xlu0
  %v1589 = vpop.trf.xlu0
  %v1590 = vpop.trf.xlu0
  %v1591 = vpop.trf.xlu0
  %v1592 = vpop.trf.xlu0
  %v1593 = vpop.trf.xlu0
  %v1594 = vpop.trf.xlu0
  %v1595 = vpop.trf.xlu0
  %1596 = vrot.lane.b32.xlu0 %v804, 112
  %v1597 = vpop.permute.xlu0 %1596
  %1598 = vrot.lane.b32.xlu0 %v805, 112
  %v1599 = vpop.permute.xlu0 %1598
  %1600 = vrot.lane.b32.xlu0 %v806, 112
  %v1601 = vpop.permute.xlu0 %1600
  %1602 = vrot.lane.b32.xlu0 %v807, 112
  %v1603 = vpop.permute.xlu0 %1602
  %v1609 = vsel %vm221, %v1588, 0
  %1611 = vmatprep.subr.bf16.mxu0 0
  %1612 = vmatpush1.bf16.msra.mxu0 0
  %1613 = vmatprep.subr.bf16.mxu0 0
  %1614 = vmatpush1.bf16.msra.mxu0 0
  %1615 = vmatprep.subr.bf16.mxu0 0
  %1616 = vmatpush1.bf16.msra.mxu0 0
  %1617 = vmatprep.subr.bf16.mxu0 0
  %1618 = vmatpush1.bf16.msra.mxu0 0
  %1619 = vmatprep.subr.bf16.mxu0 0
  %1620 = vmatpush1.bf16.msra.mxu0 %v1603
  %1621 = vmatprep.subr.bf16.mxu0 0
  %1622 = vmatpush1.bf16.msra.mxu0 %v1601
  %1623 = vmatprep.subr.bf16.mxu0 0
  %1624 = vmatpush1.bf16.msra.mxu0 %v1599
  %1625 = vmatprep.subr.bf16.mxu0 0
  %1626 = vmatpush1.bf16.msra.mxu0 %v1597
  %1627 = vmatprep.subr.bf16.mxu0 0
  %1628 = vmatpush2.bf16.msra.mxu0 0
  %1629 = vmatprep.subr.bf16.mxu0 0
  %1630 = vmatpush2.bf16.msra.mxu0 0
  %1631 = vmatprep.subr.bf16.mxu0 0
  %1632 = vmatpush2.bf16.msra.mxu0 0
  %1633 = vmatprep.subr.bf16.mxu0 0
  %1634 = vmatpush2.bf16.msra.mxu0 0
  %1635 = vmatprep.subr.bf16.mxu0 0
  %1636 = vmatpush2.bf16.msra.mxu0 0
  %1637 = vmatprep.subr.bf16.mxu0 0
  %1638 = vmatpush2.bf16.msra.mxu0 0
  %1639 = vmatprep.subr.bf16.mxu0 0
  %1640 = vmatpush2.bf16.msra.mxu0 0
  %1641 = vmatprep.subr.bf16.mxu0 0
  %1642 = vmatpush2.bf16.msra.mxu0 0
  %1643 = vmatprep.mubr.bf16.mxu0 0
  %1644 = vmatmul.mubr.bf16.gmra.mxu0 %v1609
  %v1645 = vpop.f32.mrf.mxu0
  %v1646 = vadd.f32 0.0, %v1645
  %v1647 = vpop.f32.mrf.mxu0
  %v1648 = vpop.f32.mrf.mxu0
  %v1649 = vadd.f32 0.0, %v1648
  %v1650 = vpop.f32.mrf.mxu0
  %1651 = vdwg.mxu0
  %v1652 = vmax.f32 %v1646, 0.0
  %v1653 = vmax.f32 %v1649, 0.0
  %v1654 = vsel %vm858, %v1122, 0.0
  %v1655 = vsel %vm858, %v1123, 0.0
  %v1656 = vadd.f32 %v1654, %v1655
  %v1657 = vrot.slane %v1656, 4
  %v1658 = vadd.f32 %v1656, %v1657
  %v1659 = vrot.slane %v1658, 2
  %v1660 = vadd.f32 %v1658, %v1659
  %v1661 = vrot.slane %v1660, 1
  %v1662 = vadd.f32 %v1660, %v1661
  %v1663 = vsel %vm858, %v1228, 0.0
  %v1664 = vsel %vm858, %v1229, 0.0
  %v1665 = vadd.f32 %v1663, %v1664
  %v1666 = vrot.slane %v1665, 4
  %v1667 = vadd.f32 %v1665, %v1666
  %v1668 = vrot.slane %v1667, 2
  %v1669 = vadd.f32 %v1667, %v1668
  %v1670 = vrot.slane %v1669, 1
  %v1671 = vadd.f32 %v1669, %v1670
  %v1672 = vsel %vm858, %v1334, 0.0
  %v1673 = vsel %vm858, %v1335, 0.0
  %v1674 = vadd.f32 %v1672, %v1673
  %v1675 = vrot.slane %v1674, 4
  %v1676 = vadd.f32 %v1674, %v1675
  %v1677 = vrot.slane %v1676, 2
  %v1678 = vadd.f32 %v1676, %v1677
  %v1679 = vrot.slane %v1678, 1
  %v1680 = vadd.f32 %v1678, %v1679
  %v1681 = vsel %vm858, %v1440, 0.0
  %v1682 = vsel %vm858, %v1441, 0.0
  %v1683 = vadd.f32 %v1681, %v1682
  %v1684 = vrot.slane %v1683, 4
  %v1685 = vadd.f32 %v1683, %v1684
  %v1686 = vrot.slane %v1685, 2
  %v1687 = vadd.f32 %v1685, %v1686
  %v1688 = vrot.slane %v1687, 1
  %v1689 = vadd.f32 %v1687, %v1688
  %v1690 = vsel %vm858, %v1546, 0.0
  %v1691 = vsel %vm858, %v1547, 0.0
  %v1692 = vadd.f32 %v1690, %v1691
  %v1693 = vrot.slane %v1692, 4
  %v1694 = vadd.f32 %v1692, %v1693
  %v1695 = vrot.slane %v1694, 2
  %v1696 = vadd.f32 %v1694, %v1695
  %v1697 = vrot.slane %v1696, 1
  %v1698 = vadd.f32 %v1696, %v1697
  %v1699 = vsel %vm858, %v1652, 0.0
  %v1700 = vsel %vm858, %v1653, 0.0
  %v1701 = vadd.f32 %v1699, %v1700
  %v1702 = vrot.slane %v1701, 4
  %v1703 = vadd.f32 %v1701, %v1702
  %v1704 = vrot.slane %v1703, 2
  %v1705 = vadd.f32 %v1703, %v1704
  %v1706 = vrot.slane %v1705, 1
  %v1707 = vadd.f32 %v1705, %v1706
  %v1708 = vlaneseq
  %v1709 = vshrl.u32 %v1708, 7
  %v1710 = vsub.s32 0, %v1709
  %v1711 = vrot.slane %v955, %v1710
  %v1712 = vmul.f32 %v1662, %v1711
  %v1713 = vmul.f32 %v1671, %v1711
  %v1714 = vmul.f32 %v1680, %v1711
  %v1715 = vmul.f32 %v1689, %v1711
  %v1716 = vmul.f32 %v1698, %v1711
  %v1717 = vmul.f32 %v1707, %v1711
  %v1718 = vadd.f32 %v1712, 0.0
  %v1719 = vadd.f32 %v1713, 0.0
  %v1720 = vadd.f32 %v1714, 0.0
  %v1721 = vadd.f32 %v1715, 0.0
  %v1722 = vadd.f32 %v1716, 0.0
  %v1723 = vadd.f32 %v1717, 0.0
  %v1736 = vrot.slane %v924, 7
  %vm1737 = vcmask 1041409
  %v1738 = vsel %vm1737, %v1736, %v923
  %v1739 = vrot.slane %v925, 6
  %vm1740 = vcmask 1042434
  %v1741 = vsel %vm1740, %v1739, %v1738
  %v1742 = vrot.slane %v926, 5
  %vm1743 = vcmask 1043459
  %v1744 = vsel %vm1743, %v1742, %v1741
  %v1745 = vrot.slane %v927, 4
  %vm1746 = vcmask 1044484
  %v1747 = vsel %vm1746, %v1745, %v1744
  %v1748 = vrot.slane %v928, 3
  %vm1749 = vcmask 1045509
  %v1750 = vsel %vm1749, %v1748, %v1747
  %v1751 = vrot.slane %v1719, 7
  %v1752 = vsel %vm1737, %v1751, %v1718
  %v1753 = vrot.slane %v1720, 6
  %v1754 = vsel %vm1740, %v1753, %v1752
  %v1755 = vrot.slane %v1721, 5
  %v1756 = vsel %vm1743, %v1755, %v1754
  %v1757 = vrot.slane %v1722, 4
  %v1758 = vsel %vm1746, %v1757, %v1756
  %v1759 = vrot.slane %v1723, 3
  %v1760 = vsel %vm1749, %v1759, %v1758
  %vm1763 = vcmask 128000
  %1764 = vst.msk [vmem:[%s2] sm:$0x3f] %vm1763, %v1750
  %1765 = vst.msk [vmem:[%s2 + $0x8] sm:$0x3f] %vm1763, %v1760
  // Predicated region
  $region10: #{forward.11} parent=0 // pred_check
    _
  $region11: #{forward.11} parent=0 // pred_check_branch
    %1767 = sbr.rel (0) target = $region13
  $region12: #{forward.11} parent=0 // pred_region
    _
  $region13: #{forward.11} parent=0 // pred_fallthru
    _
  // Predicated region
  $region14: #{forward.11} parent=0 // pred_check
    _
  $region15: #{forward.11} parent=0 // pred_check_branch
    %1769 = sbr.rel (0) target = $region17
  $region16: #{forward.11} parent=0 // pred_region
    _
  $region17: #{forward.11} parent=0 // pred_fallthru
    _

// kernel: forward.9
$region0: #{forward.9}
  #allocation0 [shape = 'u32[]', space=smem, size = 0x4, offset = 0x4, fixed_abs, tag = 'smem constant byte address 0x4 - core index']
  #allocation1 [shape = 'u32[144,128]{1,0:T(1,128)}', space=vmem, size = 0x12000, scoped, tag = 'internal scratch']
  %s0 = inlined_call_operand.vmem [shape: bf16[4,128], index: 0, kind: input, shape index: {}]
  %s1 = inlined_call_operand.vmem [shape: bf16[129,4], index: 1, kind: input, shape index: {}]
  %s2 = inlined_call_operand.vmem [shape: bf16[2,129,129], index: 2, kind: input, shape index: {}]
  %s3 = inlined_call_operand.vmem [shape: bf16[3,128,128], index: 3, kind: output, shape index: {}]
  %s4 = sld [smem:[#allocation0]]
  $region22: #{forward.9} parent=0
    _
  %s6 = ssub.s32 1, %s4
  %s7 = scalar_select 0, %s6, %s4
  // Predicated region
  $region2: #{forward.9} parent=0 // pred_check
    _
  $region3: #{forward.9} parent=0 // pred_check_branch
    %9 = sbr.rel (0) target = $region5
  $region4: #{forward.9} parent=0 // pred_region
    _
  $region5: #{forward.9} parent=0 // pred_fallthru
    _
  // Predicated region
  $region6: #{forward.9} parent=0 // pred_check
    _
  $region7: #{forward.9} parent=0 // pred_check_branch
    %11 = sbr.rel (0) target = $region9
  $region8: #{forward.9} parent=0 // pred_region
    _
  $region9: #{forward.9} parent=0 // pred_fallthru
    _
  // Predicated region
  $region10: #{forward.9} parent=0 // pred_check
    _
  $region11: #{forward.9} parent=0 // pred_check_branch
    %13 = sbr.rel (0) target = $region13
  $region12: #{forward.9} parent=0 // pred_region
    _
  $region13: #{forward.9} parent=0 // pred_fallthru
    _
  %v15 = vld [vmem:[%s0] sm:$0x3]
  %v16 = vld [vmem:[%s1] sm:$0xf]
  %v17 = vld [vmem:[%s1 + $0x4] sm:$0xf]
  %v18 = vld [vmem:[%s1 + $0x8] sm:$0xf]
  %v19 = vld [vmem:[%s1 + $0xc] sm:$0xf]
  %v20 = vld [vmem:[%s1 + $0x10] sm:$0xf]
  %v21 = vld [vmem:[%s1 + $0x14] sm:$0xf]
  %v22 = vld [vmem:[%s1 + $0x18] sm:$0xf]
  %v23 = vld [vmem:[%s1 + $0x1c] sm:$0xf]
  %v24 = vld [vmem:[%s1 + $0x20] sm:$0xf]
  %v25 = vld [vmem:[%s1 + $0x24] sm:$0xf]
  %v26 = vld [vmem:[%s1 + $0x28] sm:$0xf]
  %v27 = vld [vmem:[%s1 + $0x2c] sm:$0xf]
  %v28 = vld [vmem:[%s1 + $0x30] sm:$0xf]
  %v29 = vld [vmem:[%s1 + $0x34] sm:$0xf]
  %v30 = vld [vmem:[%s1 + $0x38] sm:$0xf]
  %v31 = vld [vmem:[%s1 + $0x3c] sm:$0xf]
  %v32 = vld [vmem:[%s1 + $0x40] sm:$0x1]
  %v50 = vunpack.c.l.b16 %v16
  %v51 = vunpack.c.l.b16 %v17
  %v52 = vunpack.c.l.b16 %v18
  %v53 = vunpack.c.l.b16 %v19
  %v54 = vunpack.c.l.b16 %v20
  %v55 = vunpack.c.l.b16 %v21
  %v56 = vunpack.c.l.b16 %v22
  %v57 = vunpack.c.l.b16 %v23
  %v58 = vunpack.c.l.b16 %v24
  %v59 = vunpack.c.l.b16 %v25
  %v60 = vunpack.c.l.b16 %v26
  %v61 = vunpack.c.l.b16 %v27
  %v62 = vunpack.c.l.b16 %v28
  %v63 = vunpack.c.l.b16 %v29
  %v64 = vunpack.c.l.b16 %v30
  %v65 = vunpack.c.l.b16 %v31
  %v66 = vunpack.c.l.b16 %v32
  %v67 = vpack.c.b16 %v51, %v50
  %v68 = vpack.c.b16 %v53, %v52
  %v69 = vpack.c.b16 %v55, %v54
  %v70 = vpack.c.b16 %v57, %v56
  %v71 = vpack.c.b16 %v59, %v58
  %v72 = vpack.c.b16 %v61, %v60
  %v73 = vpack.c.b16 %v63, %v62
  %v74 = vpack.c.b16 %v65, %v64
  %v75 = vpack.c.b16 %v66, %v66
  %vm76 = vcmask 31744
  %v78 = vsel %vm76, %v67, 0
  %v81 = vsel %vm76, %v68, 0
  %v84 = vsel %vm76, %v69, 0
  %v87 = vsel %vm76, %v70, 0
  %v90 = vsel %vm76, %v71, 0
  %v93 = vsel %vm76, %v72, 0
  %v96 = vsel %vm76, %v73, 0
  %v99 = vsel %vm76, %v74, 0
  %v102 = vsel %vm76, %v75, 0
  %vm104 = vcmask 1041408
  %v106 = vsel %vm104, %v15, 0
  %108 = vmatprep.subr.bf16.mxu0 0
  %109 = vmatpush1.bf16.msra.mxu0 0
  %110 = vmatprep.subr.bf16.mxu0 0
  %111 = vmatpush1.bf16.msra.mxu0 0
  %112 = vmatprep.subr.bf16.mxu0 0
  %113 = vmatpush1.bf16.msra.mxu0 0
  %114 = vmatprep.subr.bf16.mxu0 0
  %115 = vmatpush1.bf16.msra.mxu0 0
  %116 = vmatprep.subr.bf16.mxu0 0
  %117 = vmatpush1.bf16.msra.mxu0 0
  %118 = vmatprep.subr.bf16.mxu0 0
  %119 = vmatpush1.bf16.msra.mxu0 0
  %120 = vmatprep.subr.bf16.mxu0 0
  %121 = vmatpush1.bf16.msra.mxu0 0
  %122 = vmatprep.subr.bf16.mxu0 0
  %123 = vmatpush1.bf16.msra.mxu0 %v106
  %124 = vmatprep.subr.bf16.mxu0 0
  %125 = vmatpush2.bf16.msra.mxu0 0
  %126 = vmatprep.subr.bf16.mxu0 0
  %127 = vmatpush2.bf16.msra.mxu0 0
  %128 = vmatprep.subr.bf16.mxu0 0
  %129 = vmatpush2.bf16.msra.mxu0 0
  %130 = vmatprep.subr.bf16.mxu0 0
  %131 = vmatpush2.bf16.msra.mxu0 0
  %132 = vmatprep.subr.bf16.mxu0 0
  %133 = vmatpush2.bf16.msra.mxu0 0
  %134 = vmatprep.subr.bf16.mxu0 0
  %135 = vmatpush2.bf16.msra.mxu0 0
  %136 = vmatprep.subr.bf16.mxu0 0
  %137 = vmatpush2.bf16.msra.mxu0 0
  %138 = vmatprep.subr.bf16.mxu0 0
  %139 = vmatpush2.bf16.msra.mxu0 0
  %140 = vmatprep.mubr.bf16.mxu0 0
  %141 = vmatmul.mubr.bf16.gmra.mxu0 %v78
  %v142 = vpop.f32.mrf.mxu0
  %v143 = vadd.f32 0.0, %v142
  %v144 = vpop.f32.mrf.mxu0
  %v145 = vpop.f32.mrf.mxu0
  %v146 = vadd.f32 0.0, %v145
  %v147 = vpop.f32.mrf.mxu0
  %148 = vmatprep.mubr.bf16.mxu0 0
  %149 = vmatmul.mubr.bf16.gmra.mxu0 %v81
  %v150 = vpop.f32.mrf.mxu0
  %v151 = vadd.f32 0.0, %v150
  %v152 = vpop.f32.mrf.mxu0
  %v153 = vpop.f32.mrf.mxu0
  %v154 = vadd.f32 0.0, %v153
  %v155 = vpop.f32.mrf.mxu0
  %156 = vmatprep.mubr.bf16.mxu0 0
  %157 = vmatmul.mubr.bf16.gmra.mxu0 %v84
  %v158 = vpop.f32.mrf.mxu0
  %v159 = vadd.f32 0.0, %v158
  %v160 = vpop.f32.mrf.mxu0
  %v161 = vpop.f32.mrf.mxu0
  %v162 = vadd.f32 0.0, %v161
  %v163 = vpop.f32.mrf.mxu0
  %164 = vmatprep.mubr.bf16.mxu0 0
  %165 = vmatmul.mubr.bf16.gmra.mxu0 %v87
  %v166 = vpop.f32.mrf.mxu0
  %v167 = vadd.f32 0.0, %v166
  %v168 = vpop.f32.mrf.mxu0
  %v169 = vpop.f32.mrf.mxu0
  %v170 = vadd.f32 0.0, %v169
  %v171 = vpop.f32.mrf.mxu0
  %172 = vmatprep.mubr.bf16.mxu0 0
  %173 = vmatmul.mubr.bf16.gmra.mxu0 %v90
  %v174 = vpop.f32.mrf.mxu0
  %v175 = vadd.f32 0.0, %v174
  %v176 = vpop.f32.mrf.mxu0
  %v177 = vpop.f32.mrf.mxu0
  %v178 = vadd.f32 0.0, %v177
  %v179 = vpop.f32.mrf.mxu0
  %180 = vmatprep.mubr.bf16.mxu0 0
  %181 = vmatmul.mubr.bf16.gmra.mxu0 %v93
  %v182 = vpop.f32.mrf.mxu0
  %v183 = vadd.f32 0.0, %v182
  %v184 = vpop.f32.mrf.mxu0
  %v185 = vpop.f32.mrf.mxu0
  %v186 = vadd.f32 0.0, %v185
  %v187 = vpop.f32.mrf.mxu0
  %188 = vmatprep.mubr.bf16.mxu0 0
  %189 = vmatmul.mubr.bf16.gmra.mxu0 %v96
  %v190 = vpop.f32.mrf.mxu0
  %v191 = vadd.f32 0.0, %v190
  %v192 = vpop.f32.mrf.mxu0
  %v193 = vpop.f32.mrf.mxu0
  %v194 = vadd.f32 0.0, %v193
  %v195 = vpop.f32.mrf.mxu0
  %196 = vmatprep.mubr.bf16.mxu0 0
  %197 = vmatmul.mubr.bf16.gmra.mxu0 %v99
  %v198 = vpop.f32.mrf.mxu0
  %v199 = vadd.f32 0.0, %v198
  %v200 = vpop.f32.mrf.mxu0
  %v201 = vpop.f32.mrf.mxu0
  %v202 = vadd.f32 0.0, %v201
  %v203 = vpop.f32.mrf.mxu0
  %204 = vmatprep.mubr.bf16.mxu0 0
  %205 = vmatmul.mubr.bf16.gmra.mxu0 %v102
  %v206 = vpop.f32.mrf.mxu0
  %v207 = vadd.f32 0.0, %v206
  %v208 = vpop.f32.mrf.mxu0
  %v209 = vpop.f32.mrf.mxu0
  %v210 = vpop.f32.mrf.mxu0
  %211 = vdwg.mxu0
  %v212 = vmax.f32 %v143, 0.0
  %v213 = vmax.f32 %v146, 0.0
  %v214 = vmax.f32 %v151, 0.0
  %v215 = vmax.f32 %v154, 0.0
  %v216 = vmax.f32 %v159, 0.0
  %v217 = vmax.f32 %v162, 0.0
  %v218 = vmax.f32 %v167, 0.0
  %v219 = vmax.f32 %v170, 0.0
  %v220 = vmax.f32 %v175, 0.0
  %v221 = vmax.f32 %v178, 0.0
  %v222 = vmax.f32 %v183, 0.0
  %v223 = vmax.f32 %v186, 0.0
  %v224 = vmax.f32 %v191, 0.0
  %v225 = vmax.f32 %v194, 0.0
  %v226 = vmax.f32 %v199, 0.0
  %v227 = vmax.f32 %v202, 0.0
  %v228 = vmax.f32 %v207, 0.0
  %v229 = vpack.c.bf16 %v213, %v212
  %v230 = vpack.c.bf16 %v215, %v214
  %v231 = vpack.c.bf16 %v217, %v216
  %v232 = vpack.c.bf16 %v219, %v218
  %v233 = vpack.c.bf16 %v221, %v220
  %v234 = vpack.c.bf16 %v223, %v222
  %v235 = vpack.c.bf16 %v225, %v224
  %v236 = vpack.c.bf16 %v227, %v226
  %v237 = vpack.c.bf16 %v228, %v228
  %v238 = vmul.f32 %v212, %v212
  %v239 = vmul.f32 %v213, %v213
  %v240 = vmul.f32 %v214, %v214
  %v241 = vmul.f32 %v215, %v215
  %v242 = vmul.f32 %v216, %v216
  %v243 = vmul.f32 %v217, %v217
  %v244 = vmul.f32 %v218, %v218
  %v245 = vmul.f32 %v219, %v219
  %v246 = vmul.f32 %v220, %v220
  %v247 = vmul.f32 %v221, %v221
  %v248 = vmul.f32 %v222, %v222
  %v249 = vmul.f32 %v223, %v223
  %v250 = vmul.f32 %v224, %v224
  %v251 = vmul.f32 %v225, %v225
  %v252 = vmul.f32 %v226, %v226
  %v253 = vmul.f32 %v227, %v227
  %v254 = vadd.f32 %v238, %v239
  %v255 = vadd.f32 %v254, %v240
  %v256 = vadd.f32 %v255, %v241
  %v257 = vadd.f32 %v256, %v242
  %v258 = vadd.f32 %v257, %v243
  %v259 = vadd.f32 %v258, %v244
  %v260 = vadd.f32 %v259, %v245
  %v261 = vadd.f32 %v260, %v246
  %v262 = vadd.f32 %v261, %v247
  %v263 = vadd.f32 %v262, %v248
  %v264 = vadd.f32 %v263, %v249
  %v265 = vadd.f32 %v264, %v250
  %v266 = vadd.f32 %v265, %v251
  %v267 = vadd.f32 %v266, %v252
  %v268 = vadd.f32 %v267, %v253
  %v269 = vrot.slane %v268, 4
  %v270 = vadd.f32 %v268, %v269
  %v271 = vrot.slane %v270, 2
  %v272 = vadd.f32 %v270, %v271
  %v273 = vrot.slane %v272, 1
  %v274 = vadd.f32 %v272, %v273
  %v275 = vadd.f32 %v274, 1e-05
  %v276 = vrsqrt.pop %v275
  %v277 = vmul.f32 %v212, %v276
  %v278 = vmul.f32 %v213, %v276
  %v279 = vmul.f32 %v214, %v276
  %v280 = vmul.f32 %v215, %v276
  %v281 = vmul.f32 %v216, %v276
  %v282 = vmul.f32 %v217, %v276
  %v283 = vmul.f32 %v218, %v276
  %v284 = vmul.f32 %v219, %v276
  %v285 = vmul.f32 %v220, %v276
  %v286 = vmul.f32 %v221, %v276
  %v287 = vmul.f32 %v222, %v276
  %v288 = vmul.f32 %v223, %v276
  %v289 = vmul.f32 %v224, %v276
  %v290 = vmul.f32 %v225, %v276
  %v291 = vmul.f32 %v226, %v276
  %v292 = vmul.f32 %v227, %v276
  %v293 = vpack.c.bf16 %v278, %v277
  %v294 = vpack.c.bf16 %v280, %v279
  %v295 = vpack.c.bf16 %v282, %v281
  %v296 = vpack.c.bf16 %v284, %v283
  %v297 = vpack.c.bf16 %v286, %v285
  %v298 = vpack.c.bf16 %v288, %v287
  %v299 = vpack.c.bf16 %v290, %v289
  %v300 = vpack.c.bf16 %v292, %v291
  %v309 = vunpack.c.l.b16 %v293
  %v310 = vunpack.c.h.b16 %v293
  %v311 = vunpack.c.l.b16 %v294
  %v312 = vunpack.c.h.b16 %v294
  %v313 = vunpack.c.l.b16 %v295
  %v314 = vunpack.c.h.b16 %v295
  %v315 = vunpack.c.l.b16 %v296
  %v316 = vunpack.c.h.b16 %v296
  %v317 = vunpack.c.l.b16 %v297
  %v318 = vunpack.c.h.b16 %v297
  %v319 = vunpack.c.l.b16 %v298
  %v320 = vunpack.c.h.b16 %v298
  %v321 = vunpack.c.l.b16 %v299
  %v322 = vunpack.c.h.b16 %v299
  %v323 = vunpack.c.l.b16 %v300
  %v324 = vunpack.c.h.b16 %v300
  %v325 = vpack.c.b16 %v309, %v309
  %v326 = vpack.c.b16 %v310, %v310
  %v327 = vpack.c.b16 %v311, %v311
  %v328 = vpack.c.b16 %v312, %v312
  %v329 = vpack.c.b16 %v313, %v313
  %v330 = vpack.c.b16 %v314, %v314
  %v331 = vpack.c.b16 %v315, %v315
  %v332 = vpack.c.b16 %v316, %v316
  %v333 = vpack.c.b16 %v317, %v317
  %v334 = vpack.c.b16 %v318, %v318
  %v335 = vpack.c.b16 %v319, %v319
  %v336 = vpack.c.b16 %v320, %v320
  %v337 = vpack.c.b16 %v321, %v321
  %v338 = vpack.c.b16 %v322, %v322
  %v339 = vpack.c.b16 %v323, %v323
  %v340 = vpack.c.b16 %v324, %v324
  %357 = vst [vmem:[%s3] sm:$0xf] %v325
  %358 = vst [vmem:[%s3 + $0x4] sm:$0xf] %v326
  %359 = vst [vmem:[%s3 + $0x8] sm:$0xf] %v327
  %360 = vst [vmem:[%s3 + $0xc] sm:$0xf] %v328
  %361 = vst [vmem:[%s3 + $0x10] sm:$0xf] %v329
  %362 = vst [vmem:[%s3 + $0x14] sm:$0xf] %v330
  %363 = vst [vmem:[%s3 + $0x18] sm:$0xf] %v331
  %364 = vst [vmem:[%s3 + $0x1c] sm:$0xf] %v332
  %365 = vst [vmem:[%s3 + $0x20] sm:$0xf] %v333
  %366 = vst [vmem:[%s3 + $0x24] sm:$0xf] %v334
  %367 = vst [vmem:[%s3 + $0x28] sm:$0xf] %v335
  %368 = vst [vmem:[%s3 + $0x2c] sm:$0xf] %v336
  %369 = vst [vmem:[%s3 + $0x30] sm:$0xf] %v337
  %370 = vst [vmem:[%s3 + $0x34] sm:$0xf] %v338
  %371 = vst [vmem:[%s3 + $0x38] sm:$0xf] %v339
  %372 = vst [vmem:[%s3 + $0x3c] sm:$0xf] %v340
  %v373 = vld [vmem:[%s2] sm:$0xff]
  %v374 = vld [vmem:[%s2 + $0x8] sm:$0xff]
  %v375 = vld [vmem:[%s2 + $0x10] sm:$0xff]
  %v376 = vld [vmem:[%s2 + $0x18] sm:$0xff]
  %v377 = vld [vmem:[%s2 + $0x20] sm:$0xff]
  %v378 = vld [vmem:[%s2 + $0x28] sm:$0xff]
  %v379 = vld [vmem:[%s2 + $0x30] sm:$0xff]
  %v380 = vld [vmem:[%s2 + $0x38] sm:$0xff]
  %v381 = vld [vmem:[%s2 + $0x40] sm:$0xff]
  %v382 = vld [vmem:[%s2 + $0x48] sm:$0xff]
  %v383 = vld [vmem:[%s2 + $0x50] sm:$0xff]
  %v384 = vld [vmem:[%s2 + $0x58] sm:$0xff]
  %v385 = vld [vmem:[%s2 + $0x60] sm:$0xff]
  %v386 = vld [vmem:[%s2 + $0x68] sm:$0xff]
  %v387 = vld [vmem:[%s2 + $0x70] sm:$0xff]
  %v388 = vld [vmem:[%s2 + $0x78] sm:$0xff]
  %v389 = vld [vmem:[%s2 + $0x80] sm:$0x11]
  %v407 = vunpack.c.l.b16 %v373
  %v408 = vunpack.c.h.b16 %v373
  %v409 = vunpack.c.l.b16 %v374
  %v410 = vunpack.c.h.b16 %v374
  %v411 = vunpack.c.l.b16 %v375
  %v412 = vunpack.c.h.b16 %v375
  %v413 = vunpack.c.l.b16 %v376
  %v414 = vunpack.c.h.b16 %v376
  %v415 = vunpack.c.l.b16 %v377
  %v416 = vunpack.c.h.b16 %v377
  %v417 = vunpack.c.l.b16 %v378
  %v418 = vunpack.c.h.b16 %v378
  %v419 = vunpack.c.l.b16 %v379
  %v420 = vunpack.c.h.b16 %v379
  %v421 = vunpack.c.l.b16 %v380
  %v422 = vunpack.c.h.b16 %v380
  %v423 = vunpack.c.l.b16 %v381
  %v424 = vunpack.c.h.b16 %v381
  %v425 = vunpack.c.l.b16 %v382
  %v426 = vunpack.c.h.b16 %v382
  %v427 = vunpack.c.l.b16 %v383
  %v428 = vunpack.c.h.b16 %v383
  %v429 = vunpack.c.l.b16 %v384
  %v430 = vunpack.c.h.b16 %v384
  %v431 = vunpack.c.l.b16 %v385
  %v432 = vunpack.c.h.b16 %v385
  %v433 = vunpack.c.l.b16 %v386
  %v434 = vunpack.c.h.b16 %v386
  %v435 = vunpack.c.l.b16 %v387
  %v436 = vunpack.c.h.b16 %v387
  %v437 = vunpack.c.l.b16 %v388
  %v438 = vunpack.c.h.b16 %v388
  %v439 = vunpack.c.l.b16 %v389
  %v440 = vunpack.c.h.b16 %v389
  %v441 = vpack.c.b16 %v409, %v407
  %v442 = vpack.c.b16 %v410, %v408
  %v443 = vpack.c.b16 %v413, %v411
  %v444 = vpack.c.b16 %v414, %v412
  %v445 = vpack.c.b16 %v417, %v415
  %v446 = vpack.c.b16 %v418, %v416
  %v447 = vpack.c.b16 %v421, %v419
  %v448 = vpack.c.b16 %v422, %v420
  %v449 = vpack.c.b16 %v425, %v423
  %v450 = vpack.c.b16 %v426, %v424
  %v451 = vpack.c.b16 %v429, %v427
  %v452 = vpack.c.b16 %v430, %v428
  %v453 = vpack.c.b16 %v433, %v431
  %v454 = vpack.c.b16 %v434, %v432
  %v455 = vpack.c.b16 %v437, %v435
  %v456 = vpack.c.b16 %v438, %v436
  %v457 = vpack.c.b16 %v439, %v439
  %v458 = vpack.c.b16 %v440, %v440
  %vm468 = vcmask 7168
  %v470 = vsel %vm468, %v442, 0
  %v473 = vsel %vm468, %v444, 0
  %v476 = vsel %vm468, %v446, 0
  %v479 = vsel %vm468, %v448, 0
  %v482 = vsel %vm468, %v450, 0
  %v485 = vsel %vm468, %v452, 0
  %v488 = vsel %vm468, %v454, 0
  %v491 = vsel %vm468, %v456, 0
  %v494 = vsel %vm468, %v458, 0
  %vm496 = vcmask 1040384
  %v497 = vsel 0, 4294967295, 65535
  %v498 = vsel %vm496, %v497, 0
  %v500 = vand.u32 %v237, %v498
  %502 = vmatprep.subr.bf16.mxu0 0
  %503 = vmatpush1.bf16.msra.mxu0 %v236
  %504 = vmatprep.subr.bf16.mxu0 0
  %505 = vmatpush1.bf16.msra.mxu0 %v235
  %506 = vmatprep.subr.bf16.mxu0 0
  %507 = vmatpush1.bf16.msra.mxu0 %v234
  %508 = vmatprep.subr.bf16.mxu0 0
  %509 = vmatpush1.bf16.msra.mxu0 %v233
  %510 = vmatprep.subr.bf16.mxu0 0
  %511 = vmatpush1.bf16.msra.mxu0 %v232
  %512 = vmatprep.subr.bf16.mxu0 0
  %513 = vmatpush1.bf16.msra.mxu0 %v231
  %514 = vmatprep.subr.bf16.mxu0 0
  %515 = vmatpush1.bf16.msra.mxu0 %v230
  %516 = vmatprep.subr.bf16.mxu0 0
  %517 = vmatpush1.bf16.msra.mxu0 %v229
  %518 = vmatprep.subr.bf16.mxu0 0
  %519 = vmatpush2.bf16.msra.mxu0 0
  %520 = vmatprep.subr.bf16.mxu0 0
  %521 = vmatpush2.bf16.msra.mxu0 0
  %522 = vmatprep.subr.bf16.mxu0 0
  %523 = vmatpush2.bf16.msra.mxu0 0
  %524 = vmatprep.subr.bf16.mxu0 0
  %525 = vmatpush2.bf16.msra.mxu0 0
  %526 = vmatprep.subr.bf16.mxu0 0
  %527 = vmatpush2.bf16.msra.mxu0 0
  %528 = vmatprep.subr.bf16.mxu0 0
  %529 = vmatpush2.bf16.msra.mxu0 0
  %530 = vmatprep.subr.bf16.mxu0 0
  %531 = vmatpush2.bf16.msra.mxu0 0
  %532 = vmatprep.subr.bf16.mxu0 0
  %533 = vmatpush2.bf16.msra.mxu0 %v500
  %534 = vmatprep.mubr.bf16.mxu0 %v470
  %535 = vmatmul.mubr.bf16.gmra.mxu0 %v441
  %v536 = vpop.f32.mrf.mxu0
  %v537 = vadd.f32 0.0, %v536
  %v538 = vpop.f32.mrf.mxu0
  %v539 = vpop.f32.mrf.mxu0
  %v540 = vadd.f32 0.0, %v539
  %v541 = vpop.f32.mrf.mxu0
  %542 = vmatprep.mubr.bf16.mxu0 %v473
  %543 = vmatmul.mubr.bf16.gmra.mxu0 %v443
  %v544 = vpop.f32.mrf.mxu0
  %v545 = vadd.f32 0.0, %v544
  %v546 = vpop.f32.mrf.mxu0
  %v547 = vpop.f32.mrf.mxu0
  %v548 = vadd.f32 0.0, %v547
  %v549 = vpop.f32.mrf.mxu0
  %550 = vmatprep.mubr.bf16.mxu0 %v476
  %551 = vmatmul.mubr.bf16.gmra.mxu0 %v445
  %v552 = vpop.f32.mrf.mxu0
  %v553 = vadd.f32 0.0, %v552
  %v554 = vpop.f32.mrf.mxu0
  %v555 = vpop.f32.mrf.mxu0
  %v556 = vadd.f32 0.0, %v555
  %v557 = vpop.f32.mrf.mxu0
  %558 = vmatprep.mubr.bf16.mxu0 %v479
  %559 = vmatmul.mubr.bf16.gmra.mxu0 %v447
  %v560 = vpop.f32.mrf.mxu0
  %v561 = vadd.f32 0.0, %v560
  %v562 = vpop.f32.mrf.mxu0
  %v563 = vpop.f32.mrf.mxu0
  %v564 = vadd.f32 0.0, %v563
  %v565 = vpop.f32.mrf.mxu0
  %566 = vmatprep.mubr.bf16.mxu0 %v482
  %567 = vmatmul.mubr.bf16.gmra.mxu0 %v449
  %v568 = vpop.f32.mrf.mxu0
  %v569 = vadd.f32 0.0, %v568
  %v570 = vpop.f32.mrf.mxu0
  %v571 = vpop.f32.mrf.mxu0
  %v572 = vadd.f32 0.0, %v571
  %v573 = vpop.f32.mrf.mxu0
  %574 = vmatprep.mubr.bf16.mxu0 %v485
  %575 = vmatmul.mubr.bf16.gmra.mxu0 %v451
  %v576 = vpop.f32.mrf.mxu0
  %v577 = vadd.f32 0.0, %v576
  %v578 = vpop.f32.mrf.mxu0
  %v579 = vpop.f32.mrf.mxu0
  %v580 = vadd.f32 0.0, %v579
  %v581 = vpop.f32.mrf.mxu0
  %582 = vmatprep.mubr.bf16.mxu0 %v488
  %583 = vmatmul.mubr.bf16.gmra.mxu0 %v453
  %v584 = vpop.f32.mrf.mxu0
  %v585 = vadd.f32 0.0, %v584
  %v586 = vpop.f32.mrf.mxu0
  %v587 = vpop.f32.mrf.mxu0
  %v588 = vadd.f32 0.0, %v587
  %v589 = vpop.f32.mrf.mxu0
  %590 = vmatprep.mubr.bf16.mxu0 %v491
  %591 = vmatmul.mubr.bf16.gmra.mxu0 %v455
  %v592 = vpop.f32.mrf.mxu0
  %v593 = vadd.f32 0.0, %v592
  %v594 = vpop.f32.mrf.mxu0
  %v595 = vpop.f32.mrf.mxu0
  %v596 = vadd.f32 0.0, %v595
  %v597 = vpop.f32.mrf.mxu0
  %598 = vmatprep.mubr.bf16.mxu0 %v494
  %599 = vmatmul.mubr.bf16.gmra.mxu0 %v457
  %v600 = vpop.f32.mrf.mxu0
  %v601 = vadd.f32 0.0, %v600
  %v602 = vpop.f32.mrf.mxu0
  %v603 = vpop.f32.mrf.mxu0
  %v604 = vpop.f32.mrf.mxu0
  %605 = vdwg.mxu0
  %v606 = vmax.f32 %v537, 0.0
  %v607 = vmax.f32 %v540, 0.0
  %v608 = vmax.f32 %v545, 0.0
  %v609 = vmax.f32 %v548, 0.0
  %v610 = vmax.f32 %v553, 0.0
  %v611 = vmax.f32 %v556, 0.0
  %v612 = vmax.f32 %v561, 0.0
  %v613 = vmax.f32 %v564, 0.0
  %v614 = vmax.f32 %v569, 0.0
  %v615 = vmax.f32 %v572, 0.0
  %v616 = vmax.f32 %v577, 0.0
  %v617 = vmax.f32 %v580, 0.0
  %v618 = vmax.f32 %v585, 0.0
  %v619 = vmax.f32 %v588, 0.0
  %v620 = vmax.f32 %v593, 0.0
  %v621 = vmax.f32 %v596, 0.0
  %v622 = vmax.f32 %v601, 0.0
  %v623 = vpack.c.bf16 %v607, %v606
  %v624 = vpack.c.bf16 %v609, %v608
  %v625 = vpack.c.bf16 %v611, %v610
  %v626 = vpack.c.bf16 %v613, %v612
  %v627 = vpack.c.bf16 %v615, %v614
  %v628 = vpack.c.bf16 %v617, %v616
  %v629 = vpack.c.bf16 %v619, %v618
  %v630 = vpack.c.bf16 %v621, %v620
  %v631 = vpack.c.bf16 %v622, %v622
  %v632 = vmul.f32 %v606, %v606
  %v633 = vmul.f32 %v607, %v607
  %v634 = vmul.f32 %v608, %v608
  %v635 = vmul.f32 %v609, %v609
  %v636 = vmul.f32 %v610, %v610
  %v637 = vmul.f32 %v611, %v611
  %v638 = vmul.f32 %v612, %v612
  %v639 = vmul.f32 %v613, %v613
  %v640 = vmul.f32 %v614, %v614
  %v641 = vmul.f32 %v615, %v615
  %v642 = vmul.f32 %v616, %v616
  %v643 = vmul.f32 %v617, %v617
  %v644 = vmul.f32 %v618, %v618
  %v645 = vmul.f32 %v619, %v619
  %v646 = vmul.f32 %v620, %v620
  %v647 = vmul.f32 %v621, %v621
  %v648 = vadd.f32 %v632, %v633
  %v649 = vadd.f32 %v648, %v634
  %v650 = vadd.f32 %v649, %v635
  %v651 = vadd.f32 %v650, %v636
  %v652 = vadd.f32 %v651, %v637
  %v653 = vadd.f32 %v652, %v638
  %v654 = vadd.f32 %v653, %v639
  %v655 = vadd.f32 %v654, %v640
  %v656 = vadd.f32 %v655, %v641
  %v657 = vadd.f32 %v656, %v642
  %v658 = vadd.f32 %v657, %v643
  %v659 = vadd.f32 %v658, %v644
  %v660 = vadd.f32 %v659, %v645
  %v661 = vadd.f32 %v660, %v646
  %v662 = vadd.f32 %v661, %v647
  %v663 = vrot.slane %v662, 4
  %v664 = vadd.f32 %v662, %v663
  %v665 = vrot.slane %v664, 2
  %v666 = vadd.f32 %v664, %v665
  %v667 = vrot.slane %v666, 1
  %v668 = vadd.f32 %v666, %v667
  %v669 = vadd.f32 %v668, 1e-05
  %v670 = vrsqrt.pop %v669
  %v671 = vmul.f32 %v606, %v670
  %v672 = vmul.f32 %v607, %v670
  %v673 = vmul.f32 %v608, %v670
  %v674 = vmul.f32 %v609, %v670
  %v675 = vmul.f32 %v610, %v670
  %v676 = vmul.f32 %v611, %v670
  %v677 = vmul.f32 %v612, %v670
  %v678 = vmul.f32 %v613, %v670
  %v679 = vmul.f32 %v614, %v670
  %v680 = vmul.f32 %v615, %v670
  %v681 = vmul.f32 %v616, %v670
  %v682 = vmul.f32 %v617, %v670
  %v683 = vmul.f32 %v618, %v670
  %v684 = vmul.f32 %v619, %v670
  %v685 = vmul.f32 %v620, %v670
  %v686 = vmul.f32 %v621, %v670
  %v687 = vpack.c.bf16 %v672, %v671
  %v688 = vpack.c.bf16 %v674, %v673
  %v689 = vpack.c.bf16 %v676, %v675
  %v690 = vpack.c.bf16 %v678, %v677
  %v691 = vpack.c.bf16 %v680, %v679
  %v692 = vpack.c.bf16 %v682, %v681
  %v693 = vpack.c.bf16 %v684, %v683
  %v694 = vpack.c.bf16 %v686, %v685
  %v703 = vunpack.c.l.b16 %v687
  %v704 = vunpack.c.h.b16 %v687
  %v705 = vunpack.c.l.b16 %v688
  %v706 = vunpack.c.h.b16 %v688
  %v707 = vunpack.c.l.b16 %v689
  %v708 = vunpack.c.h.b16 %v689
  %v709 = vunpack.c.l.b16 %v690
  %v710 = vunpack.c.h.b16 %v690
  %v711 = vunpack.c.l.b16 %v691
  %v712 = vunpack.c.h.b16 %v691
  %v713 = vunpack.c.l.b16 %v692
  %v714 = vunpack.c.h.b16 %v692
  %v715 = vunpack.c.l.b16 %v693
  %v716 = vunpack.c.h.b16 %v693
  %v717 = vunpack.c.l.b16 %v694
  %v718 = vunpack.c.h.b16 %v694
  %v719 = vpack.c.b16 %v703, %v703
  %v720 = vpack.c.b16 %v704, %v704
  %v721 = vpack.c.b16 %v705, %v705
  %v722 = vpack.c.b16 %v706, %v706
  %v723 = vpack.c.b16 %v707, %v707
  %v724 = vpack.c.b16 %v708, %v708
  %v725 = vpack.c.b16 %v709, %v709
  %v726 = vpack.c.b16 %v710, %v710
  %v727 = vpack.c.b16 %v711, %v711
  %v728 = vpack.c.b16 %v712, %v712
  %v729 = vpack.c.b16 %v713, %v713
  %v730 = vpack.c.b16 %v714, %v714
  %v731 = vpack.c.b16 %v715, %v715
  %v732 = vpack.c.b16 %v716, %v716
  %v733 = vpack.c.b16 %v717, %v717
  %v734 = vpack.c.b16 %v718, %v718
  %s751 = scalar_lea.vmem %s3, 64
  %752 = vst [vmem:[%s751] sm:$0xf] %v719
  %753 = vst [vmem:[%s751 + $0x4] sm:$0xf] %v720
  %754 = vst [vmem:[%s751 + $0x8] sm:$0xf] %v721
  %755 = vst [vmem:[%s751 + $0xc] sm:$0xf] %v722
  %756 = vst [vmem:[%s751 + $0x10] sm:$0xf] %v723
  %757 = vst [vmem:[%s751 + $0x14] sm:$0xf] %v724
  %758 = vst [vmem:[%s751 + $0x18] sm:$0xf] %v725
  %759 = vst [vmem:[%s751 + $0x1c] sm:$0xf] %v726
  %760 = vst [vmem:[%s751 + $0x20] sm:$0xf] %v727
  %761 = vst [vmem:[%s751 + $0x24] sm:$0xf] %v728
  %762 = vst [vmem:[%s751 + $0x28] sm:$0xf] %v729
  %763 = vst [vmem:[%s751 + $0x2c] sm:$0xf] %v730
  %764 = vst [vmem:[%s751 + $0x30] sm:$0xf] %v731
  %765 = vst [vmem:[%s751 + $0x34] sm:$0xf] %v732
  %766 = vst [vmem:[%s751 + $0x38] sm:$0xf] %v733
  %767 = vst [vmem:[%s751 + $0x3c] sm:$0xf] %v734
  %s768 = scalar_lea.vmem %s2, 136
  %v769 = vld [vmem:[%s768] sm:$0xff]
  %v770 = vld [vmem:[%s768 + $0x8] sm:$0xff]
  %v771 = vld [vmem:[%s768 + $0x10] sm:$0xff]
  %v772 = vld [vmem:[%s768 + $0x18] sm:$0xff]
  %v773 = vld [vmem:[%s768 + $0x20] sm:$0xff]
  %v774 = vld [vmem:[%s768 + $0x28] sm:$0xff]
  %v775 = vld [vmem:[%s768 + $0x30] sm:$0xff]
  %v776 = vld [vmem:[%s768 + $0x38] sm:$0xff]
  %v777 = vld [vmem:[%s768 + $0x40] sm:$0xff]
  %v778 = vld [vmem:[%s768 + $0x48] sm:$0xff]
  %v779 = vld [vmem:[%s768 + $0x50] sm:$0xff]
  %v780 = vld [vmem:[%s768 + $0x58] sm:$0xff]
  %v781 = vld [vmem:[%s768 + $0x60] sm:$0xff]
  %v782 = vld [vmem:[%s768 + $0x68] sm:$0xff]
  %v783 = vld [vmem:[%s768 + $0x70] sm:$0xff]
  %v784 = vld [vmem:[%s768 + $0x78] sm:$0xff]
  %v785 = vld [vmem:[%s768 + $0x80] sm:$0x11]
  %v803 = vunpack.c.l.b16 %v769
  %v804 = vunpack.c.h.b16 %v769
  %v805 = vunpack.c.l.b16 %v770
  %v806 = vunpack.c.h.b16 %v770
  %v807 = vunpack.c.l.b16 %v771
  %v808 = vunpack.c.h.b16 %v771
  %v809 = vunpack.c.l.b16 %v772
  %v810 = vunpack.c.h.b16 %v772
  %v811 = vunpack.c.l.b16 %v773
  %v812 = vunpack.c.h.b16 %v773
  %v813 = vunpack.c.l.b16 %v774
  %v814 = vunpack.c.h.b16 %v774
  %v815 = vunpack.c.l.b16 %v775
  %v816 = vunpack.c.h.b16 %v775
  %v817 = vunpack.c.l.b16 %v776
  %v818 = vunpack.c.h.b16 %v776
  %v819 = vunpack.c.l.b16 %v777
  %v820 = vunpack.c.h.b16 %v777
  %v821 = vunpack.c.l.b16 %v778
  %v822 = vunpack.c.h.b16 %v778
  %v823 = vunpack.c.l.b16 %v779
  %v824 = vunpack.c.h.b16 %v779
  %v825 = vunpack.c.l.b16 %v780
  %v826 = vunpack.c.h.b16 %v780
  %v827 = vunpack.c.l.b16 %v781
  %v828 = vunpack.c.h.b16 %v781
  %v829 = vunpack.c.l.b16 %v782
  %v830 = vunpack.c.h.b16 %v782
  %v831 = vunpack.c.l.b16 %v783
  %v832 = vunpack.c.h.b16 %v783
  %v833 = vunpack.c.l.b16 %v784
  %v834 = vunpack.c.h.b16 %v784
  %v835 = vunpack.c.l.b16 %v785
  %v836 = vunpack.c.h.b16 %v785
  %v837 = vpack.c.b16 %v805, %v803
  %v838 = vpack.c.b16 %v806, %v804
  %v839 = vpack.c.b16 %v809, %v807
  %v840 = vpack.c.b16 %v810, %v808
  %v841 = vpack.c.b16 %v813, %v811
  %v842 = vpack.c.b16 %v814, %v812
  %v843 = vpack.c.b16 %v817, %v815
  %v844 = vpack.c.b16 %v818, %v816
  %v845 = vpack.c.b16 %v821, %v819
  %v846 = vpack.c.b16 %v822, %v820
  %v847 = vpack.c.b16 %v825, %v823
  %v848 = vpack.c.b16 %v826, %v824
  %v849 = vpack.c.b16 %v829, %v827
  %v850 = vpack.c.b16 %v830, %v828
  %v851 = vpack.c.b16 %v833, %v831
  %v852 = vpack.c.b16 %v834, %v832
  %v853 = vpack.c.b16 %v835, %v835
  %v854 = vpack.c.b16 %v836, %v836
  %v865 = vsel %vm468, %v838, 0
  %v868 = vsel %vm468, %v840, 0
  %v871 = vsel %vm468, %v842, 0
  %v874 = vsel %vm468, %v844, 0
  %v877 = vsel %vm468, %v846, 0
  %v880 = vsel %vm468, %v848, 0
  %v883 = vsel %vm468, %v850, 0
  %v886 = vsel %vm468, %v852, 0
  %v889 = vsel %vm468, %v854, 0
  %v892 = vand.u32 %v631, %v498
  %894 = vmatprep.subr.bf16.mxu0 0
  %895 = vmatpush1.bf16.msra.mxu0 %v630
  %896 = vmatprep.subr.bf16.mxu0 0
  %897 = vmatpush1.bf16.msra.mxu0 %v629
  %898 = vmatprep.subr.bf16.mxu0 0
  %899 = vmatpush1.bf16.msra.mxu0 %v628
  %900 = vmatprep.subr.bf16.mxu0 0
  %901 = vmatpush1.bf16.msra.mxu0 %v627
  %902 = vmatprep.subr.bf16.mxu0 0
  %903 = vmatpush1.bf16.msra.mxu0 %v626
  %904 = vmatprep.subr.bf16.mxu0 0
  %905 = vmatpush1.bf16.msra.mxu0 %v625
  %906 = vmatprep.subr.bf16.mxu0 0
  %907 = vmatpush1.bf16.msra.mxu0 %v624
  %908 = vmatprep.subr.bf16.mxu0 0
  %909 = vmatpush1.bf16.msra.mxu0 %v623
  %910 = vmatprep.subr.bf16.mxu0 0
  %911 = vmatpush2.bf16.msra.mxu0 0
  %912 = vmatprep.subr.bf16.mxu0 0
  %913 = vmatpush2.bf16.msra.mxu0 0
  %914 = vmatprep.subr.bf16.mxu0 0
  %915 = vmatpush2.bf16.msra.mxu0 0
  %916 = vmatprep.subr.bf16.mxu0 0
  %917 = vmatpush2.bf16.msra.mxu0 0
  %918 = vmatprep.subr.bf16.mxu0 0
  %919 = vmatpush2.bf16.msra.mxu0 0
  %920 = vmatprep.subr.bf16.mxu0 0
  %921 = vmatpush2.bf16.msra.mxu0 0
  %922 = vmatprep.subr.bf16.mxu0 0
  %923 = vmatpush2.bf16.msra.mxu0 0
  %924 = vmatprep.subr.bf16.mxu0 0
  %925 = vmatpush2.bf16.msra.mxu0 %v892
  %926 = vmatprep.mubr.bf16.mxu0 %v865
  %927 = vmatmul.mubr.bf16.gmra.mxu0 %v837
  %v928 = vpop.f32.mrf.mxu0
  %v929 = vadd.f32 0.0, %v928
  %v930 = vpop.f32.mrf.mxu0
  %v931 = vpop.f32.mrf.mxu0
  %v932 = vadd.f32 0.0, %v931
  %v933 = vpop.f32.mrf.mxu0
  %934 = vmatprep.mubr.bf16.mxu0 %v868
  %935 = vmatmul.mubr.bf16.gmra.mxu0 %v839
  %v936 = vpop.f32.mrf.mxu0
  %v937 = vadd.f32 0.0, %v936
  %v938 = vpop.f32.mrf.mxu0
  %v939 = vpop.f32.mrf.mxu0
  %v940 = vadd.f32 0.0, %v939
  %v941 = vpop.f32.mrf.mxu0
  %942 = vmatprep.mubr.bf16.mxu0 %v871
  %943 = vmatmul.mubr.bf16.gmra.mxu0 %v841
  %v944 = vpop.f32.mrf.mxu0
  %v945 = vadd.f32 0.0, %v944
  %v946 = vpop.f32.mrf.mxu0
  %v947 = vpop.f32.mrf.mxu0
  %v948 = vadd.f32 0.0, %v947
  %v949 = vpop.f32.mrf.mxu0
  %950 = vmatprep.mubr.bf16.mxu0 %v874
  %951 = vmatmul.mubr.bf16.gmra.mxu0 %v843
  %v952 = vpop.f32.mrf.mxu0
  %v953 = vadd.f32 0.0, %v952
  %v954 = vpop.f32.mrf.mxu0
  %v955 = vpop.f32.mrf.mxu0
  %v956 = vadd.f32 0.0, %v955
  %v957 = vpop.f32.mrf.mxu0
  %958 = vmatprep.mubr.bf16.mxu0 %v877
  %959 = vmatmul.mubr.bf16.gmra.mxu0 %v845
  %v960 = vpop.f32.mrf.mxu0
  %v961 = vadd.f32 0.0, %v960
  %v962 = vpop.f32.mrf.mxu0
  %v963 = vpop.f32.mrf.mxu0
  %v964 = vadd.f32 0.0, %v963
  %v965 = vpop.f32.mrf.mxu0
  %966 = vmatprep.mubr.bf16.mxu0 %v880
  %967 = vmatmul.mubr.bf16.gmra.mxu0 %v847
  %v968 = vpop.f32.mrf.mxu0
  %v969 = vadd.f32 0.0, %v968
  %v970 = vpop.f32.mrf.mxu0
  %v971 = vpop.f32.mrf.mxu0
  %v972 = vadd.f32 0.0, %v971
  %v973 = vpop.f32.mrf.mxu0
  %974 = vmatprep.mubr.bf16.mxu0 %v883
  %975 = vmatmul.mubr.bf16.gmra.mxu0 %v849
  %v976 = vpop.f32.mrf.mxu0
  %v977 = vadd.f32 0.0, %v976
  %v978 = vpop.f32.mrf.mxu0
  %v979 = vpop.f32.mrf.mxu0
  %v980 = vadd.f32 0.0, %v979
  %v981 = vpop.f32.mrf.mxu0
  %982 = vmatprep.mubr.bf16.mxu0 %v886
  %983 = vmatmul.mubr.bf16.gmra.mxu0 %v851
  %v984 = vpop.f32.mrf.mxu0
  %v985 = vadd.f32 0.0, %v984
  %v986 = vpop.f32.mrf.mxu0
  %v987 = vpop.f32.mrf.mxu0
  %v988 = vadd.f32 0.0, %v987
  %v989 = vpop.f32.mrf.mxu0
  %990 = vmatprep.mubr.bf16.mxu0 %v889
  %991 = vmatmul.mubr.bf16.gmra.mxu0 %v853
  %v992 = vpop.f32.mrf.mxu0
  %v993 = vpop.f32.mrf.mxu0
  %v994 = vpop.f32.mrf.mxu0
  %v995 = vpop.f32.mrf.mxu0
  %996 = vdwg.mxu0
  %v997 = vmax.f32 %v929, 0.0
  %v998 = vmax.f32 %v932, 0.0
  %v999 = vmax.f32 %v937, 0.0
  %v1000 = vmax.f32 %v940, 0.0
  %v1001 = vmax.f32 %v945, 0.0
  %v1002 = vmax.f32 %v948, 0.0
  %v1003 = vmax.f32 %v953, 0.0
  %v1004 = vmax.f32 %v956, 0.0
  %v1005 = vmax.f32 %v961, 0.0
  %v1006 = vmax.f32 %v964, 0.0
  %v1007 = vmax.f32 %v969, 0.0
  %v1008 = vmax.f32 %v972, 0.0
  %v1009 = vmax.f32 %v977, 0.0
  %v1010 = vmax.f32 %v980, 0.0
  %v1011 = vmax.f32 %v985, 0.0
  %v1012 = vmax.f32 %v988, 0.0
  %v1013 = vmul.f32 %v997, %v997
  %v1014 = vmul.f32 %v998, %v998
  %v1015 = vmul.f32 %v999, %v999
  %v1016 = vmul.f32 %v1000, %v1000
  %v1017 = vmul.f32 %v1001, %v1001
  %v1018 = vmul.f32 %v1002, %v1002
  %v1019 = vmul.f32 %v1003, %v1003
  %v1020 = vmul.f32 %v1004, %v1004
  %v1021 = vmul.f32 %v1005, %v1005
  %v1022 = vmul.f32 %v1006, %v1006
  %v1023 = vmul.f32 %v1007, %v1007
  %v1024 = vmul.f32 %v1008, %v1008
  %v1025 = vmul.f32 %v1009, %v1009
  %v1026 = vmul.f32 %v1010, %v1010
  %v1027 = vmul.f32 %v1011, %v1011
  %v1028 = vmul.f32 %v1012, %v1012
  %v1029 = vadd.f32 %v1013, %v1014
  %v1030 = vadd.f32 %v1029, %v1015
  %v1031 = vadd.f32 %v1030, %v1016
  %v1032 = vadd.f32 %v1031, %v1017
  %v1033 = vadd.f32 %v1032, %v1018
  %v1034 = vadd.f32 %v1033, %v1019
  %v1035 = vadd.f32 %v1034, %v1020
  %v1036 = vadd.f32 %v1035, %v1021
  %v1037 = vadd.f32 %v1036, %v1022
  %v1038 = vadd.f32 %v1037, %v1023
  %v1039 = vadd.f32 %v1038, %v1024
  %v1040 = vadd.f32 %v1039, %v1025
  %v1041 = vadd.f32 %v1040, %v1026
  %v1042 = vadd.f32 %v1041, %v1027
  %v1043 = vadd.f32 %v1042, %v1028
  %v1044 = vrot.slane %v1043, 4
  %v1045 = vadd.f32 %v1043, %v1044
  %v1046 = vrot.slane %v1045, 2
  %v1047 = vadd.f32 %v1045, %v1046
  %v1048 = vrot.slane %v1047, 1
  %v1049 = vadd.f32 %v1047, %v1048
  %v1050 = vadd.f32 %v1049, 1e-05
  %v1051 = vrsqrt.pop %v1050
  %v1052 = vmul.f32 %v997, %v1051
  %v1053 = vmul.f32 %v998, %v1051
  %v1054 = vmul.f32 %v999, %v1051
  %v1055 = vmul.f32 %v1000, %v1051
  %v1056 = vmul.f32 %v1001, %v1051
  %v1057 = vmul.f32 %v1002, %v1051
  %v1058 = vmul.f32 %v1003, %v1051
  %v1059 = vmul.f32 %v1004, %v1051
  %v1060 = vmul.f32 %v1005, %v1051
  %v1061 = vmul.f32 %v1006, %v1051
  %v1062 = vmul.f32 %v1007, %v1051
  %v1063 = vmul.f32 %v1008, %v1051
  %v1064 = vmul.f32 %v1009, %v1051
  %v1065 = vmul.f32 %v1010, %v1051
  %v1066 = vmul.f32 %v1011, %v1051
  %v1067 = vmul.f32 %v1012, %v1051
  %v1068 = vpack.c.bf16 %v1053, %v1052
  %v1069 = vpack.c.bf16 %v1055, %v1054
  %v1070 = vpack.c.bf16 %v1057, %v1056
  %v1071 = vpack.c.bf16 %v1059, %v1058
  %v1072 = vpack.c.bf16 %v1061, %v1060
  %v1073 = vpack.c.bf16 %v1063, %v1062
  %v1074 = vpack.c.bf16 %v1065, %v1064
  %v1075 = vpack.c.bf16 %v1067, %v1066
  %v1084 = vunpack.c.l.b16 %v1068
  %v1085 = vunpack.c.h.b16 %v1068
  %v1086 = vunpack.c.l.b16 %v1069
  %v1087 = vunpack.c.h.b16 %v1069
  %v1088 = vunpack.c.l.b16 %v1070
  %v1089 = vunpack.c.h.b16 %v1070
  %v1090 = vunpack.c.l.b16 %v1071
  %v1091 = vunpack.c.h.b16 %v1071
  %v1092 = vunpack.c.l.b16 %v1072
  %v1093 = vunpack.c.h.b16 %v1072
  %v1094 = vunpack.c.l.b16 %v1073
  %v1095 = vunpack.c.h.b16 %v1073
  %v1096 = vunpack.c.l.b16 %v1074
  %v1097 = vunpack.c.h.b16 %v1074
  %v1098 = vunpack.c.l.b16 %v1075
  %v1099 = vunpack.c.h.b16 %v1075
  %v1100 = vpack.c.b16 %v1084, %v1084
  %v1101 = vpack.c.b16 %v1085, %v1085
  %v1102 = vpack.c.b16 %v1086, %v1086
  %v1103 = vpack.c.b16 %v1087, %v1087
  %v1104 = vpack.c.b16 %v1088, %v1088
  %v1105 = vpack.c.b16 %v1089, %v1089
  %v1106 = vpack.c.b16 %v1090, %v1090
  %v1107 = vpack.c.b16 %v1091, %v1091
  %v1108 = vpack.c.b16 %v1092, %v1092
  %v1109 = vpack.c.b16 %v1093, %v1093
  %v1110 = vpack.c.b16 %v1094, %v1094
  %v1111 = vpack.c.b16 %v1095, %v1095
  %v1112 = vpack.c.b16 %v1096, %v1096
  %v1113 = vpack.c.b16 %v1097, %v1097
  %v1114 = vpack.c.b16 %v1098, %v1098
  %v1115 = vpack.c.b16 %v1099, %v1099
  %s1132 = scalar_lea.vmem %s3, 128
  %1133 = vst [vmem:[%s1132] sm:$0xf] %v1100
  %1134 = vst [vmem:[%s1132 + $0x4] sm:$0xf] %v1101
  %1135 = vst [vmem:[%s1132 + $0x8] sm:$0xf] %v1102
  %1136 = vst [vmem:[%s1132 + $0xc] sm:$0xf] %v1103
  %1137 = vst [vmem:[%s1132 + $0x10] sm:$0xf] %v1104
  %1138 = vst [vmem:[%s1132 + $0x14] sm:$0xf] %v1105
  %1139 = vst [vmem:[%s1132 + $0x18] sm:$0xf] %v1106
  %1140 = vst [vmem:[%s1132 + $0x1c] sm:$0xf] %v1107
  %1141 = vst [vmem:[%s1132 + $0x20] sm:$0xf] %v1108
  %1142 = vst [vmem:[%s1132 + $0x24] sm:$0xf] %v1109
  %1143 = vst [vmem:[%s1132 + $0x28] sm:$0xf] %v1110
  %1144 = vst [vmem:[%s1132 + $0x2c] sm:$0xf] %v1111
  %1145 = vst [vmem:[%s1132 + $0x30] sm:$0xf] %v1112
  %1146 = vst [vmem:[%s1132 + $0x34] sm:$0xf] %v1113
  %1147 = vst [vmem:[%s1132 + $0x38] sm:$0xf] %v1114
  %1148 = vst [vmem:[%s1132 + $0x3c] sm:$0xf] %v1115
  // Predicated region
  $region14: #{forward.9} parent=0 // pred_check
    _
  $region15: #{forward.9} parent=0 // pred_check_branch
    %1150 = sbr.rel (0) target = $region17
  $region16: #{forward.9} parent=0 // pred_region
    _
  $region17: #{forward.9} parent=0 // pred_fallthru
    _
  // Predicated region
  $region18: #{forward.9} parent=0 // pred_check
    _
  $region19: #{forward.9} parent=0 // pred_check_branch
    %1152 = sbr.rel (0) target = $region21
  $region20: #{forward.9} parent=0 // pred_region
    _
  $region21: #{forward.9} parent=0 // pred_fallthru
    _

// kernel: forward.12
$region0: #{forward.12}
  #allocation0 [shape = 'u32[]', space=smem, size = 0x4, offset = 0x4, fixed_abs, tag = 'smem constant byte address 0x4 - core index']
  #allocation1 [shape = 'u32[144,128]{1,0:T(1,128)}', space=vmem, size = 0x12000, scoped, tag = 'internal scratch']
  %s0 = inlined_call_operand.vmem [shape: bf16[3,128,128], index: 0, kind: input, shape index: {}]
  %s1 = inlined_call_operand.vmem [shape: f32[2,1,1,4], index: 1, kind: input, shape index: {}]
  %s2 = inlined_call_operand.vmem [shape: f32[2,3,4], index: 2, kind: output, shape index: {}]
  %s3 = sld [smem:[#allocation0]]
  $region18: #{forward.12} parent=0
    _
  %s5 = ssub.s32 1, %s3
  %s6 = scalar_select 0, %s5, %s3
  // Predicated region
  $region2: #{forward.12} parent=0 // pred_check
    _
  $region3: #{forward.12} parent=0 // pred_check_branch
    %8 = sbr.rel (0) target = $region5
  $region4: #{forward.12} parent=0 // pred_region
    _
  $region5: #{forward.12} parent=0 // pred_fallthru
    _
  // Predicated region
  $region6: #{forward.12} parent=0 // pred_check
    _
  $region7: #{forward.12} parent=0 // pred_check_branch
    %10 = sbr.rel (0) target = $region9
  $region8: #{forward.12} parent=0 // pred_region
    _
  $region9: #{forward.12} parent=0 // pred_fallthru
    _
  %v12 = vld [vmem:[%s0] sm:$0xf]
  %v13 = vld [vmem:[%s0 + $0x4] sm:$0xf]
  %v14 = vld [vmem:[%s0 + $0x8] sm:$0xf]
  %v15 = vld [vmem:[%s0 + $0xc] sm:$0xf]
  %v16 = vld [vmem:[%s0 + $0x10] sm:$0xf]
  %v17 = vld [vmem:[%s0 + $0x14] sm:$0xf]
  %v18 = vld [vmem:[%s0 + $0x18] sm:$0xf]
  %v19 = vld [vmem:[%s0 + $0x1c] sm:$0xf]
  %v20 = vld [vmem:[%s0 + $0x20] sm:$0xf]
  %v21 = vld [vmem:[%s0 + $0x24] sm:$0xf]
  %v22 = vld [vmem:[%s0 + $0x28] sm:$0xf]
  %v23 = vld [vmem:[%s0 + $0x2c] sm:$0xf]
  %v24 = vld [vmem:[%s0 + $0x30] sm:$0xf]
  %v25 = vld [vmem:[%s0 + $0x34] sm:$0xf]
  %v26 = vld [vmem:[%s0 + $0x38] sm:$0xf]
  %v27 = vld [vmem:[%s0 + $0x3c] sm:$0xf]
  %v28 = vld [vmem:[%s0 + $0x40] sm:$0xf]
  %v29 = vld [vmem:[%s0 + $0x44] sm:$0xf]
  %v30 = vld [vmem:[%s0 + $0x48] sm:$0xf]
  %v31 = vld [vmem:[%s0 + $0x4c] sm:$0xf]
  %v32 = vld [vmem:[%s0 + $0x50] sm:$0xf]
  %v33 = vld [vmem:[%s0 + $0x54] sm:$0xf]
  %v34 = vld [vmem:[%s0 + $0x58] sm:$0xf]
  %v35 = vld [vmem:[%s0 + $0x5c] sm:$0xf]
  %v36 = vld [vmem:[%s0 + $0x60] sm:$0xf]
  %v37 = vld [vmem:[%s0 + $0x64] sm:$0xf]
  %v38 = vld [vmem:[%s0 + $0x68] sm:$0xf]
  %v39 = vld [vmem:[%s0 + $0x6c] sm:$0xf]
  %v40 = vld [vmem:[%s0 + $0x70] sm:$0xf]
  %v41 = vld [vmem:[%s0 + $0x74] sm:$0xf]
  %v42 = vld [vmem:[%s0 + $0x78] sm:$0xf]
  %v43 = vld [vmem:[%s0 + $0x7c] sm:$0xf]
  %v44 = vld [vmem:[%s0 + $0x80] sm:$0xf]
  %v45 = vld [vmem:[%s0 + $0x84] sm:$0xf]
  %v46 = vld [vmem:[%s0 + $0x88] sm:$0xf]
  %v47 = vld [vmem:[%s0 + $0x8c] sm:$0xf]
  %v48 = vld [vmem:[%s0 + $0x90] sm:$0xf]
  %v49 = vld [vmem:[%s0 + $0x94] sm:$0xf]
  %v50 = vld [vmem:[%s0 + $0x98] sm:$0xf]
  %v51 = vld [vmem:[%s0 + $0x9c] sm:$0xf]
  %v52 = vld [vmem:[%s0 + $0xa0] sm:$0xf]
  %v53 = vld [vmem:[%s0 + $0xa4] sm:$0xf]
  %v54 = vld [vmem:[%s0 + $0xa8] sm:$0xf]
  %v55 = vld [vmem:[%s0 + $0xac] sm:$0xf]
  %v56 = vld [vmem:[%s0 + $0xb0] sm:$0xf]
  %v57 = vld [vmem:[%s0 + $0xb4] sm:$0xf]
  %v58 = vld [vmem:[%s0 + $0xb8] sm:$0xf]
  %v59 = vld [vmem:[%s0 + $0xbc] sm:$0xf]
  %v60 = vld [vmem:[%s1] sm:$0x1]
  %vm61 = vcmp.gt.f32.partialorder %v60, 0.0
  %v62 = vsel %vm61, 1, 0
  %v63 = vcvt.s32.f32 %v62
  %vm64 = vcmask 24576
  %v65 = vsel %vm64, %v63, 0.0
  %66 = vadd.xlane.f32.xlu0 %v65
  %v67 = vpop.xlane.xlu0 %66
  %v68 = vmul.f32 %v60, %v63
  %v69 = vsel %vm64, %v68, 0.0
  %70 = vadd.xlane.f32.xlu0 %v69
  %v71 = vpop.xlane.xlu0 %70
  %v72 = vmax.f32 %v67, 1.0
  %v73 = vrcp.pop %v72
  %v74 = vmul.f32 %v71, %v73
  %vm75 = vcmp.ge.f32.partialorder %v60, %v74
  %vm76 = vcmp.gt.f32.partialorder %v67, 0.0
  %v77 = vsel %vm76, 1, 0
  %vm78 = vcmp.eq.s32.totalorder %v77, 1
  %vm79 = vmand %vm75, %vm78
  %v80 = vsel %vm79, 1.0, 0.0
  %v81 = vsel %vm64, %v80, 0.0
  %82 = vadd.xlane.f32.xlu0 %v81
  %v83 = vpop.xlane.xlu0 %82
  %v84 = vmax.f32 %v83, 1.0
  %v85 = vrcp.pop %v84
  %v86 = vmul.f32 1.0, %v85
  %v87 = vpack.c.bf16 %v80, %v80
  %v89 = vpack.i.b16 %v87, %v87
  %v91 = vlaneseq
  %v92 = vshrl.u32 %v91, 7
  %v93 = vsub.s32 0, %v92
  %v94 = vrot.slane %v89, %v93
  %v96 = vunpack.c.l.b16 %v94
  %v97 = vpack.c.b16 %v96, %v96
  %98 = vrot.lane.b32.xlu0 %v97, 8
  %v99 = vpop.permute.xlu0 %98
  %v101 = vmul.bf16 %v12, %v99
  %v102 = vmul.bf16 %v13, %v99
  %v103 = vmul.bf16 %v14, %v99
  %v104 = vmul.bf16 %v15, %v99
  %v105 = vmul.bf16 %v16, %v99
  %v106 = vmul.bf16 %v17, %v99
  %v107 = vmul.bf16 %v18, %v99
  %v108 = vmul.bf16 %v19, %v99
  %v109 = vmul.bf16 %v20, %v99
  %v110 = vmul.bf16 %v21, %v99
  %v111 = vmul.bf16 %v22, %v99
  %v112 = vmul.bf16 %v23, %v99
  %v113 = vmul.bf16 %v24, %v99
  %v114 = vmul.bf16 %v25, %v99
  %v115 = vmul.bf16 %v26, %v99
  %v116 = vmul.bf16 %v27, %v99
  %v117 = vmul.bf16 %v28, %v99
  %v118 = vmul.bf16 %v29, %v99
  %v119 = vmul.bf16 %v30, %v99
  %v120 = vmul.bf16 %v31, %v99
  %v121 = vmul.bf16 %v32, %v99
  %v122 = vmul.bf16 %v33, %v99
  %v123 = vmul.bf16 %v34, %v99
  %v124 = vmul.bf16 %v35, %v99
  %v125 = vmul.bf16 %v36, %v99
  %v126 = vmul.bf16 %v37, %v99
  %v127 = vmul.bf16 %v38, %v99
  %v128 = vmul.bf16 %v39, %v99
  %v129 = vmul.bf16 %v40, %v99
  %v130 = vmul.bf16 %v41, %v99
  %v131 = vmul.bf16 %v42, %v99
  %v132 = vmul.bf16 %v43, %v99
  %v133 = vmul.bf16 %v44, %v99
  %v134 = vmul.bf16 %v45, %v99
  %v135 = vmul.bf16 %v46, %v99
  %v136 = vmul.bf16 %v47, %v99
  %v137 = vmul.bf16 %v48, %v99
  %v138 = vmul.bf16 %v49, %v99
  %v139 = vmul.bf16 %v50, %v99
  %v140 = vmul.bf16 %v51, %v99
  %v141 = vmul.bf16 %v52, %v99
  %v142 = vmul.bf16 %v53, %v99
  %v143 = vmul.bf16 %v54, %v99
  %v144 = vmul.bf16 %v55, %v99
  %v145 = vmul.bf16 %v56, %v99
  %v146 = vmul.bf16 %v57, %v99
  %v147 = vmul.bf16 %v58, %v99
  %v148 = vmul.bf16 %v59, %v99
  %v165 = vunpack.c.l.b16 %v101
  %v166 = vunpack.c.l.b16 %v102
  %v167 = vunpack.c.l.b16 %v103
  %v168 = vunpack.c.l.b16 %v104
  %v169 = vunpack.c.l.b16 %v105
  %v170 = vunpack.c.l.b16 %v106
  %v171 = vunpack.c.l.b16 %v107
  %v172 = vunpack.c.l.b16 %v108
  %v173 = vunpack.c.l.b16 %v109
  %v174 = vunpack.c.l.b16 %v110
  %v175 = vunpack.c.l.b16 %v111
  %v176 = vunpack.c.l.b16 %v112
  %v177 = vunpack.c.l.b16 %v113
  %v178 = vunpack.c.l.b16 %v114
  %v179 = vunpack.c.l.b16 %v115
  %v180 = vunpack.c.l.b16 %v116
  %v181 = vpack.c.b16 %v166, %v165
  %v182 = vpack.c.b16 %v168, %v167
  %v183 = vpack.c.b16 %v170, %v169
  %v184 = vpack.c.b16 %v172, %v171
  %v185 = vpack.c.b16 %v174, %v173
  %v186 = vpack.c.b16 %v176, %v175
  %v187 = vpack.c.b16 %v178, %v177
  %v188 = vpack.c.b16 %v180, %v179
  %189 = vrot.lane.b32.xlu0 %v181, 120
  %v190 = vpop.permute.xlu0 %189
  %191 = vrot.lane.b32.xlu0 %v182, 120
  %v192 = vpop.permute.xlu0 %191
  %193 = vrot.lane.b32.xlu0 %v183, 120
  %v194 = vpop.permute.xlu0 %193
  %195 = vrot.lane.b32.xlu0 %v184, 120
  %v196 = vpop.permute.xlu0 %195
  %197 = vrot.lane.b32.xlu0 %v185, 120
  %v198 = vpop.permute.xlu0 %197
  %199 = vrot.lane.b32.xlu0 %v186, 120
  %v200 = vpop.permute.xlu0 %199
  %201 = vrot.lane.b32.xlu0 %v187, 120
  %v202 = vpop.permute.xlu0 %201
  %203 = vrot.lane.b32.xlu0 %v188, 120
  %v204 = vpop.permute.xlu0 %203
  %213 = vxpose.xlu0.c.b16.start [1/8] %v190, 128
  %214 = vxpose.xlu0.c.b16.cont [2/8] %v192, 128
  %215 = vxpose.xlu0.c.b16.cont [3/8] %v194, 128
  %216 = vxpose.xlu0.c.b16.cont [4/8] %v196, 128
  %217 = vxpose.xlu0.c.b16.cont [5/8] %v198, 128
  %218 = vxpose.xlu0.c.b16.cont [6/8] %v200, 128
  %219 = vxpose.xlu0.c.b16.cont [7/8] %v202, 128
  %220 = vxpose.xlu0.c.b16.end [8/8] %v204, 128
  %v221 = vpop.trf.xlu0
  %v222 = vpop.trf.xlu0
  %v223 = vpop.trf.xlu0
  %v224 = vpop.trf.xlu0
  %v225 = vpop.trf.xlu0
  %v226 = vpop.trf.xlu0
  %v227 = vpop.trf.xlu0
  %v228 = vpop.trf.xlu0
  %v245 = vunpack.c.l.b16 %v12
  %v246 = vunpack.c.l.b16 %v13
  %v247 = vunpack.c.l.b16 %v14
  %v248 = vunpack.c.l.b16 %v15
  %v249 = vunpack.c.l.b16 %v16
  %v250 = vunpack.c.l.b16 %v17
  %v251 = vunpack.c.l.b16 %v18
  %v252 = vunpack.c.l.b16 %v19
  %v253 = vunpack.c.l.b16 %v20
  %v254 = vunpack.c.l.b16 %v21
  %v255 = vunpack.c.l.b16 %v22
  %v256 = vunpack.c.l.b16 %v23
  %v257 = vunpack.c.l.b16 %v24
  %v258 = vunpack.c.l.b16 %v25
  %v259 = vunpack.c.l.b16 %v26
  %v260 = vunpack.c.l.b16 %v27
  %v261 = vpack.c.b16 %v246, %v245
  %v262 = vpack.c.b16 %v248, %v247
  %v263 = vpack.c.b16 %v250, %v249
  %v264 = vpack.c.b16 %v252, %v251
  %v265 = vpack.c.b16 %v254, %v253
  %v266 = vpack.c.b16 %v256, %v255
  %v267 = vpack.c.b16 %v258, %v257
  %v268 = vpack.c.b16 %v260, %v259
  %277 = vmatprep.subr.bf16.mxu0 0
  %278 = vmatpush1.bf16.msra.mxu0 %v268
  %279 = vmatprep.subr.bf16.mxu0 0
  %280 = vmatpush1.bf16.msra.mxu0 %v267
  %281 = vmatprep.subr.bf16.mxu0 0
  %282 = vmatpush1.bf16.msra.mxu0 %v266
  %283 = vmatprep.subr.bf16.mxu0 0
  %284 = vmatpush1.bf16.msra.mxu0 %v265
  %285 = vmatprep.subr.bf16.mxu0 0
  %286 = vmatpush1.bf16.msra.mxu0 %v264
  %287 = vmatprep.subr.bf16.mxu0 0
  %288 = vmatpush1.bf16.msra.mxu0 %v263
  %289 = vmatprep.subr.bf16.mxu0 0
  %290 = vmatpush1.bf16.msra.mxu0 %v262
  %291 = vmatprep.subr.bf16.mxu0 0
  %292 = vmatpush1.bf16.msra.mxu0 %v261
  %293 = vmatprep.subr.bf16.mxu0 0
  %294 = vmatpush2.bf16.msra.mxu0 0
  %295 = vmatprep.subr.bf16.mxu0 0
  %296 = vmatpush2.bf16.msra.mxu0 0
  %297 = vmatprep.subr.bf16.mxu0 0
  %298 = vmatpush2.bf16.msra.mxu0 0
  %299 = vmatprep.subr.bf16.mxu0 0
  %300 = vmatpush2.bf16.msra.mxu0 0
  %301 = vmatprep.subr.bf16.mxu0 0
  %302 = vmatpush2.bf16.msra.mxu0 0
  %303 = vmatprep.subr.bf16.mxu0 0
  %304 = vmatpush2.bf16.msra.mxu0 0
  %305 = vmatprep.subr.bf16.mxu0 0
  %306 = vmatpush2.bf16.msra.mxu0 0
  %307 = vmatprep.subr.bf16.mxu0 0
  %308 = vmatpush2.bf16.msra.mxu0 0
  %309 = vmatprep.mubr.bf16.mxu0 0
  %310 = vmatmul.mubr.bf16.gmra.mxu0 %v221
  %v311 = vpop.f32.mrf.mxu0
  %v312 = vadd.f32 0.0, %v311
  %v313 = vpop.f32.mrf.mxu0
  %v314 = vpop.f32.mrf.mxu0
  %v315 = vpop.f32.mrf.mxu0
  %316 = vdwg.mxu0
  %v317 = vmax.f32 %v312, 0.0
  %v334 = vunpack.c.l.b16 %v117
  %v335 = vunpack.c.l.b16 %v118
  %v336 = vunpack.c.l.b16 %v119
  %v337 = vunpack.c.l.b16 %v120
  %v338 = vunpack.c.l.b16 %v121
  %v339 = vunpack.c.l.b16 %v122
  %v340 = vunpack.c.l.b16 %v123
  %v341 = vunpack.c.l.b16 %v124
  %v342 = vunpack.c.l.b16 %v125
  %v343 = vunpack.c.l.b16 %v126
  %v344 = vunpack.c.l.b16 %v127
  %v345 = vunpack.c.l.b16 %v128
  %v346 = vunpack.c.l.b16 %v129
  %v347 = vunpack.c.l.b16 %v130
  %v348 = vunpack.c.l.b16 %v131
  %v349 = vunpack.c.l.b16 %v132
  %v350 = vpack.c.b16 %v335, %v334
  %v351 = vpack.c.b16 %v337, %v336
  %v352 = vpack.c.b16 %v339, %v338
  %v353 = vpack.c.b16 %v341, %v340
  %v354 = vpack.c.b16 %v343, %v342
  %v355 = vpack.c.b16 %v345, %v344
  %v356 = vpack.c.b16 %v347, %v346
  %v357 = vpack.c.b16 %v349, %v348
  %358 = vrot.lane.b32.xlu0 %v350, 120
  %v359 = vpop.permute.xlu0 %358
  %360 = vrot.lane.b32.xlu0 %v351, 120
  %v361 = vpop.permute.xlu0 %360
  %362 = vrot.lane.b32.xlu0 %v352, 120
  %v363 = vpop.permute.xlu0 %362
  %364 = vrot.lane.b32.xlu0 %v353, 120
  %v365 = vpop.permute.xlu0 %364
  %366 = vrot.lane.b32.xlu0 %v354, 120
  %v367 = vpop.permute.xlu0 %366
  %368 = vrot.lane.b32.xlu0 %v355, 120
  %v369 = vpop.permute.xlu0 %368
  %370 = vrot.lane.b32.xlu0 %v356, 120
  %v371 = vpop.permute.xlu0 %370
  %372 = vrot.lane.b32.xlu0 %v357, 120
  %v373 = vpop.permute.xlu0 %372
  %382 = vxpose.xlu0.c.b16.start [1/8] %v359, 128
  %383 = vxpose.xlu0.c.b16.cont [2/8] %v361, 128
  %384 = vxpose.xlu0.c.b16.cont [3/8] %v363, 128
  %385 = vxpose.xlu0.c.b16.cont [4/8] %v365, 128
  %386 = vxpose.xlu0.c.b16.cont [5/8] %v367, 128
  %387 = vxpose.xlu0.c.b16.cont [6/8] %v369, 128
  %388 = vxpose.xlu0.c.b16.cont [7/8] %v371, 128
  %389 = vxpose.xlu0.c.b16.end [8/8] %v373, 128
  %v390 = vpop.trf.xlu0
  %v391 = vpop.trf.xlu0
  %v392 = vpop.trf.xlu0
  %v393 = vpop.trf.xlu0
  %v394 = vpop.trf.xlu0
  %v395 = vpop.trf.xlu0
  %v396 = vpop.trf.xlu0
  %v397 = vpop.trf.xlu0
  %v414 = vunpack.c.l.b16 %v28
  %v415 = vunpack.c.l.b16 %v29
  %v416 = vunpack.c.l.b16 %v30
  %v417 = vunpack.c.l.b16 %v31
  %v418 = vunpack.c.l.b16 %v32
  %v419 = vunpack.c.l.b16 %v33
  %v420 = vunpack.c.l.b16 %v34
  %v421 = vunpack.c.l.b16 %v35
  %v422 = vunpack.c.l.b16 %v36
  %v423 = vunpack.c.l.b16 %v37
  %v424 = vunpack.c.l.b16 %v38
  %v425 = vunpack.c.l.b16 %v39
  %v426 = vunpack.c.l.b16 %v40
  %v427 = vunpack.c.l.b16 %v41
  %v428 = vunpack.c.l.b16 %v42
  %v429 = vunpack.c.l.b16 %v43
  %v430 = vpack.c.b16 %v415, %v414
  %v431 = vpack.c.b16 %v417, %v416
  %v432 = vpack.c.b16 %v419, %v418
  %v433 = vpack.c.b16 %v421, %v420
  %v434 = vpack.c.b16 %v423, %v422
  %v435 = vpack.c.b16 %v425, %v424
  %v436 = vpack.c.b16 %v427, %v426
  %v437 = vpack.c.b16 %v429, %v428
  %446 = vmatprep.subr.bf16.mxu0 0
  %447 = vmatpush1.bf16.msra.mxu0 %v437
  %448 = vmatprep.subr.bf16.mxu0 0
  %449 = vmatpush1.bf16.msra.mxu0 %v436
  %450 = vmatprep.subr.bf16.mxu0 0
  %451 = vmatpush1.bf16.msra.mxu0 %v435
  %452 = vmatprep.subr.bf16.mxu0 0
  %453 = vmatpush1.bf16.msra.mxu0 %v434
  %454 = vmatprep.subr.bf16.mxu0 0
  %455 = vmatpush1.bf16.msra.mxu0 %v433
  %456 = vmatprep.subr.bf16.mxu0 0
  %457 = vmatpush1.bf16.msra.mxu0 %v432
  %458 = vmatprep.subr.bf16.mxu0 0
  %459 = vmatpush1.bf16.msra.mxu0 %v431
  %460 = vmatprep.subr.bf16.mxu0 0
  %461 = vmatpush1.bf16.msra.mxu0 %v430
  %462 = vmatprep.subr.bf16.mxu0 0
  %463 = vmatpush2.bf16.msra.mxu0 0
  %464 = vmatprep.subr.bf16.mxu0 0
  %465 = vmatpush2.bf16.msra.mxu0 0
  %466 = vmatprep.subr.bf16.mxu0 0
  %467 = vmatpush2.bf16.msra.mxu0 0
  %468 = vmatprep.subr.bf16.mxu0 0
  %469 = vmatpush2.bf16.msra.mxu0 0
  %470 = vmatprep.subr.bf16.mxu0 0
  %471 = vmatpush2.bf16.msra.mxu0 0
  %472 = vmatprep.subr.bf16.mxu0 0
  %473 = vmatpush2.bf16.msra.mxu0 0
  %474 = vmatprep.subr.bf16.mxu0 0
  %475 = vmatpush2.bf16.msra.mxu0 0
  %476 = vmatprep.subr.bf16.mxu0 0
  %477 = vmatpush2.bf16.msra.mxu0 0
  %478 = vmatprep.mubr.bf16.mxu0 0
  %479 = vmatmul.mubr.bf16.gmra.mxu0 %v390
  %v480 = vpop.f32.mrf.mxu0
  %v481 = vadd.f32 0.0, %v480
  %v482 = vpop.f32.mrf.mxu0
  %v483 = vpop.f32.mrf.mxu0
  %v484 = vpop.f32.mrf.mxu0
  %485 = vdwg.mxu0
  %v486 = vmax.f32 %v481, 0.0
  %v503 = vunpack.c.l.b16 %v133
  %v504 = vunpack.c.l.b16 %v134
  %v505 = vunpack.c.l.b16 %v135
  %v506 = vunpack.c.l.b16 %v136
  %v507 = vunpack.c.l.b16 %v137
  %v508 = vunpack.c.l.b16 %v138
  %v509 = vunpack.c.l.b16 %v139
  %v510 = vunpack.c.l.b16 %v140
  %v511 = vunpack.c.l.b16 %v141
  %v512 = vunpack.c.l.b16 %v142
  %v513 = vunpack.c.l.b16 %v143
  %v514 = vunpack.c.l.b16 %v144
  %v515 = vunpack.c.l.b16 %v145
  %v516 = vunpack.c.l.b16 %v146
  %v517 = vunpack.c.l.b16 %v147
  %v518 = vunpack.c.l.b16 %v148
  %v519 = vpack.c.b16 %v504, %v503
  %v520 = vpack.c.b16 %v506, %v505
  %v521 = vpack.c.b16 %v508, %v507
  %v522 = vpack.c.b16 %v510, %v509
  %v523 = vpack.c.b16 %v512, %v511
  %v524 = vpack.c.b16 %v514, %v513
  %v525 = vpack.c.b16 %v516, %v515
  %v526 = vpack.c.b16 %v518, %v517
  %527 = vrot.lane.b32.xlu0 %v519, 120
  %v528 = vpop.permute.xlu0 %527
  %529 = vrot.lane.b32.xlu0 %v520, 120
  %v530 = vpop.permute.xlu0 %529
  %531 = vrot.lane.b32.xlu0 %v521, 120
  %v532 = vpop.permute.xlu0 %531
  %533 = vrot.lane.b32.xlu0 %v522, 120
  %v534 = vpop.permute.xlu0 %533
  %535 = vrot.lane.b32.xlu0 %v523, 120
  %v536 = vpop.permute.xlu0 %535
  %537 = vrot.lane.b32.xlu0 %v524, 120
  %v538 = vpop.permute.xlu0 %537
  %539 = vrot.lane.b32.xlu0 %v525, 120
  %v540 = vpop.permute.xlu0 %539
  %541 = vrot.lane.b32.xlu0 %v526, 120
  %v542 = vpop.permute.xlu0 %541
  %551 = vxpose.xlu0.c.b16.start [1/8] %v528, 128
  %552 = vxpose.xlu0.c.b16.cont [2/8] %v530, 128
  %553 = vxpose.xlu0.c.b16.cont [3/8] %v532, 128
  %554 = vxpose.xlu0.c.b16.cont [4/8] %v534, 128
  %555 = vxpose.xlu0.c.b16.cont [5/8] %v536, 128
  %556 = vxpose.xlu0.c.b16.cont [6/8] %v538, 128
  %557 = vxpose.xlu0.c.b16.cont [7/8] %v540, 128
  %558 = vxpose.xlu0.c.b16.end [8/8] %v542, 128
  %v559 = vpop.trf.xlu0
  %v560 = vpop.trf.xlu0
  %v561 = vpop.trf.xlu0
  %v562 = vpop.trf.xlu0
  %v563 = vpop.trf.xlu0
  %v564 = vpop.trf.xlu0
  %v565 = vpop.trf.xlu0
  %v566 = vpop.trf.xlu0
  %v583 = vunpack.c.l.b16 %v44
  %v584 = vunpack.c.l.b16 %v45
  %v585 = vunpack.c.l.b16 %v46
  %v586 = vunpack.c.l.b16 %v47
  %v587 = vunpack.c.l.b16 %v48
  %v588 = vunpack.c.l.b16 %v49
  %v589 = vunpack.c.l.b16 %v50
  %v590 = vunpack.c.l.b16 %v51
  %v591 = vunpack.c.l.b16 %v52
  %v592 = vunpack.c.l.b16 %v53
  %v593 = vunpack.c.l.b16 %v54
  %v594 = vunpack.c.l.b16 %v55
  %v595 = vunpack.c.l.b16 %v56
  %v596 = vunpack.c.l.b16 %v57
  %v597 = vunpack.c.l.b16 %v58
  %v598 = vunpack.c.l.b16 %v59
  %v599 = vpack.c.b16 %v584, %v583
  %v600 = vpack.c.b16 %v586, %v585
  %v601 = vpack.c.b16 %v588, %v587
  %v602 = vpack.c.b16 %v590, %v589
  %v603 = vpack.c.b16 %v592, %v591
  %v604 = vpack.c.b16 %v594, %v593
  %v605 = vpack.c.b16 %v596, %v595
  %v606 = vpack.c.b16 %v598, %v597
  %615 = vmatprep.subr.bf16.mxu0 0
  %616 = vmatpush1.bf16.msra.mxu0 %v606
  %617 = vmatprep.subr.bf16.mxu0 0
  %618 = vmatpush1.bf16.msra.mxu0 %v605
  %619 = vmatprep.subr.bf16.mxu0 0
  %620 = vmatpush1.bf16.msra.mxu0 %v604
  %621 = vmatprep.subr.bf16.mxu0 0
  %622 = vmatpush1.bf16.msra.mxu0 %v603
  %623 = vmatprep.subr.bf16.mxu0 0
  %624 = vmatpush1.bf16.msra.mxu0 %v602
  %625 = vmatprep.subr.bf16.mxu0 0
  %626 = vmatpush1.bf16.msra.mxu0 %v601
  %627 = vmatprep.subr.bf16.mxu0 0
  %628 = vmatpush1.bf16.msra.mxu0 %v600
  %629 = vmatprep.subr.bf16.mxu0 0
  %630 = vmatpush1.bf16.msra.mxu0 %v599
  %631 = vmatprep.subr.bf16.mxu0 0
  %632 = vmatpush2.bf16.msra.mxu0 0
  %633 = vmatprep.subr.bf16.mxu0 0
  %634 = vmatpush2.bf16.msra.mxu0 0
  %635 = vmatprep.subr.bf16.mxu0 0
  %636 = vmatpush2.bf16.msra.mxu0 0
  %637 = vmatprep.subr.bf16.mxu0 0
  %638 = vmatpush2.bf16.msra.mxu0 0
  %639 = vmatprep.subr.bf16.mxu0 0
  %640 = vmatpush2.bf16.msra.mxu0 0
  %641 = vmatprep.subr.bf16.mxu0 0
  %642 = vmatpush2.bf16.msra.mxu0 0
  %643 = vmatprep.subr.bf16.mxu0 0
  %644 = vmatpush2.bf16.msra.mxu0 0
  %645 = vmatprep.subr.bf16.mxu0 0
  %646 = vmatpush2.bf16.msra.mxu0 0
  %647 = vmatprep.mubr.bf16.mxu0 0
  %648 = vmatmul.mubr.bf16.gmra.mxu0 %v559
  %v649 = vpop.f32.mrf.mxu0
  %v650 = vadd.f32 0.0, %v649
  %v651 = vpop.f32.mrf.mxu0
  %v652 = vpop.f32.mrf.mxu0
  %v653 = vpop.f32.mrf.mxu0
  %654 = vdwg.mxu0
  %v655 = vmax.f32 %v650, 0.0
  %vm656 = vcmask 27648
  %v657 = vsel %vm656, %v317, 0.0
  %v658 = vrot.slane %v657, 4
  %v659 = vadd.f32 %v657, %v658
  %v660 = vrot.slane %v659, 2
  %v661 = vadd.f32 %v659, %v660
  %v662 = vrot.slane %v661, 1
  %v663 = vadd.f32 %v661, %v662
  %v664 = vsel %vm656, %v486, 0.0
  %v665 = vrot.slane %v664, 4
  %v666 = vadd.f32 %v664, %v665
  %v667 = vrot.slane %v666, 2
  %v668 = vadd.f32 %v666, %v667
  %v669 = vrot.slane %v668, 1
  %v670 = vadd.f32 %v668, %v669
  %v671 = vsel %vm656, %v655, 0.0
  %v672 = vrot.slane %v671, 4
  %v673 = vadd.f32 %v671, %v672
  %v674 = vrot.slane %v673, 2
  %v675 = vadd.f32 %v673, %v674
  %v676 = vrot.slane %v675, 1
  %v677 = vadd.f32 %v675, %v676
  %v678 = vlaneseq
  %v679 = vshrl.u32 %v678, 7
  %v680 = vsub.s32 0, %v679
  %v681 = vrot.slane %v86, %v680
  %v682 = vmul.f32 %v663, %v681
  %v683 = vmul.f32 %v670, %v681
  %v684 = vmul.f32 %v677, %v681
  %v685 = vadd.f32 %v682, 0.0
  %v686 = vadd.f32 %v683, 0.0
  %v687 = vadd.f32 %v684, 0.0
  %s688 = scalar_lea.vmem %s1, 1
  %v689 = vld [vmem:[%s688] sm:$0x1]
  %vm690 = vcmp.gt.f32.partialorder %v689, 0.0
  %v691 = vsel %vm690, 1, 0
  %v692 = vcvt.s32.f32 %v691
  %v693 = vsel %vm64, %v692, 0.0
  %694 = vadd.xlane.f32.xlu0 %v693
  %v695 = vpop.xlane.xlu0 %694
  %v696 = vmul.f32 %v689, %v692
  %v697 = vsel %vm64, %v696, 0.0
  %698 = vadd.xlane.f32.xlu0 %v697
  %v699 = vpop.xlane.xlu0 %698
  %v700 = vmax.f32 %v695, 1.0
  %v701 = vrcp.pop %v700
  %v702 = vmul.f32 %v699, %v701
  %vm703 = vcmp.ge.f32.partialorder %v689, %v702
  %vm704 = vcmp.gt.f32.partialorder %v695, 0.0
  %v705 = vsel %vm704, 1, 0
  %vm706 = vcmp.eq.s32.totalorder %v705, 1
  %vm707 = vmand %vm703, %vm706
  %v708 = vsel %vm707, 1.0, 0.0
  %v709 = vsel %vm64, %v708, 0.0
  %710 = vadd.xlane.f32.xlu0 %v709
  %v711 = vpop.xlane.xlu0 %710
  %v712 = vmax.f32 %v711, 1.0
  %v713 = vrcp.pop %v712
  %v714 = vmul.f32 1.0, %v713
  %v715 = vpack.c.bf16 %v708, %v708
  %v717 = vpack.i.b16 %v715, %v715
  %v719 = vlaneseq
  %v720 = vshrl.u32 %v719, 7
  %v721 = vsub.s32 0, %v720
  %v722 = vrot.slane %v717, %v721
  %v724 = vunpack.c.l.b16 %v722
  %v725 = vpack.c.b16 %v724, %v724
  %726 = vrot.lane.b32.xlu0 %v725, 12
  %v727 = vpop.permute.xlu0 %726
  %v729 = vmul.bf16 %v12, %v727
  %v730 = vmul.bf16 %v13, %v727
  %v731 = vmul.bf16 %v14, %v727
  %v732 = vmul.bf16 %v15, %v727
  %v733 = vmul.bf16 %v16, %v727
  %v734 = vmul.bf16 %v17, %v727
  %v735 = vmul.bf16 %v18, %v727
  %v736 = vmul.bf16 %v19, %v727
  %v737 = vmul.bf16 %v20, %v727
  %v738 = vmul.bf16 %v21, %v727
  %v739 = vmul.bf16 %v22, %v727
  %v740 = vmul.bf16 %v23, %v727
  %v741 = vmul.bf16 %v24, %v727
  %v742 = vmul.bf16 %v25, %v727
  %v743 = vmul.bf16 %v26, %v727
  %v744 = vmul.bf16 %v27, %v727
  %v745 = vmul.bf16 %v28, %v727
  %v746 = vmul.bf16 %v29, %v727
  %v747 = vmul.bf16 %v30, %v727
  %v748 = vmul.bf16 %v31, %v727
  %v749 = vmul.bf16 %v32, %v727
  %v750 = vmul.bf16 %v33, %v727
  %v751 = vmul.bf16 %v34, %v727
  %v752 = vmul.bf16 %v35, %v727
  %v753 = vmul.bf16 %v36, %v727
  %v754 = vmul.bf16 %v37, %v727
  %v755 = vmul.bf16 %v38, %v727
  %v756 = vmul.bf16 %v39, %v727
  %v757 = vmul.bf16 %v40, %v727
  %v758 = vmul.bf16 %v41, %v727
  %v759 = vmul.bf16 %v42, %v727
  %v760 = vmul.bf16 %v43, %v727
  %v761 = vmul.bf16 %v44, %v727
  %v762 = vmul.bf16 %v45, %v727
  %v763 = vmul.bf16 %v46, %v727
  %v764 = vmul.bf16 %v47, %v727
  %v765 = vmul.bf16 %v48, %v727
  %v766 = vmul.bf16 %v49, %v727
  %v767 = vmul.bf16 %v50, %v727
  %v768 = vmul.bf16 %v51, %v727
  %v769 = vmul.bf16 %v52, %v727
  %v770 = vmul.bf16 %v53, %v727
  %v771 = vmul.bf16 %v54, %v727
  %v772 = vmul.bf16 %v55, %v727
  %v773 = vmul.bf16 %v56, %v727
  %v774 = vmul.bf16 %v57, %v727
  %v775 = vmul.bf16 %v58, %v727
  %v776 = vmul.bf16 %v59, %v727
  %v793 = vunpack.c.l.b16 %v729
  %v794 = vunpack.c.l.b16 %v730
  %v795 = vunpack.c.l.b16 %v731
  %v796 = vunpack.c.l.b16 %v732
  %v797 = vunpack.c.l.b16 %v733
  %v798 = vunpack.c.l.b16 %v734
  %v799 = vunpack.c.l.b16 %v735
  %v800 = vunpack.c.l.b16 %v736
  %v801 = vunpack.c.l.b16 %v737
  %v802 = vunpack.c.l.b16 %v738
  %v803 = vunpack.c.l.b16 %v739
  %v804 = vunpack.c.l.b16 %v740
  %v805 = vunpack.c.l.b16 %v741
  %v806 = vunpack.c.l.b16 %v742
  %v807 = vunpack.c.l.b16 %v743
  %v808 = vunpack.c.l.b16 %v744
  %v809 = vpack.c.b16 %v794, %v793
  %v810 = vpack.c.b16 %v796, %v795
  %v811 = vpack.c.b16 %v798, %v797
  %v812 = vpack.c.b16 %v800, %v799
  %v813 = vpack.c.b16 %v802, %v801
  %v814 = vpack.c.b16 %v804, %v803
  %v815 = vpack.c.b16 %v806, %v805
  %v816 = vpack.c.b16 %v808, %v807
  %817 = vrot.lane.b32.xlu0 %v809, 116
  %v818 = vpop.permute.xlu0 %817
  %819 = vrot.lane.b32.xlu0 %v810, 116
  %v820 = vpop.permute.xlu0 %819
  %821 = vrot.lane.b32.xlu0 %v811, 116
  %v822 = vpop.permute.xlu0 %821
  %823 = vrot.lane.b32.xlu0 %v812, 116
  %v824 = vpop.permute.xlu0 %823
  %825 = vrot.lane.b32.xlu0 %v813, 116
  %v826 = vpop.permute.xlu0 %825
  %827 = vrot.lane.b32.xlu0 %v814, 116
  %v828 = vpop.permute.xlu0 %827
  %829 = vrot.lane.b32.xlu0 %v815, 116
  %v830 = vpop.permute.xlu0 %829
  %831 = vrot.lane.b32.xlu0 %v816, 116
  %v832 = vpop.permute.xlu0 %831
  %841 = vxpose.xlu0.c.b16.start [1/8] %v818, 128
  %842 = vxpose.xlu0.c.b16.cont [2/8] %v820, 128
  %843 = vxpose.xlu0.c.b16.cont [3/8] %v822, 128
  %844 = vxpose.xlu0.c.b16.cont [4/8] %v824, 128
  %845 = vxpose.xlu0.c.b16.cont [5/8] %v826, 128
  %846 = vxpose.xlu0.c.b16.cont [6/8] %v828, 128
  %847 = vxpose.xlu0.c.b16.cont [7/8] %v830, 128
  %848 = vxpose.xlu0.c.b16.end [8/8] %v832, 128
  %v849 = vpop.trf.xlu0
  %v850 = vpop.trf.xlu0
  %v851 = vpop.trf.xlu0
  %v852 = vpop.trf.xlu0
  %v853 = vpop.trf.xlu0
  %v854 = vpop.trf.xlu0
  %v855 = vpop.trf.xlu0
  %v856 = vpop.trf.xlu0
  %857 = vrot.lane.b32.xlu0 %v261, 124
  %v858 = vpop.permute.xlu0 %857
  %859 = vrot.lane.b32.xlu0 %v262, 124
  %v860 = vpop.permute.xlu0 %859
  %861 = vrot.lane.b32.xlu0 %v263, 124
  %v862 = vpop.permute.xlu0 %861
  %863 = vrot.lane.b32.xlu0 %v264, 124
  %v864 = vpop.permute.xlu0 %863
  %865 = vrot.lane.b32.xlu0 %v265, 124
  %v866 = vpop.permute.xlu0 %865
  %867 = vrot.lane.b32.xlu0 %v266, 124
  %v868 = vpop.permute.xlu0 %867
  %869 = vrot.lane.b32.xlu0 %v267, 124
  %v870 = vpop.permute.xlu0 %869
  %871 = vrot.lane.b32.xlu0 %v268, 124
  %v872 = vpop.permute.xlu0 %871
  %881 = vmatprep.subr.bf16.mxu0 0
  %882 = vmatpush1.bf16.msra.mxu0 %v872
  %883 = vmatprep.subr.bf16.mxu0 0
  %884 = vmatpush1.bf16.msra.mxu0 %v870
  %885 = vmatprep.subr.bf16.mxu0 0
  %886 = vmatpush1.bf16.msra.mxu0 %v868
  %887 = vmatprep.subr.bf16.mxu0 0
  %888 = vmatpush1.bf16.msra.mxu0 %v866
  %889 = vmatprep.subr.bf16.mxu0 0
  %890 = vmatpush1.bf16.msra.mxu0 %v864
  %891 = vmatprep.subr.bf16.mxu0 0
  %892 = vmatpush1.bf16.msra.mxu0 %v862
  %893 = vmatprep.subr.bf16.mxu0 0
  %894 = vmatpush1.bf16.msra.mxu0 %v860
  %895 = vmatprep.subr.bf16.mxu0 0
  %896 = vmatpush1.bf16.msra.mxu0 %v858
  %897 = vmatprep.subr.bf16.mxu0 0
  %898 = vmatpush2.bf16.msra.mxu0 0
  %899 = vmatprep.subr.bf16.mxu0 0
  %900 = vmatpush2.bf16.msra.mxu0 0
  %901 = vmatprep.subr.bf16.mxu0 0
  %902 = vmatpush2.bf16.msra.mxu0 0
  %903 = vmatprep.subr.bf16.mxu0 0
  %904 = vmatpush2.bf16.msra.mxu0 0
  %905 = vmatprep.subr.bf16.mxu0 0
  %906 = vmatpush2.bf16.msra.mxu0 0
  %907 = vmatprep.subr.bf16.mxu0 0
  %908 = vmatpush2.bf16.msra.mxu0 0
  %909 = vmatprep.subr.bf16.mxu0 0
  %910 = vmatpush2.bf16.msra.mxu0 0
  %911 = vmatprep.subr.bf16.mxu0 0
  %912 = vmatpush2.bf16.msra.mxu0 0
  %913 = vmatprep.mubr.bf16.mxu0 0
  %914 = vmatmul.mubr.bf16.gmra.mxu0 %v849
  %v915 = vpop.f32.mrf.mxu0
  %v916 = vadd.f32 0.0, %v915
  %v917 = vpop.f32.mrf.mxu0
  %v918 = vpop.f32.mrf.mxu0
  %v919 = vpop.f32.mrf.mxu0
  %920 = vdwg.mxu0
  %v921 = vmax.f32 %v916, 0.0
  %v938 = vunpack.c.l.b16 %v745
  %v939 = vunpack.c.l.b16 %v746
  %v940 = vunpack.c.l.b16 %v747
  %v941 = vunpack.c.l.b16 %v748
  %v942 = vunpack.c.l.b16 %v749
  %v943 = vunpack.c.l.b16 %v750
  %v944 = vunpack.c.l.b16 %v751
  %v945 = vunpack.c.l.b16 %v752
  %v946 = vunpack.c.l.b16 %v753
  %v947 = vunpack.c.l.b16 %v754
  %v948 = vunpack.c.l.b16 %v755
  %v949 = vunpack.c.l.b16 %v756
  %v950 = vunpack.c.l.b16 %v757
  %v951 = vunpack.c.l.b16 %v758
  %v952 = vunpack.c.l.b16 %v759
  %v953 = vunpack.c.l.b16 %v760
  %v954 = vpack.c.b16 %v939, %v938
  %v955 = vpack.c.b16 %v941, %v940
  %v956 = vpack.c.b16 %v943, %v942
  %v957 = vpack.c.b16 %v945, %v944
  %v958 = vpack.c.b16 %v947, %v946
  %v959 = vpack.c.b16 %v949, %v948
  %v960 = vpack.c.b16 %v951, %v950
  %v961 = vpack.c.b16 %v953, %v952
  %962 = vrot.lane.b32.xlu0 %v954, 116
  %v963 = vpop.permute.xlu0 %962
  %964 = vrot.lane.b32.xlu0 %v955, 116
  %v965 = vpop.permute.xlu0 %964
  %966 = vrot.lane.b32.xlu0 %v956, 116
  %v967 = vpop.permute.xlu0 %966
  %968 = vrot.lane.b32.xlu0 %v957, 116
  %v969 = vpop.permute.xlu0 %968
  %970 = vrot.lane.b32.xlu0 %v958, 116
  %v971 = vpop.permute.xlu0 %970
  %972 = vrot.lane.b32.xlu0 %v959, 116
  %v973 = vpop.permute.xlu0 %972
  %974 = vrot.lane.b32.xlu0 %v960, 116
  %v975 = vpop.permute.xlu0 %974
  %976 = vrot.lane.b32.xlu0 %v961, 116
  %v977 = vpop.permute.xlu0 %976
  %986 = vxpose.xlu0.c.b16.start [1/8] %v963, 128
  %987 = vxpose.xlu0.c.b16.cont [2/8] %v965, 128
  %988 = vxpose.xlu0.c.b16.cont [3/8] %v967, 128
  %989 = vxpose.xlu0.c.b16.cont [4/8] %v969, 128
  %990 = vxpose.xlu0.c.b16.cont [5/8] %v971, 128
  %991 = vxpose.xlu0.c.b16.cont [6/8] %v973, 128
  %992 = vxpose.xlu0.c.b16.cont [7/8] %v975, 128
  %993 = vxpose.xlu0.c.b16.end [8/8] %v977, 128
  %v994 = vpop.trf.xlu0
  %v995 = vpop.trf.xlu0
  %v996 = vpop.trf.xlu0
  %v997 = vpop.trf.xlu0
  %v998 = vpop.trf.xlu0
  %v999 = vpop.trf.xlu0
  %v1000 = vpop.trf.xlu0
  %v1001 = vpop.trf.xlu0
  %1002 = vrot.lane.b32.xlu0 %v430, 124
  %v1003 = vpop.permute.xlu0 %1002
  %1004 = vrot.lane.b32.xlu0 %v431, 124
  %v1005 = vpop.permute.xlu0 %1004
  %1006 = vrot.lane.b32.xlu0 %v432, 124
  %v1007 = vpop.permute.xlu0 %1006
  %1008 = vrot.lane.b32.xlu0 %v433, 124
  %v1009 = vpop.permute.xlu0 %1008
  %1010 = vrot.lane.b32.xlu0 %v434, 124
  %v1011 = vpop.permute.xlu0 %1010
  %1012 = vrot.lane.b32.xlu0 %v435, 124
  %v1013 = vpop.permute.xlu0 %1012
  %1014 = vrot.lane.b32.xlu0 %v436, 124
  %v1015 = vpop.permute.xlu0 %1014
  %1016 = vrot.lane.b32.xlu0 %v437, 124
  %v1017 = vpop.permute.xlu0 %1016
  %1026 = vmatprep.subr.bf16.mxu0 0
  %1027 = vmatpush1.bf16.msra.mxu0 %v1017
  %1028 = vmatprep.subr.bf16.mxu0 0
  %1029 = vmatpush1.bf16.msra.mxu0 %v1015
  %1030 = vmatprep.subr.bf16.mxu0 0
  %1031 = vmatpush1.bf16.msra.mxu0 %v1013
  %1032 = vmatprep.subr.bf16.mxu0 0
  %1033 = vmatpush1.bf16.msra.mxu0 %v1011
  %1034 = vmatprep.subr.bf16.mxu0 0
  %1035 = vmatpush1.bf16.msra.mxu0 %v1009
  %1036 = vmatprep.subr.bf16.mxu0 0
  %1037 = vmatpush1.bf16.msra.mxu0 %v1007
  %1038 = vmatprep.subr.bf16.mxu0 0
  %1039 = vmatpush1.bf16.msra.mxu0 %v1005
  %1040 = vmatprep.subr.bf16.mxu0 0
  %1041 = vmatpush1.bf16.msra.mxu0 %v1003
  %1042 = vmatprep.subr.bf16.mxu0 0
  %1043 = vmatpush2.bf16.msra.mxu0 0
  %1044 = vmatprep.subr.bf16.mxu0 0
  %1045 = vmatpush2.bf16.msra.mxu0 0
  %1046 = vmatprep.subr.bf16.mxu0 0
  %1047 = vmatpush2.bf16.msra.mxu0 0
  %1048 = vmatprep.subr.bf16.mxu0 0
  %1049 = vmatpush2.bf16.msra.mxu0 0
  %1050 = vmatprep.subr.bf16.mxu0 0
  %1051 = vmatpush2.bf16.msra.mxu0 0
  %1052 = vmatprep.subr.bf16.mxu0 0
  %1053 = vmatpush2.bf16.msra.mxu0 0
  %1054 = vmatprep.subr.bf16.mxu0 0
  %1055 = vmatpush2.bf16.msra.mxu0 0
  %1056 = vmatprep.subr.bf16.mxu0 0
  %1057 = vmatpush2.bf16.msra.mxu0 0
  %1058 = vmatprep.mubr.bf16.mxu0 0
  %1059 = vmatmul.mubr.bf16.gmra.mxu0 %v994
  %v1060 = vpop.f32.mrf.mxu0
  %v1061 = vadd.f32 0.0, %v1060
  %v1062 = vpop.f32.mrf.mxu0
  %v1063 = vpop.f32.mrf.mxu0
  %v1064 = vpop.f32.mrf.mxu0
  %1065 = vdwg.mxu0
  %v1066 = vmax.f32 %v1061, 0.0
  %v1083 = vunpack.c.l.b16 %v761
  %v1084 = vunpack.c.l.b16 %v762
  %v1085 = vunpack.c.l.b16 %v763
  %v1086 = vunpack.c.l.b16 %v764
  %v1087 = vunpack.c.l.b16 %v765
  %v1088 = vunpack.c.l.b16 %v766
  %v1089 = vunpack.c.l.b16 %v767
  %v1090 = vunpack.c.l.b16 %v768
  %v1091 = vunpack.c.l.b16 %v769
  %v1092 = vunpack.c.l.b16 %v770
  %v1093 = vunpack.c.l.b16 %v771
  %v1094 = vunpack.c.l.b16 %v772
  %v1095 = vunpack.c.l.b16 %v773
  %v1096 = vunpack.c.l.b16 %v774
  %v1097 = vunpack.c.l.b16 %v775
  %v1098 = vunpack.c.l.b16 %v776
  %v1099 = vpack.c.b16 %v1084, %v1083
  %v1100 = vpack.c.b16 %v1086, %v1085
  %v1101 = vpack.c.b16 %v1088, %v1087
  %v1102 = vpack.c.b16 %v1090, %v1089
  %v1103 = vpack.c.b16 %v1092, %v1091
  %v1104 = vpack.c.b16 %v1094, %v1093
  %v1105 = vpack.c.b16 %v1096, %v1095
  %v1106 = vpack.c.b16 %v1098, %v1097
  %1107 = vrot.lane.b32.xlu0 %v1099, 116
  %v1108 = vpop.permute.xlu0 %1107
  %1109 = vrot.lane.b32.xlu0 %v1100, 116
  %v1110 = vpop.permute.xlu0 %1109
  %1111 = vrot.lane.b32.xlu0 %v1101, 116
  %v1112 = vpop.permute.xlu0 %1111
  %1113 = vrot.lane.b32.xlu0 %v1102, 116
  %v1114 = vpop.permute.xlu0 %1113
  %1115 = vrot.lane.b32.xlu0 %v1103, 116
  %v1116 = vpop.permute.xlu0 %1115
  %1117 = vrot.lane.b32.xlu0 %v1104, 116
  %v1118 = vpop.permute.xlu0 %1117
  %1119 = vrot.lane.b32.xlu0 %v1105, 116
  %v1120 = vpop.permute.xlu0 %1119
  %1121 = vrot.lane.b32.xlu0 %v1106, 116
  %v1122 = vpop.permute.xlu0 %1121
  %1131 = vxpose.xlu0.c.b16.start [1/8] %v1108, 128
  %1132 = vxpose.xlu0.c.b16.cont [2/8] %v1110, 128
  %1133 = vxpose.xlu0.c.b16.cont [3/8] %v1112, 128
  %1134 = vxpose.xlu0.c.b16.cont [4/8] %v1114, 128
  %1135 = vxpose.xlu0.c.b16.cont [5/8] %v1116, 128
  %1136 = vxpose.xlu0.c.b16.cont [6/8] %v1118, 128
  %1137 = vxpose.xlu0.c.b16.cont [7/8] %v1120, 128
  %1138 = vxpose.xlu0.c.b16.end [8/8] %v1122, 128
  %v1139 = vpop.trf.xlu0
  %v1140 = vpop.trf.xlu0
  %v1141 = vpop.trf.xlu0
  %v1142 = vpop.trf.xlu0
  %v1143 = vpop.trf.xlu0
  %v1144 = vpop.trf.xlu0
  %v1145 = vpop.trf.xlu0
  %v1146 = vpop.trf.xlu0
  %1147 = vrot.lane.b32.xlu0 %v599, 124
  %v1148 = vpop.permute.xlu0 %1147
  %1149 = vrot.lane.b32.xlu0 %v600, 124
  %v1150 = vpop.permute.xlu0 %1149
  %1151 = vrot.lane.b32.xlu0 %v601, 124
  %v1152 = vpop.permute.xlu0 %1151
  %1153 = vrot.lane.b32.xlu0 %v602, 124
  %v1154 = vpop.permute.xlu0 %1153
  %1155 = vrot.lane.b32.xlu0 %v603, 124
  %v1156 = vpop.permute.xlu0 %1155
  %1157 = vrot.lane.b32.xlu0 %v604, 124
  %v1158 = vpop.permute.xlu0 %1157
  %1159 = vrot.lane.b32.xlu0 %v605, 124
  %v1160 = vpop.permute.xlu0 %1159
  %1161 = vrot.lane.b32.xlu0 %v606, 124
  %v1162 = vpop.permute.xlu0 %1161
  %1171 = vmatprep.subr.bf16.mxu0 0
  %1172 = vmatpush1.bf16.msra.mxu0 %v1162
  %1173 = vmatprep.subr.bf16.mxu0 0
  %1174 = vmatpush1.bf16.msra.mxu0 %v1160
  %1175 = vmatprep.subr.bf16.mxu0 0
  %1176 = vmatpush1.bf16.msra.mxu0 %v1158
  %1177 = vmatprep.subr.bf16.mxu0 0
  %1178 = vmatpush1.bf16.msra.mxu0 %v1156
  %1179 = vmatprep.subr.bf16.mxu0 0
  %1180 = vmatpush1.bf16.msra.mxu0 %v1154
  %1181 = vmatprep.subr.bf16.mxu0 0
  %1182 = vmatpush1.bf16.msra.mxu0 %v1152
  %1183 = vmatprep.subr.bf16.mxu0 0
  %1184 = vmatpush1.bf16.msra.mxu0 %v1150
  %1185 = vmatprep.subr.bf16.mxu0 0
  %1186 = vmatpush1.bf16.msra.mxu0 %v1148
  %1187 = vmatprep.subr.bf16.mxu0 0
  %1188 = vmatpush2.bf16.msra.mxu0 0
  %1189 = vmatprep.subr.bf16.mxu0 0
  %1190 = vmatpush2.bf16.msra.mxu0 0
  %1191 = vmatprep.subr.bf16.mxu0 0
  %1192 = vmatpush2.bf16.msra.mxu0 0
  %1193 = vmatprep.subr.bf16.mxu0 0
  %1194 = vmatpush2.bf16.msra.mxu0 0
  %1195 = vmatprep.subr.bf16.mxu0 0
  %1196 = vmatpush2.bf16.msra.mxu0 0
  %1197 = vmatprep.subr.bf16.mxu0 0
  %1198 = vmatpush2.bf16.msra.mxu0 0
  %1199 = vmatprep.subr.bf16.mxu0 0
  %1200 = vmatpush2.bf16.msra.mxu0 0
  %1201 = vmatprep.subr.bf16.mxu0 0
  %1202 = vmatpush2.bf16.msra.mxu0 0
  %1203 = vmatprep.mubr.bf16.mxu0 0
  %1204 = vmatmul.mubr.bf16.gmra.mxu0 %v1139
  %v1205 = vpop.f32.mrf.mxu0
  %v1206 = vadd.f32 0.0, %v1205
  %v1207 = vpop.f32.mrf.mxu0
  %v1208 = vpop.f32.mrf.mxu0
  %v1209 = vpop.f32.mrf.mxu0
  %1210 = vdwg.mxu0
  %v1211 = vmax.f32 %v1206, 0.0
  %v1212 = vsel %vm656, %v921, 0.0
  %v1213 = vrot.slane %v1212, 4
  %v1214 = vadd.f32 %v1212, %v1213
  %v1215 = vrot.slane %v1214, 2
  %v1216 = vadd.f32 %v1214, %v1215
  %v1217 = vrot.slane %v1216, 1
  %v1218 = vadd.f32 %v1216, %v1217
  %v1219 = vsel %vm656, %v1066, 0.0
  %v1220 = vrot.slane %v1219, 4
  %v1221 = vadd.f32 %v1219, %v1220
  %v1222 = vrot.slane %v1221, 2
  %v1223 = vadd.f32 %v1221, %v1222
  %v1224 = vrot.slane %v1223, 1
  %v1225 = vadd.f32 %v1223, %v1224
  %v1226 = vsel %vm656, %v1211, 0.0
  %v1227 = vrot.slane %v1226, 4
  %v1228 = vadd.f32 %v1226, %v1227
  %v1229 = vrot.slane %v1228, 2
  %v1230 = vadd.f32 %v1228, %v1229
  %v1231 = vrot.slane %v1230, 1
  %v1232 = vadd.f32 %v1230, %v1231
  %v1233 = vlaneseq
  %v1234 = vshrl.u32 %v1233, 7
  %v1235 = vsub.s32 0, %v1234
  %v1236 = vrot.slane %v714, %v1235
  %v1237 = vmul.f32 %v1218, %v1236
  %v1238 = vmul.f32 %v1225, %v1236
  %v1239 = vmul.f32 %v1232, %v1236
  %v1240 = vadd.f32 %v1237, 0.0
  %v1241 = vadd.f32 %v1238, 0.0
  %v1242 = vadd.f32 %v1239, 0.0
  %v1249 = vrot.slane %v686, 7
  %vm1250 = vcmask 1041409
  %v1251 = vsel %vm1250, %v1249, %v685
  %v1252 = vrot.slane %v687, 6
  %vm1253 = vcmask 1042434
  %v1254 = vsel %vm1253, %v1252, %v1251
  %v1255 = vrot.slane %v1241, 7
  %v1256 = vsel %vm1250, %v1255, %v1240
  %v1257 = vrot.slane %v1242, 6
  %v1258 = vsel %vm1253, %v1257, %v1256
  %vm1261 = vcmask 26624
  %1262 = vst.msk [vmem:[%s2] sm:$0x7] %vm1261, %v1254
  %1263 = vst.msk [vmem:[%s2 + $0x4] sm:$0x7] %vm1261, %v1258
  // Predicated region
  $region10: #{forward.12} parent=0 // pred_check
    _
  $region11: #{forward.12} parent=0 // pred_check_branch
    %1265 = sbr.rel (0) target = $region13
  $region12: #{forward.12} parent=0 // pred_region
    _
  $region13: #{forward.12} parent=0 // pred_fallthru
    _
  // Predicated region
  $region14: #{forward.12} parent=0 // pred_check
    _
  $region15: #{forward.12} parent=0 // pred_check_branch
    %1267 = sbr.rel (0) target = $region17
  $region16: #{forward.12} parent=0 // pred_region
    _
  $region17: #{forward.12} parent=0 // pred_fallthru
    _

// kernel: forward.13
$region0: #{forward.13}
  #allocation0 [shape = 'u32[]', space=smem, size = 0x4, offset = 0x4, fixed_abs, tag = 'smem constant byte address 0x4 - core index']
  #allocation1 [shape = 'u32[144,128]{1,0:T(1,128)}', space=vmem, size = 0x12000, scoped, tag = 'internal scratch']
  %s0 = inlined_call_operand.vmem [shape: bf16[14,128], index: 0, kind: input, shape index: {}]
  %s1 = inlined_call_operand.vmem [shape: bf16[33,14], index: 1, kind: input, shape index: {}]
  %s2 = inlined_call_operand.vmem [shape: bf16[2,33], index: 2, kind: input, shape index: {}]
  %s3 = inlined_call_operand.vmem [shape: f32[2,128], index: 3, kind: output, shape index: {}]
  %s4 = sld [smem:[#allocation0]]
  $region22: #{forward.13} parent=0
    _
  %s6 = ssub.s32 1, %s4
  %s7 = scalar_select 0, %s6, %s4
  // Predicated region
  $region2: #{forward.13} parent=0 // pred_check
    _
  $region3: #{forward.13} parent=0 // pred_check_branch
    %9 = sbr.rel (0) target = $region5
  $region4: #{forward.13} parent=0 // pred_region
    _
  $region5: #{forward.13} parent=0 // pred_fallthru
    _
  // Predicated region
  $region6: #{forward.13} parent=0 // pred_check
    _
  $region7: #{forward.13} parent=0 // pred_check_branch
    %11 = sbr.rel (0) target = $region9
  $region8: #{forward.13} parent=0 // pred_region
    _
  $region9: #{forward.13} parent=0 // pred_fallthru
    _
  // Predicated region
  $region10: #{forward.13} parent=0 // pred_check
    _
  $region11: #{forward.13} parent=0 // pred_check_branch
    %13 = sbr.rel (0) target = $region13
  $region12: #{forward.13} parent=0 // pred_region
    _
  $region13: #{forward.13} parent=0 // pred_fallthru
    _
  %v15 = vld [vmem:[%s1] sm:$0xf]
  %v16 = vld [vmem:[%s1 + $0x4] sm:$0xf]
  %v17 = vld [vmem:[%s1 + $0x8] sm:$0xf]
  %v18 = vld [vmem:[%s1 + $0xc] sm:$0xf]
  %v19 = vld [vmem:[%s1 + $0x10] sm:$0x1]
  %v20 = vld [vmem:[%s0] sm:$0xf]
  %v21 = vld [vmem:[%s0 + $0x4] sm:$0x7]
  %v27 = vunpack.c.l.b16 %v15
  %v28 = vunpack.c.l.b16 %v16
  %v29 = vunpack.c.l.b16 %v17
  %v30 = vunpack.c.l.b16 %v18
  %v31 = vunpack.c.l.b16 %v19
  %v32 = vpack.c.b16 %v28, %v27
  %v33 = vpack.c.b16 %v30, %v29
  %v34 = vpack.c.b16 %v31, %v31
  %v37 = vunpack.c.l.b16 %v20
  %v38 = vunpack.c.l.b16 %v21
  %v39 = vpack.c.b16 %v38, %v37
  %vm40 = vcmask 113664
  %v42 = vsel %vm40, %v32, 0
  %v45 = vsel %vm40, %v33, 0
  %v48 = vsel %vm40, %v34, 0
  %vm50 = vcmask 1046528
  %v52 = vsel %vm50, %v39, 0
  %54 = vmatprep.subr.bf16.mxu0 0
  %55 = vmatpush1.bf16.msra.mxu0 0
  %56 = vmatprep.subr.bf16.mxu0 0
  %57 = vmatpush1.bf16.msra.mxu0 0
  %58 = vmatprep.subr.bf16.mxu0 0
  %59 = vmatpush1.bf16.msra.mxu0 0
  %60 = vmatprep.subr.bf16.mxu0 0
  %61 = vmatpush1.bf16.msra.mxu0 0
  %62 = vmatprep.subr.bf16.mxu0 0
  %63 = vmatpush1.bf16.msra.mxu0 0
  %64 = vmatprep.subr.bf16.mxu0 0
  %65 = vmatpush1.bf16.msra.mxu0 0
  %66 = vmatprep.subr.bf16.mxu0 0
  %67 = vmatpush1.bf16.msra.mxu0 0
  %68 = vmatprep.subr.bf16.mxu0 0
  %69 = vmatpush1.bf16.msra.mxu0 %v52
  %70 = vmatprep.subr.bf16.mxu0 0
  %71 = vmatpush2.bf16.msra.mxu0 0
  %72 = vmatprep.subr.bf16.mxu0 0
  %73 = vmatpush2.bf16.msra.mxu0 0
  %74 = vmatprep.subr.bf16.mxu0 0
  %75 = vmatpush2.bf16.msra.mxu0 0
  %76 = vmatprep.subr.bf16.mxu0 0
  %77 = vmatpush2.bf16.msra.mxu0 0
  %78 = vmatprep.subr.bf16.mxu0 0
  %79 = vmatpush2.bf16.msra.mxu0 0
  %80 = vmatprep.subr.bf16.mxu0 0
  %81 = vmatpush2.bf16.msra.mxu0 0
  %82 = vmatprep.subr.bf16.mxu0 0
  %83 = vmatpush2.bf16.msra.mxu0 0
  %84 = vmatprep.subr.bf16.mxu0 0
  %85 = vmatpush2.bf16.msra.mxu0 0
  %86 = vmatprep.mubr.bf16.mxu0 0
  %87 = vmatmul.mubr.bf16.gmra.mxu0 %v42
  %v88 = vpop.f32.mrf.mxu0
  %v89 = vadd.f32 0.0, %v88
  %v90 = vpop.f32.mrf.mxu0
  %v91 = vpop.f32.mrf.mxu0
  %v92 = vadd.f32 0.0, %v91
  %v93 = vpop.f32.mrf.mxu0
  %94 = vmatprep.mubr.bf16.mxu0 0
  %95 = vmatmul.mubr.bf16.gmra.mxu0 %v45
  %v96 = vpop.f32.mrf.mxu0
  %v97 = vadd.f32 0.0, %v96
  %v98 = vpop.f32.mrf.mxu0
  %v99 = vpop.f32.mrf.mxu0
  %v100 = vadd.f32 0.0, %v99
  %v101 = vpop.f32.mrf.mxu0
  %102 = vmatprep.mubr.bf16.mxu0 0
  %103 = vmatmul.mubr.bf16.gmra.mxu0 %v48
  %v104 = vpop.f32.mrf.mxu0
  %v105 = vadd.f32 0.0, %v104
  %v106 = vpop.f32.mrf.mxu0
  %v107 = vpop.f32.mrf.mxu0
  %v108 = vpop.f32.mrf.mxu0
  %109 = vdwg.mxu0
  %v110 = vmax.f32 %v89, 0.0
  %v111 = vmax.f32 %v92, 0.0
  %v112 = vmax.f32 %v97, 0.0
  %v113 = vmax.f32 %v100, 0.0
  %v114 = vmax.f32 %v105, 0.0
  %v115 = vld [vmem:[%s2] sm:$0x1]
  %v116 = vpack.c.bf16 %v111, %v110
  %v117 = vpack.c.bf16 %v113, %v112
  %v118 = vpack.c.bf16 %v114, %v114
  %vm119 = vcmask 269312
  %v121 = vsel %vm119, %v115, 0
  %vm123 = vcmask 1040384
  %v124 = vsel 0, 4294967295, 65535
  %v125 = vsel %vm123, %v124, 0
  %v127 = vand.u32 %v118, %v125
  %129 = vmatprep.subr.bf16.mxu0 0
  %130 = vmatpush1.bf16.msra.mxu0 0
  %131 = vmatprep.subr.bf16.mxu0 0
  %132 = vmatpush1.bf16.msra.mxu0 0
  %133 = vmatprep.subr.bf16.mxu0 0
  %134 = vmatpush1.bf16.msra.mxu0 0
  %135 = vmatprep.subr.bf16.mxu0 0
  %136 = vmatpush1.bf16.msra.mxu0 0
  %137 = vmatprep.subr.bf16.mxu0 0
  %138 = vmatpush1.bf16.msra.mxu0 0
  %139 = vmatprep.subr.bf16.mxu0 0
  %140 = vmatpush1.bf16.msra.mxu0 %v127
  %141 = vmatprep.subr.bf16.mxu0 0
  %142 = vmatpush1.bf16.msra.mxu0 %v117
  %143 = vmatprep.subr.bf16.mxu0 0
  %144 = vmatpush1.bf16.msra.mxu0 %v116
  %145 = vmatprep.subr.bf16.mxu0 0
  %146 = vmatpush2.bf16.msra.mxu0 0
  %147 = vmatprep.subr.bf16.mxu0 0
  %148 = vmatpush2.bf16.msra.mxu0 0
  %149 = vmatprep.subr.bf16.mxu0 0
  %150 = vmatpush2.bf16.msra.mxu0 0
  %151 = vmatprep.subr.bf16.mxu0 0
  %152 = vmatpush2.bf16.msra.mxu0 0
  %153 = vmatprep.subr.bf16.mxu0 0
  %154 = vmatpush2.bf16.msra.mxu0 0
  %155 = vmatprep.subr.bf16.mxu0 0
  %156 = vmatpush2.bf16.msra.mxu0 0
  %157 = vmatprep.subr.bf16.mxu0 0
  %158 = vmatpush2.bf16.msra.mxu0 0
  %159 = vmatprep.subr.bf16.mxu0 0
  %160 = vmatpush2.bf16.msra.mxu0 0
  %161 = vmatprep.mubr.bf16.mxu0 0
  %162 = vmatmul.mubr.bf16.gmra.mxu0 %v121
  %v163 = vpop.f32.mrf.mxu0
  %v164 = vadd.f32 0.0, %v163
  %v165 = vpop.f32.mrf.mxu0
  %v166 = vpop.f32.mrf.mxu0
  %v167 = vpop.f32.mrf.mxu0
  %168 = vdwg.mxu0
  %169 = vst [vmem:[%s3] sm:$0x3] %v164
  // Predicated region
  $region14: #{forward.13} parent=0 // pred_check
    _
  $region15: #{forward.13} parent=0 // pred_check_branch
    %171 = sbr.rel (0) target = $region17
  $region16: #{forward.13} parent=0 // pred_region
    _
  $region17: #{forward.13} parent=0 // pred_fallthru
    _
  // Predicated region
  $region18: #{forward.13} parent=0 // pred_check
    _
  $region19: #{forward.13} parent=0 // pred_check_branch
    %173 = sbr.rel (0) target = $region21
  $region20: #{forward.13} parent=0 // pred_region
    _
  $region21: #{forward.13} parent=0 // pred_fallthru
    _

</llo_original>
